<compile_context>
chip_gen: v5e
topology: v5e:2x2
jax: 0.10.0
libtpu: 0.0.40
codegen_flags: <defaults>
</compile_context>

<pallas_src>
import functools

import jax
import jax.numpy as jnp
from jax import lax
from jax.experimental import pallas as pl
from jax.experimental.pallas import tpu as pltpu


def _round_up(x, m):
    return (x + m - 1) // m * m


def _resnet_block_kernel(x_ref, w1_ref, w2_ref, o_ref, y_ref, s2_ref, *,
                         H, W, Wpp, Cp, TM, nt):
    """One batch image per grid step.

    x_ref : (Rs, Cp)   f32   reflect-padded input strip (row pitch Wpp)
    w*_ref: (3, Cp, 3Cp) bf16 weights; kh indexed, kw folded into the out dim
    o_ref : (Mtot, Cp)       output (junk cols/rows cropped on the XLA side)
    y_ref : (Mtot, Cp) f32   scratch: raw conv outputs (reused by both convs)
    s2_ref: (Rs, Cp)   f32   scratch: reflect-padded ReLU(IN(conv1)) strip
    """
    Mo = H * Wpp                       # valid conv-output flat rows
    inv_hw = 1.0 / float(H * W)
    eps = 1e-5
    loop_kw = dict(unroll=True) if nt <= 4 else {}

    def conv_pass(w_ref, load_lhs):
        # 3x3 conv: kw folded into the matmul output dim (N = 3*Cp), kh as
        # three matmuls with sublane-aligned LHS slices.  Writes raw outputs
        # to y_ref and accumulates masked InstanceNorm statistics.
        def body(m, carry):
            s, q = carry
            r0 = m * TM
            acc = jnp.zeros((TM, Cp), jnp.float32)
            for kh in range(3):
                lhs = load_lhs(pl.multiple_of(r0 + kh * Wpp, 8))   # (TM+8, Cp)
                p = jnp.dot(lhs, w_ref[kh],
                            preferred_element_type=jnp.float32)    # (TM+8, 3Cp)
                # kw fold-back: acc[i] += p[i+kw, kw*Cp:(kw+1)*Cp]
                acc = (acc + p[0:TM, 0:Cp]
                       + p[1:TM + 1, Cp:2 * Cp]
                       + p[2:TM + 2, 2 * Cp:3 * Cp])
            y_ref[pl.ds(pl.multiple_of(r0, 8), TM)] = acc
            r = r0 + lax.broadcasted_iota(jnp.int32, (TM, 1), 0)
            valid = (lax.rem(r, Wpp) < W) & (r < Mo)
            am = jnp.where(valid, acc, 0.0)
            return (s + jnp.sum(am, axis=0, keepdims=True),
                    q + jnp.sum(am * am, axis=0, keepdims=True))

        z0 = jnp.zeros((1, Cp), jnp.float32)
        return lax.fori_loop(0, nt, body, (z0, z0), **loop_kw)

    def stats(s, q):
        # Single-pass masked mean / rsqrt(var).  NOTE: E[x^2]-E[x]^2 can
        # cancel if conv outputs ever have a huge mean; clamped at 0.
        mean = s * inv_hw
        var = jnp.maximum(q * inv_hw - mean * mean, 0.0)
        return mean, lax.rsqrt(var + eps)

    # ------------------------- conv1 + statistics -------------------------
    s1, q1 = conv_pass(
        w1_ref, lambda st: x_ref[pl.ds(st, TM + 8)].astype(jnp.bfloat16))
    mean1, rstd1 = stats(s1, q1)

    # ---- IN -> ReLU -> rebuild reflect-padded strip2 (per tile, scratch) ----
    @pl.loop(0, nt)
    def _(m):
        r0 = m * TM
        yn = jnp.maximum(
            (y_ref[pl.ds(pl.multiple_of(r0, 8), TM)] - mean1) * rstd1, 0.0)
        # Column reflection inside each image row (rows never straddle a tile
        # because TM % Wpp == 0): pw==0 -> col 1, pw==W+1 -> col W-2, else pw-1.
        yn_m1 = jnp.concatenate([yn[:1], yn[:-1]], axis=0)
        yn_p1 = jnp.concatenate([yn[1:], yn[-1:]], axis=0)
        yn_m3 = jnp.concatenate([yn[:3], yn[:-3]], axis=0)
        pw = lax.rem(r0 + lax.broadcasted_iota(jnp.int32, (TM, 1), 0), Wpp)
        z = jnp.where(pw == 0, yn_p1, jnp.where(pw == W + 1, yn_m3, yn_m1))
        s2_ref[pl.ds(pl.multiple_of(Wpp + r0, 8), TM)] = z

    # Top / bottom reflected pad rows (after the tile loop, before conv2).
    s2_ref[pl.ds(0, Wpp)] = s2_ref[pl.ds(2 * Wpp, Wpp)]
    s2_ref[pl.ds((H + 1) * Wpp, Wpp)] = s2_ref[pl.ds((H - 1) * Wpp, Wpp)]

    # ------------------------- conv2 + statistics -------------------------
    s2s, q2s = conv_pass(
        w2_ref, lambda st: s2_ref[pl.ds(st, TM + 8)].astype(jnp.bfloat16))
    mean2, rstd2 = stats(s2s, q2s)

    # ------------------- IN -> + residual -> output store ------------------
    @pl.loop(0, nt)
    def _(m):
        r0 = m * TM
        yn2 = (y_ref[pl.ds(pl.multiple_of(r0, 8), TM)] - mean2) * rstd2
        # Residual lives at strip row r + Wpp + 1; the +1 keeps this one slice
        # sublane-unaligned, but it is per-tile and VMEM-local (cheap).
        xres = x_ref[pl.ds(r0 + Wpp + 1, TM)]
        o_ref[pl.ds(pl.multiple_of(r0, 8), TM)] = (xres + yn2).astype(o_ref.dtype)


def _vmem_limit_bytes():
    # Generation-aware budget: ~85% of physical VMEM (~108 MiB on v5e/v6e's
    # 128 MiB, ~54 MiB on v7x's 64 MiB); conservative fallback otherwise.
    try:
        cap = int(pltpu.get_tpu_info().vmem_capacity_bytes)
    except Exception:
        cap = 64 * 1024 * 1024
    return max(32 * 1024 * 1024, int(cap * 0.85))


def resnet_block(x_nchw, w1, b1, w2, b2, *, tile_rows=512):
    """x: (N, C, H, W); w*: (C, C, 3, 3) OIHW; b*: (C,).

    Conv biases are accepted for API parity but unused: they are cancelled
    exactly by the InstanceNorm2d(affine=False) that follows each conv.
    """
    del b1, b2
    N, C, H, W = x_nchw.shape
    assert H >= 2 and W >= 3, "reflection padding needs H >= 2, W >= 3"

    Wpp = _round_up(W + 2, 8)                 # sublane-aligned padded row pitch
    Cp = _round_up(max(C, 128), 128)          # lane-dense channel axis
    TH = max(1, min(H, tile_rows // Wpp))     # image rows per conv tile
    TM = TH * Wpp                             # flat rows per tile (mult. of 8)
    nt = -(-H // TH)                          # tiles per image
    Mo = H * Wpp                              # valid conv-output rows
    Mtot = nt * TM
    Rs = Mtot + 2 * Wpp + 8                   # strip rows incl. slack

    # --- stage inputs (XLA side): reflect pad, pad pitch/channels, flatten ---
    x = jnp.transpose(x_nchw, (0, 2, 3, 1))                            # NHWC
    xp = jnp.pad(x, ((0, 0), (1, 1), (1, 1), (0, 0)), mode="reflect")
    xp = jnp.pad(xp, ((0, 0), (0, 0), (0, Wpp - (W + 2)), (0, Cp - C)))
    x_strip = xp.reshape(N, (H + 2) * Wpp, Cp)
    x_strip = jnp.pad(x_strip, ((0, 0), (0, Rs - (H + 2) * Wpp), (0, 0)))

    def prep_w(w):
        # wk[kh, ci, kw*Cp + co] = w[co, ci, kh, kw]   (bf16, kw -> out dim)
        wt = jnp.transpose(w, (2, 1, 3, 0))                            # kh,ci,kw,co
        wt = jnp.pad(wt, ((0, 0), (0, Cp - C), (0, 0), (0, Cp - C)))
        return wt.reshape(3, Cp, 3 * Cp).astype(jnp.bfloat16)

    w1k, w2k = prep_w(w1), prep_w(w2)

    kernel = functools.partial(_resnet_block_kernel,
                               H=H, W=W, Wpp=Wpp, Cp=Cp, TM=TM, nt=nt)

    flops = int(N * nt * 2 * 3 * 2 * (TM + 8) * Cp * 3 * Cp)
    bytes_accessed = int(4 * N * Rs * Cp + 4 * N * Mtot * Cp
                         + 2 * 2 * 3 * Cp * 3 * Cp)

    out = pl.pallas_call(
        kernel,
        out_shape=jax.ShapeDtypeStruct((N, Mtot, Cp), x_nchw.dtype),
        grid_spec=pltpu.PrefetchScalarGridSpec(
            num_scalar_prefetch=0,
            grid=(N,),
            in_specs=[
                pl.BlockSpec((None, Rs, Cp), lambda b: (b, 0, 0)),
                # Constant index_map -> fetched once and revisited across the
                # grid; pipeline_mode=pl.Buffered(1) would also reclaim the
                # second (unused) weight buffer if VMEM ever gets tight.
                pl.BlockSpec((3, Cp, 3 * Cp), lambda b: (0, 0, 0)),
                pl.BlockSpec((3, Cp, 3 * Cp), lambda b: (0, 0, 0)),
            ],
            out_specs=pl.BlockSpec((None, Mtot, Cp), lambda b: (b, 0, 0)),
            scratch_shapes=[
                pltpu.VMEM((Mtot, Cp), jnp.float32),   # raw conv outputs
                pltpu.VMEM((Rs, Cp), jnp.float32),     # reflect-padded strip2
            ]),
        compiler_params=pltpu.CompilerParams(
            dimension_semantics=("parallel",),
            vmem_limit_bytes=_vmem_limit_bytes()),
        cost_estimate=pl.CostEstimate(
            flops=flops, transcendentals=2 * N * Cp,
            bytes_accessed=bytes_accessed),
    )(x_strip, w1k, w2k)

    # --- unstage (XLA side): crop junk rows/cols/channels, back to NCHW ---
    out = out[:, :Mo].reshape(N, H, Wpp, Cp)[:, :, :W, :C]
    return jnp.transpose(out, (0, 3, 1, 2))


def _reference(x, w1, b1, w2, b2, *, cast_bf16=False):
    """Pure-JAX reference mirroring the PyTorch module (NCHW).

    cast_bf16=True rounds the matmul operands to bf16 exactly like the kernel
    does (f32 accumulation), giving a tight numerical comparison.
    """
    def rnd(t):
        return t.astype(jnp.bfloat16).astype(jnp.float32) if cast_bf16 else t

    def conv(t, w, b):
        tp = jnp.pad(t, ((0, 0), (0, 0), (1, 1), (1, 1)), mode="reflect")
        y = lax.conv_general_dilated(
            rnd(tp), rnd(w), window_strides=(1, 1), padding="VALID",
            dimension_numbers=("NCHW", "OIHW", "NCHW"),
            precision=lax.Precision.HIGHEST)
        return y + b[None, :, None, None]

    def inorm(t):
        m = jnp.mean(t, axis=(2, 3), keepdims=True)
        v = jnp.mean((t - m) ** 2, axis=(2, 3), keepdims=True)
        return (t - m) * lax.rsqrt(v + 1e-5)

    y = jnp.maximum(inorm(conv(x, w1, b1)), 0.0)
    y = inorm(conv(y, w2, b2))
    return x + y


def _make_inputs(key, N, C, H, W):
    kx, kw1, kb1, kw2, kb2 = jax.random.split(key, 5)
    bound = 1.0 / (C * 9) ** 0.5
    x = jax.random.normal(kx, (N, C, H, W), dtype=jnp.float32)
    w1 = jax.random.uniform(kw1, (C, C, 3, 3), jnp.float32, -bound, bound)
    b1 = jax.random.uniform(kb1, (C,), jnp.float32, -bound, bound)
    w2 = jax.random.uniform(kw2, (C, C, 3, 3), jnp.float32, -bound, bound)
    b2 = jax.random.uniform(kb2, (C,), jnp.float32, -bound, bound)
    return x, w1, b1, w2, b2


def _check(x, w1, b1, w2, b2, tile_rows, label):
    out = jax.block_until_ready(
        resnet_block(x, w1, b1, w2, b2, tile_rows=tile_rows))
    assert out.shape == x.shape, f"{label}: bad output shape {out.shape}"
    ref_m = _reference(x, w1, b1, w2, b2, cast_bf16=True)   # bf16-matched
    ref_f = _reference(x, w1, b1, w2, b2, cast_bf16=False)  # full fp32
    assert jnp.allclose(out, ref_m, atol=5e-3, rtol=5e-3), \
        f"{label}: mismatch vs bf16-matched reference"
    assert jnp.allclose(out, ref_f, atol=8e-2, rtol=8e-2), \
        f"{label}: mismatch vs fp32 reference"


if __name__ == "__main__":
    key = jax.random.PRNGKey(0)
    k1, k2 = jax.random.split(key)

    # Main config: batch=2, channels=4, 16x16 spatial (single row-tile/image).
    args = _make_inputs(k1, 2, 4, 16, 16)
    _check(*args, tile_rows=512, label="n2c4s16")
    # Same data with small row tiles: exercises multi-tile path + partial tail.
    _check(*args, tile_rows=72, label="n2c4s16-tiled")
    # Larger channel count: exercises the Cp=256 multi-vreg lane path.
    args2 = _make_inputs(k2, 1, 160, 12, 12)
    _check(*args2, tile_rows=512, label="n1c160s12")

    print("KERNEL_OK")
</pallas_src>

<mosaic_0001>
module attributes {stable_mosaic.version = 11 : i64} {
  func.func @_resnet_block_kernel(%arg0: i32, %arg1: memref<1x440x128xf32, #tpu.memory_space<vmem>>, %arg2: memref<3x128x384xbf16, #tpu.memory_space<vmem>>, %arg3: memref<3x128x384xbf16, #tpu.memory_space<vmem>>, %arg4: memref<1x384x128xf32, #tpu.memory_space<vmem>>, %arg5: memref<384x128xf32, #tpu.memory_space<vmem>>, %arg6: memref<440x128xf32, #tpu.memory_space<vmem>>) attributes {dimension_semantics = [#tpu.dimension_semantics<parallel>], iteration_bounds = array<i64: 2>, scalar_prefetch = 0 : i64, scratch_operands = 2 : i64, tpu.core_type = #tpu.core_type<tc>, window_params = [{transform_indices = @transform_0, window_bounds = array<i64: 1, 440, 128>}, {pipeline_mode = #tpu.pipeline_mode<synchronous>, transform_indices = @transform_1, window_bounds = array<i64: 3, 128, 384>}, {pipeline_mode = #tpu.pipeline_mode<synchronous>, transform_indices = @transform_2, window_bounds = array<i64: 3, 128, 384>}, {transform_indices = @transform_3, window_bounds = array<i64: 1, 384, 128>}]} {
    %cst = arith.constant 0.000000e+00 : f32
    %0 = vector.broadcast %cst : f32 to vector<1x128xf32>
    %c0_i32 = arith.constant 0 : i32
    %c384_i32 = arith.constant 384 : i32
    %1 = arith.muli %c0_i32, %c384_i32 : i32
    %cst_0 = arith.constant 0.000000e+00 : f32
    %2 = vector.broadcast %cst_0 : f32 to vector<384x128xf32>
    %c0_i32_1 = arith.constant 0 : i32
    %3 = arith.addi %1, %c0_i32_1 : i32
    %4 = tpu.assume_multiple %3, 8 : i32
    %c0 = arith.constant 0 : index
    %5 = arith.index_cast %4 : i32 to index
    %c0_2 = arith.constant 0 : index
    %6 = vector.load %arg1[%c0, %5, %c0_2] : memref<1x440x128xf32, #tpu.memory_space<vmem>>, vector<1x392x128xf32>
    %7 = vector.shape_cast %6 : vector<1x392x128xf32> to vector<392x128xf32>
    %8 = arith.truncf %7 : vector<392x128xf32> to vector<392x128xbf16>
    %c0_3 = arith.constant 0 : index
    %c0_4 = arith.constant 0 : index
    %c0_5 = arith.constant 0 : index
    %9 = vector.load %arg2[%c0_3, %c0_4, %c0_5] : memref<3x128x384xbf16, #tpu.memory_space<vmem>>, vector<1x128x384xbf16>
    %10 = vector.shape_cast %9 : vector<1x128x384xbf16> to vector<128x384xbf16>
    %cst_6 = arith.constant dense<0.000000e+00> : vector<392x384xf32>
    %11 = tpu.matmul %8, %10, %cst_6 {dimension_numbers = #tpu.dot_dimension_numbers<[1], [0], [0], [1], [0, 0, 1, 1], [], []>} : vector<392x128xbf16>, vector<128x384xbf16>, vector<392x384xf32> -> vector<392x384xf32>
    %12 = vector.extract_strided_slice %11 {offsets = [0, 0], sizes = [384, 128], strides = [1, 1]} : vector<392x384xf32> to vector<384x128xf32>
    %13 = arith.addf %2, %12 : vector<384x128xf32>
    %14 = vector.extract_strided_slice %11 {offsets = [1, 128], sizes = [384, 128], strides = [1, 1]} : vector<392x384xf32> to vector<384x128xf32>
    %15 = arith.addf %13, %14 : vector<384x128xf32>
    %16 = vector.extract_strided_slice %11 {offsets = [2, 256], sizes = [384, 128], strides = [1, 1]} : vector<392x384xf32> to vector<384x128xf32>
    %17 = arith.addf %15, %16 : vector<384x128xf32>
    %c24_i32 = arith.constant 24 : i32
    %18 = arith.addi %1, %c24_i32 : i32
    %19 = tpu.assume_multiple %18, 8 : i32
    %c0_7 = arith.constant 0 : index
    %20 = arith.index_cast %19 : i32 to index
    %c0_8 = arith.constant 0 : index
    %21 = vector.load %arg1[%c0_7, %20, %c0_8] : memref<1x440x128xf32, #tpu.memory_space<vmem>>, vector<1x392x128xf32>
    %22 = vector.shape_cast %21 : vector<1x392x128xf32> to vector<392x128xf32>
    %23 = arith.truncf %22 : vector<392x128xf32> to vector<392x128xbf16>
    %c1 = arith.constant 1 : index
    %c0_9 = arith.constant 0 : index
    %c0_10 = arith.constant 0 : index
    %24 = vector.load %arg2[%c1, %c0_9, %c0_10] : memref<3x128x384xbf16, #tpu.memory_space<vmem>>, vector<1x128x384xbf16>
    %25 = vector.shape_cast %24 : vector<1x128x384xbf16> to vector<128x384xbf16>
    %cst_11 = arith.constant dense<0.000000e+00> : vector<392x384xf32>
    %26 = tpu.matmul %23, %25, %cst_11 {dimension_numbers = #tpu.dot_dimension_numbers<[1], [0], [0], [1], [0, 0, 1, 1], [], []>} : vector<392x128xbf16>, vector<128x384xbf16>, vector<392x384xf32> -> vector<392x384xf32>
    %27 = vector.extract_strided_slice %26 {offsets = [0, 0], sizes = [384, 128], strides = [1, 1]} : vector<392x384xf32> to vector<384x128xf32>
    %28 = arith.addf %17, %27 : vector<384x128xf32>
    %29 = vector.extract_strided_slice %26 {offsets = [1, 128], sizes = [384, 128], strides = [1, 1]} : vector<392x384xf32> to vector<384x128xf32>
    %30 = arith.addf %28, %29 : vector<384x128xf32>
    %31 = vector.extract_strided_slice %26 {offsets = [2, 256], sizes = [384, 128], strides = [1, 1]} : vector<392x384xf32> to vector<384x128xf32>
    %32 = arith.addf %30, %31 : vector<384x128xf32>
    %c48_i32 = arith.constant 48 : i32
    %33 = arith.addi %1, %c48_i32 : i32
    %34 = tpu.assume_multiple %33, 8 : i32
    %c0_12 = arith.constant 0 : index
    %35 = arith.index_cast %34 : i32 to index
    %c0_13 = arith.constant 0 : index
    %36 = vector.load %arg1[%c0_12, %35, %c0_13] : memref<1x440x128xf32, #tpu.memory_space<vmem>>, vector<1x392x128xf32>
    %37 = vector.shape_cast %36 : vector<1x392x128xf32> to vector<392x128xf32>
    %38 = arith.truncf %37 : vector<392x128xf32> to vector<392x128xbf16>
    %c2 = arith.constant 2 : index
    %c0_14 = arith.constant 0 : index
    %c0_15 = arith.constant 0 : index
    %39 = vector.load %arg2[%c2, %c0_14, %c0_15] : memref<3x128x384xbf16, #tpu.memory_space<vmem>>, vector<1x128x384xbf16>
    %40 = vector.shape_cast %39 : vector<1x128x384xbf16> to vector<128x384xbf16>
    %cst_16 = arith.constant dense<0.000000e+00> : vector<392x384xf32>
    %41 = tpu.matmul %38, %40, %cst_16 {dimension_numbers = #tpu.dot_dimension_numbers<[1], [0], [0], [1], [0, 0, 1, 1], [], []>} : vector<392x128xbf16>, vector<128x384xbf16>, vector<392x384xf32> -> vector<392x384xf32>
    %42 = vector.extract_strided_slice %41 {offsets = [0, 0], sizes = [384, 128], strides = [1, 1]} : vector<392x384xf32> to vector<384x128xf32>
    %43 = arith.addf %32, %42 : vector<384x128xf32>
    %44 = vector.extract_strided_slice %41 {offsets = [1, 128], sizes = [384, 128], strides = [1, 1]} : vector<392x384xf32> to vector<384x128xf32>
    %45 = arith.addf %43, %44 : vector<384x128xf32>
    %46 = vector.extract_strided_slice %41 {offsets = [2, 256], sizes = [384, 128], strides = [1, 1]} : vector<392x384xf32> to vector<384x128xf32>
    %47 = arith.addf %45, %46 : vector<384x128xf32>
    %48 = tpu.assume_multiple %1, 8 : i32
    %49 = arith.index_cast %48 : i32 to index
    %c0_17 = arith.constant 0 : index
    %50 = vector.load %arg5[%49, %c0_17] : memref<384x128xf32, #tpu.memory_space<vmem>>, vector<384x128xf32>
    tpu.vector_store %arg5[%49, %c0_17], %47 {strides = array<i32>} : memref<384x128xf32, #tpu.memory_space<vmem>>, vector<384x128xf32>,
    %51 = tpu.iota {dimensions = array<i32: 0>} : vector<384x1xi32>
    %52 = vector.broadcast %1 : i32 to vector<384x1xi32>
    %53 = arith.addi %52, %51 : vector<384x1xi32>
    %c24_i32_18 = arith.constant 24 : i32
    %54 = vector.broadcast %c24_i32_18 : i32 to vector<384x1xi32>
    %55 = arith.remsi %53, %54 : vector<384x1xi32>
    %c16_i32 = arith.constant 16 : i32
    %56 = vector.broadcast %c16_i32 : i32 to vector<384x1xi32>
    %57 = arith.cmpi slt, %55, %56 : vector<384x1xi32>
    %c384_i32_19 = arith.constant 384 : i32
    %58 = vector.broadcast %c384_i32_19 : i32 to vector<384x1xi32>
    %59 = arith.cmpi slt, %53, %58 : vector<384x1xi32>
    %60 = arith.andi %57, %59 : vector<384x1xi1>
    %cst_20 = arith.constant 0.000000e+00 : f32
    %61 = vector.shape_cast %60 : vector<384x1xi1> to vector<384x1xi1>
    %62 = vector.broadcast %61 : vector<384x1xi1> to vector<384x128xi1>
    %63 = vector.broadcast %cst_20 : f32 to vector<384x128xf32>
    %64 = arith.select %62, %47, %63 : vector<384x128xi1>, vector<384x128xf32>
    %cst_21 = arith.constant dense<0.000000e+00> : vector<128xf32>
    %65 = vector.multi_reduction <add>, %64, %cst_21 [0] : vector<384x128xf32> to vector<128xf32>
    %66 = vector.shape_cast %65 : vector<128xf32> to vector<1x128xf32>
    %67 = arith.addf %0, %66 : vector<1x128xf32>
    %68 = arith.mulf %64, %64 : vector<384x128xf32>
    %cst_22 = arith.constant dense<0.000000e+00> : vector<128xf32>
    %69 = vector.multi_reduction <add>, %68, %cst_22 [0] : vector<384x128xf32> to vector<128xf32>
    %70 = vector.shape_cast %69 : vector<128xf32> to vector<1x128xf32>
    %71 = arith.addf %0, %70 : vector<1x128xf32>
    %c1_i32 = arith.constant 1 : i32
    %cst_23 = arith.constant 3.906250e-03 : f32
    %72 = vector.broadcast %cst_23 : f32 to vector<1x128xf32>
    %73 = arith.mulf %67, %72 : vector<1x128xf32>
    %cst_24 = arith.constant 3.906250e-03 : f32
    %74 = vector.broadcast %cst_24 : f32 to vector<1x128xf32>
    %75 = arith.mulf %71, %74 : vector<1x128xf32>
    %76 = arith.mulf %73, %73 : vector<1x128xf32>
    %77 = arith.subf %75, %76 : vector<1x128xf32>
    %cst_25 = arith.constant 0.000000e+00 : f32
    %78 = vector.broadcast %cst_25 : f32 to vector<1x128xf32>
    %79 = arith.maximumf %77, %78 : vector<1x128xf32>
    %cst_26 = arith.constant 9.99999974E-6 : f32
    %80 = vector.broadcast %cst_26 : f32 to vector<1x128xf32>
    %81 = arith.addf %79, %80 : vector<1x128xf32>
    %82 = math.rsqrt %81 : vector<1x128xf32>
    %c0_i32_27 = arith.constant 0 : i32
    %c1_i32_28 = arith.constant 1 : i32
    %83 = arith.muli %c0_i32_27, %c1_i32_28 : i32
    %c0_i32_29 = arith.constant 0 : i32
    %84 = arith.addi %c0_i32_29, %83 : i32
    %c384_i32_30 = arith.constant 384 : i32
    %85 = arith.muli %84, %c384_i32_30 : i32
    %86 = tpu.assume_multiple %85, 8 : i32
    %87 = arith.index_cast %86 : i32 to index
    %c0_31 = arith.constant 0 : index
    %88 = vector.load %arg5[%87, %c0_31] : memref<384x128xf32, #tpu.memory_space<vmem>>, vector<384x128xf32>
    %89 = vector.broadcast %73 : vector<1x128xf32> to vector<384x128xf32>
    %90 = arith.subf %88, %89 : vector<384x128xf32>
    %91 = vector.broadcast %82 : vector<1x128xf32> to vector<384x128xf32>
    %92 = arith.mulf %90, %91 : vector<384x128xf32>
    %cst_32 = arith.constant 0.000000e+00 : f32
    %93 = vector.broadcast %cst_32 : f32 to vector<384x128xf32>
    %94 = arith.maximumf %92, %93 : vector<384x128xf32>
    %95 = vector.extract_strided_slice %94 {offsets = [0, 0], sizes = [1, 128], strides = [1, 1]} : vector<384x128xf32> to vector<1x128xf32>
    %96 = vector.extract_strided_slice %94 {offsets = [0, 0], sizes = [383, 128], strides = [1, 1]} : vector<384x128xf32> to vector<383x128xf32>
    %97 = tpu.concatenate %95, %96 in 0 : vector<1x128xf32>, vector<383x128xf32> -> vector<384x128xf32>
    %98 = vector.extract_strided_slice %94 {offsets = [1, 0], sizes = [383, 128], strides = [1, 1]} : vector<384x128xf32> to vector<383x128xf32>
    %99 = vector.extract_strided_slice %94 {offsets = [383, 0], sizes = [1, 128], strides = [1, 1]} : vector<384x128xf32> to vector<1x128xf32>
    %100 = tpu.concatenate %98, %99 in 0 : vector<383x128xf32>, vector<1x128xf32> -> vector<384x128xf32>
    %101 = vector.extract_strided_slice %94 {offsets = [0, 0], sizes = [3, 128], strides = [1, 1]} : vector<384x128xf32> to vector<3x128xf32>
    %102 = vector.extract_strided_slice %94 {offsets = [0, 0], sizes = [381, 128], strides = [1, 1]} : vector<384x128xf32> to vector<381x128xf32>
    %103 = tpu.concatenate %101, %102 in 0 : vector<3x128xf32>, vector<381x128xf32> -> vector<384x128xf32>
    %104 = tpu.iota {dimensions = array<i32: 0>} : vector<384x1xi32>
    %105 = vector.broadcast %85 : i32 to vector<384x1xi32>
    %106 = arith.addi %105, %104 : vector<384x1xi32>
    %c24_i32_33 = arith.constant 24 : i32
    %107 = vector.broadcast %c24_i32_33 : i32 to vector<384x1xi32>
    %108 = arith.remsi %106, %107 : vector<384x1xi32>
    %c0_i32_34 = arith.constant 0 : i32
    %109 = vector.broadcast %c0_i32_34 : i32 to vector<384x1xi32>
    %110 = arith.cmpi eq, %108, %109 : vector<384x1xi32>
    %c17_i32 = arith.constant 17 : i32
    %111 = vector.broadcast %c17_i32 : i32 to vector<384x1xi32>
    %112 = arith.cmpi eq, %108, %111 : vector<384x1xi32>
    %113 = vector.shape_cast %112 : vector<384x1xi1> to vector<384x1xi1>
    %114 = vector.broadcast %113 : vector<384x1xi1> to vector<384x128xi1>
    %115 = arith.select %114, %103, %97 : vector<384x128xi1>, vector<384x128xf32>
    %116 = vector.shape_cast %110 : vector<384x1xi1> to vector<384x1xi1>
    %117 = vector.broadcast %116 : vector<384x1xi1> to vector<384x128xi1>
    %118 = arith.select %117, %100, %115 : vector<384x128xi1>, vector<384x128xf32>
    %c24_i32_35 = arith.constant 24 : i32
    %119 = arith.addi %c24_i32_35, %85 : i32
    %120 = tpu.assume_multiple %119, 8 : i32
    %121 = arith.index_cast %120 : i32 to index
    %c0_36 = arith.constant 0 : index
    %122 = vector.load %arg6[%121, %c0_36] : memref<440x128xf32, #tpu.memory_space<vmem>>, vector<384x128xf32>
    tpu.vector_store %arg6[%121, %c0_36], %118 {strides = array<i32>} : memref<440x128xf32, #tpu.memory_space<vmem>>, vector<384x128xf32>,
    %c1_i32_37 = arith.constant 1 : i32
    %c48 = arith.constant 48 : index
    %c0_38 = arith.constant 0 : index
    %123 = vector.load %arg6[%c48, %c0_38] : memref<440x128xf32, #tpu.memory_space<vmem>>, vector<24x128xf32>
    %c0_39 = arith.constant 0 : index
    %c0_40 = arith.constant 0 : index
    %124 = vector.load %arg6[%c0_39, %c0_40] : memref<440x128xf32, #tpu.memory_space<vmem>>, vector<24x128xf32>
    tpu.vector_store %arg6[%c0_39, %c0_40], %123 {strides = array<i32>} : memref<440x128xf32, #tpu.memory_space<vmem>>, vector<24x128xf32>,
    %c360 = arith.constant 360 : index
    %c0_41 = arith.constant 0 : index
    %125 = vector.load %arg6[%c360, %c0_41] : memref<440x128xf32, #tpu.memory_space<vmem>>, vector<24x128xf32>
    %c408 = arith.constant 408 : index
    %c0_42 = arith.constant 0 : index
    %126 = vector.load %arg6[%c408, %c0_42] : memref<440x128xf32, #tpu.memory_space<vmem>>, vector<24x128xf32>
    tpu.vector_store %arg6[%c408, %c0_42], %125 {strides = array<i32>} : memref<440x128xf32, #tpu.memory_space<vmem>>, vector<24x128xf32>,
    %cst_43 = arith.constant 0.000000e+00 : f32
    %127 = vector.broadcast %cst_43 : f32 to vector<1x128xf32>
    %c0_i32_44 = arith.constant 0 : i32
    %c384_i32_45 = arith.constant 384 : i32
    %128 = arith.muli %c0_i32_44, %c384_i32_45 : i32
    %cst_46 = arith.constant 0.000000e+00 : f32
    %129 = vector.broadcast %cst_46 : f32 to vector<384x128xf32>
    %c0_i32_47 = arith.constant 0 : i32
    %130 = arith.addi %128, %c0_i32_47 : i32
    %131 = tpu.assume_multiple %130, 8 : i32
    %132 = arith.index_cast %131 : i32 to index
    %c0_48 = arith.constant 0 : index
    %133 = vector.load %arg6[%132, %c0_48] : memref<440x128xf32, #tpu.memory_space<vmem>>, vector<392x128xf32>
    %134 = arith.truncf %133 : vector<392x128xf32> to vector<392x128xbf16>
    %c0_49 = arith.constant 0 : index
    %c0_50 = arith.constant 0 : index
    %c0_51 = arith.constant 0 : index
    %135 = vector.load %arg3[%c0_49, %c0_50, %c0_51] : memref<3x128x384xbf16, #tpu.memory_space<vmem>>, vector<1x128x384xbf16>
    %136 = vector.shape_cast %135 : vector<1x128x384xbf16> to vector<128x384xbf16>
    %cst_52 = arith.constant dense<0.000000e+00> : vector<392x384xf32>
    %137 = tpu.matmul %134, %136, %cst_52 {dimension_numbers = #tpu.dot_dimension_numbers<[1], [0], [0], [1], [0, 0, 1, 1], [], []>} : vector<392x128xbf16>, vector<128x384xbf16>, vector<392x384xf32> -> vector<392x384xf32>
    %138 = vector.extract_strided_slice %137 {offsets = [0, 0], sizes = [384, 128], strides = [1, 1]} : vector<392x384xf32> to vector<384x128xf32>
    %139 = arith.addf %129, %138 : vector<384x128xf32>
    %140 = vector.extract_strided_slice %137 {offsets = [1, 128], sizes = [384, 128], strides = [1, 1]} : vector<392x384xf32> to vector<384x128xf32>
    %141 = arith.addf %139, %140 : vector<384x128xf32>
    %142 = vector.extract_strided_slice %137 {offsets = [2, 256], sizes = [384, 128], strides = [1, 1]} : vector<392x384xf32> to vector<384x128xf32>
    %143 = arith.addf %141, %142 : vector<384x128xf32>
    %c24_i32_53 = arith.constant 24 : i32
    %144 = arith.addi %128, %c24_i32_53 : i32
    %145 = tpu.assume_multiple %144, 8 : i32
    %146 = arith.index_cast %145 : i32 to index
    %c0_54 = arith.constant 0 : index
    %147 = vector.load %arg6[%146, %c0_54] : memref<440x128xf32, #tpu.memory_space<vmem>>, vector<392x128xf32>
    %148 = arith.truncf %147 : vector<392x128xf32> to vector<392x128xbf16>
    %c1_55 = arith.constant 1 : index
    %c0_56 = arith.constant 0 : index
    %c0_57 = arith.constant 0 : index
    %149 = vector.load %arg3[%c1_55, %c0_56, %c0_57] : memref<3x128x384xbf16, #tpu.memory_space<vmem>>, vector<1x128x384xbf16>
    %150 = vector.shape_cast %149 : vector<1x128x384xbf16> to vector<128x384xbf16>
    %cst_58 = arith.constant dense<0.000000e+00> : vector<392x384xf32>
    %151 = tpu.matmul %148, %150, %cst_58 {dimension_numbers = #tpu.dot_dimension_numbers<[1], [0], [0], [1], [0, 0, 1, 1], [], []>} : vector<392x128xbf16>, vector<128x384xbf16>, vector<392x384xf32> -> vector<392x384xf32>
    %152 = vector.extract_strided_slice %151 {offsets = [0, 0], sizes = [384, 128], strides = [1, 1]} : vector<392x384xf32> to vector<384x128xf32>
    %153 = arith.addf %143, %152 : vector<384x128xf32>
    %154 = vector.extract_strided_slice %151 {offsets = [1, 128], sizes = [384, 128], strides = [1, 1]} : vector<392x384xf32> to vector<384x128xf32>
    %155 = arith.addf %153, %154 : vector<384x128xf32>
    %156 = vector.extract_strided_slice %151 {offsets = [2, 256], sizes = [384, 128], strides = [1, 1]} : vector<392x384xf32> to vector<384x128xf32>
    %157 = arith.addf %155, %156 : vector<384x128xf32>
    %c48_i32_59 = arith.constant 48 : i32
    %158 = arith.addi %128, %c48_i32_59 : i32
    %159 = tpu.assume_multiple %158, 8 : i32
    %160 = arith.index_cast %159 : i32 to index
    %c0_60 = arith.constant 0 : index
    %161 = vector.load %arg6[%160, %c0_60] : memref<440x128xf32, #tpu.memory_space<vmem>>, vector<392x128xf32>
    %162 = arith.truncf %161 : vector<392x128xf32> to vector<392x128xbf16>
    %c2_61 = arith.constant 2 : index
    %c0_62 = arith.constant 0 : index
    %c0_63 = arith.constant 0 : index
    %163 = vector.load %arg3[%c2_61, %c0_62, %c0_63] : memref<3x128x384xbf16, #tpu.memory_space<vmem>>, vector<1x128x384xbf16>
    %164 = vector.shape_cast %163 : vector<1x128x384xbf16> to vector<128x384xbf16>
    %cst_64 = arith.constant dense<0.000000e+00> : vector<392x384xf32>
    %165 = tpu.matmul %162, %164, %cst_64 {dimension_numbers = #tpu.dot_dimension_numbers<[1], [0], [0], [1], [0, 0, 1, 1], [], []>} : vector<392x128xbf16>, vector<128x384xbf16>, vector<392x384xf32> -> vector<392x384xf32>
    %166 = vector.extract_strided_slice %165 {offsets = [0, 0], sizes = [384, 128], strides = [1, 1]} : vector<392x384xf32> to vector<384x128xf32>
    %167 = arith.addf %157, %166 : vector<384x128xf32>
    %168 = vector.extract_strided_slice %165 {offsets = [1, 128], sizes = [384, 128], strides = [1, 1]} : vector<392x384xf32> to vector<384x128xf32>
    %169 = arith.addf %167, %168 : vector<384x128xf32>
    %170 = vector.extract_strided_slice %165 {offsets = [2, 256], sizes = [384, 128], strides = [1, 1]} : vector<392x384xf32> to vector<384x128xf32>
    %171 = arith.addf %169, %170 : vector<384x128xf32>
    %172 = tpu.assume_multiple %128, 8 : i32
    %173 = arith.index_cast %172 : i32 to index
    %c0_65 = arith.constant 0 : index
    %174 = vector.load %arg5[%173, %c0_65] : memref<384x128xf32, #tpu.memory_space<vmem>>, vector<384x128xf32>
    tpu.vector_store %arg5[%173, %c0_65], %171 {strides = array<i32>} : memref<384x128xf32, #tpu.memory_space<vmem>>, vector<384x128xf32>,
    %175 = tpu.iota {dimensions = array<i32: 0>} : vector<384x1xi32>
    %176 = vector.broadcast %128 : i32 to vector<384x1xi32>
    %177 = arith.addi %176, %175 : vector<384x1xi32>
    %c24_i32_66 = arith.constant 24 : i32
    %178 = vector.broadcast %c24_i32_66 : i32 to vector<384x1xi32>
    %179 = arith.remsi %177, %178 : vector<384x1xi32>
    %c16_i32_67 = arith.constant 16 : i32
    %180 = vector.broadcast %c16_i32_67 : i32 to vector<384x1xi32>
    %181 = arith.cmpi slt, %179, %180 : vector<384x1xi32>
    %c384_i32_68 = arith.constant 384 : i32
    %182 = vector.broadcast %c384_i32_68 : i32 to vector<384x1xi32>
    %183 = arith.cmpi slt, %177, %182 : vector<384x1xi32>
    %184 = arith.andi %181, %183 : vector<384x1xi1>
    %cst_69 = arith.constant 0.000000e+00 : f32
    %185 = vector.shape_cast %184 : vector<384x1xi1> to vector<384x1xi1>
    %186 = vector.broadcast %185 : vector<384x1xi1> to vector<384x128xi1>
    %187 = vector.broadcast %cst_69 : f32 to vector<384x128xf32>
    %188 = arith.select %186, %171, %187 : vector<384x128xi1>, vector<384x128xf32>
    %cst_70 = arith.constant dense<0.000000e+00> : vector<128xf32>
    %189 = vector.multi_reduction <add>, %188, %cst_70 [0] : vector<384x128xf32> to vector<128xf32>
    %190 = vector.shape_cast %189 : vector<128xf32> to vector<1x128xf32>
    %191 = arith.addf %127, %190 : vector<1x128xf32>
    %192 = arith.mulf %188, %188 : vector<384x128xf32>
    %cst_71 = arith.constant dense<0.000000e+00> : vector<128xf32>
    %193 = vector.multi_reduction <add>, %192, %cst_71 [0] : vector<384x128xf32> to vector<128xf32>
    %194 = vector.shape_cast %193 : vector<128xf32> to vector<1x128xf32>
    %195 = arith.addf %127, %194 : vector<1x128xf32>
    %c1_i32_72 = arith.constant 1 : i32
    %cst_73 = arith.constant 3.906250e-03 : f32
    %196 = vector.broadcast %cst_73 : f32 to vector<1x128xf32>
    %197 = arith.mulf %191, %196 : vector<1x128xf32>
    %cst_74 = arith.constant 3.906250e-03 : f32
    %198 = vector.broadcast %cst_74 : f32 to vector<1x128xf32>
    %199 = arith.mulf %195, %198 : vector<1x128xf32>
    %200 = arith.mulf %197, %197 : vector<1x128xf32>
    %201 = arith.subf %199, %200 : vector<1x128xf32>
    %cst_75 = arith.constant 0.000000e+00 : f32
    %202 = vector.broadcast %cst_75 : f32 to vector<1x128xf32>
    %203 = arith.maximumf %201, %202 : vector<1x128xf32>
    %cst_76 = arith.constant 9.99999974E-6 : f32
    %204 = vector.broadcast %cst_76 : f32 to vector<1x128xf32>
    %205 = arith.addf %203, %204 : vector<1x128xf32>
    %206 = math.rsqrt %205 : vector<1x128xf32>
    %c0_i32_77 = arith.constant 0 : i32
    %c1_i32_78 = arith.constant 1 : i32
    %207 = arith.muli %c0_i32_77, %c1_i32_78 : i32
    %c0_i32_79 = arith.constant 0 : i32
    %208 = arith.addi %c0_i32_79, %207 : i32
    %c384_i32_80 = arith.constant 384 : i32
    %209 = arith.muli %208, %c384_i32_80 : i32
    %210 = tpu.assume_multiple %209, 8 : i32
    %211 = arith.index_cast %210 : i32 to index
    %c0_81 = arith.constant 0 : index
    %212 = vector.load %arg5[%211, %c0_81] : memref<384x128xf32, #tpu.memory_space<vmem>>, vector<384x128xf32>
    %213 = vector.broadcast %197 : vector<1x128xf32> to vector<384x128xf32>
    %214 = arith.subf %212, %213 : vector<384x128xf32>
    %215 = vector.broadcast %206 : vector<1x128xf32> to vector<384x128xf32>
    %216 = arith.mulf %214, %215 : vector<384x128xf32>
    %c24_i32_82 = arith.constant 24 : i32
    %217 = arith.addi %209, %c24_i32_82 : i32
    %c1_i32_83 = arith.constant 1 : i32
    %218 = arith.addi %217, %c1_i32_83 : i32
    %c0_84 = arith.constant 0 : index
    %219 = arith.index_cast %218 : i32 to index
    %c0_85 = arith.constant 0 : index
    %220 = vector.load %arg1[%c0_84, %219, %c0_85] : memref<1x440x128xf32, #tpu.memory_space<vmem>>, vector<1x384x128xf32>
    %221 = vector.shape_cast %220 : vector<1x384x128xf32> to vector<384x128xf32>
    %222 = arith.addf %221, %216 : vector<384x128xf32>
    %223 = tpu.assume_multiple %209, 8 : i32
    %c0_86 = arith.constant 0 : index
    %224 = arith.index_cast %223 : i32 to index
    %c0_87 = arith.constant 0 : index
    %225 = vector.load %arg4[%c0_86, %224, %c0_87] : memref<1x384x128xf32, #tpu.memory_space<vmem>>, vector<1x384x128xf32>
    %226 = vector.shape_cast %225 : vector<1x384x128xf32> to vector<384x128xf32>
    %227 = vector.shape_cast %222 : vector<384x128xf32> to vector<1x384x128xf32>
    tpu.vector_store %arg4[%c0_86, %224, %c0_87], %227 {strides = array<i32>} : memref<1x384x128xf32, #tpu.memory_space<vmem>>, vector<1x384x128xf32>,
    %c1_i32_88 = arith.constant 1 : i32
    return
  }
  func.func @transform_0(%arg0: i32) -> (i32, i32, i32) {
    %c0_i32 = arith.constant 0 : i32
    %c0_i32_0 = arith.constant 0 : i32
    %c0_i32_1 = arith.constant 0 : i32
    return %arg0, %c0_i32, %c0_i32_0 : i32, i32, i32
  }
  func.func @transform_1(%arg0: i32) -> (i32, i32, i32) {
    %c0_i32 = arith.constant 0 : i32
    %c0_i32_0 = arith.constant 0 : i32
    %c0_i32_1 = arith.constant 0 : i32
    %c0_i32_2 = arith.constant 0 : i32
    return %c0_i32, %c0_i32_0, %c0_i32_1 : i32, i32, i32
  }
  func.func @transform_2(%arg0: i32) -> (i32, i32, i32) {
    %c0_i32 = arith.constant 0 : i32
    %c0_i32_0 = arith.constant 0 : i32
    %c0_i32_1 = arith.constant 0 : i32
    %c0_i32_2 = arith.constant 0 : i32
    return %c0_i32, %c0_i32_0, %c0_i32_1 : i32, i32, i32
  }
  func.func @transform_3(%arg0: i32) -> (i32, i32, i32) {
    %c0_i32 = arith.constant 0 : i32
    %c0_i32_0 = arith.constant 0 : i32
    %c0_i32_1 = arith.constant 0 : i32
    return %arg0, %c0_i32, %c0_i32_0 : i32, i32, i32
  }
}

</mosaic_0001>

<llo_original>
// kernel: tpu_custom_call.1
$region0: #{tpu_custom_call.1}
  #allocation0 [shape = 'u32[]', space=smem, size = 0x4, offset = 0x4, fixed_abs, tag = 'smem constant byte address 0x4 - core index']
  #allocation1 [shape = 'u32[72,128]{1,0:T(1,128)}', space=vmem, size = 0x9000, scoped, tag = 'internal scratch']
  #allocation2 [shape = 'f32[384,128]{1,0:T(8,128)}', space=vmem, size = 0x30000, scoped, tag = 'scratch operand']
  #allocation3 [shape = 'f32[440,128]{1,0:T(8,128)}', space=vmem, size = 0x37000, scoped, tag = 'scratch operand']
  %s0 = inlined_call_operand.hbm [shape: f32[2,440,128], index: 0, kind: input, shape index: {}]
  %s1 = inlined_call_operand.hbm [shape: bf16[3,128,384], index: 1, kind: input, shape index: {}]
  %s2 = inlined_call_operand.hbm [shape: bf16[3,128,384], index: 2, kind: input, shape index: {}]
  %s3 = inlined_call_operand.hbm [shape: f32[2,384,128], index: 3, kind: output, shape index: {}]
  %s4 = sld [smem:[#allocation0]]
  $region57: #{tpu_custom_call.1} parent=0
    _
  %s6 = ssub.s32 1, %s4
  %s7 = scalar_select 0, %s6, %s4
  $region1: #{tpu_custom_call.1} parent=0
    #allocation4 [shape = 'u8[450560]{0}', space=vmem, size = 0x6e000, scoped, tag = 'input window, operand 0']
    #allocation5 [shape = 's32[2]{0}', space=sflag, size = 0x8, scoped, tag = 'scoped memory for tpu_custom_call.1']
    #allocation6 [shape = 's32[2]{0}', space=sflag, size = 0x8, scoped, tag = 'scoped memory for tpu_custom_call.1']
    #allocation7 [shape = 'u8[294912]{0}', space=vmem, size = 0x48000, scoped, tag = 'input window, operand 1, single buffered']
    #allocation8 [shape = 's32[1]{0}', space=sflag, size = 0x4, scoped, tag = 'scoped memory for tpu_custom_call.1']
    #allocation9 [shape = 'u8[294912]{0}', space=vmem, size = 0x48000, scoped, tag = 'input window, operand 2, single buffered']
    #allocation10 [shape = 'u8[393216]{0}', space=vmem, size = 0x60000, scoped, tag = 'output window, operand 0']
    %8 = vsyncpa [#allocation5], 0
    %s9 = scalar_lea.sflag [#allocation5], 1
    %10 = vsyncpa %s9, 0
    %11 = vsyncpa [#allocation8], 0
    %12 = vsyncpa [#allocation6], 0
    %s13 = scalar_lea.sflag [#allocation6], 1
    %14 = vsyncpa %s13, 0
    loop: start=0, step=1, limit=4
    $region2: #{tpu_custom_call.1} parent=1 // loop_pre_header
      _
    $region3: #{tpu_custom_call.1} parent=1 // loop_header
      %s16 = sphi 0, %s20
      %p17 = scmp.ge.s32.totalorder %s16, 4
      %s26 = sphi 0, %s28
      %s29 = sphi 0, %s26
      %s30 = sphi 0, %s29
      %s46 = sphi 0, %s30
      %s50 = sphi 0, %s50
      %s52 = sphi 0, %s50
      %s53 = sphi 0, %s52
      %s67 = sphi 0, %s53
      %s71 = sphi 0, %s71
      %s73 = sphi 0, %s71
      %s74 = sphi 0, %s73
      %s88 = sphi 0, %s74
      %s94 = sphi 0, %s96
      %s97 = sphi 0, %s94
      %s98 = sphi 0, %s97
      %s114 = sphi 0, %s98
    $region4: #{tpu_custom_call.1} parent=1 // loop_header_branch
      %19 = sbr.rel (%p17) target = $region8
    $region5: #{tpu_custom_call.1} parent=1 // loop_body
      %s21 = ssub.s32 %s16, 1
      %s22 = ssub.s32 %s16, 2
      %s23 = sadd.s32 %s16, 1
      %s24 = ssub.s32 %s16, %s23
      %p25 = scmp.eq.s32.totalorder %s24, 0
      %s27 = sadd.s32 %s26, 1
      %s28 = scalar_select %p25, %s26, %s27
      %p31 = pneg %p25
      %p32 = scmp.eq.s32.totalorder %s16, 1
      %p33 = por %p31, %p32
      %p34 = scmp.ne.s32.totalorder %s26, %s29
      %p35 = scmp.eq.s32.totalorder %s16, 0
      %p36 = por %p34, %p35
      %p37 = scmp.ne.s32.totalorder %s26, %s29
      %p38 = scmp.eq.s32.totalorder %s21, 1
      %p39 = por %p37, %p38
      %p40 = scmp.ne.s32.totalorder %s29, %s30
      %p41 = scmp.eq.s32.totalorder %s21, 0
      %p42 = por %p40, %p41
      %p43 = scmp.ne.s32.totalorder %s29, %s30
      %p44 = scmp.eq.s32.totalorder %s22, 1
      %p45 = por %p43, %p44
      %p47 = scmp.ne.s32.totalorder %s30, %s46
      %p48 = scmp.eq.s32.totalorder %s22, 0
      %p49 = por %p47, %p48
      %s51 = sadd.s32 %s50, 1
      %p54 = scmp.eq.s32.totalorder %s16, 1
      %p55 = scmp.ne.s32.totalorder %s50, %s52
      %p56 = scmp.eq.s32.totalorder %s16, 0
      %p57 = por %p55, %p56
      %p58 = scmp.ne.s32.totalorder %s50, %s52
      %p59 = scmp.eq.s32.totalorder %s21, 1
      %p60 = por %p58, %p59
      %p61 = scmp.ne.s32.totalorder %s52, %s53
      %p62 = scmp.eq.s32.totalorder %s21, 0
      %p63 = por %p61, %p62
      %p64 = scmp.ne.s32.totalorder %s52, %s53
      %p65 = scmp.eq.s32.totalorder %s22, 1
      %p66 = por %p64, %p65
      %p68 = scmp.ne.s32.totalorder %s53, %s67
      %p69 = scmp.eq.s32.totalorder %s22, 0
      %p70 = por %p68, %p69
      %s72 = sadd.s32 %s71, 1
      %p75 = scmp.eq.s32.totalorder %s16, 1
      %p76 = scmp.ne.s32.totalorder %s71, %s73
      %p77 = scmp.eq.s32.totalorder %s16, 0
      %p78 = por %p76, %p77
      %p79 = scmp.ne.s32.totalorder %s71, %s73
      %p80 = scmp.eq.s32.totalorder %s21, 1
      %p81 = por %p79, %p80
      %p82 = scmp.ne.s32.totalorder %s73, %s74
      %p83 = scmp.eq.s32.totalorder %s21, 0
      %p84 = por %p82, %p83
      %p85 = scmp.ne.s32.totalorder %s73, %s74
      %p86 = scmp.eq.s32.totalorder %s22, 1
      %p87 = por %p85, %p86
      %p89 = scmp.ne.s32.totalorder %s74, %s88
      %p90 = scmp.eq.s32.totalorder %s22, 0
      %p91 = por %p89, %p90
      %s92 = ssub.s32 %s16, %s23
      %p93 = scmp.eq.s32.totalorder %s92, 0
      %s95 = sadd.s32 %s94, 1
      %s96 = scalar_select %p93, %s94, %s95
      %p99 = pneg %p93
      %p100 = scmp.eq.s32.totalorder %s16, 1
      %p101 = por %p99, %p100
      %p102 = scmp.ne.s32.totalorder %s94, %s97
      %p103 = scmp.eq.s32.totalorder %s16, 0
      %p104 = por %p102, %p103
      %p105 = scmp.ne.s32.totalorder %s94, %s97
      %p106 = scmp.eq.s32.totalorder %s21, 1
      %p107 = por %p105, %p106
      %p108 = scmp.ne.s32.totalorder %s97, %s98
      %p109 = scmp.eq.s32.totalorder %s21, 0
      %p110 = por %p108, %p109
      %p111 = scmp.ne.s32.totalorder %s97, %s98
      %p112 = scmp.eq.s32.totalorder %s22, 1
      %p113 = por %p111, %p112
      %p115 = scmp.ne.s32.totalorder %s98, %s114
      %p116 = scmp.eq.s32.totalorder %s22, 0
      %p117 = por %p115, %p116
      %p118 = scmp.le.s32.totalorder 1, %s16
      %p119 = scmp.lt.s32.totalorder %s16, 3
      %p120 = pnand %p118, %p119
      %p121 = pneg %p120
      // Predicated region
      $region9: #{tpu_custom_call.1} parent=5 // pred_check
        _
      $region10: #{tpu_custom_call.1} parent=5 // pred_check_branch
        %123 = sbr.rel (%p120) target = $region12
      $region11: #{tpu_custom_call.1} parent=5 // pred_region
        %s124 = ssub.s32 %s16, 1
        // Predicated region
        $region13: #{tpu_custom_call.1} parent=11 // pred_check
          %p125 = pneg %p63
        $region14: #{tpu_custom_call.1} parent=11 // pred_check_branch
          %127 = sbr.rel (%p125) target = $region16
        $region15: #{tpu_custom_call.1} parent=11 // pred_region
          %129 = vsyncadd [#allocation8], 0
          %s130 = sshll.u32 %s1, 4
          %s131 = int_to_ptr.hbm [resolvable:$true] %s130
          %s132 = sshll.u32 [#allocation7], 4
          %s133 = int_to_ptr.vmem [resolvable:$true] %s132
          %138 = dma.hbm_to_vmem [thread:$0]  %s131, 9216, %s133, [#allocation8], 192, 192, 12
        $region16: #{tpu_custom_call.1} parent=11 // pred_fallthru
          _
        // Predicated region
        $region17: #{tpu_custom_call.1} parent=11 // pred_check
          %p139 = pneg %p84
        $region18: #{tpu_custom_call.1} parent=11 // pred_check_branch
          %141 = sbr.rel (%p139) target = $region20
        $region19: #{tpu_custom_call.1} parent=11 // pred_region
          %143 = vsyncadd [#allocation8], 0
          %s144 = sshll.u32 %s2, 4
          %s145 = int_to_ptr.hbm [resolvable:$true] %s144
          %s146 = sshll.u32 [#allocation9], 4
          %s147 = int_to_ptr.vmem [resolvable:$true] %s146
          %152 = dma.hbm_to_vmem [thread:$0]  %s145, 9216, %s147, [#allocation8], 192, 192, 12
        $region20: #{tpu_custom_call.1} parent=11 // pred_fallthru
          _
      $region12: #{tpu_custom_call.1} parent=5 // pred_fallthru
        _
      %p153 = scmp.lt.s32.totalorder %s16, 2
      // Predicated region
      $region21: #{tpu_custom_call.1} parent=5 // pred_check
        %p154 = pneg %p153
      $region22: #{tpu_custom_call.1} parent=5 // pred_check_branch
        %156 = sbr.rel (%p154) target = $region24
      $region23: #{tpu_custom_call.1} parent=5 // pred_region
        // Predicated region
        $region25: #{tpu_custom_call.1} parent=23 // pred_check
          %p157 = pneg %p36
        $region26: #{tpu_custom_call.1} parent=23 // pred_check_branch
          %159 = sbr.rel (%p157) target = $region28
        $region27: #{tpu_custom_call.1} parent=23 // pred_region
          %s160 = sand.u32 %s26, 1
          %s161 = scalar_lea.sflag [#allocation5], %s160
          %s162 = sand.u32 %s26, 1
          %s163 = smul.addr %s162, 440
          %s164 = scalar_lea.vmem [#allocation4], %s163
          %166 = vsyncadd %s161, 0
          %s167 = smul.addr %s16, 55
          %s168 = smul.addr %s167, 8
          %s169 = scalar_lea.hbm %s0, %s168
          %s170 = sshll.u32 %s169, 4
          %s171 = int_to_ptr.hbm [resolvable:$true] %s170
          %s172 = sshll.u32 %s164, 4
          %s173 = int_to_ptr.vmem [resolvable:$true] %s172
          %178 = dma.hbm_to_vmem [thread:$0]  %s171, 7040, %s173, %s161, 128, 128, 8
        $region28: #{tpu_custom_call.1} parent=23 // pred_fallthru
          _
      $region24: #{tpu_custom_call.1} parent=5 // pred_fallthru
        _
      %p179 = scmp.le.s32.totalorder 1, %s16
      %p180 = scmp.lt.s32.totalorder %s16, 3
      %p181 = pnand %p179, %p180
      %p182 = pneg %p181
      // Predicated region
      $region29: #{tpu_custom_call.1} parent=5 // pred_check
        _
      $region30: #{tpu_custom_call.1} parent=5 // pred_check_branch
        %184 = sbr.rel (%p181) target = $region32
      $region31: #{tpu_custom_call.1} parent=5 // pred_region
        %s185 = ssub.s32 %s16, 1
        %s186 = sand.u32 %s29, 1
        %s187 = scalar_lea.sflag [#allocation5], %s186
        %s188 = sand.u32 %s29, 1
        %s189 = smul.addr %s188, 440
        %s190 = scalar_lea.vmem [#allocation4], %s189
        // Predicated region
        $region33: #{tpu_custom_call.1} parent=31 // pred_check
          %p191 = pneg %p42
        $region34: #{tpu_custom_call.1} parent=31 // pred_check_branch
          %193 = sbr.rel (%p191) target = $region36
        $region35: #{tpu_custom_call.1} parent=31 // pred_region
          %195 = dma.done %s187, 7040
        $region36: #{tpu_custom_call.1} parent=31 // pred_fallthru
          _
        // Predicated region
        $region37: #{tpu_custom_call.1} parent=31 // pred_check
          %p196 = pneg %p63
        $region38: #{tpu_custom_call.1} parent=31 // pred_check_branch
          %198 = sbr.rel (%p196) target = $region40
        $region39: #{tpu_custom_call.1} parent=31 // pred_region
          %200 = dma.done [#allocation8], 9216
        $region40: #{tpu_custom_call.1} parent=31 // pred_fallthru
          _
        // Predicated region
        $region41: #{tpu_custom_call.1} parent=31 // pred_check
          %p201 = pneg %p84
        $region42: #{tpu_custom_call.1} parent=31 // pred_check_branch
          %203 = sbr.rel (%p201) target = $region44
        $region43: #{tpu_custom_call.1} parent=31 // pred_region
          %205 = dma.done [#allocation8], 9216
        $region44: #{tpu_custom_call.1} parent=31 // pred_fallthru
          _
        %s206 = sand.u32 %s29, 1
        %s207 = scalar_lea.sflag [#allocation5], %s206
        %s208 = sand.u32 %s29, 1
        %s209 = smul.addr %s208, 440
        %s210 = scalar_lea.vmem [#allocation4], %s209
        %p211 = pneg %p42
        %p212 = pneg %p39
        %p213 = pneg %p63
        %p214 = pneg %p60
        %p215 = pneg %p84
        %p216 = pneg %p81
        %p217 = pneg %p110
        %p218 = pneg %p107
        %s219 = sand.u32 %s97, 1
        %s220 = scalar_lea.sflag [#allocation6], %s219
        %s221 = sand.u32 %s97, 1
        %s222 = smul.addr %s221, 384
        %s223 = scalar_lea.vmem [#allocation10], %s222
        %v224 = vld [vmem:[%s190] sm:$0xff]
        %v225 = vld [vmem:[%s190 + $0x8] sm:$0xff]
        %v226 = vld [vmem:[%s190 + $0x10] sm:$0xff]
        %v227 = vld [vmem:[%s190 + $0x18] sm:$0xff]
        %v228 = vld [vmem:[%s190 + $0x20] sm:$0xff]
        %v229 = vld [vmem:[%s190 + $0x28] sm:$0xff]
        %v230 = vld [vmem:[%s190 + $0x30] sm:$0xff]
        %v231 = vld [vmem:[%s190 + $0x38] sm:$0xff]
        %v232 = vld [vmem:[%s190 + $0x40] sm:$0xff]
        %v233 = vld [vmem:[%s190 + $0x48] sm:$0xff]
        %v234 = vld [vmem:[%s190 + $0x50] sm:$0xff]
        %v235 = vld [vmem:[%s190 + $0x58] sm:$0xff]
        %v236 = vld [vmem:[%s190 + $0x60] sm:$0xff]
        %v237 = vld [vmem:[%s190 + $0x68] sm:$0xff]
        %v238 = vld [vmem:[%s190 + $0x70] sm:$0xff]
        %v239 = vld [vmem:[%s190 + $0x78] sm:$0xff]
        %v240 = vld [vmem:[%s190 + $0x80] sm:$0xff]
        %v241 = vld [vmem:[%s190 + $0x88] sm:$0xff]
        %v242 = vld [vmem:[%s190 + $0x90] sm:$0xff]
        %v243 = vld [vmem:[%s190 + $0x98] sm:$0xff]
        %v244 = vld [vmem:[%s190 + $0xa0] sm:$0xff]
        %v245 = vld [vmem:[%s190 + $0xa8] sm:$0xff]
        %v246 = vld [vmem:[%s190 + $0xb0] sm:$0xff]
        %v247 = vld [vmem:[%s190 + $0xb8] sm:$0xff]
        %v248 = vld [vmem:[%s190 + $0xc0] sm:$0xff]
        %v249 = vld [vmem:[%s190 + $0xc8] sm:$0xff]
        %v250 = vld [vmem:[%s190 + $0xd0] sm:$0xff]
        %v251 = vld [vmem:[%s190 + $0xd8] sm:$0xff]
        %v252 = vld [vmem:[%s190 + $0xe0] sm:$0xff]
        %v253 = vld [vmem:[%s190 + $0xe8] sm:$0xff]
        %v254 = vld [vmem:[%s190 + $0xf0] sm:$0xff]
        %v255 = vld [vmem:[%s190 + $0xf8] sm:$0xff]
        %v256 = vld [vmem:[%s190 + $0x100] sm:$0xff]
        %v257 = vld [vmem:[%s190 + $0x108] sm:$0xff]
        %v258 = vld [vmem:[%s190 + $0x110] sm:$0xff]
        %v259 = vld [vmem:[%s190 + $0x118] sm:$0xff]
        %v260 = vld [vmem:[%s190 + $0x120] sm:$0xff]
        %v261 = vld [vmem:[%s190 + $0x128] sm:$0xff]
        %v262 = vld [vmem:[%s190 + $0x130] sm:$0xff]
        %v263 = vld [vmem:[%s190 + $0x138] sm:$0xff]
        %v264 = vld [vmem:[%s190 + $0x140] sm:$0xff]
        %v265 = vld [vmem:[%s190 + $0x148] sm:$0xff]
        %v266 = vld [vmem:[%s190 + $0x150] sm:$0xff]
        %v267 = vld [vmem:[%s190 + $0x158] sm:$0xff]
        %v268 = vld [vmem:[%s190 + $0x160] sm:$0xff]
        %v269 = vld [vmem:[%s190 + $0x168] sm:$0xff]
        %v270 = vld [vmem:[%s190 + $0x170] sm:$0xff]
        %v271 = vld [vmem:[%s190 + $0x178] sm:$0xff]
        %v272 = vld [vmem:[%s190 + $0x180] sm:$0xff]
        %v273 = vpack.c.bf16 %v225, %v224
        %v274 = vpack.c.bf16 %v227, %v226
        %v275 = vpack.c.bf16 %v229, %v228
        %v276 = vpack.c.bf16 %v231, %v230
        %v277 = vpack.c.bf16 %v233, %v232
        %v278 = vpack.c.bf16 %v235, %v234
        %v279 = vpack.c.bf16 %v237, %v236
        %v280 = vpack.c.bf16 %v239, %v238
        %v281 = vpack.c.bf16 %v241, %v240
        %v282 = vpack.c.bf16 %v243, %v242
        %v283 = vpack.c.bf16 %v245, %v244
        %v284 = vpack.c.bf16 %v247, %v246
        %v285 = vpack.c.bf16 %v249, %v248
        %v286 = vpack.c.bf16 %v251, %v250
        %v287 = vpack.c.bf16 %v253, %v252
        %v288 = vpack.c.bf16 %v255, %v254
        %v289 = vpack.c.bf16 %v257, %v256
        %v290 = vpack.c.bf16 %v259, %v258
        %v291 = vpack.c.bf16 %v261, %v260
        %v292 = vpack.c.bf16 %v263, %v262
        %v293 = vpack.c.bf16 %v265, %v264
        %v294 = vpack.c.bf16 %v267, %v266
        %v295 = vpack.c.bf16 %v269, %v268
        %v296 = vpack.c.bf16 %v271, %v270
        %v297 = vpack.c.bf16 %v272, %v272
        %v298 = vld [vmem:[#allocation7] sm:$0xff]
        %v299 = vld [vmem:[#allocation7 + $0x8] sm:$0xf]
        %v300 = vld [vmem:[#allocation7 + $0xc] sm:$0xff]
        %v301 = vld [vmem:[#allocation7 + $0x14] sm:$0xf]
        %v302 = vld [vmem:[#allocation7 + $0x18] sm:$0xff]
        %v303 = vld [vmem:[#allocation7 + $0x20] sm:$0xf]
        %v304 = vld [vmem:[#allocation7 + $0x24] sm:$0xff]
        %v305 = vld [vmem:[#allocation7 + $0x2c] sm:$0xf]
        %v306 = vld [vmem:[#allocation7 + $0x30] sm:$0xff]
        %v307 = vld [vmem:[#allocation7 + $0x38] sm:$0xf]
        %v308 = vld [vmem:[#allocation7 + $0x3c] sm:$0xff]
        %v309 = vld [vmem:[#allocation7 + $0x44] sm:$0xf]
        %v310 = vld [vmem:[#allocation7 + $0x48] sm:$0xff]
        %v311 = vld [vmem:[#allocation7 + $0x50] sm:$0xf]
        %v312 = vld [vmem:[#allocation7 + $0x54] sm:$0xff]
        %v313 = vld [vmem:[#allocation7 + $0x5c] sm:$0xf]
        %v314 = vld [vmem:[#allocation7 + $0x60] sm:$0xff]
        %v315 = vld [vmem:[#allocation7 + $0x68] sm:$0xf]
        %v316 = vld [vmem:[#allocation7 + $0x6c] sm:$0xff]
        %v317 = vld [vmem:[#allocation7 + $0x74] sm:$0xf]
        %v318 = vld [vmem:[#allocation7 + $0x78] sm:$0xff]
        %v319 = vld [vmem:[#allocation7 + $0x80] sm:$0xf]
        %v320 = vld [vmem:[#allocation7 + $0x84] sm:$0xff]
        %v321 = vld [vmem:[#allocation7 + $0x8c] sm:$0xf]
        %v322 = vld [vmem:[#allocation7 + $0x90] sm:$0xff]
        %v323 = vld [vmem:[#allocation7 + $0x98] sm:$0xf]
        %v324 = vld [vmem:[#allocation7 + $0x9c] sm:$0xff]
        %v325 = vld [vmem:[#allocation7 + $0xa4] sm:$0xf]
        %v326 = vld [vmem:[#allocation7 + $0xa8] sm:$0xff]
        %v327 = vld [vmem:[#allocation7 + $0xb0] sm:$0xf]
        %v328 = vld [vmem:[#allocation7 + $0xb4] sm:$0xff]
        %v329 = vld [vmem:[#allocation7 + $0xbc] sm:$0xf]
        %v362 = vunpack.c.l.b16 %v298
        %v363 = vunpack.c.h.b16 %v298
        %v364 = vunpack.c.l.b16 %v299
        %v365 = vunpack.c.l.b16 %v300
        %v366 = vunpack.c.h.b16 %v300
        %v367 = vunpack.c.l.b16 %v301
        %v368 = vunpack.c.l.b16 %v302
        %v369 = vunpack.c.h.b16 %v302
        %v370 = vunpack.c.l.b16 %v303
        %v371 = vunpack.c.l.b16 %v304
        %v372 = vunpack.c.h.b16 %v304
        %v373 = vunpack.c.l.b16 %v305
        %v374 = vunpack.c.l.b16 %v306
        %v375 = vunpack.c.h.b16 %v306
        %v376 = vunpack.c.l.b16 %v307
        %v377 = vunpack.c.l.b16 %v308
        %v378 = vunpack.c.h.b16 %v308
        %v379 = vunpack.c.l.b16 %v309
        %v380 = vunpack.c.l.b16 %v310
        %v381 = vunpack.c.h.b16 %v310
        %v382 = vunpack.c.l.b16 %v311
        %v383 = vunpack.c.l.b16 %v312
        %v384 = vunpack.c.h.b16 %v312
        %v385 = vunpack.c.l.b16 %v313
        %v386 = vunpack.c.l.b16 %v314
        %v387 = vunpack.c.h.b16 %v314
        %v388 = vunpack.c.l.b16 %v315
        %v389 = vunpack.c.l.b16 %v316
        %v390 = vunpack.c.h.b16 %v316
        %v391 = vunpack.c.l.b16 %v317
        %v392 = vunpack.c.l.b16 %v318
        %v393 = vunpack.c.h.b16 %v318
        %v394 = vunpack.c.l.b16 %v319
        %v395 = vunpack.c.l.b16 %v320
        %v396 = vunpack.c.h.b16 %v320
        %v397 = vunpack.c.l.b16 %v321
        %v398 = vunpack.c.l.b16 %v322
        %v399 = vunpack.c.h.b16 %v322
        %v400 = vunpack.c.l.b16 %v323
        %v401 = vunpack.c.l.b16 %v324
        %v402 = vunpack.c.h.b16 %v324
        %v403 = vunpack.c.l.b16 %v325
        %v404 = vunpack.c.l.b16 %v326
        %v405 = vunpack.c.h.b16 %v326
        %v406 = vunpack.c.l.b16 %v327
        %v407 = vunpack.c.l.b16 %v328
        %v408 = vunpack.c.h.b16 %v328
        %v409 = vunpack.c.l.b16 %v329
        %v410 = vpack.c.b16 %v365, %v362
        %v411 = vpack.c.b16 %v366, %v363
        %v412 = vpack.c.b16 %v367, %v364
        %v413 = vpack.c.b16 %v371, %v368
        %v414 = vpack.c.b16 %v372, %v369
        %v415 = vpack.c.b16 %v373, %v370
        %v416 = vpack.c.b16 %v377, %v374
        %v417 = vpack.c.b16 %v378, %v375
        %v418 = vpack.c.b16 %v379, %v376
        %v419 = vpack.c.b16 %v383, %v380
        %v420 = vpack.c.b16 %v384, %v381
        %v421 = vpack.c.b16 %v385, %v382
        %v422 = vpack.c.b16 %v389, %v386
        %v423 = vpack.c.b16 %v390, %v387
        %v424 = vpack.c.b16 %v391, %v388
        %v425 = vpack.c.b16 %v395, %v392
        %v426 = vpack.c.b16 %v396, %v393
        %v427 = vpack.c.b16 %v397, %v394
        %v428 = vpack.c.b16 %v401, %v398
        %v429 = vpack.c.b16 %v402, %v399
        %v430 = vpack.c.b16 %v403, %v400
        %v431 = vpack.c.b16 %v407, %v404
        %v432 = vpack.c.b16 %v408, %v405
        %v433 = vpack.c.b16 %v409, %v406
        %458 = vmatpush.bf16.msra.mxu0 %v431
        %459 = vmatpush.bf16.msra.mxu0 %v428
        %460 = vmatpush.bf16.msra.mxu0 %v425
        %461 = vmatpush.bf16.msra.mxu0 %v422
        %462 = vmatpush.bf16.msra.mxu0 %v419
        %463 = vmatpush.bf16.msra.mxu0 %v416
        %464 = vmatpush.bf16.msra.mxu0 %v413
        %465 = vmatpush.bf16.msra.mxu0 %v410
        %466 = vmatmul.bf16.gmra.mxu0 %v273
        %v467 = vpop.f32.mrf.mxu0
        %v468 = vadd.f32 0.0, %v467
        %v469 = vpop.f32.mrf.mxu0
        %v470 = vadd.f32 0.0, %v469
        %471 = vmatmul.bf16.gmra.mxu0 %v274
        %v472 = vpop.f32.mrf.mxu0
        %v473 = vadd.f32 0.0, %v472
        %v474 = vpop.f32.mrf.mxu0
        %v475 = vadd.f32 0.0, %v474
        %476 = vmatmul.bf16.gmra.mxu0 %v275
        %v477 = vpop.f32.mrf.mxu0
        %v478 = vadd.f32 0.0, %v477
        %v479 = vpop.f32.mrf.mxu0
        %v480 = vadd.f32 0.0, %v479
        %481 = vmatmul.bf16.gmra.mxu0 %v276
        %v482 = vpop.f32.mrf.mxu0
        %v483 = vadd.f32 0.0, %v482
        %v484 = vpop.f32.mrf.mxu0
        %v485 = vadd.f32 0.0, %v484
        %486 = vmatmul.bf16.gmra.mxu0 %v277
        %v487 = vpop.f32.mrf.mxu0
        %v488 = vadd.f32 0.0, %v487
        %v489 = vpop.f32.mrf.mxu0
        %v490 = vadd.f32 0.0, %v489
        %491 = vmatmul.bf16.gmra.mxu0 %v278
        %v492 = vpop.f32.mrf.mxu0
        %v493 = vadd.f32 0.0, %v492
        %v494 = vpop.f32.mrf.mxu0
        %v495 = vadd.f32 0.0, %v494
        %496 = vmatmul.bf16.gmra.mxu0 %v279
        %v497 = vpop.f32.mrf.mxu0
        %v498 = vadd.f32 0.0, %v497
        %v499 = vpop.f32.mrf.mxu0
        %v500 = vadd.f32 0.0, %v499
        %501 = vmatmul.bf16.gmra.mxu0 %v280
        %v502 = vpop.f32.mrf.mxu0
        %v503 = vadd.f32 0.0, %v502
        %v504 = vpop.f32.mrf.mxu0
        %v505 = vadd.f32 0.0, %v504
        %506 = vmatmul.bf16.gmra.mxu0 %v281
        %v507 = vpop.f32.mrf.mxu0
        %v508 = vadd.f32 0.0, %v507
        %v509 = vpop.f32.mrf.mxu0
        %v510 = vadd.f32 0.0, %v509
        %511 = vmatmul.bf16.gmra.mxu0 %v282
        %v512 = vpop.f32.mrf.mxu0
        %v513 = vadd.f32 0.0, %v512
        %v514 = vpop.f32.mrf.mxu0
        %v515 = vadd.f32 0.0, %v514
        %516 = vmatmul.bf16.gmra.mxu0 %v283
        %v517 = vpop.f32.mrf.mxu0
        %v518 = vadd.f32 0.0, %v517
        %v519 = vpop.f32.mrf.mxu0
        %v520 = vadd.f32 0.0, %v519
        %521 = vmatmul.bf16.gmra.mxu0 %v284
        %v522 = vpop.f32.mrf.mxu0
        %v523 = vadd.f32 0.0, %v522
        %v524 = vpop.f32.mrf.mxu0
        %v525 = vadd.f32 0.0, %v524
        %526 = vmatmul.bf16.gmra.mxu0 %v285
        %v527 = vpop.f32.mrf.mxu0
        %v528 = vadd.f32 0.0, %v527
        %v529 = vpop.f32.mrf.mxu0
        %v530 = vadd.f32 0.0, %v529
        %531 = vmatmul.bf16.gmra.mxu0 %v286
        %v532 = vpop.f32.mrf.mxu0
        %v533 = vadd.f32 0.0, %v532
        %v534 = vpop.f32.mrf.mxu0
        %v535 = vadd.f32 0.0, %v534
        %536 = vmatmul.bf16.gmra.mxu0 %v287
        %v537 = vpop.f32.mrf.mxu0
        %v538 = vadd.f32 0.0, %v537
        %v539 = vpop.f32.mrf.mxu0
        %v540 = vadd.f32 0.0, %v539
        %541 = vmatmul.bf16.gmra.mxu0 %v288
        %v542 = vpop.f32.mrf.mxu0
        %v543 = vadd.f32 0.0, %v542
        %v544 = vpop.f32.mrf.mxu0
        %v545 = vadd.f32 0.0, %v544
        %546 = vmatmul.bf16.gmra.mxu0 %v289
        %v547 = vpop.f32.mrf.mxu0
        %v548 = vadd.f32 0.0, %v547
        %v549 = vpop.f32.mrf.mxu0
        %v550 = vadd.f32 0.0, %v549
        %551 = vmatmul.bf16.gmra.mxu0 %v290
        %v552 = vpop.f32.mrf.mxu0
        %v553 = vadd.f32 0.0, %v552
        %v554 = vpop.f32.mrf.mxu0
        %v555 = vadd.f32 0.0, %v554
        %556 = vmatmul.bf16.gmra.mxu0 %v291
        %v557 = vpop.f32.mrf.mxu0
        %v558 = vadd.f32 0.0, %v557
        %v559 = vpop.f32.mrf.mxu0
        %v560 = vadd.f32 0.0, %v559
        %561 = vmatmul.bf16.gmra.mxu0 %v292
        %v562 = vpop.f32.mrf.mxu0
        %v563 = vadd.f32 0.0, %v562
        %v564 = vpop.f32.mrf.mxu0
        %v565 = vadd.f32 0.0, %v564
        %566 = vmatmul.bf16.gmra.mxu0 %v293
        %v567 = vpop.f32.mrf.mxu0
        %v568 = vadd.f32 0.0, %v567
        %v569 = vpop.f32.mrf.mxu0
        %v570 = vadd.f32 0.0, %v569
        %571 = vmatmul.bf16.gmra.mxu0 %v294
        %v572 = vpop.f32.mrf.mxu0
        %v573 = vadd.f32 0.0, %v572
        %v574 = vpop.f32.mrf.mxu0
        %v575 = vadd.f32 0.0, %v574
        %576 = vmatmul.bf16.gmra.mxu0 %v295
        %v577 = vpop.f32.mrf.mxu0
        %v578 = vadd.f32 0.0, %v577
        %v579 = vpop.f32.mrf.mxu0
        %v580 = vadd.f32 0.0, %v579
        %581 = vmatmul.bf16.gmra.mxu0 %v296
        %v582 = vpop.f32.mrf.mxu0
        %v583 = vadd.f32 0.0, %v582
        %v584 = vpop.f32.mrf.mxu0
        %v585 = vadd.f32 0.0, %v584
        %586 = vmatmul.bf16.gmra.mxu0 %v297
        %v587 = vpop.f32.mrf.mxu0
        %v588 = vpop.f32.mrf.mxu0
        %589 = vdwg.mxu0
        %590 = vmatpush.bf16.msra.mxu0 %v432
        %591 = vmatpush.bf16.msra.mxu0 %v429
        %592 = vmatpush.bf16.msra.mxu0 %v426
        %593 = vmatpush.bf16.msra.mxu0 %v423
        %594 = vmatpush.bf16.msra.mxu0 %v420
        %595 = vmatpush.bf16.msra.mxu0 %v417
        %596 = vmatpush.bf16.msra.mxu0 %v414
        %597 = vmatpush.bf16.msra.mxu0 %v411
        %598 = vmatmul.bf16.gmra.mxu0 %v273
        %v599 = vpop.f32.mrf.mxu0
        %v600 = vadd.f32 0.0, %v599
        %v601 = vpop.f32.mrf.mxu0
        %v602 = vadd.f32 0.0, %v601
        %603 = vmatmul.bf16.gmra.mxu0 %v274
        %v604 = vpop.f32.mrf.mxu0
        %v605 = vadd.f32 0.0, %v604
        %v606 = vpop.f32.mrf.mxu0
        %v607 = vadd.f32 0.0, %v606
        %608 = vmatmul.bf16.gmra.mxu0 %v275
        %v609 = vpop.f32.mrf.mxu0
        %v610 = vadd.f32 0.0, %v609
        %v611 = vpop.f32.mrf.mxu0
        %v612 = vadd.f32 0.0, %v611
        %613 = vmatmul.bf16.gmra.mxu0 %v276
        %v614 = vpop.f32.mrf.mxu0
        %v615 = vadd.f32 0.0, %v614
        %v616 = vpop.f32.mrf.mxu0
        %v617 = vadd.f32 0.0, %v616
        %618 = vmatmul.bf16.gmra.mxu0 %v277
        %v619 = vpop.f32.mrf.mxu0
        %v620 = vadd.f32 0.0, %v619
        %v621 = vpop.f32.mrf.mxu0
        %v622 = vadd.f32 0.0, %v621
        %623 = vmatmul.bf16.gmra.mxu0 %v278
        %v624 = vpop.f32.mrf.mxu0
        %v625 = vadd.f32 0.0, %v624
        %v626 = vpop.f32.mrf.mxu0
        %v627 = vadd.f32 0.0, %v626
        %628 = vmatmul.bf16.gmra.mxu0 %v279
        %v629 = vpop.f32.mrf.mxu0
        %v630 = vadd.f32 0.0, %v629
        %v631 = vpop.f32.mrf.mxu0
        %v632 = vadd.f32 0.0, %v631
        %633 = vmatmul.bf16.gmra.mxu0 %v280
        %v634 = vpop.f32.mrf.mxu0
        %v635 = vadd.f32 0.0, %v634
        %v636 = vpop.f32.mrf.mxu0
        %v637 = vadd.f32 0.0, %v636
        %638 = vmatmul.bf16.gmra.mxu0 %v281
        %v639 = vpop.f32.mrf.mxu0
        %v640 = vadd.f32 0.0, %v639
        %v641 = vpop.f32.mrf.mxu0
        %v642 = vadd.f32 0.0, %v641
        %643 = vmatmul.bf16.gmra.mxu0 %v282
        %v644 = vpop.f32.mrf.mxu0
        %v645 = vadd.f32 0.0, %v644
        %v646 = vpop.f32.mrf.mxu0
        %v647 = vadd.f32 0.0, %v646
        %648 = vmatmul.bf16.gmra.mxu0 %v283
        %v649 = vpop.f32.mrf.mxu0
        %v650 = vadd.f32 0.0, %v649
        %v651 = vpop.f32.mrf.mxu0
        %v652 = vadd.f32 0.0, %v651
        %653 = vmatmul.bf16.gmra.mxu0 %v284
        %v654 = vpop.f32.mrf.mxu0
        %v655 = vadd.f32 0.0, %v654
        %v656 = vpop.f32.mrf.mxu0
        %v657 = vadd.f32 0.0, %v656
        %658 = vmatmul.bf16.gmra.mxu0 %v285
        %v659 = vpop.f32.mrf.mxu0
        %v660 = vadd.f32 0.0, %v659
        %v661 = vpop.f32.mrf.mxu0
        %v662 = vadd.f32 0.0, %v661
        %663 = vmatmul.bf16.gmra.mxu0 %v286
        %v664 = vpop.f32.mrf.mxu0
        %v665 = vadd.f32 0.0, %v664
        %v666 = vpop.f32.mrf.mxu0
        %v667 = vadd.f32 0.0, %v666
        %668 = vmatmul.bf16.gmra.mxu0 %v287
        %v669 = vpop.f32.mrf.mxu0
        %v670 = vadd.f32 0.0, %v669
        %v671 = vpop.f32.mrf.mxu0
        %v672 = vadd.f32 0.0, %v671
        %673 = vmatmul.bf16.gmra.mxu0 %v288
        %v674 = vpop.f32.mrf.mxu0
        %v675 = vadd.f32 0.0, %v674
        %v676 = vpop.f32.mrf.mxu0
        %v677 = vadd.f32 0.0, %v676
        %678 = vmatmul.bf16.gmra.mxu0 %v289
        %v679 = vpop.f32.mrf.mxu0
        %v680 = vadd.f32 0.0, %v679
        %v681 = vpop.f32.mrf.mxu0
        %v682 = vadd.f32 0.0, %v681
        %683 = vmatmul.bf16.gmra.mxu0 %v290
        %v684 = vpop.f32.mrf.mxu0
        %v685 = vadd.f32 0.0, %v684
        %v686 = vpop.f32.mrf.mxu0
        %v687 = vadd.f32 0.0, %v686
        %688 = vmatmul.bf16.gmra.mxu0 %v291
        %v689 = vpop.f32.mrf.mxu0
        %v690 = vadd.f32 0.0, %v689
        %v691 = vpop.f32.mrf.mxu0
        %v692 = vadd.f32 0.0, %v691
        %693 = vmatmul.bf16.gmra.mxu0 %v292
        %v694 = vpop.f32.mrf.mxu0
        %v695 = vadd.f32 0.0, %v694
        %v696 = vpop.f32.mrf.mxu0
        %v697 = vadd.f32 0.0, %v696
        %698 = vmatmul.bf16.gmra.mxu0 %v293
        %v699 = vpop.f32.mrf.mxu0
        %v700 = vadd.f32 0.0, %v699
        %v701 = vpop.f32.mrf.mxu0
        %v702 = vadd.f32 0.0, %v701
        %703 = vmatmul.bf16.gmra.mxu0 %v294
        %v704 = vpop.f32.mrf.mxu0
        %v705 = vadd.f32 0.0, %v704
        %v706 = vpop.f32.mrf.mxu0
        %v707 = vadd.f32 0.0, %v706
        %708 = vmatmul.bf16.gmra.mxu0 %v295
        %v709 = vpop.f32.mrf.mxu0
        %v710 = vadd.f32 0.0, %v709
        %v711 = vpop.f32.mrf.mxu0
        %v712 = vadd.f32 0.0, %v711
        %713 = vmatmul.bf16.gmra.mxu0 %v296
        %v714 = vpop.f32.mrf.mxu0
        %v715 = vadd.f32 0.0, %v714
        %v716 = vpop.f32.mrf.mxu0
        %v717 = vadd.f32 0.0, %v716
        %718 = vmatmul.bf16.gmra.mxu0 %v297
        %v719 = vpop.f32.mrf.mxu0
        %v720 = vadd.f32 0.0, %v719
        %v721 = vpop.f32.mrf.mxu0
        %722 = vdwg.mxu0
        %723 = vmatpush.bf16.msra.mxu0 %v433
        %724 = vmatpush.bf16.msra.mxu0 %v430
        %725 = vmatpush.bf16.msra.mxu0 %v427
        %726 = vmatpush.bf16.msra.mxu0 %v424
        %727 = vmatpush.bf16.msra.mxu0 %v421
        %728 = vmatpush.bf16.msra.mxu0 %v418
        %729 = vmatpush.bf16.msra.mxu0 %v415
        %730 = vmatpush.bf16.msra.mxu0 %v412
        %731 = vmatmul.bf16.gmra.mxu0 %v273
        %v732 = vpop.f32.mrf.mxu0
        %v733 = vadd.f32 0.0, %v732
        %v734 = vpop.f32.mrf.mxu0
        %v735 = vadd.f32 0.0, %v734
        %736 = vmatmul.bf16.gmra.mxu0 %v274
        %v737 = vpop.f32.mrf.mxu0
        %v738 = vadd.f32 0.0, %v737
        %v739 = vpop.f32.mrf.mxu0
        %v740 = vadd.f32 0.0, %v739
        %741 = vmatmul.bf16.gmra.mxu0 %v275
        %v742 = vpop.f32.mrf.mxu0
        %v743 = vadd.f32 0.0, %v742
        %v744 = vpop.f32.mrf.mxu0
        %v745 = vadd.f32 0.0, %v744
        %746 = vmatmul.bf16.gmra.mxu0 %v276
        %v747 = vpop.f32.mrf.mxu0
        %v748 = vadd.f32 0.0, %v747
        %v749 = vpop.f32.mrf.mxu0
        %v750 = vadd.f32 0.0, %v749
        %751 = vmatmul.bf16.gmra.mxu0 %v277
        %v752 = vpop.f32.mrf.mxu0
        %v753 = vadd.f32 0.0, %v752
        %v754 = vpop.f32.mrf.mxu0
        %v755 = vadd.f32 0.0, %v754
        %756 = vmatmul.bf16.gmra.mxu0 %v278
        %v757 = vpop.f32.mrf.mxu0
        %v758 = vadd.f32 0.0, %v757
        %v759 = vpop.f32.mrf.mxu0
        %v760 = vadd.f32 0.0, %v759
        %761 = vmatmul.bf16.gmra.mxu0 %v279
        %v762 = vpop.f32.mrf.mxu0
        %v763 = vadd.f32 0.0, %v762
        %v764 = vpop.f32.mrf.mxu0
        %v765 = vadd.f32 0.0, %v764
        %766 = vmatmul.bf16.gmra.mxu0 %v280
        %v767 = vpop.f32.mrf.mxu0
        %v768 = vadd.f32 0.0, %v767
        %v769 = vpop.f32.mrf.mxu0
        %v770 = vadd.f32 0.0, %v769
        %771 = vmatmul.bf16.gmra.mxu0 %v281
        %v772 = vpop.f32.mrf.mxu0
        %v773 = vadd.f32 0.0, %v772
        %v774 = vpop.f32.mrf.mxu0
        %v775 = vadd.f32 0.0, %v774
        %776 = vmatmul.bf16.gmra.mxu0 %v282
        %v777 = vpop.f32.mrf.mxu0
        %v778 = vadd.f32 0.0, %v777
        %v779 = vpop.f32.mrf.mxu0
        %v780 = vadd.f32 0.0, %v779
        %781 = vmatmul.bf16.gmra.mxu0 %v283
        %v782 = vpop.f32.mrf.mxu0
        %v783 = vadd.f32 0.0, %v782
        %v784 = vpop.f32.mrf.mxu0
        %v785 = vadd.f32 0.0, %v784
        %786 = vmatmul.bf16.gmra.mxu0 %v284
        %v787 = vpop.f32.mrf.mxu0
        %v788 = vadd.f32 0.0, %v787
        %v789 = vpop.f32.mrf.mxu0
        %v790 = vadd.f32 0.0, %v789
        %791 = vmatmul.bf16.gmra.mxu0 %v285
        %v792 = vpop.f32.mrf.mxu0
        %v793 = vadd.f32 0.0, %v792
        %v794 = vpop.f32.mrf.mxu0
        %v795 = vadd.f32 0.0, %v794
        %796 = vmatmul.bf16.gmra.mxu0 %v286
        %v797 = vpop.f32.mrf.mxu0
        %v798 = vadd.f32 0.0, %v797
        %v799 = vpop.f32.mrf.mxu0
        %v800 = vadd.f32 0.0, %v799
        %801 = vmatmul.bf16.gmra.mxu0 %v287
        %v802 = vpop.f32.mrf.mxu0
        %v803 = vadd.f32 0.0, %v802
        %v804 = vpop.f32.mrf.mxu0
        %v805 = vadd.f32 0.0, %v804
        %806 = vmatmul.bf16.gmra.mxu0 %v288
        %v807 = vpop.f32.mrf.mxu0
        %v808 = vadd.f32 0.0, %v807
        %v809 = vpop.f32.mrf.mxu0
        %v810 = vadd.f32 0.0, %v809
        %811 = vmatmul.bf16.gmra.mxu0 %v289
        %v812 = vpop.f32.mrf.mxu0
        %v813 = vadd.f32 0.0, %v812
        %v814 = vpop.f32.mrf.mxu0
        %v815 = vadd.f32 0.0, %v814
        %816 = vmatmul.bf16.gmra.mxu0 %v290
        %v817 = vpop.f32.mrf.mxu0
        %v818 = vadd.f32 0.0, %v817
        %v819 = vpop.f32.mrf.mxu0
        %v820 = vadd.f32 0.0, %v819
        %821 = vmatmul.bf16.gmra.mxu0 %v291
        %v822 = vpop.f32.mrf.mxu0
        %v823 = vadd.f32 0.0, %v822
        %v824 = vpop.f32.mrf.mxu0
        %v825 = vadd.f32 0.0, %v824
        %826 = vmatmul.bf16.gmra.mxu0 %v292
        %v827 = vpop.f32.mrf.mxu0
        %v828 = vadd.f32 0.0, %v827
        %v829 = vpop.f32.mrf.mxu0
        %v830 = vadd.f32 0.0, %v829
        %831 = vmatmul.bf16.gmra.mxu0 %v293
        %v832 = vpop.f32.mrf.mxu0
        %v833 = vadd.f32 0.0, %v832
        %v834 = vpop.f32.mrf.mxu0
        %v835 = vadd.f32 0.0, %v834
        %836 = vmatmul.bf16.gmra.mxu0 %v294
        %v837 = vpop.f32.mrf.mxu0
        %v838 = vadd.f32 0.0, %v837
        %v839 = vpop.f32.mrf.mxu0
        %v840 = vadd.f32 0.0, %v839
        %841 = vmatmul.bf16.gmra.mxu0 %v295
        %v842 = vpop.f32.mrf.mxu0
        %v843 = vadd.f32 0.0, %v842
        %v844 = vpop.f32.mrf.mxu0
        %v845 = vadd.f32 0.0, %v844
        %846 = vmatmul.bf16.gmra.mxu0 %v296
        %v847 = vpop.f32.mrf.mxu0
        %v848 = vadd.f32 0.0, %v847
        %v849 = vpop.f32.mrf.mxu0
        %v850 = vadd.f32 0.0, %v849
        %851 = vmatmul.bf16.gmra.mxu0 %v297
        %v852 = vpop.f32.mrf.mxu0
        %v853 = vadd.f32 0.0, %v852
        %v854 = vpop.f32.mrf.mxu0
        %855 = vdwg.mxu0
        %v856 = vadd.f32 %v468, 0.0
        %v857 = vadd.f32 %v470, 0.0
        %v858 = vadd.f32 %v473, 0.0
        %v859 = vadd.f32 %v475, 0.0
        %v860 = vadd.f32 %v478, 0.0
        %v861 = vadd.f32 %v480, 0.0
        %v862 = vadd.f32 %v483, 0.0
        %v863 = vadd.f32 %v485, 0.0
        %v864 = vadd.f32 %v488, 0.0
        %v865 = vadd.f32 %v490, 0.0
        %v866 = vadd.f32 %v493, 0.0
        %v867 = vadd.f32 %v495, 0.0
        %v868 = vadd.f32 %v498, 0.0
        %v869 = vadd.f32 %v500, 0.0
        %v870 = vadd.f32 %v503, 0.0
        %v871 = vadd.f32 %v505, 0.0
        %v872 = vadd.f32 %v508, 0.0
        %v873 = vadd.f32 %v510, 0.0
        %v874 = vadd.f32 %v513, 0.0
        %v875 = vadd.f32 %v515, 0.0
        %v876 = vadd.f32 %v518, 0.0
        %v877 = vadd.f32 %v520, 0.0
        %v878 = vadd.f32 %v523, 0.0
        %v879 = vadd.f32 %v525, 0.0
        %v880 = vadd.f32 %v528, 0.0
        %v881 = vadd.f32 %v530, 0.0
        %v882 = vadd.f32 %v533, 0.0
        %v883 = vadd.f32 %v535, 0.0
        %v884 = vadd.f32 %v538, 0.0
        %v885 = vadd.f32 %v540, 0.0
        %v886 = vadd.f32 %v543, 0.0
        %v887 = vadd.f32 %v545, 0.0
        %v888 = vadd.f32 %v548, 0.0
        %v889 = vadd.f32 %v550, 0.0
        %v890 = vadd.f32 %v553, 0.0
        %v891 = vadd.f32 %v555, 0.0
        %v892 = vadd.f32 %v558, 0.0
        %v893 = vadd.f32 %v560, 0.0
        %v894 = vadd.f32 %v563, 0.0
        %v895 = vadd.f32 %v565, 0.0
        %v896 = vadd.f32 %v568, 0.0
        %v897 = vadd.f32 %v570, 0.0
        %v898 = vadd.f32 %v573, 0.0
        %v899 = vadd.f32 %v575, 0.0
        %v900 = vadd.f32 %v578, 0.0
        %v901 = vadd.f32 %v580, 0.0
        %v902 = vadd.f32 %v583, 0.0
        %v903 = vadd.f32 %v585, 0.0
        %vm953 = vcmask 1046528
        %v954 = vrot.slane %v600, 1
        %v955 = vrot.slane %v602, 1
        %v956 = vsel %vm953, %v954, %v955
        %v957 = vrot.slane %v605, 1
        %v958 = vsel %vm953, %v955, %v957
        %v959 = vrot.slane %v607, 1
        %v960 = vsel %vm953, %v957, %v959
        %v961 = vrot.slane %v610, 1
        %v962 = vsel %vm953, %v959, %v961
        %v963 = vrot.slane %v612, 1
        %v964 = vsel %vm953, %v961, %v963
        %v965 = vrot.slane %v615, 1
        %v966 = vsel %vm953, %v963, %v965
        %v967 = vrot.slane %v617, 1
        %v968 = vsel %vm953, %v965, %v967
        %v969 = vrot.slane %v620, 1
        %v970 = vsel %vm953, %v967, %v969
        %v971 = vrot.slane %v622, 1
        %v972 = vsel %vm953, %v969, %v971
        %v973 = vrot.slane %v625, 1
        %v974 = vsel %vm953, %v971, %v973
        %v975 = vrot.slane %v627, 1
        %v976 = vsel %vm953, %v973, %v975
        %v977 = vrot.slane %v630, 1
        %v978 = vsel %vm953, %v975, %v977
        %v979 = vrot.slane %v632, 1
        %v980 = vsel %vm953, %v977, %v979
        %v981 = vrot.slane %v635, 1
        %v982 = vsel %vm953, %v979, %v981
        %v983 = vrot.slane %v637, 1
        %v984 = vsel %vm953, %v981, %v983
        %v985 = vrot.slane %v640, 1
        %v986 = vsel %vm953, %v983, %v985
        %v987 = vrot.slane %v642, 1
        %v988 = vsel %vm953, %v985, %v987
        %v989 = vrot.slane %v645, 1
        %v990 = vsel %vm953, %v987, %v989
        %v991 = vrot.slane %v647, 1
        %v992 = vsel %vm953, %v989, %v991
        %v993 = vrot.slane %v650, 1
        %v994 = vsel %vm953, %v991, %v993
        %v995 = vrot.slane %v652, 1
        %v996 = vsel %vm953, %v993, %v995
        %v997 = vrot.slane %v655, 1
        %v998 = vsel %vm953, %v995, %v997
        %v999 = vrot.slane %v657, 1
        %v1000 = vsel %vm953, %v997, %v999
        %v1001 = vrot.slane %v660, 1
        %v1002 = vsel %vm953, %v999, %v1001
        %v1003 = vrot.slane %v662, 1
        %v1004 = vsel %vm953, %v1001, %v1003
        %v1005 = vrot.slane %v665, 1
        %v1006 = vsel %vm953, %v1003, %v1005
        %v1007 = vrot.slane %v667, 1
        %v1008 = vsel %vm953, %v1005, %v1007
        %v1009 = vrot.slane %v670, 1
        %v1010 = vsel %vm953, %v1007, %v1009
        %v1011 = vrot.slane %v672, 1
        %v1012 = vsel %vm953, %v1009, %v1011
        %v1013 = vrot.slane %v675, 1
        %v1014 = vsel %vm953, %v1011, %v1013
        %v1015 = vrot.slane %v677, 1
        %v1016 = vsel %vm953, %v1013, %v1015
        %v1017 = vrot.slane %v680, 1
        %v1018 = vsel %vm953, %v1015, %v1017
        %v1019 = vrot.slane %v682, 1
        %v1020 = vsel %vm953, %v1017, %v1019
        %v1021 = vrot.slane %v685, 1
        %v1022 = vsel %vm953, %v1019, %v1021
        %v1023 = vrot.slane %v687, 1
        %v1024 = vsel %vm953, %v1021, %v1023
        %v1025 = vrot.slane %v690, 1
        %v1026 = vsel %vm953, %v1023, %v1025
        %v1027 = vrot.slane %v692, 1
        %v1028 = vsel %vm953, %v1025, %v1027
        %v1029 = vrot.slane %v695, 1
        %v1030 = vsel %vm953, %v1027, %v1029
        %v1031 = vrot.slane %v697, 1
        %v1032 = vsel %vm953, %v1029, %v1031
        %v1033 = vrot.slane %v700, 1
        %v1034 = vsel %vm953, %v1031, %v1033
        %v1035 = vrot.slane %v702, 1
        %v1036 = vsel %vm953, %v1033, %v1035
        %v1037 = vrot.slane %v705, 1
        %v1038 = vsel %vm953, %v1035, %v1037
        %v1039 = vrot.slane %v707, 1
        %v1040 = vsel %vm953, %v1037, %v1039
        %v1041 = vrot.slane %v710, 1
        %v1042 = vsel %vm953, %v1039, %v1041
        %v1043 = vrot.slane %v712, 1
        %v1044 = vsel %vm953, %v1041, %v1043
        %v1045 = vrot.slane %v715, 1
        %v1046 = vsel %vm953, %v1043, %v1045
        %v1047 = vrot.slane %v717, 1
        %v1048 = vsel %vm953, %v1045, %v1047
        %v1049 = vrot.slane %v720, 1
        %v1050 = vsel %vm953, %v1047, %v1049
        %v1099 = vadd.f32 %v856, %v956
        %v1100 = vadd.f32 %v857, %v958
        %v1101 = vadd.f32 %v858, %v960
        %v1102 = vadd.f32 %v859, %v962
        %v1103 = vadd.f32 %v860, %v964
        %v1104 = vadd.f32 %v861, %v966
        %v1105 = vadd.f32 %v862, %v968
        %v1106 = vadd.f32 %v863, %v970
        %v1107 = vadd.f32 %v864, %v972
        %v1108 = vadd.f32 %v865, %v974
        %v1109 = vadd.f32 %v866, %v976
        %v1110 = vadd.f32 %v867, %v978
        %v1111 = vadd.f32 %v868, %v980
        %v1112 = vadd.f32 %v869, %v982
        %v1113 = vadd.f32 %v870, %v984
        %v1114 = vadd.f32 %v871, %v986
        %v1115 = vadd.f32 %v872, %v988
        %v1116 = vadd.f32 %v873, %v990
        %v1117 = vadd.f32 %v874, %v992
        %v1118 = vadd.f32 %v875, %v994
        %v1119 = vadd.f32 %v876, %v996
        %v1120 = vadd.f32 %v877, %v998
        %v1121 = vadd.f32 %v878, %v1000
        %v1122 = vadd.f32 %v879, %v1002
        %v1123 = vadd.f32 %v880, %v1004
        %v1124 = vadd.f32 %v881, %v1006
        %v1125 = vadd.f32 %v882, %v1008
        %v1126 = vadd.f32 %v883, %v1010
        %v1127 = vadd.f32 %v884, %v1012
        %v1128 = vadd.f32 %v885, %v1014
        %v1129 = vadd.f32 %v886, %v1016
        %v1130 = vadd.f32 %v887, %v1018
        %v1131 = vadd.f32 %v888, %v1020
        %v1132 = vadd.f32 %v889, %v1022
        %v1133 = vadd.f32 %v890, %v1024
        %v1134 = vadd.f32 %v891, %v1026
        %v1135 = vadd.f32 %v892, %v1028
        %v1136 = vadd.f32 %v893, %v1030
        %v1137 = vadd.f32 %v894, %v1032
        %v1138 = vadd.f32 %v895, %v1034
        %v1139 = vadd.f32 %v896, %v1036
        %v1140 = vadd.f32 %v897, %v1038
        %v1141 = vadd.f32 %v898, %v1040
        %v1142 = vadd.f32 %v899, %v1042
        %v1143 = vadd.f32 %v900, %v1044
        %v1144 = vadd.f32 %v901, %v1046
        %v1145 = vadd.f32 %v902, %v1048
        %v1146 = vadd.f32 %v903, %v1050
        %vm1196 = vcmask 1045504
        %v1197 = vrot.slane %v733, 2
        %v1198 = vrot.slane %v735, 2
        %v1199 = vsel %vm1196, %v1197, %v1198
        %v1200 = vrot.slane %v738, 2
        %v1201 = vsel %vm1196, %v1198, %v1200
        %v1202 = vrot.slane %v740, 2
        %v1203 = vsel %vm1196, %v1200, %v1202
        %v1204 = vrot.slane %v743, 2
        %v1205 = vsel %vm1196, %v1202, %v1204
        %v1206 = vrot.slane %v745, 2
        %v1207 = vsel %vm1196, %v1204, %v1206
        %v1208 = vrot.slane %v748, 2
        %v1209 = vsel %vm1196, %v1206, %v1208
        %v1210 = vrot.slane %v750, 2
        %v1211 = vsel %vm1196, %v1208, %v1210
        %v1212 = vrot.slane %v753, 2
        %v1213 = vsel %vm1196, %v1210, %v1212
        %v1214 = vrot.slane %v755, 2
        %v1215 = vsel %vm1196, %v1212, %v1214
        %v1216 = vrot.slane %v758, 2
        %v1217 = vsel %vm1196, %v1214, %v1216
        %v1218 = vrot.slane %v760, 2
        %v1219 = vsel %vm1196, %v1216, %v1218
        %v1220 = vrot.slane %v763, 2
        %v1221 = vsel %vm1196, %v1218, %v1220
        %v1222 = vrot.slane %v765, 2
        %v1223 = vsel %vm1196, %v1220, %v1222
        %v1224 = vrot.slane %v768, 2
        %v1225 = vsel %vm1196, %v1222, %v1224
        %v1226 = vrot.slane %v770, 2
        %v1227 = vsel %vm1196, %v1224, %v1226
        %v1228 = vrot.slane %v773, 2
        %v1229 = vsel %vm1196, %v1226, %v1228
        %v1230 = vrot.slane %v775, 2
        %v1231 = vsel %vm1196, %v1228, %v1230
        %v1232 = vrot.slane %v778, 2
        %v1233 = vsel %vm1196, %v1230, %v1232
        %v1234 = vrot.slane %v780, 2
        %v1235 = vsel %vm1196, %v1232, %v1234
        %v1236 = vrot.slane %v783, 2
        %v1237 = vsel %vm1196, %v1234, %v1236
        %v1238 = vrot.slane %v785, 2
        %v1239 = vsel %vm1196, %v1236, %v1238
        %v1240 = vrot.slane %v788, 2
        %v1241 = vsel %vm1196, %v1238, %v1240
        %v1242 = vrot.slane %v790, 2
        %v1243 = vsel %vm1196, %v1240, %v1242
        %v1244 = vrot.slane %v793, 2
        %v1245 = vsel %vm1196, %v1242, %v1244
        %v1246 = vrot.slane %v795, 2
        %v1247 = vsel %vm1196, %v1244, %v1246
        %v1248 = vrot.slane %v798, 2
        %v1249 = vsel %vm1196, %v1246, %v1248
        %v1250 = vrot.slane %v800, 2
        %v1251 = vsel %vm1196, %v1248, %v1250
        %v1252 = vrot.slane %v803, 2
        %v1253 = vsel %vm1196, %v1250, %v1252
        %v1254 = vrot.slane %v805, 2
        %v1255 = vsel %vm1196, %v1252, %v1254
        %v1256 = vrot.slane %v808, 2
        %v1257 = vsel %vm1196, %v1254, %v1256
        %v1258 = vrot.slane %v810, 2
        %v1259 = vsel %vm1196, %v1256, %v1258
        %v1260 = vrot.slane %v813, 2
        %v1261 = vsel %vm1196, %v1258, %v1260
        %v1262 = vrot.slane %v815, 2
        %v1263 = vsel %vm1196, %v1260, %v1262
        %v1264 = vrot.slane %v818, 2
        %v1265 = vsel %vm1196, %v1262, %v1264
        %v1266 = vrot.slane %v820, 2
        %v1267 = vsel %vm1196, %v1264, %v1266
        %v1268 = vrot.slane %v823, 2
        %v1269 = vsel %vm1196, %v1266, %v1268
        %v1270 = vrot.slane %v825, 2
        %v1271 = vsel %vm1196, %v1268, %v1270
        %v1272 = vrot.slane %v828, 2
        %v1273 = vsel %vm1196, %v1270, %v1272
        %v1274 = vrot.slane %v830, 2
        %v1275 = vsel %vm1196, %v1272, %v1274
        %v1276 = vrot.slane %v833, 2
        %v1277 = vsel %vm1196, %v1274, %v1276
        %v1278 = vrot.slane %v835, 2
        %v1279 = vsel %vm1196, %v1276, %v1278
        %v1280 = vrot.slane %v838, 2
        %v1281 = vsel %vm1196, %v1278, %v1280
        %v1282 = vrot.slane %v840, 2
        %v1283 = vsel %vm1196, %v1280, %v1282
        %v1284 = vrot.slane %v843, 2
        %v1285 = vsel %vm1196, %v1282, %v1284
        %v1286 = vrot.slane %v845, 2
        %v1287 = vsel %vm1196, %v1284, %v1286
        %v1288 = vrot.slane %v848, 2
        %v1289 = vsel %vm1196, %v1286, %v1288
        %v1290 = vrot.slane %v850, 2
        %v1291 = vsel %vm1196, %v1288, %v1290
        %v1292 = vrot.slane %v853, 2
        %v1293 = vsel %vm1196, %v1290, %v1292
        %v1342 = vadd.f32 %v1099, %v1199
        %v1343 = vadd.f32 %v1100, %v1201
        %v1344 = vadd.f32 %v1101, %v1203
        %v1345 = vadd.f32 %v1102, %v1205
        %v1346 = vadd.f32 %v1103, %v1207
        %v1347 = vadd.f32 %v1104, %v1209
        %v1348 = vadd.f32 %v1105, %v1211
        %v1349 = vadd.f32 %v1106, %v1213
        %v1350 = vadd.f32 %v1107, %v1215
        %v1351 = vadd.f32 %v1108, %v1217
        %v1352 = vadd.f32 %v1109, %v1219
        %v1353 = vadd.f32 %v1110, %v1221
        %v1354 = vadd.f32 %v1111, %v1223
        %v1355 = vadd.f32 %v1112, %v1225
        %v1356 = vadd.f32 %v1113, %v1227
        %v1357 = vadd.f32 %v1114, %v1229
        %v1358 = vadd.f32 %v1115, %v1231
        %v1359 = vadd.f32 %v1116, %v1233
        %v1360 = vadd.f32 %v1117, %v1235
        %v1361 = vadd.f32 %v1118, %v1237
        %v1362 = vadd.f32 %v1119, %v1239
        %v1363 = vadd.f32 %v1120, %v1241
        %v1364 = vadd.f32 %v1121, %v1243
        %v1365 = vadd.f32 %v1122, %v1245
        %v1366 = vadd.f32 %v1123, %v1247
        %v1367 = vadd.f32 %v1124, %v1249
        %v1368 = vadd.f32 %v1125, %v1251
        %v1369 = vadd.f32 %v1126, %v1253
        %v1370 = vadd.f32 %v1127, %v1255
        %v1371 = vadd.f32 %v1128, %v1257
        %v1372 = vadd.f32 %v1129, %v1259
        %v1373 = vadd.f32 %v1130, %v1261
        %v1374 = vadd.f32 %v1131, %v1263
        %v1375 = vadd.f32 %v1132, %v1265
        %v1376 = vadd.f32 %v1133, %v1267
        %v1377 = vadd.f32 %v1134, %v1269
        %v1378 = vadd.f32 %v1135, %v1271
        %v1379 = vadd.f32 %v1136, %v1273
        %v1380 = vadd.f32 %v1137, %v1275
        %v1381 = vadd.f32 %v1138, %v1277
        %v1382 = vadd.f32 %v1139, %v1279
        %v1383 = vadd.f32 %v1140, %v1281
        %v1384 = vadd.f32 %v1141, %v1283
        %v1385 = vadd.f32 %v1142, %v1285
        %v1386 = vadd.f32 %v1143, %v1287
        %v1387 = vadd.f32 %v1144, %v1289
        %v1388 = vadd.f32 %v1145, %v1291
        %v1389 = vadd.f32 %v1146, %v1293
        %s1390 = scalar_lea.vmem %s190, 24 [#allocation4]
        %v1391 = vld [vmem:[%s1390] sm:$0xff]
        %v1392 = vld [vmem:[%s1390 + $0x8] sm:$0xff]
        %v1393 = vld [vmem:[%s1390 + $0x10] sm:$0xff]
        %v1394 = vld [vmem:[%s1390 + $0x18] sm:$0xff]
        %v1395 = vld [vmem:[%s1390 + $0x20] sm:$0xff]
        %v1396 = vld [vmem:[%s1390 + $0x28] sm:$0xff]
        %v1397 = vld [vmem:[%s1390 + $0x30] sm:$0xff]
        %v1398 = vld [vmem:[%s1390 + $0x38] sm:$0xff]
        %v1399 = vld [vmem:[%s1390 + $0x40] sm:$0xff]
        %v1400 = vld [vmem:[%s1390 + $0x48] sm:$0xff]
        %v1401 = vld [vmem:[%s1390 + $0x50] sm:$0xff]
        %v1402 = vld [vmem:[%s1390 + $0x58] sm:$0xff]
        %v1403 = vld [vmem:[%s1390 + $0x60] sm:$0xff]
        %v1404 = vld [vmem:[%s1390 + $0x68] sm:$0xff]
        %v1405 = vld [vmem:[%s1390 + $0x70] sm:$0xff]
        %v1406 = vld [vmem:[%s1390 + $0x78] sm:$0xff]
        %v1407 = vld [vmem:[%s1390 + $0x80] sm:$0xff]
        %v1408 = vld [vmem:[%s1390 + $0x88] sm:$0xff]
        %v1409 = vld [vmem:[%s1390 + $0x90] sm:$0xff]
        %v1410 = vld [vmem:[%s1390 + $0x98] sm:$0xff]
        %v1411 = vld [vmem:[%s1390 + $0xa0] sm:$0xff]
        %v1412 = vld [vmem:[%s1390 + $0xa8] sm:$0xff]
        %v1413 = vld [vmem:[%s1390 + $0xb0] sm:$0xff]
        %v1414 = vld [vmem:[%s1390 + $0xb8] sm:$0xff]
        %v1415 = vld [vmem:[%s1390 + $0xc0] sm:$0xff]
        %v1416 = vld [vmem:[%s1390 + $0xc8] sm:$0xff]
        %v1417 = vld [vmem:[%s1390 + $0xd0] sm:$0xff]
        %v1418 = vld [vmem:[%s1390 + $0xd8] sm:$0xff]
        %v1419 = vld [vmem:[%s1390 + $0xe0] sm:$0xff]
        %v1420 = vld [vmem:[%s1390 + $0xe8] sm:$0xff]
        %v1421 = vld [vmem:[%s1390 + $0xf0] sm:$0xff]
        %v1422 = vld [vmem:[%s1390 + $0xf8] sm:$0xff]
        %v1423 = vld [vmem:[%s1390 + $0x100] sm:$0xff]
        %v1424 = vld [vmem:[%s1390 + $0x108] sm:$0xff]
        %v1425 = vld [vmem:[%s1390 + $0x110] sm:$0xff]
        %v1426 = vld [vmem:[%s1390 + $0x118] sm:$0xff]
        %v1427 = vld [vmem:[%s1390 + $0x120] sm:$0xff]
        %v1428 = vld [vmem:[%s1390 + $0x128] sm:$0xff]
        %v1429 = vld [vmem:[%s1390 + $0x130] sm:$0xff]
        %v1430 = vld [vmem:[%s1390 + $0x138] sm:$0xff]
        %v1431 = vld [vmem:[%s1390 + $0x140] sm:$0xff]
        %v1432 = vld [vmem:[%s1390 + $0x148] sm:$0xff]
        %v1433 = vld [vmem:[%s1390 + $0x150] sm:$0xff]
        %v1434 = vld [vmem:[%s1390 + $0x158] sm:$0xff]
        %v1435 = vld [vmem:[%s1390 + $0x160] sm:$0xff]
        %v1436 = vld [vmem:[%s1390 + $0x168] sm:$0xff]
        %v1437 = vld [vmem:[%s1390 + $0x170] sm:$0xff]
        %v1438 = vld [vmem:[%s1390 + $0x178] sm:$0xff]
        %v1439 = vld [vmem:[%s1390 + $0x180] sm:$0xff]
        %v1440 = vpack.c.bf16 %v1392, %v1391
        %v1441 = vpack.c.bf16 %v1394, %v1393
        %v1442 = vpack.c.bf16 %v1396, %v1395
        %v1443 = vpack.c.bf16 %v1398, %v1397
        %v1444 = vpack.c.bf16 %v1400, %v1399
        %v1445 = vpack.c.bf16 %v1402, %v1401
        %v1446 = vpack.c.bf16 %v1404, %v1403
        %v1447 = vpack.c.bf16 %v1406, %v1405
        %v1448 = vpack.c.bf16 %v1408, %v1407
        %v1449 = vpack.c.bf16 %v1410, %v1409
        %v1450 = vpack.c.bf16 %v1412, %v1411
        %v1451 = vpack.c.bf16 %v1414, %v1413
        %v1452 = vpack.c.bf16 %v1416, %v1415
        %v1453 = vpack.c.bf16 %v1418, %v1417
        %v1454 = vpack.c.bf16 %v1420, %v1419
        %v1455 = vpack.c.bf16 %v1422, %v1421
        %v1456 = vpack.c.bf16 %v1424, %v1423
        %v1457 = vpack.c.bf16 %v1426, %v1425
        %v1458 = vpack.c.bf16 %v1428, %v1427
        %v1459 = vpack.c.bf16 %v1430, %v1429
        %v1460 = vpack.c.bf16 %v1432, %v1431
        %v1461 = vpack.c.bf16 %v1434, %v1433
        %v1462 = vpack.c.bf16 %v1436, %v1435
        %v1463 = vpack.c.bf16 %v1438, %v1437
        %v1464 = vpack.c.bf16 %v1439, %v1439
        %s1465 = scalar_lea.vmem [#allocation7], 192
        %v1466 = vld [vmem:[%s1465] sm:$0xff]
        %v1467 = vld [vmem:[%s1465 + $0x8] sm:$0xf]
        %v1468 = vld [vmem:[%s1465 + $0xc] sm:$0xff]
        %v1469 = vld [vmem:[%s1465 + $0x14] sm:$0xf]
        %v1470 = vld [vmem:[%s1465 + $0x18] sm:$0xff]
        %v1471 = vld [vmem:[%s1465 + $0x20] sm:$0xf]
        %v1472 = vld [vmem:[%s1465 + $0x24] sm:$0xff]
        %v1473 = vld [vmem:[%s1465 + $0x2c] sm:$0xf]
        %v1474 = vld [vmem:[%s1465 + $0x30] sm:$0xff]
        %v1475 = vld [vmem:[%s1465 + $0x38] sm:$0xf]
        %v1476 = vld [vmem:[%s1465 + $0x3c] sm:$0xff]
        %v1477 = vld [vmem:[%s1465 + $0x44] sm:$0xf]
        %v1478 = vld [vmem:[%s1465 + $0x48] sm:$0xff]
        %v1479 = vld [vmem:[%s1465 + $0x50] sm:$0xf]
        %v1480 = vld [vmem:[%s1465 + $0x54] sm:$0xff]
        %v1481 = vld [vmem:[%s1465 + $0x5c] sm:$0xf]
        %v1482 = vld [vmem:[%s1465 + $0x60] sm:$0xff]
        %v1483 = vld [vmem:[%s1465 + $0x68] sm:$0xf]
        %v1484 = vld [vmem:[%s1465 + $0x6c] sm:$0xff]
        %v1485 = vld [vmem:[%s1465 + $0x74] sm:$0xf]
        %v1486 = vld [vmem:[%s1465 + $0x78] sm:$0xff]
        %v1487 = vld [vmem:[%s1465 + $0x80] sm:$0xf]
        %v1488 = vld [vmem:[%s1465 + $0x84] sm:$0xff]
        %v1489 = vld [vmem:[%s1465 + $0x8c] sm:$0xf]
        %v1490 = vld [vmem:[%s1465 + $0x90] sm:$0xff]
        %v1491 = vld [vmem:[%s1465 + $0x98] sm:$0xf]
        %v1492 = vld [vmem:[%s1465 + $0x9c] sm:$0xff]
        %v1493 = vld [vmem:[%s1465 + $0xa4] sm:$0xf]
        %v1494 = vld [vmem:[%s1465 + $0xa8] sm:$0xff]
        %v1495 = vld [vmem:[%s1465 + $0xb0] sm:$0xf]
        %v1496 = vld [vmem:[%s1465 + $0xb4] sm:$0xff]
        %v1497 = vld [vmem:[%s1465 + $0xbc] sm:$0xf]
        %v1530 = vunpack.c.l.b16 %v1466
        %v1531 = vunpack.c.h.b16 %v1466
        %v1532 = vunpack.c.l.b16 %v1467
        %v1533 = vunpack.c.l.b16 %v1468
        %v1534 = vunpack.c.h.b16 %v1468
        %v1535 = vunpack.c.l.b16 %v1469
        %v1536 = vunpack.c.l.b16 %v1470
        %v1537 = vunpack.c.h.b16 %v1470
        %v1538 = vunpack.c.l.b16 %v1471
        %v1539 = vunpack.c.l.b16 %v1472
        %v1540 = vunpack.c.h.b16 %v1472
        %v1541 = vunpack.c.l.b16 %v1473
        %v1542 = vunpack.c.l.b16 %v1474
        %v1543 = vunpack.c.h.b16 %v1474
        %v1544 = vunpack.c.l.b16 %v1475
        %v1545 = vunpack.c.l.b16 %v1476
        %v1546 = vunpack.c.h.b16 %v1476
        %v1547 = vunpack.c.l.b16 %v1477
        %v1548 = vunpack.c.l.b16 %v1478
        %v1549 = vunpack.c.h.b16 %v1478
        %v1550 = vunpack.c.l.b16 %v1479
        %v1551 = vunpack.c.l.b16 %v1480
        %v1552 = vunpack.c.h.b16 %v1480
        %v1553 = vunpack.c.l.b16 %v1481
        %v1554 = vunpack.c.l.b16 %v1482
        %v1555 = vunpack.c.h.b16 %v1482
        %v1556 = vunpack.c.l.b16 %v1483
        %v1557 = vunpack.c.l.b16 %v1484
        %v1558 = vunpack.c.h.b16 %v1484
        %v1559 = vunpack.c.l.b16 %v1485
        %v1560 = vunpack.c.l.b16 %v1486
        %v1561 = vunpack.c.h.b16 %v1486
        %v1562 = vunpack.c.l.b16 %v1487
        %v1563 = vunpack.c.l.b16 %v1488
        %v1564 = vunpack.c.h.b16 %v1488
        %v1565 = vunpack.c.l.b16 %v1489
        %v1566 = vunpack.c.l.b16 %v1490
        %v1567 = vunpack.c.h.b16 %v1490
        %v1568 = vunpack.c.l.b16 %v1491
        %v1569 = vunpack.c.l.b16 %v1492
        %v1570 = vunpack.c.h.b16 %v1492
        %v1571 = vunpack.c.l.b16 %v1493
        %v1572 = vunpack.c.l.b16 %v1494
        %v1573 = vunpack.c.h.b16 %v1494
        %v1574 = vunpack.c.l.b16 %v1495
        %v1575 = vunpack.c.l.b16 %v1496
        %v1576 = vunpack.c.h.b16 %v1496
        %v1577 = vunpack.c.l.b16 %v1497
        %v1578 = vpack.c.b16 %v1533, %v1530
        %v1579 = vpack.c.b16 %v1534, %v1531
        %v1580 = vpack.c.b16 %v1535, %v1532
        %v1581 = vpack.c.b16 %v1539, %v1536
        %v1582 = vpack.c.b16 %v1540, %v1537
        %v1583 = vpack.c.b16 %v1541, %v1538
        %v1584 = vpack.c.b16 %v1545, %v1542
        %v1585 = vpack.c.b16 %v1546, %v1543
        %v1586 = vpack.c.b16 %v1547, %v1544
        %v1587 = vpack.c.b16 %v1551, %v1548
        %v1588 = vpack.c.b16 %v1552, %v1549
        %v1589 = vpack.c.b16 %v1553, %v1550
        %v1590 = vpack.c.b16 %v1557, %v1554
        %v1591 = vpack.c.b16 %v1558, %v1555
        %v1592 = vpack.c.b16 %v1559, %v1556
        %v1593 = vpack.c.b16 %v1563, %v1560
        %v1594 = vpack.c.b16 %v1564, %v1561
        %v1595 = vpack.c.b16 %v1565, %v1562
        %v1596 = vpack.c.b16 %v1569, %v1566
        %v1597 = vpack.c.b16 %v1570, %v1567
        %v1598 = vpack.c.b16 %v1571, %v1568
        %v1599 = vpack.c.b16 %v1575, %v1572
        %v1600 = vpack.c.b16 %v1576, %v1573
        %v1601 = vpack.c.b16 %v1577, %v1574
        %1626 = vmatpush.bf16.msra.mxu0 %v1599
        %1627 = vmatpush.bf16.msra.mxu0 %v1596
        %1628 = vmatpush.bf16.msra.mxu0 %v1593
        %1629 = vmatpush.bf16.msra.mxu0 %v1590
        %1630 = vmatpush.bf16.msra.mxu0 %v1587
        %1631 = vmatpush.bf16.msra.mxu0 %v1584
        %1632 = vmatpush.bf16.msra.mxu0 %v1581
        %1633 = vmatpush.bf16.msra.mxu0 %v1578
        %1634 = vmatmul.bf16.gmra.mxu0 %v1440
        %v1635 = vpop.f32.mrf.mxu0
        %v1636 = vadd.f32 0.0, %v1635
        %v1637 = vpop.f32.mrf.mxu0
        %v1638 = vadd.f32 0.0, %v1637
        %1639 = vmatmul.bf16.gmra.mxu0 %v1441
        %v1640 = vpop.f32.mrf.mxu0
        %v1641 = vadd.f32 0.0, %v1640
        %v1642 = vpop.f32.mrf.mxu0
        %v1643 = vadd.f32 0.0, %v1642
        %1644 = vmatmul.bf16.gmra.mxu0 %v1442
        %v1645 = vpop.f32.mrf.mxu0
        %v1646 = vadd.f32 0.0, %v1645
        %v1647 = vpop.f32.mrf.mxu0
        %v1648 = vadd.f32 0.0, %v1647
        %1649 = vmatmul.bf16.gmra.mxu0 %v1443
        %v1650 = vpop.f32.mrf.mxu0
        %v1651 = vadd.f32 0.0, %v1650
        %v1652 = vpop.f32.mrf.mxu0
        %v1653 = vadd.f32 0.0, %v1652
        %1654 = vmatmul.bf16.gmra.mxu0 %v1444
        %v1655 = vpop.f32.mrf.mxu0
        %v1656 = vadd.f32 0.0, %v1655
        %v1657 = vpop.f32.mrf.mxu0
        %v1658 = vadd.f32 0.0, %v1657
        %1659 = vmatmul.bf16.gmra.mxu0 %v1445
        %v1660 = vpop.f32.mrf.mxu0
        %v1661 = vadd.f32 0.0, %v1660
        %v1662 = vpop.f32.mrf.mxu0
        %v1663 = vadd.f32 0.0, %v1662
        %1664 = vmatmul.bf16.gmra.mxu0 %v1446
        %v1665 = vpop.f32.mrf.mxu0
        %v1666 = vadd.f32 0.0, %v1665
        %v1667 = vpop.f32.mrf.mxu0
        %v1668 = vadd.f32 0.0, %v1667
        %1669 = vmatmul.bf16.gmra.mxu0 %v1447
        %v1670 = vpop.f32.mrf.mxu0
        %v1671 = vadd.f32 0.0, %v1670
        %v1672 = vpop.f32.mrf.mxu0
        %v1673 = vadd.f32 0.0, %v1672
        %1674 = vmatmul.bf16.gmra.mxu0 %v1448
        %v1675 = vpop.f32.mrf.mxu0
        %v1676 = vadd.f32 0.0, %v1675
        %v1677 = vpop.f32.mrf.mxu0
        %v1678 = vadd.f32 0.0, %v1677
        %1679 = vmatmul.bf16.gmra.mxu0 %v1449
        %v1680 = vpop.f32.mrf.mxu0
        %v1681 = vadd.f32 0.0, %v1680
        %v1682 = vpop.f32.mrf.mxu0
        %v1683 = vadd.f32 0.0, %v1682
        %1684 = vmatmul.bf16.gmra.mxu0 %v1450
        %v1685 = vpop.f32.mrf.mxu0
        %v1686 = vadd.f32 0.0, %v1685
        %v1687 = vpop.f32.mrf.mxu0
        %v1688 = vadd.f32 0.0, %v1687
        %1689 = vmatmul.bf16.gmra.mxu0 %v1451
        %v1690 = vpop.f32.mrf.mxu0
        %v1691 = vadd.f32 0.0, %v1690
        %v1692 = vpop.f32.mrf.mxu0
        %v1693 = vadd.f32 0.0, %v1692
        %1694 = vmatmul.bf16.gmra.mxu0 %v1452
        %v1695 = vpop.f32.mrf.mxu0
        %v1696 = vadd.f32 0.0, %v1695
        %v1697 = vpop.f32.mrf.mxu0
        %v1698 = vadd.f32 0.0, %v1697
        %1699 = vmatmul.bf16.gmra.mxu0 %v1453
        %v1700 = vpop.f32.mrf.mxu0
        %v1701 = vadd.f32 0.0, %v1700
        %v1702 = vpop.f32.mrf.mxu0
        %v1703 = vadd.f32 0.0, %v1702
        %1704 = vmatmul.bf16.gmra.mxu0 %v1454
        %v1705 = vpop.f32.mrf.mxu0
        %v1706 = vadd.f32 0.0, %v1705
        %v1707 = vpop.f32.mrf.mxu0
        %v1708 = vadd.f32 0.0, %v1707
        %1709 = vmatmul.bf16.gmra.mxu0 %v1455
        %v1710 = vpop.f32.mrf.mxu0
        %v1711 = vadd.f32 0.0, %v1710
        %v1712 = vpop.f32.mrf.mxu0
        %v1713 = vadd.f32 0.0, %v1712
        %1714 = vmatmul.bf16.gmra.mxu0 %v1456
        %v1715 = vpop.f32.mrf.mxu0
        %v1716 = vadd.f32 0.0, %v1715
        %v1717 = vpop.f32.mrf.mxu0
        %v1718 = vadd.f32 0.0, %v1717
        %1719 = vmatmul.bf16.gmra.mxu0 %v1457
        %v1720 = vpop.f32.mrf.mxu0
        %v1721 = vadd.f32 0.0, %v1720
        %v1722 = vpop.f32.mrf.mxu0
        %v1723 = vadd.f32 0.0, %v1722
        %1724 = vmatmul.bf16.gmra.mxu0 %v1458
        %v1725 = vpop.f32.mrf.mxu0
        %v1726 = vadd.f32 0.0, %v1725
        %v1727 = vpop.f32.mrf.mxu0
        %v1728 = vadd.f32 0.0, %v1727
        %1729 = vmatmul.bf16.gmra.mxu0 %v1459
        %v1730 = vpop.f32.mrf.mxu0
        %v1731 = vadd.f32 0.0, %v1730
        %v1732 = vpop.f32.mrf.mxu0
        %v1733 = vadd.f32 0.0, %v1732
        %1734 = vmatmul.bf16.gmra.mxu0 %v1460
        %v1735 = vpop.f32.mrf.mxu0
        %v1736 = vadd.f32 0.0, %v1735
        %v1737 = vpop.f32.mrf.mxu0
        %v1738 = vadd.f32 0.0, %v1737
        %1739 = vmatmul.bf16.gmra.mxu0 %v1461
        %v1740 = vpop.f32.mrf.mxu0
        %v1741 = vadd.f32 0.0, %v1740
        %v1742 = vpop.f32.mrf.mxu0
        %v1743 = vadd.f32 0.0, %v1742
        %1744 = vmatmul.bf16.gmra.mxu0 %v1462
        %v1745 = vpop.f32.mrf.mxu0
        %v1746 = vadd.f32 0.0, %v1745
        %v1747 = vpop.f32.mrf.mxu0
        %v1748 = vadd.f32 0.0, %v1747
        %1749 = vmatmul.bf16.gmra.mxu0 %v1463
        %v1750 = vpop.f32.mrf.mxu0
        %v1751 = vadd.f32 0.0, %v1750
        %v1752 = vpop.f32.mrf.mxu0
        %v1753 = vadd.f32 0.0, %v1752
        %1754 = vmatmul.bf16.gmra.mxu0 %v1464
        %v1755 = vpop.f32.mrf.mxu0
        %v1756 = vpop.f32.mrf.mxu0
        %1757 = vdwg.mxu0
        %1758 = vmatpush.bf16.msra.mxu0 %v1600
        %1759 = vmatpush.bf16.msra.mxu0 %v1597
        %1760 = vmatpush.bf16.msra.mxu0 %v1594
        %1761 = vmatpush.bf16.msra.mxu0 %v1591
        %1762 = vmatpush.bf16.msra.mxu0 %v1588
        %1763 = vmatpush.bf16.msra.mxu0 %v1585
        %1764 = vmatpush.bf16.msra.mxu0 %v1582
        %1765 = vmatpush.bf16.msra.mxu0 %v1579
        %1766 = vmatmul.bf16.gmra.mxu0 %v1440
        %v1767 = vpop.f32.mrf.mxu0
        %v1768 = vadd.f32 0.0, %v1767
        %v1769 = vpop.f32.mrf.mxu0
        %v1770 = vadd.f32 0.0, %v1769
        %1771 = vmatmul.bf16.gmra.mxu0 %v1441
        %v1772 = vpop.f32.mrf.mxu0
        %v1773 = vadd.f32 0.0, %v1772
        %v1774 = vpop.f32.mrf.mxu0
        %v1775 = vadd.f32 0.0, %v1774
        %1776 = vmatmul.bf16.gmra.mxu0 %v1442
        %v1777 = vpop.f32.mrf.mxu0
        %v1778 = vadd.f32 0.0, %v1777
        %v1779 = vpop.f32.mrf.mxu0
        %v1780 = vadd.f32 0.0, %v1779
        %1781 = vmatmul.bf16.gmra.mxu0 %v1443
        %v1782 = vpop.f32.mrf.mxu0
        %v1783 = vadd.f32 0.0, %v1782
        %v1784 = vpop.f32.mrf.mxu0
        %v1785 = vadd.f32 0.0, %v1784
        %1786 = vmatmul.bf16.gmra.mxu0 %v1444
        %v1787 = vpop.f32.mrf.mxu0
        %v1788 = vadd.f32 0.0, %v1787
        %v1789 = vpop.f32.mrf.mxu0
        %v1790 = vadd.f32 0.0, %v1789
        %1791 = vmatmul.bf16.gmra.mxu0 %v1445
        %v1792 = vpop.f32.mrf.mxu0
        %v1793 = vadd.f32 0.0, %v1792
        %v1794 = vpop.f32.mrf.mxu0
        %v1795 = vadd.f32 0.0, %v1794
        %1796 = vmatmul.bf16.gmra.mxu0 %v1446
        %v1797 = vpop.f32.mrf.mxu0
        %v1798 = vadd.f32 0.0, %v1797
        %v1799 = vpop.f32.mrf.mxu0
        %v1800 = vadd.f32 0.0, %v1799
        %1801 = vmatmul.bf16.gmra.mxu0 %v1447
        %v1802 = vpop.f32.mrf.mxu0
        %v1803 = vadd.f32 0.0, %v1802
        %v1804 = vpop.f32.mrf.mxu0
        %v1805 = vadd.f32 0.0, %v1804
        %1806 = vmatmul.bf16.gmra.mxu0 %v1448
        %v1807 = vpop.f32.mrf.mxu0
        %v1808 = vadd.f32 0.0, %v1807
        %v1809 = vpop.f32.mrf.mxu0
        %v1810 = vadd.f32 0.0, %v1809
        %1811 = vmatmul.bf16.gmra.mxu0 %v1449
        %v1812 = vpop.f32.mrf.mxu0
        %v1813 = vadd.f32 0.0, %v1812
        %v1814 = vpop.f32.mrf.mxu0
        %v1815 = vadd.f32 0.0, %v1814
        %1816 = vmatmul.bf16.gmra.mxu0 %v1450
        %v1817 = vpop.f32.mrf.mxu0
        %v1818 = vadd.f32 0.0, %v1817
        %v1819 = vpop.f32.mrf.mxu0
        %v1820 = vadd.f32 0.0, %v1819
        %1821 = vmatmul.bf16.gmra.mxu0 %v1451
        %v1822 = vpop.f32.mrf.mxu0
        %v1823 = vadd.f32 0.0, %v1822
        %v1824 = vpop.f32.mrf.mxu0
        %v1825 = vadd.f32 0.0, %v1824
        %1826 = vmatmul.bf16.gmra.mxu0 %v1452
        %v1827 = vpop.f32.mrf.mxu0
        %v1828 = vadd.f32 0.0, %v1827
        %v1829 = vpop.f32.mrf.mxu0
        %v1830 = vadd.f32 0.0, %v1829
        %1831 = vmatmul.bf16.gmra.mxu0 %v1453
        %v1832 = vpop.f32.mrf.mxu0
        %v1833 = vadd.f32 0.0, %v1832
        %v1834 = vpop.f32.mrf.mxu0
        %v1835 = vadd.f32 0.0, %v1834
        %1836 = vmatmul.bf16.gmra.mxu0 %v1454
        %v1837 = vpop.f32.mrf.mxu0
        %v1838 = vadd.f32 0.0, %v1837
        %v1839 = vpop.f32.mrf.mxu0
        %v1840 = vadd.f32 0.0, %v1839
        %1841 = vmatmul.bf16.gmra.mxu0 %v1455
        %v1842 = vpop.f32.mrf.mxu0
        %v1843 = vadd.f32 0.0, %v1842
        %v1844 = vpop.f32.mrf.mxu0
        %v1845 = vadd.f32 0.0, %v1844
        %1846 = vmatmul.bf16.gmra.mxu0 %v1456
        %v1847 = vpop.f32.mrf.mxu0
        %v1848 = vadd.f32 0.0, %v1847
        %v1849 = vpop.f32.mrf.mxu0
        %v1850 = vadd.f32 0.0, %v1849
        %1851 = vmatmul.bf16.gmra.mxu0 %v1457
        %v1852 = vpop.f32.mrf.mxu0
        %v1853 = vadd.f32 0.0, %v1852
        %v1854 = vpop.f32.mrf.mxu0
        %v1855 = vadd.f32 0.0, %v1854
        %1856 = vmatmul.bf16.gmra.mxu0 %v1458
        %v1857 = vpop.f32.mrf.mxu0
        %v1858 = vadd.f32 0.0, %v1857
        %v1859 = vpop.f32.mrf.mxu0
        %v1860 = vadd.f32 0.0, %v1859
        %1861 = vmatmul.bf16.gmra.mxu0 %v1459
        %v1862 = vpop.f32.mrf.mxu0
        %v1863 = vadd.f32 0.0, %v1862
        %v1864 = vpop.f32.mrf.mxu0
        %v1865 = vadd.f32 0.0, %v1864
        %1866 = vmatmul.bf16.gmra.mxu0 %v1460
        %v1867 = vpop.f32.mrf.mxu0
        %v1868 = vadd.f32 0.0, %v1867
        %v1869 = vpop.f32.mrf.mxu0
        %v1870 = vadd.f32 0.0, %v1869
        %1871 = vmatmul.bf16.gmra.mxu0 %v1461
        %v1872 = vpop.f32.mrf.mxu0
        %v1873 = vadd.f32 0.0, %v1872
        %v1874 = vpop.f32.mrf.mxu0
        %v1875 = vadd.f32 0.0, %v1874
        %1876 = vmatmul.bf16.gmra.mxu0 %v1462
        %v1877 = vpop.f32.mrf.mxu0
        %v1878 = vadd.f32 0.0, %v1877
        %v1879 = vpop.f32.mrf.mxu0
        %v1880 = vadd.f32 0.0, %v1879
        %1881 = vmatmul.bf16.gmra.mxu0 %v1463
        %v1882 = vpop.f32.mrf.mxu0
        %v1883 = vadd.f32 0.0, %v1882
        %v1884 = vpop.f32.mrf.mxu0
        %v1885 = vadd.f32 0.0, %v1884
        %1886 = vmatmul.bf16.gmra.mxu0 %v1464
        %v1887 = vpop.f32.mrf.mxu0
        %v1888 = vadd.f32 0.0, %v1887
        %v1889 = vpop.f32.mrf.mxu0
        %1890 = vdwg.mxu0
        %1891 = vmatpush.bf16.msra.mxu0 %v1601
        %1892 = vmatpush.bf16.msra.mxu0 %v1598
        %1893 = vmatpush.bf16.msra.mxu0 %v1595
        %1894 = vmatpush.bf16.msra.mxu0 %v1592
        %1895 = vmatpush.bf16.msra.mxu0 %v1589
        %1896 = vmatpush.bf16.msra.mxu0 %v1586
        %1897 = vmatpush.bf16.msra.mxu0 %v1583
        %1898 = vmatpush.bf16.msra.mxu0 %v1580
        %1899 = vmatmul.bf16.gmra.mxu0 %v1440
        %v1900 = vpop.f32.mrf.mxu0
        %v1901 = vadd.f32 0.0, %v1900
        %v1902 = vpop.f32.mrf.mxu0
        %v1903 = vadd.f32 0.0, %v1902
        %1904 = vmatmul.bf16.gmra.mxu0 %v1441
        %v1905 = vpop.f32.mrf.mxu0
        %v1906 = vadd.f32 0.0, %v1905
        %v1907 = vpop.f32.mrf.mxu0
        %v1908 = vadd.f32 0.0, %v1907
        %1909 = vmatmul.bf16.gmra.mxu0 %v1442
        %v1910 = vpop.f32.mrf.mxu0
        %v1911 = vadd.f32 0.0, %v1910
        %v1912 = vpop.f32.mrf.mxu0
        %v1913 = vadd.f32 0.0, %v1912
        %1914 = vmatmul.bf16.gmra.mxu0 %v1443
        %v1915 = vpop.f32.mrf.mxu0
        %v1916 = vadd.f32 0.0, %v1915
        %v1917 = vpop.f32.mrf.mxu0
        %v1918 = vadd.f32 0.0, %v1917
        %1919 = vmatmul.bf16.gmra.mxu0 %v1444
        %v1920 = vpop.f32.mrf.mxu0
        %v1921 = vadd.f32 0.0, %v1920
        %v1922 = vpop.f32.mrf.mxu0
        %v1923 = vadd.f32 0.0, %v1922
        %1924 = vmatmul.bf16.gmra.mxu0 %v1445
        %v1925 = vpop.f32.mrf.mxu0
        %v1926 = vadd.f32 0.0, %v1925
        %v1927 = vpop.f32.mrf.mxu0
        %v1928 = vadd.f32 0.0, %v1927
        %1929 = vmatmul.bf16.gmra.mxu0 %v1446
        %v1930 = vpop.f32.mrf.mxu0
        %v1931 = vadd.f32 0.0, %v1930
        %v1932 = vpop.f32.mrf.mxu0
        %v1933 = vadd.f32 0.0, %v1932
        %1934 = vmatmul.bf16.gmra.mxu0 %v1447
        %v1935 = vpop.f32.mrf.mxu0
        %v1936 = vadd.f32 0.0, %v1935
        %v1937 = vpop.f32.mrf.mxu0
        %v1938 = vadd.f32 0.0, %v1937
        %1939 = vmatmul.bf16.gmra.mxu0 %v1448
        %v1940 = vpop.f32.mrf.mxu0
        %v1941 = vadd.f32 0.0, %v1940
        %v1942 = vpop.f32.mrf.mxu0
        %v1943 = vadd.f32 0.0, %v1942
        %1944 = vmatmul.bf16.gmra.mxu0 %v1449
        %v1945 = vpop.f32.mrf.mxu0
        %v1946 = vadd.f32 0.0, %v1945
        %v1947 = vpop.f32.mrf.mxu0
        %v1948 = vadd.f32 0.0, %v1947
        %1949 = vmatmul.bf16.gmra.mxu0 %v1450
        %v1950 = vpop.f32.mrf.mxu0
        %v1951 = vadd.f32 0.0, %v1950
        %v1952 = vpop.f32.mrf.mxu0
        %v1953 = vadd.f32 0.0, %v1952
        %1954 = vmatmul.bf16.gmra.mxu0 %v1451
        %v1955 = vpop.f32.mrf.mxu0
        %v1956 = vadd.f32 0.0, %v1955
        %v1957 = vpop.f32.mrf.mxu0
        %v1958 = vadd.f32 0.0, %v1957
        %1959 = vmatmul.bf16.gmra.mxu0 %v1452
        %v1960 = vpop.f32.mrf.mxu0
        %v1961 = vadd.f32 0.0, %v1960
        %v1962 = vpop.f32.mrf.mxu0
        %v1963 = vadd.f32 0.0, %v1962
        %1964 = vmatmul.bf16.gmra.mxu0 %v1453
        %v1965 = vpop.f32.mrf.mxu0
        %v1966 = vadd.f32 0.0, %v1965
        %v1967 = vpop.f32.mrf.mxu0
        %v1968 = vadd.f32 0.0, %v1967
        %1969 = vmatmul.bf16.gmra.mxu0 %v1454
        %v1970 = vpop.f32.mrf.mxu0
        %v1971 = vadd.f32 0.0, %v1970
        %v1972 = vpop.f32.mrf.mxu0
        %v1973 = vadd.f32 0.0, %v1972
        %1974 = vmatmul.bf16.gmra.mxu0 %v1455
        %v1975 = vpop.f32.mrf.mxu0
        %v1976 = vadd.f32 0.0, %v1975
        %v1977 = vpop.f32.mrf.mxu0
        %v1978 = vadd.f32 0.0, %v1977
        %1979 = vmatmul.bf16.gmra.mxu0 %v1456
        %v1980 = vpop.f32.mrf.mxu0
        %v1981 = vadd.f32 0.0, %v1980
        %v1982 = vpop.f32.mrf.mxu0
        %v1983 = vadd.f32 0.0, %v1982
        %1984 = vmatmul.bf16.gmra.mxu0 %v1457
        %v1985 = vpop.f32.mrf.mxu0
        %v1986 = vadd.f32 0.0, %v1985
        %v1987 = vpop.f32.mrf.mxu0
        %v1988 = vadd.f32 0.0, %v1987
        %1989 = vmatmul.bf16.gmra.mxu0 %v1458
        %v1990 = vpop.f32.mrf.mxu0
        %v1991 = vadd.f32 0.0, %v1990
        %v1992 = vpop.f32.mrf.mxu0
        %v1993 = vadd.f32 0.0, %v1992
        %1994 = vmatmul.bf16.gmra.mxu0 %v1459
        %v1995 = vpop.f32.mrf.mxu0
        %v1996 = vadd.f32 0.0, %v1995
        %v1997 = vpop.f32.mrf.mxu0
        %v1998 = vadd.f32 0.0, %v1997
        %1999 = vmatmul.bf16.gmra.mxu0 %v1460
        %v2000 = vpop.f32.mrf.mxu0
        %v2001 = vadd.f32 0.0, %v2000
        %v2002 = vpop.f32.mrf.mxu0
        %v2003 = vadd.f32 0.0, %v2002
        %2004 = vmatmul.bf16.gmra.mxu0 %v1461
        %v2005 = vpop.f32.mrf.mxu0
        %v2006 = vadd.f32 0.0, %v2005
        %v2007 = vpop.f32.mrf.mxu0
        %v2008 = vadd.f32 0.0, %v2007
        %2009 = vmatmul.bf16.gmra.mxu0 %v1462
        %v2010 = vpop.f32.mrf.mxu0
        %v2011 = vadd.f32 0.0, %v2010
        %v2012 = vpop.f32.mrf.mxu0
        %v2013 = vadd.f32 0.0, %v2012
        %2014 = vmatmul.bf16.gmra.mxu0 %v1463
        %v2015 = vpop.f32.mrf.mxu0
        %v2016 = vadd.f32 0.0, %v2015
        %v2017 = vpop.f32.mrf.mxu0
        %v2018 = vadd.f32 0.0, %v2017
        %2019 = vmatmul.bf16.gmra.mxu0 %v1464
        %v2020 = vpop.f32.mrf.mxu0
        %v2021 = vadd.f32 0.0, %v2020
        %v2022 = vpop.f32.mrf.mxu0
        %2023 = vdwg.mxu0
        %v2024 = vadd.f32 %v1342, %v1636
        %v2025 = vadd.f32 %v1343, %v1638
        %v2026 = vadd.f32 %v1344, %v1641
        %v2027 = vadd.f32 %v1345, %v1643
        %v2028 = vadd.f32 %v1346, %v1646
        %v2029 = vadd.f32 %v1347, %v1648
        %v2030 = vadd.f32 %v1348, %v1651
        %v2031 = vadd.f32 %v1349, %v1653
        %v2032 = vadd.f32 %v1350, %v1656
        %v2033 = vadd.f32 %v1351, %v1658
        %v2034 = vadd.f32 %v1352, %v1661
        %v2035 = vadd.f32 %v1353, %v1663
        %v2036 = vadd.f32 %v1354, %v1666
        %v2037 = vadd.f32 %v1355, %v1668
        %v2038 = vadd.f32 %v1356, %v1671
        %v2039 = vadd.f32 %v1357, %v1673
        %v2040 = vadd.f32 %v1358, %v1676
        %v2041 = vadd.f32 %v1359, %v1678
        %v2042 = vadd.f32 %v1360, %v1681
        %v2043 = vadd.f32 %v1361, %v1683
        %v2044 = vadd.f32 %v1362, %v1686
        %v2045 = vadd.f32 %v1363, %v1688
        %v2046 = vadd.f32 %v1364, %v1691
        %v2047 = vadd.f32 %v1365, %v1693
        %v2048 = vadd.f32 %v1366, %v1696
        %v2049 = vadd.f32 %v1367, %v1698
        %v2050 = vadd.f32 %v1368, %v1701
        %v2051 = vadd.f32 %v1369, %v1703
        %v2052 = vadd.f32 %v1370, %v1706
        %v2053 = vadd.f32 %v1371, %v1708
        %v2054 = vadd.f32 %v1372, %v1711
        %v2055 = vadd.f32 %v1373, %v1713
        %v2056 = vadd.f32 %v1374, %v1716
        %v2057 = vadd.f32 %v1375, %v1718
        %v2058 = vadd.f32 %v1376, %v1721
        %v2059 = vadd.f32 %v1377, %v1723
        %v2060 = vadd.f32 %v1378, %v1726
        %v2061 = vadd.f32 %v1379, %v1728
        %v2062 = vadd.f32 %v1380, %v1731
        %v2063 = vadd.f32 %v1381, %v1733
        %v2064 = vadd.f32 %v1382, %v1736
        %v2065 = vadd.f32 %v1383, %v1738
        %v2066 = vadd.f32 %v1384, %v1741
        %v2067 = vadd.f32 %v1385, %v1743
        %v2068 = vadd.f32 %v1386, %v1746
        %v2069 = vadd.f32 %v1387, %v1748
        %v2070 = vadd.f32 %v1388, %v1751
        %v2071 = vadd.f32 %v1389, %v1753
        %v2121 = vrot.slane %v1768, 1
        %v2122 = vrot.slane %v1770, 1
        %v2123 = vsel %vm953, %v2121, %v2122
        %v2124 = vrot.slane %v1773, 1
        %v2125 = vsel %vm953, %v2122, %v2124
        %v2126 = vrot.slane %v1775, 1
        %v2127 = vsel %vm953, %v2124, %v2126
        %v2128 = vrot.slane %v1778, 1
        %v2129 = vsel %vm953, %v2126, %v2128
        %v2130 = vrot.slane %v1780, 1
        %v2131 = vsel %vm953, %v2128, %v2130
        %v2132 = vrot.slane %v1783, 1
        %v2133 = vsel %vm953, %v2130, %v2132
        %v2134 = vrot.slane %v1785, 1
        %v2135 = vsel %vm953, %v2132, %v2134
        %v2136 = vrot.slane %v1788, 1
        %v2137 = vsel %vm953, %v2134, %v2136
        %v2138 = vrot.slane %v1790, 1
        %v2139 = vsel %vm953, %v2136, %v2138
        %v2140 = vrot.slane %v1793, 1
        %v2141 = vsel %vm953, %v2138, %v2140
        %v2142 = vrot.slane %v1795, 1
        %v2143 = vsel %vm953, %v2140, %v2142
        %v2144 = vrot.slane %v1798, 1
        %v2145 = vsel %vm953, %v2142, %v2144
        %v2146 = vrot.slane %v1800, 1
        %v2147 = vsel %vm953, %v2144, %v2146
        %v2148 = vrot.slane %v1803, 1
        %v2149 = vsel %vm953, %v2146, %v2148
        %v2150 = vrot.slane %v1805, 1
        %v2151 = vsel %vm953, %v2148, %v2150
        %v2152 = vrot.slane %v1808, 1
        %v2153 = vsel %vm953, %v2150, %v2152
        %v2154 = vrot.slane %v1810, 1
        %v2155 = vsel %vm953, %v2152, %v2154
        %v2156 = vrot.slane %v1813, 1
        %v2157 = vsel %vm953, %v2154, %v2156
        %v2158 = vrot.slane %v1815, 1
        %v2159 = vsel %vm953, %v2156, %v2158
        %v2160 = vrot.slane %v1818, 1
        %v2161 = vsel %vm953, %v2158, %v2160
        %v2162 = vrot.slane %v1820, 1
        %v2163 = vsel %vm953, %v2160, %v2162
        %v2164 = vrot.slane %v1823, 1
        %v2165 = vsel %vm953, %v2162, %v2164
        %v2166 = vrot.slane %v1825, 1
        %v2167 = vsel %vm953, %v2164, %v2166
        %v2168 = vrot.slane %v1828, 1
        %v2169 = vsel %vm953, %v2166, %v2168
        %v2170 = vrot.slane %v1830, 1
        %v2171 = vsel %vm953, %v2168, %v2170
        %v2172 = vrot.slane %v1833, 1
        %v2173 = vsel %vm953, %v2170, %v2172
        %v2174 = vrot.slane %v1835, 1
        %v2175 = vsel %vm953, %v2172, %v2174
        %v2176 = vrot.slane %v1838, 1
        %v2177 = vsel %vm953, %v2174, %v2176
        %v2178 = vrot.slane %v1840, 1
        %v2179 = vsel %vm953, %v2176, %v2178
        %v2180 = vrot.slane %v1843, 1
        %v2181 = vsel %vm953, %v2178, %v2180
        %v2182 = vrot.slane %v1845, 1
        %v2183 = vsel %vm953, %v2180, %v2182
        %v2184 = vrot.slane %v1848, 1
        %v2185 = vsel %vm953, %v2182, %v2184
        %v2186 = vrot.slane %v1850, 1
        %v2187 = vsel %vm953, %v2184, %v2186
        %v2188 = vrot.slane %v1853, 1
        %v2189 = vsel %vm953, %v2186, %v2188
        %v2190 = vrot.slane %v1855, 1
        %v2191 = vsel %vm953, %v2188, %v2190
        %v2192 = vrot.slane %v1858, 1
        %v2193 = vsel %vm953, %v2190, %v2192
        %v2194 = vrot.slane %v1860, 1
        %v2195 = vsel %vm953, %v2192, %v2194
        %v2196 = vrot.slane %v1863, 1
        %v2197 = vsel %vm953, %v2194, %v2196
        %v2198 = vrot.slane %v1865, 1
        %v2199 = vsel %vm953, %v2196, %v2198
        %v2200 = vrot.slane %v1868, 1
        %v2201 = vsel %vm953, %v2198, %v2200
        %v2202 = vrot.slane %v1870, 1
        %v2203 = vsel %vm953, %v2200, %v2202
        %v2204 = vrot.slane %v1873, 1
        %v2205 = vsel %vm953, %v2202, %v2204
        %v2206 = vrot.slane %v1875, 1
        %v2207 = vsel %vm953, %v2204, %v2206
        %v2208 = vrot.slane %v1878, 1
        %v2209 = vsel %vm953, %v2206, %v2208
        %v2210 = vrot.slane %v1880, 1
        %v2211 = vsel %vm953, %v2208, %v2210
        %v2212 = vrot.slane %v1883, 1
        %v2213 = vsel %vm953, %v2210, %v2212
        %v2214 = vrot.slane %v1885, 1
        %v2215 = vsel %vm953, %v2212, %v2214
        %v2216 = vrot.slane %v1888, 1
        %v2217 = vsel %vm953, %v2214, %v2216
        %v2266 = vadd.f32 %v2024, %v2123
        %v2267 = vadd.f32 %v2025, %v2125
        %v2268 = vadd.f32 %v2026, %v2127
        %v2269 = vadd.f32 %v2027, %v2129
        %v2270 = vadd.f32 %v2028, %v2131
        %v2271 = vadd.f32 %v2029, %v2133
        %v2272 = vadd.f32 %v2030, %v2135
        %v2273 = vadd.f32 %v2031, %v2137
        %v2274 = vadd.f32 %v2032, %v2139
        %v2275 = vadd.f32 %v2033, %v2141
        %v2276 = vadd.f32 %v2034, %v2143
        %v2277 = vadd.f32 %v2035, %v2145
        %v2278 = vadd.f32 %v2036, %v2147
        %v2279 = vadd.f32 %v2037, %v2149
        %v2280 = vadd.f32 %v2038, %v2151
        %v2281 = vadd.f32 %v2039, %v2153
        %v2282 = vadd.f32 %v2040, %v2155
        %v2283 = vadd.f32 %v2041, %v2157
        %v2284 = vadd.f32 %v2042, %v2159
        %v2285 = vadd.f32 %v2043, %v2161
        %v2286 = vadd.f32 %v2044, %v2163
        %v2287 = vadd.f32 %v2045, %v2165
        %v2288 = vadd.f32 %v2046, %v2167
        %v2289 = vadd.f32 %v2047, %v2169
        %v2290 = vadd.f32 %v2048, %v2171
        %v2291 = vadd.f32 %v2049, %v2173
        %v2292 = vadd.f32 %v2050, %v2175
        %v2293 = vadd.f32 %v2051, %v2177
        %v2294 = vadd.f32 %v2052, %v2179
        %v2295 = vadd.f32 %v2053, %v2181
        %v2296 = vadd.f32 %v2054, %v2183
        %v2297 = vadd.f32 %v2055, %v2185
        %v2298 = vadd.f32 %v2056, %v2187
        %v2299 = vadd.f32 %v2057, %v2189
        %v2300 = vadd.f32 %v2058, %v2191
        %v2301 = vadd.f32 %v2059, %v2193
        %v2302 = vadd.f32 %v2060, %v2195
        %v2303 = vadd.f32 %v2061, %v2197
        %v2304 = vadd.f32 %v2062, %v2199
        %v2305 = vadd.f32 %v2063, %v2201
        %v2306 = vadd.f32 %v2064, %v2203
        %v2307 = vadd.f32 %v2065, %v2205
        %v2308 = vadd.f32 %v2066, %v2207
        %v2309 = vadd.f32 %v2067, %v2209
        %v2310 = vadd.f32 %v2068, %v2211
        %v2311 = vadd.f32 %v2069, %v2213
        %v2312 = vadd.f32 %v2070, %v2215
        %v2313 = vadd.f32 %v2071, %v2217
        %v2363 = vrot.slane %v1901, 2
        %v2364 = vrot.slane %v1903, 2
        %v2365 = vsel %vm1196, %v2363, %v2364
        %v2366 = vrot.slane %v1906, 2
        %v2367 = vsel %vm1196, %v2364, %v2366
        %v2368 = vrot.slane %v1908, 2
        %v2369 = vsel %vm1196, %v2366, %v2368
        %v2370 = vrot.slane %v1911, 2
        %v2371 = vsel %vm1196, %v2368, %v2370
        %v2372 = vrot.slane %v1913, 2
        %v2373 = vsel %vm1196, %v2370, %v2372
        %v2374 = vrot.slane %v1916, 2
        %v2375 = vsel %vm1196, %v2372, %v2374
        %v2376 = vrot.slane %v1918, 2
        %v2377 = vsel %vm1196, %v2374, %v2376
        %v2378 = vrot.slane %v1921, 2
        %v2379 = vsel %vm1196, %v2376, %v2378
        %v2380 = vrot.slane %v1923, 2
        %v2381 = vsel %vm1196, %v2378, %v2380
        %v2382 = vrot.slane %v1926, 2
        %v2383 = vsel %vm1196, %v2380, %v2382
        %v2384 = vrot.slane %v1928, 2
        %v2385 = vsel %vm1196, %v2382, %v2384
        %v2386 = vrot.slane %v1931, 2
        %v2387 = vsel %vm1196, %v2384, %v2386
        %v2388 = vrot.slane %v1933, 2
        %v2389 = vsel %vm1196, %v2386, %v2388
        %v2390 = vrot.slane %v1936, 2
        %v2391 = vsel %vm1196, %v2388, %v2390
        %v2392 = vrot.slane %v1938, 2
        %v2393 = vsel %vm1196, %v2390, %v2392
        %v2394 = vrot.slane %v1941, 2
        %v2395 = vsel %vm1196, %v2392, %v2394
        %v2396 = vrot.slane %v1943, 2
        %v2397 = vsel %vm1196, %v2394, %v2396
        %v2398 = vrot.slane %v1946, 2
        %v2399 = vsel %vm1196, %v2396, %v2398
        %v2400 = vrot.slane %v1948, 2
        %v2401 = vsel %vm1196, %v2398, %v2400
        %v2402 = vrot.slane %v1951, 2
        %v2403 = vsel %vm1196, %v2400, %v2402
        %v2404 = vrot.slane %v1953, 2
        %v2405 = vsel %vm1196, %v2402, %v2404
        %v2406 = vrot.slane %v1956, 2
        %v2407 = vsel %vm1196, %v2404, %v2406
        %v2408 = vrot.slane %v1958, 2
        %v2409 = vsel %vm1196, %v2406, %v2408
        %v2410 = vrot.slane %v1961, 2
        %v2411 = vsel %vm1196, %v2408, %v2410
        %v2412 = vrot.slane %v1963, 2
        %v2413 = vsel %vm1196, %v2410, %v2412
        %v2414 = vrot.slane %v1966, 2
        %v2415 = vsel %vm1196, %v2412, %v2414
        %v2416 = vrot.slane %v1968, 2
        %v2417 = vsel %vm1196, %v2414, %v2416
        %v2418 = vrot.slane %v1971, 2
        %v2419 = vsel %vm1196, %v2416, %v2418
        %v2420 = vrot.slane %v1973, 2
        %v2421 = vsel %vm1196, %v2418, %v2420
        %v2422 = vrot.slane %v1976, 2
        %v2423 = vsel %vm1196, %v2420, %v2422
        %v2424 = vrot.slane %v1978, 2
        %v2425 = vsel %vm1196, %v2422, %v2424
        %v2426 = vrot.slane %v1981, 2
        %v2427 = vsel %vm1196, %v2424, %v2426
        %v2428 = vrot.slane %v1983, 2
        %v2429 = vsel %vm1196, %v2426, %v2428
        %v2430 = vrot.slane %v1986, 2
        %v2431 = vsel %vm1196, %v2428, %v2430
        %v2432 = vrot.slane %v1988, 2
        %v2433 = vsel %vm1196, %v2430, %v2432
        %v2434 = vrot.slane %v1991, 2
        %v2435 = vsel %vm1196, %v2432, %v2434
        %v2436 = vrot.slane %v1993, 2
        %v2437 = vsel %vm1196, %v2434, %v2436
        %v2438 = vrot.slane %v1996, 2
        %v2439 = vsel %vm1196, %v2436, %v2438
        %v2440 = vrot.slane %v1998, 2
        %v2441 = vsel %vm1196, %v2438, %v2440
        %v2442 = vrot.slane %v2001, 2
        %v2443 = vsel %vm1196, %v2440, %v2442
        %v2444 = vrot.slane %v2003, 2
        %v2445 = vsel %vm1196, %v2442, %v2444
        %v2446 = vrot.slane %v2006, 2
        %v2447 = vsel %vm1196, %v2444, %v2446
        %v2448 = vrot.slane %v2008, 2
        %v2449 = vsel %vm1196, %v2446, %v2448
        %v2450 = vrot.slane %v2011, 2
        %v2451 = vsel %vm1196, %v2448, %v2450
        %v2452 = vrot.slane %v2013, 2
        %v2453 = vsel %vm1196, %v2450, %v2452
        %v2454 = vrot.slane %v2016, 2
        %v2455 = vsel %vm1196, %v2452, %v2454
        %v2456 = vrot.slane %v2018, 2
        %v2457 = vsel %vm1196, %v2454, %v2456
        %v2458 = vrot.slane %v2021, 2
        %v2459 = vsel %vm1196, %v2456, %v2458
        %v2508 = vadd.f32 %v2266, %v2365
        %v2509 = vadd.f32 %v2267, %v2367
        %v2510 = vadd.f32 %v2268, %v2369
        %v2511 = vadd.f32 %v2269, %v2371
        %v2512 = vadd.f32 %v2270, %v2373
        %v2513 = vadd.f32 %v2271, %v2375
        %v2514 = vadd.f32 %v2272, %v2377
        %v2515 = vadd.f32 %v2273, %v2379
        %v2516 = vadd.f32 %v2274, %v2381
        %v2517 = vadd.f32 %v2275, %v2383
        %v2518 = vadd.f32 %v2276, %v2385
        %v2519 = vadd.f32 %v2277, %v2387
        %v2520 = vadd.f32 %v2278, %v2389
        %v2521 = vadd.f32 %v2279, %v2391
        %v2522 = vadd.f32 %v2280, %v2393
        %v2523 = vadd.f32 %v2281, %v2395
        %v2524 = vadd.f32 %v2282, %v2397
        %v2525 = vadd.f32 %v2283, %v2399
        %v2526 = vadd.f32 %v2284, %v2401
        %v2527 = vadd.f32 %v2285, %v2403
        %v2528 = vadd.f32 %v2286, %v2405
        %v2529 = vadd.f32 %v2287, %v2407
        %v2530 = vadd.f32 %v2288, %v2409
        %v2531 = vadd.f32 %v2289, %v2411
        %v2532 = vadd.f32 %v2290, %v2413
        %v2533 = vadd.f32 %v2291, %v2415
        %v2534 = vadd.f32 %v2292, %v2417
        %v2535 = vadd.f32 %v2293, %v2419
        %v2536 = vadd.f32 %v2294, %v2421
        %v2537 = vadd.f32 %v2295, %v2423
        %v2538 = vadd.f32 %v2296, %v2425
        %v2539 = vadd.f32 %v2297, %v2427
        %v2540 = vadd.f32 %v2298, %v2429
        %v2541 = vadd.f32 %v2299, %v2431
        %v2542 = vadd.f32 %v2300, %v2433
        %v2543 = vadd.f32 %v2301, %v2435
        %v2544 = vadd.f32 %v2302, %v2437
        %v2545 = vadd.f32 %v2303, %v2439
        %v2546 = vadd.f32 %v2304, %v2441
        %v2547 = vadd.f32 %v2305, %v2443
        %v2548 = vadd.f32 %v2306, %v2445
        %v2549 = vadd.f32 %v2307, %v2447
        %v2550 = vadd.f32 %v2308, %v2449
        %v2551 = vadd.f32 %v2309, %v2451
        %v2552 = vadd.f32 %v2310, %v2453
        %v2553 = vadd.f32 %v2311, %v2455
        %v2554 = vadd.f32 %v2312, %v2457
        %v2555 = vadd.f32 %v2313, %v2459
        %s2556 = scalar_lea.vmem %s190, 48 [#allocation4]
        %v2557 = vld [vmem:[%s2556] sm:$0xff]
        %v2558 = vld [vmem:[%s2556 + $0x8] sm:$0xff]
        %v2559 = vld [vmem:[%s2556 + $0x10] sm:$0xff]
        %v2560 = vld [vmem:[%s2556 + $0x18] sm:$0xff]
        %v2561 = vld [vmem:[%s2556 + $0x20] sm:$0xff]
        %v2562 = vld [vmem:[%s2556 + $0x28] sm:$0xff]
        %v2563 = vld [vmem:[%s2556 + $0x30] sm:$0xff]
        %v2564 = vld [vmem:[%s2556 + $0x38] sm:$0xff]
        %v2565 = vld [vmem:[%s2556 + $0x40] sm:$0xff]
        %v2566 = vld [vmem:[%s2556 + $0x48] sm:$0xff]
        %v2567 = vld [vmem:[%s2556 + $0x50] sm:$0xff]
        %v2568 = vld [vmem:[%s2556 + $0x58] sm:$0xff]
        %v2569 = vld [vmem:[%s2556 + $0x60] sm:$0xff]
        %v2570 = vld [vmem:[%s2556 + $0x68] sm:$0xff]
        %v2571 = vld [vmem:[%s2556 + $0x70] sm:$0xff]
        %v2572 = vld [vmem:[%s2556 + $0x78] sm:$0xff]
        %v2573 = vld [vmem:[%s2556 + $0x80] sm:$0xff]
        %v2574 = vld [vmem:[%s2556 + $0x88] sm:$0xff]
        %v2575 = vld [vmem:[%s2556 + $0x90] sm:$0xff]
        %v2576 = vld [vmem:[%s2556 + $0x98] sm:$0xff]
        %v2577 = vld [vmem:[%s2556 + $0xa0] sm:$0xff]
        %v2578 = vld [vmem:[%s2556 + $0xa8] sm:$0xff]
        %v2579 = vld [vmem:[%s2556 + $0xb0] sm:$0xff]
        %v2580 = vld [vmem:[%s2556 + $0xb8] sm:$0xff]
        %v2581 = vld [vmem:[%s2556 + $0xc0] sm:$0xff]
        %v2582 = vld [vmem:[%s2556 + $0xc8] sm:$0xff]
        %v2583 = vld [vmem:[%s2556 + $0xd0] sm:$0xff]
        %v2584 = vld [vmem:[%s2556 + $0xd8] sm:$0xff]
        %v2585 = vld [vmem:[%s2556 + $0xe0] sm:$0xff]
        %v2586 = vld [vmem:[%s2556 + $0xe8] sm:$0xff]
        %v2587 = vld [vmem:[%s2556 + $0xf0] sm:$0xff]
        %v2588 = vld [vmem:[%s2556 + $0xf8] sm:$0xff]
        %v2589 = vld [vmem:[%s2556 + $0x100] sm:$0xff]
        %v2590 = vld [vmem:[%s2556 + $0x108] sm:$0xff]
        %v2591 = vld [vmem:[%s2556 + $0x110] sm:$0xff]
        %v2592 = vld [vmem:[%s2556 + $0x118] sm:$0xff]
        %v2593 = vld [vmem:[%s2556 + $0x120] sm:$0xff]
        %v2594 = vld [vmem:[%s2556 + $0x128] sm:$0xff]
        %v2595 = vld [vmem:[%s2556 + $0x130] sm:$0xff]
        %v2596 = vld [vmem:[%s2556 + $0x138] sm:$0xff]
        %v2597 = vld [vmem:[%s2556 + $0x140] sm:$0xff]
        %v2598 = vld [vmem:[%s2556 + $0x148] sm:$0xff]
        %v2599 = vld [vmem:[%s2556 + $0x150] sm:$0xff]
        %v2600 = vld [vmem:[%s2556 + $0x158] sm:$0xff]
        %v2601 = vld [vmem:[%s2556 + $0x160] sm:$0xff]
        %v2602 = vld [vmem:[%s2556 + $0x168] sm:$0xff]
        %v2603 = vld [vmem:[%s2556 + $0x170] sm:$0xff]
        %v2604 = vld [vmem:[%s2556 + $0x178] sm:$0xff]
        %v2605 = vld [vmem:[%s2556 + $0x180] sm:$0xff]
        %v2606 = vpack.c.bf16 %v2558, %v2557
        %v2607 = vpack.c.bf16 %v2560, %v2559
        %v2608 = vpack.c.bf16 %v2562, %v2561
        %v2609 = vpack.c.bf16 %v2564, %v2563
        %v2610 = vpack.c.bf16 %v2566, %v2565
        %v2611 = vpack.c.bf16 %v2568, %v2567
        %v2612 = vpack.c.bf16 %v2570, %v2569
        %v2613 = vpack.c.bf16 %v2572, %v2571
        %v2614 = vpack.c.bf16 %v2574, %v2573
        %v2615 = vpack.c.bf16 %v2576, %v2575
        %v2616 = vpack.c.bf16 %v2578, %v2577
        %v2617 = vpack.c.bf16 %v2580, %v2579
        %v2618 = vpack.c.bf16 %v2582, %v2581
        %v2619 = vpack.c.bf16 %v2584, %v2583
        %v2620 = vpack.c.bf16 %v2586, %v2585
        %v2621 = vpack.c.bf16 %v2588, %v2587
        %v2622 = vpack.c.bf16 %v2590, %v2589
        %v2623 = vpack.c.bf16 %v2592, %v2591
        %v2624 = vpack.c.bf16 %v2594, %v2593
        %v2625 = vpack.c.bf16 %v2596, %v2595
        %v2626 = vpack.c.bf16 %v2598, %v2597
        %v2627 = vpack.c.bf16 %v2600, %v2599
        %v2628 = vpack.c.bf16 %v2602, %v2601
        %v2629 = vpack.c.bf16 %v2604, %v2603
        %v2630 = vpack.c.bf16 %v2605, %v2605
        %s2631 = scalar_lea.vmem [#allocation7], 384
        %v2632 = vld [vmem:[%s2631] sm:$0xff]
        %v2633 = vld [vmem:[%s2631 + $0x8] sm:$0xf]
        %v2634 = vld [vmem:[%s2631 + $0xc] sm:$0xff]
        %v2635 = vld [vmem:[%s2631 + $0x14] sm:$0xf]
        %v2636 = vld [vmem:[%s2631 + $0x18] sm:$0xff]
        %v2637 = vld [vmem:[%s2631 + $0x20] sm:$0xf]
        %v2638 = vld [vmem:[%s2631 + $0x24] sm:$0xff]
        %v2639 = vld [vmem:[%s2631 + $0x2c] sm:$0xf]
        %v2640 = vld [vmem:[%s2631 + $0x30] sm:$0xff]
        %v2641 = vld [vmem:[%s2631 + $0x38] sm:$0xf]
        %v2642 = vld [vmem:[%s2631 + $0x3c] sm:$0xff]
        %v2643 = vld [vmem:[%s2631 + $0x44] sm:$0xf]
        %v2644 = vld [vmem:[%s2631 + $0x48] sm:$0xff]
        %v2645 = vld [vmem:[%s2631 + $0x50] sm:$0xf]
        %v2646 = vld [vmem:[%s2631 + $0x54] sm:$0xff]
        %v2647 = vld [vmem:[%s2631 + $0x5c] sm:$0xf]
        %v2648 = vld [vmem:[%s2631 + $0x60] sm:$0xff]
        %v2649 = vld [vmem:[%s2631 + $0x68] sm:$0xf]
        %v2650 = vld [vmem:[%s2631 + $0x6c] sm:$0xff]
        %v2651 = vld [vmem:[%s2631 + $0x74] sm:$0xf]
        %v2652 = vld [vmem:[%s2631 + $0x78] sm:$0xff]
        %v2653 = vld [vmem:[%s2631 + $0x80] sm:$0xf]
        %v2654 = vld [vmem:[%s2631 + $0x84] sm:$0xff]
        %v2655 = vld [vmem:[%s2631 + $0x8c] sm:$0xf]
        %v2656 = vld [vmem:[%s2631 + $0x90] sm:$0xff]
        %v2657 = vld [vmem:[%s2631 + $0x98] sm:$0xf]
        %v2658 = vld [vmem:[%s2631 + $0x9c] sm:$0xff]
        %v2659 = vld [vmem:[%s2631 + $0xa4] sm:$0xf]
        %v2660 = vld [vmem:[%s2631 + $0xa8] sm:$0xff]
        %v2661 = vld [vmem:[%s2631 + $0xb0] sm:$0xf]
        %v2662 = vld [vmem:[%s2631 + $0xb4] sm:$0xff]
        %v2663 = vld [vmem:[%s2631 + $0xbc] sm:$0xf]
        %v2696 = vunpack.c.l.b16 %v2632
        %v2697 = vunpack.c.h.b16 %v2632
        %v2698 = vunpack.c.l.b16 %v2633
        %v2699 = vunpack.c.l.b16 %v2634
        %v2700 = vunpack.c.h.b16 %v2634
        %v2701 = vunpack.c.l.b16 %v2635
        %v2702 = vunpack.c.l.b16 %v2636
        %v2703 = vunpack.c.h.b16 %v2636
        %v2704 = vunpack.c.l.b16 %v2637
        %v2705 = vunpack.c.l.b16 %v2638
        %v2706 = vunpack.c.h.b16 %v2638
        %v2707 = vunpack.c.l.b16 %v2639
        %v2708 = vunpack.c.l.b16 %v2640
        %v2709 = vunpack.c.h.b16 %v2640
        %v2710 = vunpack.c.l.b16 %v2641
        %v2711 = vunpack.c.l.b16 %v2642
        %v2712 = vunpack.c.h.b16 %v2642
        %v2713 = vunpack.c.l.b16 %v2643
        %v2714 = vunpack.c.l.b16 %v2644
        %v2715 = vunpack.c.h.b16 %v2644
        %v2716 = vunpack.c.l.b16 %v2645
        %v2717 = vunpack.c.l.b16 %v2646
        %v2718 = vunpack.c.h.b16 %v2646
        %v2719 = vunpack.c.l.b16 %v2647
        %v2720 = vunpack.c.l.b16 %v2648
        %v2721 = vunpack.c.h.b16 %v2648
        %v2722 = vunpack.c.l.b16 %v2649
        %v2723 = vunpack.c.l.b16 %v2650
        %v2724 = vunpack.c.h.b16 %v2650
        %v2725 = vunpack.c.l.b16 %v2651
        %v2726 = vunpack.c.l.b16 %v2652
        %v2727 = vunpack.c.h.b16 %v2652
        %v2728 = vunpack.c.l.b16 %v2653
        %v2729 = vunpack.c.l.b16 %v2654
        %v2730 = vunpack.c.h.b16 %v2654
        %v2731 = vunpack.c.l.b16 %v2655
        %v2732 = vunpack.c.l.b16 %v2656
        %v2733 = vunpack.c.h.b16 %v2656
        %v2734 = vunpack.c.l.b16 %v2657
        %v2735 = vunpack.c.l.b16 %v2658
        %v2736 = vunpack.c.h.b16 %v2658
        %v2737 = vunpack.c.l.b16 %v2659
        %v2738 = vunpack.c.l.b16 %v2660
        %v2739 = vunpack.c.h.b16 %v2660
        %v2740 = vunpack.c.l.b16 %v2661
        %v2741 = vunpack.c.l.b16 %v2662
        %v2742 = vunpack.c.h.b16 %v2662
        %v2743 = vunpack.c.l.b16 %v2663
        %v2744 = vpack.c.b16 %v2699, %v2696
        %v2745 = vpack.c.b16 %v2700, %v2697
        %v2746 = vpack.c.b16 %v2701, %v2698
        %v2747 = vpack.c.b16 %v2705, %v2702
        %v2748 = vpack.c.b16 %v2706, %v2703
        %v2749 = vpack.c.b16 %v2707, %v2704
        %v2750 = vpack.c.b16 %v2711, %v2708
        %v2751 = vpack.c.b16 %v2712, %v2709
        %v2752 = vpack.c.b16 %v2713, %v2710
        %v2753 = vpack.c.b16 %v2717, %v2714
        %v2754 = vpack.c.b16 %v2718, %v2715
        %v2755 = vpack.c.b16 %v2719, %v2716
        %v2756 = vpack.c.b16 %v2723, %v2720
        %v2757 = vpack.c.b16 %v2724, %v2721
        %v2758 = vpack.c.b16 %v2725, %v2722
        %v2759 = vpack.c.b16 %v2729, %v2726
        %v2760 = vpack.c.b16 %v2730, %v2727
        %v2761 = vpack.c.b16 %v2731, %v2728
        %v2762 = vpack.c.b16 %v2735, %v2732
        %v2763 = vpack.c.b16 %v2736, %v2733
        %v2764 = vpack.c.b16 %v2737, %v2734
        %v2765 = vpack.c.b16 %v2741, %v2738
        %v2766 = vpack.c.b16 %v2742, %v2739
        %v2767 = vpack.c.b16 %v2743, %v2740
        %2792 = vmatpush.bf16.msra.mxu0 %v2765
        %2793 = vmatpush.bf16.msra.mxu0 %v2762
        %2794 = vmatpush.bf16.msra.mxu0 %v2759
        %2795 = vmatpush.bf16.msra.mxu0 %v2756
        %2796 = vmatpush.bf16.msra.mxu0 %v2753
        %2797 = vmatpush.bf16.msra.mxu0 %v2750
        %2798 = vmatpush.bf16.msra.mxu0 %v2747
        %2799 = vmatpush.bf16.msra.mxu0 %v2744
        %2800 = vmatmul.bf16.gmra.mxu0 %v2606
        %v2801 = vpop.f32.mrf.mxu0
        %v2802 = vadd.f32 0.0, %v2801
        %v2803 = vpop.f32.mrf.mxu0
        %v2804 = vadd.f32 0.0, %v2803
        %2805 = vmatmul.bf16.gmra.mxu0 %v2607
        %v2806 = vpop.f32.mrf.mxu0
        %v2807 = vadd.f32 0.0, %v2806
        %v2808 = vpop.f32.mrf.mxu0
        %v2809 = vadd.f32 0.0, %v2808
        %2810 = vmatmul.bf16.gmra.mxu0 %v2608
        %v2811 = vpop.f32.mrf.mxu0
        %v2812 = vadd.f32 0.0, %v2811
        %v2813 = vpop.f32.mrf.mxu0
        %v2814 = vadd.f32 0.0, %v2813
        %2815 = vmatmul.bf16.gmra.mxu0 %v2609
        %v2816 = vpop.f32.mrf.mxu0
        %v2817 = vadd.f32 0.0, %v2816
        %v2818 = vpop.f32.mrf.mxu0
        %v2819 = vadd.f32 0.0, %v2818
        %2820 = vmatmul.bf16.gmra.mxu0 %v2610
        %v2821 = vpop.f32.mrf.mxu0
        %v2822 = vadd.f32 0.0, %v2821
        %v2823 = vpop.f32.mrf.mxu0
        %v2824 = vadd.f32 0.0, %v2823
        %2825 = vmatmul.bf16.gmra.mxu0 %v2611
        %v2826 = vpop.f32.mrf.mxu0
        %v2827 = vadd.f32 0.0, %v2826
        %v2828 = vpop.f32.mrf.mxu0
        %v2829 = vadd.f32 0.0, %v2828
        %2830 = vmatmul.bf16.gmra.mxu0 %v2612
        %v2831 = vpop.f32.mrf.mxu0
        %v2832 = vadd.f32 0.0, %v2831
        %v2833 = vpop.f32.mrf.mxu0
        %v2834 = vadd.f32 0.0, %v2833
        %2835 = vmatmul.bf16.gmra.mxu0 %v2613
        %v2836 = vpop.f32.mrf.mxu0
        %v2837 = vadd.f32 0.0, %v2836
        %v2838 = vpop.f32.mrf.mxu0
        %v2839 = vadd.f32 0.0, %v2838
        %2840 = vmatmul.bf16.gmra.mxu0 %v2614
        %v2841 = vpop.f32.mrf.mxu0
        %v2842 = vadd.f32 0.0, %v2841
        %v2843 = vpop.f32.mrf.mxu0
        %v2844 = vadd.f32 0.0, %v2843
        %2845 = vmatmul.bf16.gmra.mxu0 %v2615
        %v2846 = vpop.f32.mrf.mxu0
        %v2847 = vadd.f32 0.0, %v2846
        %v2848 = vpop.f32.mrf.mxu0
        %v2849 = vadd.f32 0.0, %v2848
        %2850 = vmatmul.bf16.gmra.mxu0 %v2616
        %v2851 = vpop.f32.mrf.mxu0
        %v2852 = vadd.f32 0.0, %v2851
        %v2853 = vpop.f32.mrf.mxu0
        %v2854 = vadd.f32 0.0, %v2853
        %2855 = vmatmul.bf16.gmra.mxu0 %v2617
        %v2856 = vpop.f32.mrf.mxu0
        %v2857 = vadd.f32 0.0, %v2856
        %v2858 = vpop.f32.mrf.mxu0
        %v2859 = vadd.f32 0.0, %v2858
        %2860 = vmatmul.bf16.gmra.mxu0 %v2618
        %v2861 = vpop.f32.mrf.mxu0
        %v2862 = vadd.f32 0.0, %v2861
        %v2863 = vpop.f32.mrf.mxu0
        %v2864 = vadd.f32 0.0, %v2863
        %2865 = vmatmul.bf16.gmra.mxu0 %v2619
        %v2866 = vpop.f32.mrf.mxu0
        %v2867 = vadd.f32 0.0, %v2866
        %v2868 = vpop.f32.mrf.mxu0
        %v2869 = vadd.f32 0.0, %v2868
        %2870 = vmatmul.bf16.gmra.mxu0 %v2620
        %v2871 = vpop.f32.mrf.mxu0
        %v2872 = vadd.f32 0.0, %v2871
        %v2873 = vpop.f32.mrf.mxu0
        %v2874 = vadd.f32 0.0, %v2873
        %2875 = vmatmul.bf16.gmra.mxu0 %v2621
        %v2876 = vpop.f32.mrf.mxu0
        %v2877 = vadd.f32 0.0, %v2876
        %v2878 = vpop.f32.mrf.mxu0
        %v2879 = vadd.f32 0.0, %v2878
        %2880 = vmatmul.bf16.gmra.mxu0 %v2622
        %v2881 = vpop.f32.mrf.mxu0
        %v2882 = vadd.f32 0.0, %v2881
        %v2883 = vpop.f32.mrf.mxu0
        %v2884 = vadd.f32 0.0, %v2883
        %2885 = vmatmul.bf16.gmra.mxu0 %v2623
        %v2886 = vpop.f32.mrf.mxu0
        %v2887 = vadd.f32 0.0, %v2886
        %v2888 = vpop.f32.mrf.mxu0
        %v2889 = vadd.f32 0.0, %v2888
        %2890 = vmatmul.bf16.gmra.mxu0 %v2624
        %v2891 = vpop.f32.mrf.mxu0
        %v2892 = vadd.f32 0.0, %v2891
        %v2893 = vpop.f32.mrf.mxu0
        %v2894 = vadd.f32 0.0, %v2893
        %2895 = vmatmul.bf16.gmra.mxu0 %v2625
        %v2896 = vpop.f32.mrf.mxu0
        %v2897 = vadd.f32 0.0, %v2896
        %v2898 = vpop.f32.mrf.mxu0
        %v2899 = vadd.f32 0.0, %v2898
        %2900 = vmatmul.bf16.gmra.mxu0 %v2626
        %v2901 = vpop.f32.mrf.mxu0
        %v2902 = vadd.f32 0.0, %v2901
        %v2903 = vpop.f32.mrf.mxu0
        %v2904 = vadd.f32 0.0, %v2903
        %2905 = vmatmul.bf16.gmra.mxu0 %v2627
        %v2906 = vpop.f32.mrf.mxu0
        %v2907 = vadd.f32 0.0, %v2906
        %v2908 = vpop.f32.mrf.mxu0
        %v2909 = vadd.f32 0.0, %v2908
        %2910 = vmatmul.bf16.gmra.mxu0 %v2628
        %v2911 = vpop.f32.mrf.mxu0
        %v2912 = vadd.f32 0.0, %v2911
        %v2913 = vpop.f32.mrf.mxu0
        %v2914 = vadd.f32 0.0, %v2913
        %2915 = vmatmul.bf16.gmra.mxu0 %v2629
        %v2916 = vpop.f32.mrf.mxu0
        %v2917 = vadd.f32 0.0, %v2916
        %v2918 = vpop.f32.mrf.mxu0
        %v2919 = vadd.f32 0.0, %v2918
        %2920 = vmatmul.bf16.gmra.mxu0 %v2630
        %v2921 = vpop.f32.mrf.mxu0
        %v2922 = vpop.f32.mrf.mxu0
        %2923 = vdwg.mxu0
        %2924 = vmatpush.bf16.msra.mxu0 %v2766
        %2925 = vmatpush.bf16.msra.mxu0 %v2763
        %2926 = vmatpush.bf16.msra.mxu0 %v2760
        %2927 = vmatpush.bf16.msra.mxu0 %v2757
        %2928 = vmatpush.bf16.msra.mxu0 %v2754
        %2929 = vmatpush.bf16.msra.mxu0 %v2751
        %2930 = vmatpush.bf16.msra.mxu0 %v2748
        %2931 = vmatpush.bf16.msra.mxu0 %v2745
        %2932 = vmatmul.bf16.gmra.mxu0 %v2606
        %v2933 = vpop.f32.mrf.mxu0
        %v2934 = vadd.f32 0.0, %v2933
        %v2935 = vpop.f32.mrf.mxu0
        %v2936 = vadd.f32 0.0, %v2935
        %2937 = vmatmul.bf16.gmra.mxu0 %v2607
        %v2938 = vpop.f32.mrf.mxu0
        %v2939 = vadd.f32 0.0, %v2938
        %v2940 = vpop.f32.mrf.mxu0
        %v2941 = vadd.f32 0.0, %v2940
        %2942 = vmatmul.bf16.gmra.mxu0 %v2608
        %v2943 = vpop.f32.mrf.mxu0
        %v2944 = vadd.f32 0.0, %v2943
        %v2945 = vpop.f32.mrf.mxu0
        %v2946 = vadd.f32 0.0, %v2945
        %2947 = vmatmul.bf16.gmra.mxu0 %v2609
        %v2948 = vpop.f32.mrf.mxu0
        %v2949 = vadd.f32 0.0, %v2948
        %v2950 = vpop.f32.mrf.mxu0
        %v2951 = vadd.f32 0.0, %v2950
        %2952 = vmatmul.bf16.gmra.mxu0 %v2610
        %v2953 = vpop.f32.mrf.mxu0
        %v2954 = vadd.f32 0.0, %v2953
        %v2955 = vpop.f32.mrf.mxu0
        %v2956 = vadd.f32 0.0, %v2955
        %2957 = vmatmul.bf16.gmra.mxu0 %v2611
        %v2958 = vpop.f32.mrf.mxu0
        %v2959 = vadd.f32 0.0, %v2958
        %v2960 = vpop.f32.mrf.mxu0
        %v2961 = vadd.f32 0.0, %v2960
        %2962 = vmatmul.bf16.gmra.mxu0 %v2612
        %v2963 = vpop.f32.mrf.mxu0
        %v2964 = vadd.f32 0.0, %v2963
        %v2965 = vpop.f32.mrf.mxu0
        %v2966 = vadd.f32 0.0, %v2965
        %2967 = vmatmul.bf16.gmra.mxu0 %v2613
        %v2968 = vpop.f32.mrf.mxu0
        %v2969 = vadd.f32 0.0, %v2968
        %v2970 = vpop.f32.mrf.mxu0
        %v2971 = vadd.f32 0.0, %v2970
        %2972 = vmatmul.bf16.gmra.mxu0 %v2614
        %v2973 = vpop.f32.mrf.mxu0
        %v2974 = vadd.f32 0.0, %v2973
        %v2975 = vpop.f32.mrf.mxu0
        %v2976 = vadd.f32 0.0, %v2975
        %2977 = vmatmul.bf16.gmra.mxu0 %v2615
        %v2978 = vpop.f32.mrf.mxu0
        %v2979 = vadd.f32 0.0, %v2978
        %v2980 = vpop.f32.mrf.mxu0
        %v2981 = vadd.f32 0.0, %v2980
        %2982 = vmatmul.bf16.gmra.mxu0 %v2616
        %v2983 = vpop.f32.mrf.mxu0
        %v2984 = vadd.f32 0.0, %v2983
        %v2985 = vpop.f32.mrf.mxu0
        %v2986 = vadd.f32 0.0, %v2985
        %2987 = vmatmul.bf16.gmra.mxu0 %v2617
        %v2988 = vpop.f32.mrf.mxu0
        %v2989 = vadd.f32 0.0, %v2988
        %v2990 = vpop.f32.mrf.mxu0
        %v2991 = vadd.f32 0.0, %v2990
        %2992 = vmatmul.bf16.gmra.mxu0 %v2618
        %v2993 = vpop.f32.mrf.mxu0
        %v2994 = vadd.f32 0.0, %v2993
        %v2995 = vpop.f32.mrf.mxu0
        %v2996 = vadd.f32 0.0, %v2995
        %2997 = vmatmul.bf16.gmra.mxu0 %v2619
        %v2998 = vpop.f32.mrf.mxu0
        %v2999 = vadd.f32 0.0, %v2998
        %v3000 = vpop.f32.mrf.mxu0
        %v3001 = vadd.f32 0.0, %v3000
        %3002 = vmatmul.bf16.gmra.mxu0 %v2620
        %v3003 = vpop.f32.mrf.mxu0
        %v3004 = vadd.f32 0.0, %v3003
        %v3005 = vpop.f32.mrf.mxu0
        %v3006 = vadd.f32 0.0, %v3005
        %3007 = vmatmul.bf16.gmra.mxu0 %v2621
        %v3008 = vpop.f32.mrf.mxu0
        %v3009 = vadd.f32 0.0, %v3008
        %v3010 = vpop.f32.mrf.mxu0
        %v3011 = vadd.f32 0.0, %v3010
        %3012 = vmatmul.bf16.gmra.mxu0 %v2622
        %v3013 = vpop.f32.mrf.mxu0
        %v3014 = vadd.f32 0.0, %v3013
        %v3015 = vpop.f32.mrf.mxu0
        %v3016 = vadd.f32 0.0, %v3015
        %3017 = vmatmul.bf16.gmra.mxu0 %v2623
        %v3018 = vpop.f32.mrf.mxu0
        %v3019 = vadd.f32 0.0, %v3018
        %v3020 = vpop.f32.mrf.mxu0
        %v3021 = vadd.f32 0.0, %v3020
        %3022 = vmatmul.bf16.gmra.mxu0 %v2624
        %v3023 = vpop.f32.mrf.mxu0
        %v3024 = vadd.f32 0.0, %v3023
        %v3025 = vpop.f32.mrf.mxu0
        %v3026 = vadd.f32 0.0, %v3025
        %3027 = vmatmul.bf16.gmra.mxu0 %v2625
        %v3028 = vpop.f32.mrf.mxu0
        %v3029 = vadd.f32 0.0, %v3028
        %v3030 = vpop.f32.mrf.mxu0
        %v3031 = vadd.f32 0.0, %v3030
        %3032 = vmatmul.bf16.gmra.mxu0 %v2626
        %v3033 = vpop.f32.mrf.mxu0
        %v3034 = vadd.f32 0.0, %v3033
        %v3035 = vpop.f32.mrf.mxu0
        %v3036 = vadd.f32 0.0, %v3035
        %3037 = vmatmul.bf16.gmra.mxu0 %v2627
        %v3038 = vpop.f32.mrf.mxu0
        %v3039 = vadd.f32 0.0, %v3038
        %v3040 = vpop.f32.mrf.mxu0
        %v3041 = vadd.f32 0.0, %v3040
        %3042 = vmatmul.bf16.gmra.mxu0 %v2628
        %v3043 = vpop.f32.mrf.mxu0
        %v3044 = vadd.f32 0.0, %v3043
        %v3045 = vpop.f32.mrf.mxu0
        %v3046 = vadd.f32 0.0, %v3045
        %3047 = vmatmul.bf16.gmra.mxu0 %v2629
        %v3048 = vpop.f32.mrf.mxu0
        %v3049 = vadd.f32 0.0, %v3048
        %v3050 = vpop.f32.mrf.mxu0
        %v3051 = vadd.f32 0.0, %v3050
        %3052 = vmatmul.bf16.gmra.mxu0 %v2630
        %v3053 = vpop.f32.mrf.mxu0
        %v3054 = vadd.f32 0.0, %v3053
        %v3055 = vpop.f32.mrf.mxu0
        %3056 = vdwg.mxu0
        %3057 = vmatpush.bf16.msra.mxu0 %v2767
        %3058 = vmatpush.bf16.msra.mxu0 %v2764
        %3059 = vmatpush.bf16.msra.mxu0 %v2761
        %3060 = vmatpush.bf16.msra.mxu0 %v2758
        %3061 = vmatpush.bf16.msra.mxu0 %v2755
        %3062 = vmatpush.bf16.msra.mxu0 %v2752
        %3063 = vmatpush.bf16.msra.mxu0 %v2749
        %3064 = vmatpush.bf16.msra.mxu0 %v2746
        %3065 = vmatmul.bf16.gmra.mxu0 %v2606
        %v3066 = vpop.f32.mrf.mxu0
        %v3067 = vadd.f32 0.0, %v3066
        %v3068 = vpop.f32.mrf.mxu0
        %v3069 = vadd.f32 0.0, %v3068
        %3070 = vmatmul.bf16.gmra.mxu0 %v2607
        %v3071 = vpop.f32.mrf.mxu0
        %v3072 = vadd.f32 0.0, %v3071
        %v3073 = vpop.f32.mrf.mxu0
        %v3074 = vadd.f32 0.0, %v3073
        %3075 = vmatmul.bf16.gmra.mxu0 %v2608
        %v3076 = vpop.f32.mrf.mxu0
        %v3077 = vadd.f32 0.0, %v3076
        %v3078 = vpop.f32.mrf.mxu0
        %v3079 = vadd.f32 0.0, %v3078
        %3080 = vmatmul.bf16.gmra.mxu0 %v2609
        %v3081 = vpop.f32.mrf.mxu0
        %v3082 = vadd.f32 0.0, %v3081
        %v3083 = vpop.f32.mrf.mxu0
        %v3084 = vadd.f32 0.0, %v3083
        %3085 = vmatmul.bf16.gmra.mxu0 %v2610
        %v3086 = vpop.f32.mrf.mxu0
        %v3087 = vadd.f32 0.0, %v3086
        %v3088 = vpop.f32.mrf.mxu0
        %v3089 = vadd.f32 0.0, %v3088
        %3090 = vmatmul.bf16.gmra.mxu0 %v2611
        %v3091 = vpop.f32.mrf.mxu0
        %v3092 = vadd.f32 0.0, %v3091
        %v3093 = vpop.f32.mrf.mxu0
        %v3094 = vadd.f32 0.0, %v3093
        %3095 = vmatmul.bf16.gmra.mxu0 %v2612
        %v3096 = vpop.f32.mrf.mxu0
        %v3097 = vadd.f32 0.0, %v3096
        %v3098 = vpop.f32.mrf.mxu0
        %v3099 = vadd.f32 0.0, %v3098
        %3100 = vmatmul.bf16.gmra.mxu0 %v2613
        %v3101 = vpop.f32.mrf.mxu0
        %v3102 = vadd.f32 0.0, %v3101
        %v3103 = vpop.f32.mrf.mxu0
        %v3104 = vadd.f32 0.0, %v3103
        %3105 = vmatmul.bf16.gmra.mxu0 %v2614
        %v3106 = vpop.f32.mrf.mxu0
        %v3107 = vadd.f32 0.0, %v3106
        %v3108 = vpop.f32.mrf.mxu0
        %v3109 = vadd.f32 0.0, %v3108
        %3110 = vmatmul.bf16.gmra.mxu0 %v2615
        %v3111 = vpop.f32.mrf.mxu0
        %v3112 = vadd.f32 0.0, %v3111
        %v3113 = vpop.f32.mrf.mxu0
        %v3114 = vadd.f32 0.0, %v3113
        %3115 = vmatmul.bf16.gmra.mxu0 %v2616
        %v3116 = vpop.f32.mrf.mxu0
        %v3117 = vadd.f32 0.0, %v3116
        %v3118 = vpop.f32.mrf.mxu0
        %v3119 = vadd.f32 0.0, %v3118
        %3120 = vmatmul.bf16.gmra.mxu0 %v2617
        %v3121 = vpop.f32.mrf.mxu0
        %v3122 = vadd.f32 0.0, %v3121
        %v3123 = vpop.f32.mrf.mxu0
        %v3124 = vadd.f32 0.0, %v3123
        %3125 = vmatmul.bf16.gmra.mxu0 %v2618
        %v3126 = vpop.f32.mrf.mxu0
        %v3127 = vadd.f32 0.0, %v3126
        %v3128 = vpop.f32.mrf.mxu0
        %v3129 = vadd.f32 0.0, %v3128
        %3130 = vmatmul.bf16.gmra.mxu0 %v2619
        %v3131 = vpop.f32.mrf.mxu0
        %v3132 = vadd.f32 0.0, %v3131
        %v3133 = vpop.f32.mrf.mxu0
        %v3134 = vadd.f32 0.0, %v3133
        %3135 = vmatmul.bf16.gmra.mxu0 %v2620
        %v3136 = vpop.f32.mrf.mxu0
        %v3137 = vadd.f32 0.0, %v3136
        %v3138 = vpop.f32.mrf.mxu0
        %v3139 = vadd.f32 0.0, %v3138
        %3140 = vmatmul.bf16.gmra.mxu0 %v2621
        %v3141 = vpop.f32.mrf.mxu0
        %v3142 = vadd.f32 0.0, %v3141
        %v3143 = vpop.f32.mrf.mxu0
        %v3144 = vadd.f32 0.0, %v3143
        %3145 = vmatmul.bf16.gmra.mxu0 %v2622
        %v3146 = vpop.f32.mrf.mxu0
        %v3147 = vadd.f32 0.0, %v3146
        %v3148 = vpop.f32.mrf.mxu0
        %v3149 = vadd.f32 0.0, %v3148
        %3150 = vmatmul.bf16.gmra.mxu0 %v2623
        %v3151 = vpop.f32.mrf.mxu0
        %v3152 = vadd.f32 0.0, %v3151
        %v3153 = vpop.f32.mrf.mxu0
        %v3154 = vadd.f32 0.0, %v3153
        %3155 = vmatmul.bf16.gmra.mxu0 %v2624
        %v3156 = vpop.f32.mrf.mxu0
        %v3157 = vadd.f32 0.0, %v3156
        %v3158 = vpop.f32.mrf.mxu0
        %v3159 = vadd.f32 0.0, %v3158
        %3160 = vmatmul.bf16.gmra.mxu0 %v2625
        %v3161 = vpop.f32.mrf.mxu0
        %v3162 = vadd.f32 0.0, %v3161
        %v3163 = vpop.f32.mrf.mxu0
        %v3164 = vadd.f32 0.0, %v3163
        %3165 = vmatmul.bf16.gmra.mxu0 %v2626
        %v3166 = vpop.f32.mrf.mxu0
        %v3167 = vadd.f32 0.0, %v3166
        %v3168 = vpop.f32.mrf.mxu0
        %v3169 = vadd.f32 0.0, %v3168
        %3170 = vmatmul.bf16.gmra.mxu0 %v2627
        %v3171 = vpop.f32.mrf.mxu0
        %v3172 = vadd.f32 0.0, %v3171
        %v3173 = vpop.f32.mrf.mxu0
        %v3174 = vadd.f32 0.0, %v3173
        %3175 = vmatmul.bf16.gmra.mxu0 %v2628
        %v3176 = vpop.f32.mrf.mxu0
        %v3177 = vadd.f32 0.0, %v3176
        %v3178 = vpop.f32.mrf.mxu0
        %v3179 = vadd.f32 0.0, %v3178
        %3180 = vmatmul.bf16.gmra.mxu0 %v2629
        %v3181 = vpop.f32.mrf.mxu0
        %v3182 = vadd.f32 0.0, %v3181
        %v3183 = vpop.f32.mrf.mxu0
        %v3184 = vadd.f32 0.0, %v3183
        %3185 = vmatmul.bf16.gmra.mxu0 %v2630
        %v3186 = vpop.f32.mrf.mxu0
        %v3187 = vadd.f32 0.0, %v3186
        %v3188 = vpop.f32.mrf.mxu0
        %3189 = vdwg.mxu0
        %v3190 = vadd.f32 %v2508, %v2802
        %v3191 = vadd.f32 %v2509, %v2804
        %v3192 = vadd.f32 %v2510, %v2807
        %v3193 = vadd.f32 %v2511, %v2809
        %v3194 = vadd.f32 %v2512, %v2812
        %v3195 = vadd.f32 %v2513, %v2814
        %v3196 = vadd.f32 %v2514, %v2817
        %v3197 = vadd.f32 %v2515, %v2819
        %v3198 = vadd.f32 %v2516, %v2822
        %v3199 = vadd.f32 %v2517, %v2824
        %v3200 = vadd.f32 %v2518, %v2827
        %v3201 = vadd.f32 %v2519, %v2829
        %v3202 = vadd.f32 %v2520, %v2832
        %v3203 = vadd.f32 %v2521, %v2834
        %v3204 = vadd.f32 %v2522, %v2837
        %v3205 = vadd.f32 %v2523, %v2839
        %v3206 = vadd.f32 %v2524, %v2842
        %v3207 = vadd.f32 %v2525, %v2844
        %v3208 = vadd.f32 %v2526, %v2847
        %v3209 = vadd.f32 %v2527, %v2849
        %v3210 = vadd.f32 %v2528, %v2852
        %v3211 = vadd.f32 %v2529, %v2854
        %v3212 = vadd.f32 %v2530, %v2857
        %v3213 = vadd.f32 %v2531, %v2859
        %v3214 = vadd.f32 %v2532, %v2862
        %v3215 = vadd.f32 %v2533, %v2864
        %v3216 = vadd.f32 %v2534, %v2867
        %v3217 = vadd.f32 %v2535, %v2869
        %v3218 = vadd.f32 %v2536, %v2872
        %v3219 = vadd.f32 %v2537, %v2874
        %v3220 = vadd.f32 %v2538, %v2877
        %v3221 = vadd.f32 %v2539, %v2879
        %v3222 = vadd.f32 %v2540, %v2882
        %v3223 = vadd.f32 %v2541, %v2884
        %v3224 = vadd.f32 %v2542, %v2887
        %v3225 = vadd.f32 %v2543, %v2889
        %v3226 = vadd.f32 %v2544, %v2892
        %v3227 = vadd.f32 %v2545, %v2894
        %v3228 = vadd.f32 %v2546, %v2897
        %v3229 = vadd.f32 %v2547, %v2899
        %v3230 = vadd.f32 %v2548, %v2902
        %v3231 = vadd.f32 %v2549, %v2904
        %v3232 = vadd.f32 %v2550, %v2907
        %v3233 = vadd.f32 %v2551, %v2909
        %v3234 = vadd.f32 %v2552, %v2912
        %v3235 = vadd.f32 %v2553, %v2914
        %v3236 = vadd.f32 %v2554, %v2917
        %v3237 = vadd.f32 %v2555, %v2919
        %v3287 = vrot.slane %v2934, 1
        %v3288 = vrot.slane %v2936, 1
        %v3289 = vsel %vm953, %v3287, %v3288
        %v3290 = vrot.slane %v2939, 1
        %v3291 = vsel %vm953, %v3288, %v3290
        %v3292 = vrot.slane %v2941, 1
        %v3293 = vsel %vm953, %v3290, %v3292
        %v3294 = vrot.slane %v2944, 1
        %v3295 = vsel %vm953, %v3292, %v3294
        %v3296 = vrot.slane %v2946, 1
        %v3297 = vsel %vm953, %v3294, %v3296
        %v3298 = vrot.slane %v2949, 1
        %v3299 = vsel %vm953, %v3296, %v3298
        %v3300 = vrot.slane %v2951, 1
        %v3301 = vsel %vm953, %v3298, %v3300
        %v3302 = vrot.slane %v2954, 1
        %v3303 = vsel %vm953, %v3300, %v3302
        %v3304 = vrot.slane %v2956, 1
        %v3305 = vsel %vm953, %v3302, %v3304
        %v3306 = vrot.slane %v2959, 1
        %v3307 = vsel %vm953, %v3304, %v3306
        %v3308 = vrot.slane %v2961, 1
        %v3309 = vsel %vm953, %v3306, %v3308
        %v3310 = vrot.slane %v2964, 1
        %v3311 = vsel %vm953, %v3308, %v3310
        %v3312 = vrot.slane %v2966, 1
        %v3313 = vsel %vm953, %v3310, %v3312
        %v3314 = vrot.slane %v2969, 1
        %v3315 = vsel %vm953, %v3312, %v3314
        %v3316 = vrot.slane %v2971, 1
        %v3317 = vsel %vm953, %v3314, %v3316
        %v3318 = vrot.slane %v2974, 1
        %v3319 = vsel %vm953, %v3316, %v3318
        %v3320 = vrot.slane %v2976, 1
        %v3321 = vsel %vm953, %v3318, %v3320
        %v3322 = vrot.slane %v2979, 1
        %v3323 = vsel %vm953, %v3320, %v3322
        %v3324 = vrot.slane %v2981, 1
        %v3325 = vsel %vm953, %v3322, %v3324
        %v3326 = vrot.slane %v2984, 1
        %v3327 = vsel %vm953, %v3324, %v3326
        %v3328 = vrot.slane %v2986, 1
        %v3329 = vsel %vm953, %v3326, %v3328
        %v3330 = vrot.slane %v2989, 1
        %v3331 = vsel %vm953, %v3328, %v3330
        %v3332 = vrot.slane %v2991, 1
        %v3333 = vsel %vm953, %v3330, %v3332
        %v3334 = vrot.slane %v2994, 1
        %v3335 = vsel %vm953, %v3332, %v3334
        %v3336 = vrot.slane %v2996, 1
        %v3337 = vsel %vm953, %v3334, %v3336
        %v3338 = vrot.slane %v2999, 1
        %v3339 = vsel %vm953, %v3336, %v3338
        %v3340 = vrot.slane %v3001, 1
        %v3341 = vsel %vm953, %v3338, %v3340
        %v3342 = vrot.slane %v3004, 1
        %v3343 = vsel %vm953, %v3340, %v3342
        %v3344 = vrot.slane %v3006, 1
        %v3345 = vsel %vm953, %v3342, %v3344
        %v3346 = vrot.slane %v3009, 1
        %v3347 = vsel %vm953, %v3344, %v3346
        %v3348 = vrot.slane %v3011, 1
        %v3349 = vsel %vm953, %v3346, %v3348
        %v3350 = vrot.slane %v3014, 1
        %v3351 = vsel %vm953, %v3348, %v3350
        %v3352 = vrot.slane %v3016, 1
        %v3353 = vsel %vm953, %v3350, %v3352
        %v3354 = vrot.slane %v3019, 1
        %v3355 = vsel %vm953, %v3352, %v3354
        %v3356 = vrot.slane %v3021, 1
        %v3357 = vsel %vm953, %v3354, %v3356
        %v3358 = vrot.slane %v3024, 1
        %v3359 = vsel %vm953, %v3356, %v3358
        %v3360 = vrot.slane %v3026, 1
        %v3361 = vsel %vm953, %v3358, %v3360
        %v3362 = vrot.slane %v3029, 1
        %v3363 = vsel %vm953, %v3360, %v3362
        %v3364 = vrot.slane %v3031, 1
        %v3365 = vsel %vm953, %v3362, %v3364
        %v3366 = vrot.slane %v3034, 1
        %v3367 = vsel %vm953, %v3364, %v3366
        %v3368 = vrot.slane %v3036, 1
        %v3369 = vsel %vm953, %v3366, %v3368
        %v3370 = vrot.slane %v3039, 1
        %v3371 = vsel %vm953, %v3368, %v3370
        %v3372 = vrot.slane %v3041, 1
        %v3373 = vsel %vm953, %v3370, %v3372
        %v3374 = vrot.slane %v3044, 1
        %v3375 = vsel %vm953, %v3372, %v3374
        %v3376 = vrot.slane %v3046, 1
        %v3377 = vsel %vm953, %v3374, %v3376
        %v3378 = vrot.slane %v3049, 1
        %v3379 = vsel %vm953, %v3376, %v3378
        %v3380 = vrot.slane %v3051, 1
        %v3381 = vsel %vm953, %v3378, %v3380
        %v3382 = vrot.slane %v3054, 1
        %v3383 = vsel %vm953, %v3380, %v3382
        %v3432 = vadd.f32 %v3190, %v3289
        %v3433 = vadd.f32 %v3191, %v3291
        %v3434 = vadd.f32 %v3192, %v3293
        %v3435 = vadd.f32 %v3193, %v3295
        %v3436 = vadd.f32 %v3194, %v3297
        %v3437 = vadd.f32 %v3195, %v3299
        %v3438 = vadd.f32 %v3196, %v3301
        %v3439 = vadd.f32 %v3197, %v3303
        %v3440 = vadd.f32 %v3198, %v3305
        %v3441 = vadd.f32 %v3199, %v3307
        %v3442 = vadd.f32 %v3200, %v3309
        %v3443 = vadd.f32 %v3201, %v3311
        %v3444 = vadd.f32 %v3202, %v3313
        %v3445 = vadd.f32 %v3203, %v3315
        %v3446 = vadd.f32 %v3204, %v3317
        %v3447 = vadd.f32 %v3205, %v3319
        %v3448 = vadd.f32 %v3206, %v3321
        %v3449 = vadd.f32 %v3207, %v3323
        %v3450 = vadd.f32 %v3208, %v3325
        %v3451 = vadd.f32 %v3209, %v3327
        %v3452 = vadd.f32 %v3210, %v3329
        %v3453 = vadd.f32 %v3211, %v3331
        %v3454 = vadd.f32 %v3212, %v3333
        %v3455 = vadd.f32 %v3213, %v3335
        %v3456 = vadd.f32 %v3214, %v3337
        %v3457 = vadd.f32 %v3215, %v3339
        %v3458 = vadd.f32 %v3216, %v3341
        %v3459 = vadd.f32 %v3217, %v3343
        %v3460 = vadd.f32 %v3218, %v3345
        %v3461 = vadd.f32 %v3219, %v3347
        %v3462 = vadd.f32 %v3220, %v3349
        %v3463 = vadd.f32 %v3221, %v3351
        %v3464 = vadd.f32 %v3222, %v3353
        %v3465 = vadd.f32 %v3223, %v3355
        %v3466 = vadd.f32 %v3224, %v3357
        %v3467 = vadd.f32 %v3225, %v3359
        %v3468 = vadd.f32 %v3226, %v3361
        %v3469 = vadd.f32 %v3227, %v3363
        %v3470 = vadd.f32 %v3228, %v3365
        %v3471 = vadd.f32 %v3229, %v3367
        %v3472 = vadd.f32 %v3230, %v3369
        %v3473 = vadd.f32 %v3231, %v3371
        %v3474 = vadd.f32 %v3232, %v3373
        %v3475 = vadd.f32 %v3233, %v3375
        %v3476 = vadd.f32 %v3234, %v3377
        %v3477 = vadd.f32 %v3235, %v3379
        %v3478 = vadd.f32 %v3236, %v3381
        %v3479 = vadd.f32 %v3237, %v3383
        %v3529 = vrot.slane %v3067, 2
        %v3530 = vrot.slane %v3069, 2
        %v3531 = vsel %vm1196, %v3529, %v3530
        %v3532 = vrot.slane %v3072, 2
        %v3533 = vsel %vm1196, %v3530, %v3532
        %v3534 = vrot.slane %v3074, 2
        %v3535 = vsel %vm1196, %v3532, %v3534
        %v3536 = vrot.slane %v3077, 2
        %v3537 = vsel %vm1196, %v3534, %v3536
        %v3538 = vrot.slane %v3079, 2
        %v3539 = vsel %vm1196, %v3536, %v3538
        %v3540 = vrot.slane %v3082, 2
        %v3541 = vsel %vm1196, %v3538, %v3540
        %v3542 = vrot.slane %v3084, 2
        %v3543 = vsel %vm1196, %v3540, %v3542
        %v3544 = vrot.slane %v3087, 2
        %v3545 = vsel %vm1196, %v3542, %v3544
        %v3546 = vrot.slane %v3089, 2
        %v3547 = vsel %vm1196, %v3544, %v3546
        %v3548 = vrot.slane %v3092, 2
        %v3549 = vsel %vm1196, %v3546, %v3548
        %v3550 = vrot.slane %v3094, 2
        %v3551 = vsel %vm1196, %v3548, %v3550
        %v3552 = vrot.slane %v3097, 2
        %v3553 = vsel %vm1196, %v3550, %v3552
        %v3554 = vrot.slane %v3099, 2
        %v3555 = vsel %vm1196, %v3552, %v3554
        %v3556 = vrot.slane %v3102, 2
        %v3557 = vsel %vm1196, %v3554, %v3556
        %v3558 = vrot.slane %v3104, 2
        %v3559 = vsel %vm1196, %v3556, %v3558
        %v3560 = vrot.slane %v3107, 2
        %v3561 = vsel %vm1196, %v3558, %v3560
        %v3562 = vrot.slane %v3109, 2
        %v3563 = vsel %vm1196, %v3560, %v3562
        %v3564 = vrot.slane %v3112, 2
        %v3565 = vsel %vm1196, %v3562, %v3564
        %v3566 = vrot.slane %v3114, 2
        %v3567 = vsel %vm1196, %v3564, %v3566
        %v3568 = vrot.slane %v3117, 2
        %v3569 = vsel %vm1196, %v3566, %v3568
        %v3570 = vrot.slane %v3119, 2
        %v3571 = vsel %vm1196, %v3568, %v3570
        %v3572 = vrot.slane %v3122, 2
        %v3573 = vsel %vm1196, %v3570, %v3572
        %v3574 = vrot.slane %v3124, 2
        %v3575 = vsel %vm1196, %v3572, %v3574
        %v3576 = vrot.slane %v3127, 2
        %v3577 = vsel %vm1196, %v3574, %v3576
        %v3578 = vrot.slane %v3129, 2
        %v3579 = vsel %vm1196, %v3576, %v3578
        %v3580 = vrot.slane %v3132, 2
        %v3581 = vsel %vm1196, %v3578, %v3580
        %v3582 = vrot.slane %v3134, 2
        %v3583 = vsel %vm1196, %v3580, %v3582
        %v3584 = vrot.slane %v3137, 2
        %v3585 = vsel %vm1196, %v3582, %v3584
        %v3586 = vrot.slane %v3139, 2
        %v3587 = vsel %vm1196, %v3584, %v3586
        %v3588 = vrot.slane %v3142, 2
        %v3589 = vsel %vm1196, %v3586, %v3588
        %v3590 = vrot.slane %v3144, 2
        %v3591 = vsel %vm1196, %v3588, %v3590
        %v3592 = vrot.slane %v3147, 2
        %v3593 = vsel %vm1196, %v3590, %v3592
        %v3594 = vrot.slane %v3149, 2
        %v3595 = vsel %vm1196, %v3592, %v3594
        %v3596 = vrot.slane %v3152, 2
        %v3597 = vsel %vm1196, %v3594, %v3596
        %v3598 = vrot.slane %v3154, 2
        %v3599 = vsel %vm1196, %v3596, %v3598
        %v3600 = vrot.slane %v3157, 2
        %v3601 = vsel %vm1196, %v3598, %v3600
        %v3602 = vrot.slane %v3159, 2
        %v3603 = vsel %vm1196, %v3600, %v3602
        %v3604 = vrot.slane %v3162, 2
        %v3605 = vsel %vm1196, %v3602, %v3604
        %v3606 = vrot.slane %v3164, 2
        %v3607 = vsel %vm1196, %v3604, %v3606
        %v3608 = vrot.slane %v3167, 2
        %v3609 = vsel %vm1196, %v3606, %v3608
        %v3610 = vrot.slane %v3169, 2
        %v3611 = vsel %vm1196, %v3608, %v3610
        %v3612 = vrot.slane %v3172, 2
        %v3613 = vsel %vm1196, %v3610, %v3612
        %v3614 = vrot.slane %v3174, 2
        %v3615 = vsel %vm1196, %v3612, %v3614
        %v3616 = vrot.slane %v3177, 2
        %v3617 = vsel %vm1196, %v3614, %v3616
        %v3618 = vrot.slane %v3179, 2
        %v3619 = vsel %vm1196, %v3616, %v3618
        %v3620 = vrot.slane %v3182, 2
        %v3621 = vsel %vm1196, %v3618, %v3620
        %v3622 = vrot.slane %v3184, 2
        %v3623 = vsel %vm1196, %v3620, %v3622
        %v3624 = vrot.slane %v3187, 2
        %v3625 = vsel %vm1196, %v3622, %v3624
        %v3674 = vadd.f32 %v3432, %v3531
        %v3675 = vadd.f32 %v3433, %v3533
        %v3676 = vadd.f32 %v3434, %v3535
        %v3677 = vadd.f32 %v3435, %v3537
        %v3678 = vadd.f32 %v3436, %v3539
        %v3679 = vadd.f32 %v3437, %v3541
        %v3680 = vadd.f32 %v3438, %v3543
        %v3681 = vadd.f32 %v3439, %v3545
        %v3682 = vadd.f32 %v3440, %v3547
        %v3683 = vadd.f32 %v3441, %v3549
        %v3684 = vadd.f32 %v3442, %v3551
        %v3685 = vadd.f32 %v3443, %v3553
        %v3686 = vadd.f32 %v3444, %v3555
        %v3687 = vadd.f32 %v3445, %v3557
        %v3688 = vadd.f32 %v3446, %v3559
        %v3689 = vadd.f32 %v3447, %v3561
        %v3690 = vadd.f32 %v3448, %v3563
        %v3691 = vadd.f32 %v3449, %v3565
        %v3692 = vadd.f32 %v3450, %v3567
        %v3693 = vadd.f32 %v3451, %v3569
        %v3694 = vadd.f32 %v3452, %v3571
        %v3695 = vadd.f32 %v3453, %v3573
        %v3696 = vadd.f32 %v3454, %v3575
        %v3697 = vadd.f32 %v3455, %v3577
        %v3698 = vadd.f32 %v3456, %v3579
        %v3699 = vadd.f32 %v3457, %v3581
        %v3700 = vadd.f32 %v3458, %v3583
        %v3701 = vadd.f32 %v3459, %v3585
        %v3702 = vadd.f32 %v3460, %v3587
        %v3703 = vadd.f32 %v3461, %v3589
        %v3704 = vadd.f32 %v3462, %v3591
        %v3705 = vadd.f32 %v3463, %v3593
        %v3706 = vadd.f32 %v3464, %v3595
        %v3707 = vadd.f32 %v3465, %v3597
        %v3708 = vadd.f32 %v3466, %v3599
        %v3709 = vadd.f32 %v3467, %v3601
        %v3710 = vadd.f32 %v3468, %v3603
        %v3711 = vadd.f32 %v3469, %v3605
        %v3712 = vadd.f32 %v3470, %v3607
        %v3713 = vadd.f32 %v3471, %v3609
        %v3714 = vadd.f32 %v3472, %v3611
        %v3715 = vadd.f32 %v3473, %v3613
        %v3716 = vadd.f32 %v3474, %v3615
        %v3717 = vadd.f32 %v3475, %v3617
        %v3718 = vadd.f32 %v3476, %v3619
        %v3719 = vadd.f32 %v3477, %v3621
        %v3720 = vadd.f32 %v3478, %v3623
        %v3721 = vadd.f32 %v3479, %v3625
        %3722 = vst [vmem:[#allocation2] sm:$0xff] %v3674
        %3723 = vst [vmem:[#allocation2 + $0x8] sm:$0xff] %v3675
        %3724 = vst [vmem:[#allocation2 + $0x10] sm:$0xff] %v3676
        %3725 = vst [vmem:[#allocation2 + $0x18] sm:$0xff] %v3677
        %3726 = vst [vmem:[#allocation2 + $0x20] sm:$0xff] %v3678
        %3727 = vst [vmem:[#allocation2 + $0x28] sm:$0xff] %v3679
        %3728 = vst [vmem:[#allocation2 + $0x30] sm:$0xff] %v3680
        %3729 = vst [vmem:[#allocation2 + $0x38] sm:$0xff] %v3681
        %3730 = vst [vmem:[#allocation2 + $0x40] sm:$0xff] %v3682
        %3731 = vst [vmem:[#allocation2 + $0x48] sm:$0xff] %v3683
        %3732 = vst [vmem:[#allocation2 + $0x50] sm:$0xff] %v3684
        %3733 = vst [vmem:[#allocation2 + $0x58] sm:$0xff] %v3685
        %3734 = vst [vmem:[#allocation2 + $0x60] sm:$0xff] %v3686
        %3735 = vst [vmem:[#allocation2 + $0x68] sm:$0xff] %v3687
        %3736 = vst [vmem:[#allocation2 + $0x70] sm:$0xff] %v3688
        %3737 = vst [vmem:[#allocation2 + $0x78] sm:$0xff] %v3689
        %3738 = vst [vmem:[#allocation2 + $0x80] sm:$0xff] %v3690
        %3739 = vst [vmem:[#allocation2 + $0x88] sm:$0xff] %v3691
        %3740 = vst [vmem:[#allocation2 + $0x90] sm:$0xff] %v3692
        %3741 = vst [vmem:[#allocation2 + $0x98] sm:$0xff] %v3693
        %3742 = vst [vmem:[#allocation2 + $0xa0] sm:$0xff] %v3694
        %3743 = vst [vmem:[#allocation2 + $0xa8] sm:$0xff] %v3695
        %3744 = vst [vmem:[#allocation2 + $0xb0] sm:$0xff] %v3696
        %3745 = vst [vmem:[#allocation2 + $0xb8] sm:$0xff] %v3697
        %3746 = vst [vmem:[#allocation2 + $0xc0] sm:$0xff] %v3698
        %3747 = vst [vmem:[#allocation2 + $0xc8] sm:$0xff] %v3699
        %3748 = vst [vmem:[#allocation2 + $0xd0] sm:$0xff] %v3700
        %3749 = vst [vmem:[#allocation2 + $0xd8] sm:$0xff] %v3701
        %3750 = vst [vmem:[#allocation2 + $0xe0] sm:$0xff] %v3702
        %3751 = vst [vmem:[#allocation2 + $0xe8] sm:$0xff] %v3703
        %3752 = vst [vmem:[#allocation2 + $0xf0] sm:$0xff] %v3704
        %3753 = vst [vmem:[#allocation2 + $0xf8] sm:$0xff] %v3705
        %3754 = vst [vmem:[#allocation2 + $0x100] sm:$0xff] %v3706
        %3755 = vst [vmem:[#allocation2 + $0x108] sm:$0xff] %v3707
        %3756 = vst [vmem:[#allocation2 + $0x110] sm:$0xff] %v3708
        %3757 = vst [vmem:[#allocation2 + $0x118] sm:$0xff] %v3709
        %3758 = vst [vmem:[#allocation2 + $0x120] sm:$0xff] %v3710
        %3759 = vst [vmem:[#allocation2 + $0x128] sm:$0xff] %v3711
        %3760 = vst [vmem:[#allocation2 + $0x130] sm:$0xff] %v3712
        %3761 = vst [vmem:[#allocation2 + $0x138] sm:$0xff] %v3713
        %3762 = vst [vmem:[#allocation2 + $0x140] sm:$0xff] %v3714
        %3763 = vst [vmem:[#allocation2 + $0x148] sm:$0xff] %v3715
        %3764 = vst [vmem:[#allocation2 + $0x150] sm:$0xff] %v3716
        %3765 = vst [vmem:[#allocation2 + $0x158] sm:$0xff] %v3717
        %3766 = vst [vmem:[#allocation2 + $0x160] sm:$0xff] %v3718
        %3767 = vst [vmem:[#allocation2 + $0x168] sm:$0xff] %v3719
        %3768 = vst [vmem:[#allocation2 + $0x170] sm:$0xff] %v3720
        %3769 = vst [vmem:[#allocation2 + $0x178] sm:$0xff] %v3721
        %v3770 = vlaneseq
        %v3771 = vshrl.u32 %v3770, 7
        %v3772 = vadd.s32 %v3771, 8
        %v3773 = vadd.s32 %v3771, 16
        %v3774 = vadd.s32 %v3771, 24
        %v3775 = vadd.s32 %v3771, 32
        %v3776 = vadd.s32 %v3771, 40
        %v3777 = vadd.s32 %v3771, 48
        %v3778 = vadd.s32 %v3771, 56
        %v3779 = vadd.s32 %v3771, 64
        %v3780 = vadd.s32 %v3771, 72
        %v3781 = vadd.s32 %v3771, 80
        %v3782 = vadd.s32 %v3771, 88
        %v3783 = vadd.s32 %v3771, 96
        %v3784 = vadd.s32 %v3771, 104
        %v3785 = vadd.s32 %v3771, 112
        %v3786 = vadd.s32 %v3771, 120
        %v3787 = vadd.s32 %v3771, 128
        %v3788 = vadd.s32 %v3771, 136
        %v3789 = vadd.s32 %v3771, 144
        %v3790 = vadd.s32 %v3771, 152
        %v3791 = vadd.s32 %v3771, 160
        %v3792 = vadd.s32 %v3771, 168
        %v3793 = vadd.s32 %v3771, 176
        %v3794 = vadd.s32 %v3771, 184
        %v3795 = vadd.s32 %v3771, 192
        %v3796 = vadd.s32 %v3771, 200
        %v3797 = vadd.s32 %v3771, 208
        %v3798 = vadd.s32 %v3771, 216
        %v3799 = vadd.s32 %v3771, 224
        %v3800 = vadd.s32 %v3771, 232
        %v3801 = vadd.s32 %v3771, 240
        %v3802 = vadd.s32 %v3771, 248
        %v3803 = vadd.s32 %v3771, 256
        %v3804 = vadd.s32 %v3771, 264
        %v3805 = vadd.s32 %v3771, 272
        %v3806 = vadd.s32 %v3771, 280
        %v3807 = vadd.s32 %v3771, 288
        %v3808 = vadd.s32 %v3771, 296
        %v3809 = vadd.s32 %v3771, 304
        %v3810 = vadd.s32 %v3771, 312
        %v3811 = vadd.s32 %v3771, 320
        %v3812 = vadd.s32 %v3771, 328
        %v3813 = vadd.s32 %v3771, 336
        %v3814 = vadd.s32 %v3771, 344
        %v3815 = vadd.s32 %v3771, 352
        %v3816 = vadd.s32 %v3771, 360
        %v3817 = vadd.s32 %v3771, 368
        %v3818 = vadd.s32 %v3771, 376
        %vm3819 = vcmp.lt.s32.totalorder %v3771, 0
        %v3820 = vsub.s32 0, %v3771
        %v3821 = vsel %vm3819, %v3820, %v3771
        %v3822 = vand.u32 %v3821, 65535
        %v3823 = vshrl.u32 %v3821, 16
        %v3825 = vmul.u32 %v3822, 43691
        %v3826 = vmul.u32 %v3822, 43690
        %v3827 = vmul.u32 %v3823, 43691
        %v3828 = vmul.u32 %v3823, 43690
        %v3829 = vshll.u32 %v3826, 16
        %v3830 = vshrl.u32 %v3826, 16
        %v3831 = vshll.u32 %v3827, 16
        %v3832 = vshrl.u32 %v3827, 16
        %vm3833 = vc.u32 %v3825, %v3829
        %v3834 = vsel %vm3833, 1, 0
        %v3835 = vadd.s32 %v3825, %v3829
        %v3836 = vadd.s32 %v3828, %v3834
        %vm3837 = vc.u32 %v3835, %v3831
        %v3838 = vsel %vm3837, 1, 0
        %v3839 = vadd.s32 %v3835, %v3831
        %v3840 = vadd.s32 %v3836, %v3838
        %v3841 = vadd.s32 %v3840, %v3830
        %v3842 = vadd.s32 %v3841, %v3832
        %v3843 = vshrl.u32 %v3842, 4
        %v3844 = vmul.u32 %v3843, 24
        %v3845 = vsub.s32 %v3821, %v3844
        %v3846 = vsub.s32 0, %v3845
        %v3847 = vsel %vm3819, %v3846, %v3845
        %vm3848 = vcmp.lt.s32.totalorder %v3772, 0
        %v3849 = vsub.s32 0, %v3772
        %v3850 = vsel %vm3848, %v3849, %v3772
        %v3851 = vand.u32 %v3850, 65535
        %v3852 = vshrl.u32 %v3850, 16
        %v3854 = vmul.u32 %v3851, 43691
        %v3855 = vmul.u32 %v3851, 43690
        %v3856 = vmul.u32 %v3852, 43691
        %v3857 = vmul.u32 %v3852, 43690
        %v3858 = vshll.u32 %v3855, 16
        %v3859 = vshrl.u32 %v3855, 16
        %v3860 = vshll.u32 %v3856, 16
        %v3861 = vshrl.u32 %v3856, 16
        %vm3862 = vc.u32 %v3854, %v3858
        %v3863 = vsel %vm3862, 1, 0
        %v3864 = vadd.s32 %v3854, %v3858
        %v3865 = vadd.s32 %v3857, %v3863
        %vm3866 = vc.u32 %v3864, %v3860
        %v3867 = vsel %vm3866, 1, 0
        %v3868 = vadd.s32 %v3864, %v3860
        %v3869 = vadd.s32 %v3865, %v3867
        %v3870 = vadd.s32 %v3869, %v3859
        %v3871 = vadd.s32 %v3870, %v3861
        %v3872 = vshrl.u32 %v3871, 4
        %v3873 = vmul.u32 %v3872, 24
        %v3874 = vsub.s32 %v3850, %v3873
        %v3875 = vsub.s32 0, %v3874
        %v3876 = vsel %vm3848, %v3875, %v3874
        %vm3877 = vcmp.lt.s32.totalorder %v3773, 0
        %v3878 = vsub.s32 0, %v3773
        %v3879 = vsel %vm3877, %v3878, %v3773
        %v3880 = vand.u32 %v3879, 65535
        %v3881 = vshrl.u32 %v3879, 16
        %v3883 = vmul.u32 %v3880, 43691
        %v3884 = vmul.u32 %v3880, 43690
        %v3885 = vmul.u32 %v3881, 43691
        %v3886 = vmul.u32 %v3881, 43690
        %v3887 = vshll.u32 %v3884, 16
        %v3888 = vshrl.u32 %v3884, 16
        %v3889 = vshll.u32 %v3885, 16
        %v3890 = vshrl.u32 %v3885, 16
        %vm3891 = vc.u32 %v3883, %v3887
        %v3892 = vsel %vm3891, 1, 0
        %v3893 = vadd.s32 %v3883, %v3887
        %v3894 = vadd.s32 %v3886, %v3892
        %vm3895 = vc.u32 %v3893, %v3889
        %v3896 = vsel %vm3895, 1, 0
        %v3897 = vadd.s32 %v3893, %v3889
        %v3898 = vadd.s32 %v3894, %v3896
        %v3899 = vadd.s32 %v3898, %v3888
        %v3900 = vadd.s32 %v3899, %v3890
        %v3901 = vshrl.u32 %v3900, 4
        %v3902 = vmul.u32 %v3901, 24
        %v3903 = vsub.s32 %v3879, %v3902
        %v3904 = vsub.s32 0, %v3903
        %v3905 = vsel %vm3877, %v3904, %v3903
        %vm3906 = vcmp.lt.s32.totalorder %v3774, 0
        %v3907 = vsub.s32 0, %v3774
        %v3908 = vsel %vm3906, %v3907, %v3774
        %v3909 = vand.u32 %v3908, 65535
        %v3910 = vshrl.u32 %v3908, 16
        %v3912 = vmul.u32 %v3909, 43691
        %v3913 = vmul.u32 %v3909, 43690
        %v3914 = vmul.u32 %v3910, 43691
        %v3915 = vmul.u32 %v3910, 43690
        %v3916 = vshll.u32 %v3913, 16
        %v3917 = vshrl.u32 %v3913, 16
        %v3918 = vshll.u32 %v3914, 16
        %v3919 = vshrl.u32 %v3914, 16
        %vm3920 = vc.u32 %v3912, %v3916
        %v3921 = vsel %vm3920, 1, 0
        %v3922 = vadd.s32 %v3912, %v3916
        %v3923 = vadd.s32 %v3915, %v3921
        %vm3924 = vc.u32 %v3922, %v3918
        %v3925 = vsel %vm3924, 1, 0
        %v3926 = vadd.s32 %v3922, %v3918
        %v3927 = vadd.s32 %v3923, %v3925
        %v3928 = vadd.s32 %v3927, %v3917
        %v3929 = vadd.s32 %v3928, %v3919
        %v3930 = vshrl.u32 %v3929, 4
        %v3931 = vmul.u32 %v3930, 24
        %v3932 = vsub.s32 %v3908, %v3931
        %v3933 = vsub.s32 0, %v3932
        %v3934 = vsel %vm3906, %v3933, %v3932
        %vm3935 = vcmp.lt.s32.totalorder %v3775, 0
        %v3936 = vsub.s32 0, %v3775
        %v3937 = vsel %vm3935, %v3936, %v3775
        %v3938 = vand.u32 %v3937, 65535
        %v3939 = vshrl.u32 %v3937, 16
        %v3941 = vmul.u32 %v3938, 43691
        %v3942 = vmul.u32 %v3938, 43690
        %v3943 = vmul.u32 %v3939, 43691
        %v3944 = vmul.u32 %v3939, 43690
        %v3945 = vshll.u32 %v3942, 16
        %v3946 = vshrl.u32 %v3942, 16
        %v3947 = vshll.u32 %v3943, 16
        %v3948 = vshrl.u32 %v3943, 16
        %vm3949 = vc.u32 %v3941, %v3945
        %v3950 = vsel %vm3949, 1, 0
        %v3951 = vadd.s32 %v3941, %v3945
        %v3952 = vadd.s32 %v3944, %v3950
        %vm3953 = vc.u32 %v3951, %v3947
        %v3954 = vsel %vm3953, 1, 0
        %v3955 = vadd.s32 %v3951, %v3947
        %v3956 = vadd.s32 %v3952, %v3954
        %v3957 = vadd.s32 %v3956, %v3946
        %v3958 = vadd.s32 %v3957, %v3948
        %v3959 = vshrl.u32 %v3958, 4
        %v3960 = vmul.u32 %v3959, 24
        %v3961 = vsub.s32 %v3937, %v3960
        %v3962 = vsub.s32 0, %v3961
        %v3963 = vsel %vm3935, %v3962, %v3961
        %vm3964 = vcmp.lt.s32.totalorder %v3776, 0
        %v3965 = vsub.s32 0, %v3776
        %v3966 = vsel %vm3964, %v3965, %v3776
        %v3967 = vand.u32 %v3966, 65535
        %v3968 = vshrl.u32 %v3966, 16
        %v3970 = vmul.u32 %v3967, 43691
        %v3971 = vmul.u32 %v3967, 43690
        %v3972 = vmul.u32 %v3968, 43691
        %v3973 = vmul.u32 %v3968, 43690
        %v3974 = vshll.u32 %v3971, 16
        %v3975 = vshrl.u32 %v3971, 16
        %v3976 = vshll.u32 %v3972, 16
        %v3977 = vshrl.u32 %v3972, 16
        %vm3978 = vc.u32 %v3970, %v3974
        %v3979 = vsel %vm3978, 1, 0
        %v3980 = vadd.s32 %v3970, %v3974
        %v3981 = vadd.s32 %v3973, %v3979
        %vm3982 = vc.u32 %v3980, %v3976
        %v3983 = vsel %vm3982, 1, 0
        %v3984 = vadd.s32 %v3980, %v3976
        %v3985 = vadd.s32 %v3981, %v3983
        %v3986 = vadd.s32 %v3985, %v3975
        %v3987 = vadd.s32 %v3986, %v3977
        %v3988 = vshrl.u32 %v3987, 4
        %v3989 = vmul.u32 %v3988, 24
        %v3990 = vsub.s32 %v3966, %v3989
        %v3991 = vsub.s32 0, %v3990
        %v3992 = vsel %vm3964, %v3991, %v3990
        %vm3993 = vcmp.lt.s32.totalorder %v3777, 0
        %v3994 = vsub.s32 0, %v3777
        %v3995 = vsel %vm3993, %v3994, %v3777
        %v3996 = vand.u32 %v3995, 65535
        %v3997 = vshrl.u32 %v3995, 16
        %v3999 = vmul.u32 %v3996, 43691
        %v4000 = vmul.u32 %v3996, 43690
        %v4001 = vmul.u32 %v3997, 43691
        %v4002 = vmul.u32 %v3997, 43690
        %v4003 = vshll.u32 %v4000, 16
        %v4004 = vshrl.u32 %v4000, 16
        %v4005 = vshll.u32 %v4001, 16
        %v4006 = vshrl.u32 %v4001, 16
        %vm4007 = vc.u32 %v3999, %v4003
        %v4008 = vsel %vm4007, 1, 0
        %v4009 = vadd.s32 %v3999, %v4003
        %v4010 = vadd.s32 %v4002, %v4008
        %vm4011 = vc.u32 %v4009, %v4005
        %v4012 = vsel %vm4011, 1, 0
        %v4013 = vadd.s32 %v4009, %v4005
        %v4014 = vadd.s32 %v4010, %v4012
        %v4015 = vadd.s32 %v4014, %v4004
        %v4016 = vadd.s32 %v4015, %v4006
        %v4017 = vshrl.u32 %v4016, 4
        %v4018 = vmul.u32 %v4017, 24
        %v4019 = vsub.s32 %v3995, %v4018
        %v4020 = vsub.s32 0, %v4019
        %v4021 = vsel %vm3993, %v4020, %v4019
        %vm4022 = vcmp.lt.s32.totalorder %v3778, 0
        %v4023 = vsub.s32 0, %v3778
        %v4024 = vsel %vm4022, %v4023, %v3778
        %v4025 = vand.u32 %v4024, 65535
        %v4026 = vshrl.u32 %v4024, 16
        %v4028 = vmul.u32 %v4025, 43691
        %v4029 = vmul.u32 %v4025, 43690
        %v4030 = vmul.u32 %v4026, 43691
        %v4031 = vmul.u32 %v4026, 43690
        %v4032 = vshll.u32 %v4029, 16
        %v4033 = vshrl.u32 %v4029, 16
        %v4034 = vshll.u32 %v4030, 16
        %v4035 = vshrl.u32 %v4030, 16
        %vm4036 = vc.u32 %v4028, %v4032
        %v4037 = vsel %vm4036, 1, 0
        %v4038 = vadd.s32 %v4028, %v4032
        %v4039 = vadd.s32 %v4031, %v4037
        %vm4040 = vc.u32 %v4038, %v4034
        %v4041 = vsel %vm4040, 1, 0
        %v4042 = vadd.s32 %v4038, %v4034
        %v4043 = vadd.s32 %v4039, %v4041
        %v4044 = vadd.s32 %v4043, %v4033
        %v4045 = vadd.s32 %v4044, %v4035
        %v4046 = vshrl.u32 %v4045, 4
        %v4047 = vmul.u32 %v4046, 24
        %v4048 = vsub.s32 %v4024, %v4047
        %v4049 = vsub.s32 0, %v4048
        %v4050 = vsel %vm4022, %v4049, %v4048
        %vm4051 = vcmp.lt.s32.totalorder %v3779, 0
        %v4052 = vsub.s32 0, %v3779
        %v4053 = vsel %vm4051, %v4052, %v3779
        %v4054 = vand.u32 %v4053, 65535
        %v4055 = vshrl.u32 %v4053, 16
        %v4057 = vmul.u32 %v4054, 43691
        %v4058 = vmul.u32 %v4054, 43690
        %v4059 = vmul.u32 %v4055, 43691
        %v4060 = vmul.u32 %v4055, 43690
        %v4061 = vshll.u32 %v4058, 16
        %v4062 = vshrl.u32 %v4058, 16
        %v4063 = vshll.u32 %v4059, 16
        %v4064 = vshrl.u32 %v4059, 16
        %vm4065 = vc.u32 %v4057, %v4061
        %v4066 = vsel %vm4065, 1, 0
        %v4067 = vadd.s32 %v4057, %v4061
        %v4068 = vadd.s32 %v4060, %v4066
        %vm4069 = vc.u32 %v4067, %v4063
        %v4070 = vsel %vm4069, 1, 0
        %v4071 = vadd.s32 %v4067, %v4063
        %v4072 = vadd.s32 %v4068, %v4070
        %v4073 = vadd.s32 %v4072, %v4062
        %v4074 = vadd.s32 %v4073, %v4064
        %v4075 = vshrl.u32 %v4074, 4
        %v4076 = vmul.u32 %v4075, 24
        %v4077 = vsub.s32 %v4053, %v4076
        %v4078 = vsub.s32 0, %v4077
        %v4079 = vsel %vm4051, %v4078, %v4077
        %vm4080 = vcmp.lt.s32.totalorder %v3780, 0
        %v4081 = vsub.s32 0, %v3780
        %v4082 = vsel %vm4080, %v4081, %v3780
        %v4083 = vand.u32 %v4082, 65535
        %v4084 = vshrl.u32 %v4082, 16
        %v4086 = vmul.u32 %v4083, 43691
        %v4087 = vmul.u32 %v4083, 43690
        %v4088 = vmul.u32 %v4084, 43691
        %v4089 = vmul.u32 %v4084, 43690
        %v4090 = vshll.u32 %v4087, 16
        %v4091 = vshrl.u32 %v4087, 16
        %v4092 = vshll.u32 %v4088, 16
        %v4093 = vshrl.u32 %v4088, 16
        %vm4094 = vc.u32 %v4086, %v4090
        %v4095 = vsel %vm4094, 1, 0
        %v4096 = vadd.s32 %v4086, %v4090
        %v4097 = vadd.s32 %v4089, %v4095
        %vm4098 = vc.u32 %v4096, %v4092
        %v4099 = vsel %vm4098, 1, 0
        %v4100 = vadd.s32 %v4096, %v4092
        %v4101 = vadd.s32 %v4097, %v4099
        %v4102 = vadd.s32 %v4101, %v4091
        %v4103 = vadd.s32 %v4102, %v4093
        %v4104 = vshrl.u32 %v4103, 4
        %v4105 = vmul.u32 %v4104, 24
        %v4106 = vsub.s32 %v4082, %v4105
        %v4107 = vsub.s32 0, %v4106
        %v4108 = vsel %vm4080, %v4107, %v4106
        %vm4109 = vcmp.lt.s32.totalorder %v3781, 0
        %v4110 = vsub.s32 0, %v3781
        %v4111 = vsel %vm4109, %v4110, %v3781
        %v4112 = vand.u32 %v4111, 65535
        %v4113 = vshrl.u32 %v4111, 16
        %v4115 = vmul.u32 %v4112, 43691
        %v4116 = vmul.u32 %v4112, 43690
        %v4117 = vmul.u32 %v4113, 43691
        %v4118 = vmul.u32 %v4113, 43690
        %v4119 = vshll.u32 %v4116, 16
        %v4120 = vshrl.u32 %v4116, 16
        %v4121 = vshll.u32 %v4117, 16
        %v4122 = vshrl.u32 %v4117, 16
        %vm4123 = vc.u32 %v4115, %v4119
        %v4124 = vsel %vm4123, 1, 0
        %v4125 = vadd.s32 %v4115, %v4119
        %v4126 = vadd.s32 %v4118, %v4124
        %vm4127 = vc.u32 %v4125, %v4121
        %v4128 = vsel %vm4127, 1, 0
        %v4129 = vadd.s32 %v4125, %v4121
        %v4130 = vadd.s32 %v4126, %v4128
        %v4131 = vadd.s32 %v4130, %v4120
        %v4132 = vadd.s32 %v4131, %v4122
        %v4133 = vshrl.u32 %v4132, 4
        %v4134 = vmul.u32 %v4133, 24
        %v4135 = vsub.s32 %v4111, %v4134
        %v4136 = vsub.s32 0, %v4135
        %v4137 = vsel %vm4109, %v4136, %v4135
        %vm4138 = vcmp.lt.s32.totalorder %v3782, 0
        %v4139 = vsub.s32 0, %v3782
        %v4140 = vsel %vm4138, %v4139, %v3782
        %v4141 = vand.u32 %v4140, 65535
        %v4142 = vshrl.u32 %v4140, 16
        %v4144 = vmul.u32 %v4141, 43691
        %v4145 = vmul.u32 %v4141, 43690
        %v4146 = vmul.u32 %v4142, 43691
        %v4147 = vmul.u32 %v4142, 43690
        %v4148 = vshll.u32 %v4145, 16
        %v4149 = vshrl.u32 %v4145, 16
        %v4150 = vshll.u32 %v4146, 16
        %v4151 = vshrl.u32 %v4146, 16
        %vm4152 = vc.u32 %v4144, %v4148
        %v4153 = vsel %vm4152, 1, 0
        %v4154 = vadd.s32 %v4144, %v4148
        %v4155 = vadd.s32 %v4147, %v4153
        %vm4156 = vc.u32 %v4154, %v4150
        %v4157 = vsel %vm4156, 1, 0
        %v4158 = vadd.s32 %v4154, %v4150
        %v4159 = vadd.s32 %v4155, %v4157
        %v4160 = vadd.s32 %v4159, %v4149
        %v4161 = vadd.s32 %v4160, %v4151
        %v4162 = vshrl.u32 %v4161, 4
        %v4163 = vmul.u32 %v4162, 24
        %v4164 = vsub.s32 %v4140, %v4163
        %v4165 = vsub.s32 0, %v4164
        %v4166 = vsel %vm4138, %v4165, %v4164
        %vm4167 = vcmp.lt.s32.totalorder %v3783, 0
        %v4168 = vsub.s32 0, %v3783
        %v4169 = vsel %vm4167, %v4168, %v3783
        %v4170 = vand.u32 %v4169, 65535
        %v4171 = vshrl.u32 %v4169, 16
        %v4173 = vmul.u32 %v4170, 43691
        %v4174 = vmul.u32 %v4170, 43690
        %v4175 = vmul.u32 %v4171, 43691
        %v4176 = vmul.u32 %v4171, 43690
        %v4177 = vshll.u32 %v4174, 16
        %v4178 = vshrl.u32 %v4174, 16
        %v4179 = vshll.u32 %v4175, 16
        %v4180 = vshrl.u32 %v4175, 16
        %vm4181 = vc.u32 %v4173, %v4177
        %v4182 = vsel %vm4181, 1, 0
        %v4183 = vadd.s32 %v4173, %v4177
        %v4184 = vadd.s32 %v4176, %v4182
        %vm4185 = vc.u32 %v4183, %v4179
        %v4186 = vsel %vm4185, 1, 0
        %v4187 = vadd.s32 %v4183, %v4179
        %v4188 = vadd.s32 %v4184, %v4186
        %v4189 = vadd.s32 %v4188, %v4178
        %v4190 = vadd.s32 %v4189, %v4180
        %v4191 = vshrl.u32 %v4190, 4
        %v4192 = vmul.u32 %v4191, 24
        %v4193 = vsub.s32 %v4169, %v4192
        %v4194 = vsub.s32 0, %v4193
        %v4195 = vsel %vm4167, %v4194, %v4193
        %vm4196 = vcmp.lt.s32.totalorder %v3784, 0
        %v4197 = vsub.s32 0, %v3784
        %v4198 = vsel %vm4196, %v4197, %v3784
        %v4199 = vand.u32 %v4198, 65535
        %v4200 = vshrl.u32 %v4198, 16
        %v4202 = vmul.u32 %v4199, 43691
        %v4203 = vmul.u32 %v4199, 43690
        %v4204 = vmul.u32 %v4200, 43691
        %v4205 = vmul.u32 %v4200, 43690
        %v4206 = vshll.u32 %v4203, 16
        %v4207 = vshrl.u32 %v4203, 16
        %v4208 = vshll.u32 %v4204, 16
        %v4209 = vshrl.u32 %v4204, 16
        %vm4210 = vc.u32 %v4202, %v4206
        %v4211 = vsel %vm4210, 1, 0
        %v4212 = vadd.s32 %v4202, %v4206
        %v4213 = vadd.s32 %v4205, %v4211
        %vm4214 = vc.u32 %v4212, %v4208
        %v4215 = vsel %vm4214, 1, 0
        %v4216 = vadd.s32 %v4212, %v4208
        %v4217 = vadd.s32 %v4213, %v4215
        %v4218 = vadd.s32 %v4217, %v4207
        %v4219 = vadd.s32 %v4218, %v4209
        %v4220 = vshrl.u32 %v4219, 4
        %v4221 = vmul.u32 %v4220, 24
        %v4222 = vsub.s32 %v4198, %v4221
        %v4223 = vsub.s32 0, %v4222
        %v4224 = vsel %vm4196, %v4223, %v4222
        %vm4225 = vcmp.lt.s32.totalorder %v3785, 0
        %v4226 = vsub.s32 0, %v3785
        %v4227 = vsel %vm4225, %v4226, %v3785
        %v4228 = vand.u32 %v4227, 65535
        %v4229 = vshrl.u32 %v4227, 16
        %v4231 = vmul.u32 %v4228, 43691
        %v4232 = vmul.u32 %v4228, 43690
        %v4233 = vmul.u32 %v4229, 43691
        %v4234 = vmul.u32 %v4229, 43690
        %v4235 = vshll.u32 %v4232, 16
        %v4236 = vshrl.u32 %v4232, 16
        %v4237 = vshll.u32 %v4233, 16
        %v4238 = vshrl.u32 %v4233, 16
        %vm4239 = vc.u32 %v4231, %v4235
        %v4240 = vsel %vm4239, 1, 0
        %v4241 = vadd.s32 %v4231, %v4235
        %v4242 = vadd.s32 %v4234, %v4240
        %vm4243 = vc.u32 %v4241, %v4237
        %v4244 = vsel %vm4243, 1, 0
        %v4245 = vadd.s32 %v4241, %v4237
        %v4246 = vadd.s32 %v4242, %v4244
        %v4247 = vadd.s32 %v4246, %v4236
        %v4248 = vadd.s32 %v4247, %v4238
        %v4249 = vshrl.u32 %v4248, 4
        %v4250 = vmul.u32 %v4249, 24
        %v4251 = vsub.s32 %v4227, %v4250
        %v4252 = vsub.s32 0, %v4251
        %v4253 = vsel %vm4225, %v4252, %v4251
        %vm4254 = vcmp.lt.s32.totalorder %v3786, 0
        %v4255 = vsub.s32 0, %v3786
        %v4256 = vsel %vm4254, %v4255, %v3786
        %v4257 = vand.u32 %v4256, 65535
        %v4258 = vshrl.u32 %v4256, 16
        %v4260 = vmul.u32 %v4257, 43691
        %v4261 = vmul.u32 %v4257, 43690
        %v4262 = vmul.u32 %v4258, 43691
        %v4263 = vmul.u32 %v4258, 43690
        %v4264 = vshll.u32 %v4261, 16
        %v4265 = vshrl.u32 %v4261, 16
        %v4266 = vshll.u32 %v4262, 16
        %v4267 = vshrl.u32 %v4262, 16
        %vm4268 = vc.u32 %v4260, %v4264
        %v4269 = vsel %vm4268, 1, 0
        %v4270 = vadd.s32 %v4260, %v4264
        %v4271 = vadd.s32 %v4263, %v4269
        %vm4272 = vc.u32 %v4270, %v4266
        %v4273 = vsel %vm4272, 1, 0
        %v4274 = vadd.s32 %v4270, %v4266
        %v4275 = vadd.s32 %v4271, %v4273
        %v4276 = vadd.s32 %v4275, %v4265
        %v4277 = vadd.s32 %v4276, %v4267
        %v4278 = vshrl.u32 %v4277, 4
        %v4279 = vmul.u32 %v4278, 24
        %v4280 = vsub.s32 %v4256, %v4279
        %v4281 = vsub.s32 0, %v4280
        %v4282 = vsel %vm4254, %v4281, %v4280
        %vm4283 = vcmp.lt.s32.totalorder %v3787, 0
        %v4284 = vsub.s32 0, %v3787
        %v4285 = vsel %vm4283, %v4284, %v3787
        %v4286 = vand.u32 %v4285, 65535
        %v4287 = vshrl.u32 %v4285, 16
        %v4289 = vmul.u32 %v4286, 43691
        %v4290 = vmul.u32 %v4286, 43690
        %v4291 = vmul.u32 %v4287, 43691
        %v4292 = vmul.u32 %v4287, 43690
        %v4293 = vshll.u32 %v4290, 16
        %v4294 = vshrl.u32 %v4290, 16
        %v4295 = vshll.u32 %v4291, 16
        %v4296 = vshrl.u32 %v4291, 16
        %vm4297 = vc.u32 %v4289, %v4293
        %v4298 = vsel %vm4297, 1, 0
        %v4299 = vadd.s32 %v4289, %v4293
        %v4300 = vadd.s32 %v4292, %v4298
        %vm4301 = vc.u32 %v4299, %v4295
        %v4302 = vsel %vm4301, 1, 0
        %v4303 = vadd.s32 %v4299, %v4295
        %v4304 = vadd.s32 %v4300, %v4302
        %v4305 = vadd.s32 %v4304, %v4294
        %v4306 = vadd.s32 %v4305, %v4296
        %v4307 = vshrl.u32 %v4306, 4
        %v4308 = vmul.u32 %v4307, 24
        %v4309 = vsub.s32 %v4285, %v4308
        %v4310 = vsub.s32 0, %v4309
        %v4311 = vsel %vm4283, %v4310, %v4309
        %vm4312 = vcmp.lt.s32.totalorder %v3788, 0
        %v4313 = vsub.s32 0, %v3788
        %v4314 = vsel %vm4312, %v4313, %v3788
        %v4315 = vand.u32 %v4314, 65535
        %v4316 = vshrl.u32 %v4314, 16
        %v4318 = vmul.u32 %v4315, 43691
        %v4319 = vmul.u32 %v4315, 43690
        %v4320 = vmul.u32 %v4316, 43691
        %v4321 = vmul.u32 %v4316, 43690
        %v4322 = vshll.u32 %v4319, 16
        %v4323 = vshrl.u32 %v4319, 16
        %v4324 = vshll.u32 %v4320, 16
        %v4325 = vshrl.u32 %v4320, 16
        %vm4326 = vc.u32 %v4318, %v4322
        %v4327 = vsel %vm4326, 1, 0
        %v4328 = vadd.s32 %v4318, %v4322
        %v4329 = vadd.s32 %v4321, %v4327
        %vm4330 = vc.u32 %v4328, %v4324
        %v4331 = vsel %vm4330, 1, 0
        %v4332 = vadd.s32 %v4328, %v4324
        %v4333 = vadd.s32 %v4329, %v4331
        %v4334 = vadd.s32 %v4333, %v4323
        %v4335 = vadd.s32 %v4334, %v4325
        %v4336 = vshrl.u32 %v4335, 4
        %v4337 = vmul.u32 %v4336, 24
        %v4338 = vsub.s32 %v4314, %v4337
        %v4339 = vsub.s32 0, %v4338
        %v4340 = vsel %vm4312, %v4339, %v4338
        %vm4341 = vcmp.lt.s32.totalorder %v3789, 0
        %v4342 = vsub.s32 0, %v3789
        %v4343 = vsel %vm4341, %v4342, %v3789
        %v4344 = vand.u32 %v4343, 65535
        %v4345 = vshrl.u32 %v4343, 16
        %v4347 = vmul.u32 %v4344, 43691
        %v4348 = vmul.u32 %v4344, 43690
        %v4349 = vmul.u32 %v4345, 43691
        %v4350 = vmul.u32 %v4345, 43690
        %v4351 = vshll.u32 %v4348, 16
        %v4352 = vshrl.u32 %v4348, 16
        %v4353 = vshll.u32 %v4349, 16
        %v4354 = vshrl.u32 %v4349, 16
        %vm4355 = vc.u32 %v4347, %v4351
        %v4356 = vsel %vm4355, 1, 0
        %v4357 = vadd.s32 %v4347, %v4351
        %v4358 = vadd.s32 %v4350, %v4356
        %vm4359 = vc.u32 %v4357, %v4353
        %v4360 = vsel %vm4359, 1, 0
        %v4361 = vadd.s32 %v4357, %v4353
        %v4362 = vadd.s32 %v4358, %v4360
        %v4363 = vadd.s32 %v4362, %v4352
        %v4364 = vadd.s32 %v4363, %v4354
        %v4365 = vshrl.u32 %v4364, 4
        %v4366 = vmul.u32 %v4365, 24
        %v4367 = vsub.s32 %v4343, %v4366
        %v4368 = vsub.s32 0, %v4367
        %v4369 = vsel %vm4341, %v4368, %v4367
        %vm4370 = vcmp.lt.s32.totalorder %v3790, 0
        %v4371 = vsub.s32 0, %v3790
        %v4372 = vsel %vm4370, %v4371, %v3790
        %v4373 = vand.u32 %v4372, 65535
        %v4374 = vshrl.u32 %v4372, 16
        %v4376 = vmul.u32 %v4373, 43691
        %v4377 = vmul.u32 %v4373, 43690
        %v4378 = vmul.u32 %v4374, 43691
        %v4379 = vmul.u32 %v4374, 43690
        %v4380 = vshll.u32 %v4377, 16
        %v4381 = vshrl.u32 %v4377, 16
        %v4382 = vshll.u32 %v4378, 16
        %v4383 = vshrl.u32 %v4378, 16
        %vm4384 = vc.u32 %v4376, %v4380
        %v4385 = vsel %vm4384, 1, 0
        %v4386 = vadd.s32 %v4376, %v4380
        %v4387 = vadd.s32 %v4379, %v4385
        %vm4388 = vc.u32 %v4386, %v4382
        %v4389 = vsel %vm4388, 1, 0
        %v4390 = vadd.s32 %v4386, %v4382
        %v4391 = vadd.s32 %v4387, %v4389
        %v4392 = vadd.s32 %v4391, %v4381
        %v4393 = vadd.s32 %v4392, %v4383
        %v4394 = vshrl.u32 %v4393, 4
        %v4395 = vmul.u32 %v4394, 24
        %v4396 = vsub.s32 %v4372, %v4395
        %v4397 = vsub.s32 0, %v4396
        %v4398 = vsel %vm4370, %v4397, %v4396
        %vm4399 = vcmp.lt.s32.totalorder %v3791, 0
        %v4400 = vsub.s32 0, %v3791
        %v4401 = vsel %vm4399, %v4400, %v3791
        %v4402 = vand.u32 %v4401, 65535
        %v4403 = vshrl.u32 %v4401, 16
        %v4405 = vmul.u32 %v4402, 43691
        %v4406 = vmul.u32 %v4402, 43690
        %v4407 = vmul.u32 %v4403, 43691
        %v4408 = vmul.u32 %v4403, 43690
        %v4409 = vshll.u32 %v4406, 16
        %v4410 = vshrl.u32 %v4406, 16
        %v4411 = vshll.u32 %v4407, 16
        %v4412 = vshrl.u32 %v4407, 16
        %vm4413 = vc.u32 %v4405, %v4409
        %v4414 = vsel %vm4413, 1, 0
        %v4415 = vadd.s32 %v4405, %v4409
        %v4416 = vadd.s32 %v4408, %v4414
        %vm4417 = vc.u32 %v4415, %v4411
        %v4418 = vsel %vm4417, 1, 0
        %v4419 = vadd.s32 %v4415, %v4411
        %v4420 = vadd.s32 %v4416, %v4418
        %v4421 = vadd.s32 %v4420, %v4410
        %v4422 = vadd.s32 %v4421, %v4412
        %v4423 = vshrl.u32 %v4422, 4
        %v4424 = vmul.u32 %v4423, 24
        %v4425 = vsub.s32 %v4401, %v4424
        %v4426 = vsub.s32 0, %v4425
        %v4427 = vsel %vm4399, %v4426, %v4425
        %vm4428 = vcmp.lt.s32.totalorder %v3792, 0
        %v4429 = vsub.s32 0, %v3792
        %v4430 = vsel %vm4428, %v4429, %v3792
        %v4431 = vand.u32 %v4430, 65535
        %v4432 = vshrl.u32 %v4430, 16
        %v4434 = vmul.u32 %v4431, 43691
        %v4435 = vmul.u32 %v4431, 43690
        %v4436 = vmul.u32 %v4432, 43691
        %v4437 = vmul.u32 %v4432, 43690
        %v4438 = vshll.u32 %v4435, 16
        %v4439 = vshrl.u32 %v4435, 16
        %v4440 = vshll.u32 %v4436, 16
        %v4441 = vshrl.u32 %v4436, 16
        %vm4442 = vc.u32 %v4434, %v4438
        %v4443 = vsel %vm4442, 1, 0
        %v4444 = vadd.s32 %v4434, %v4438
        %v4445 = vadd.s32 %v4437, %v4443
        %vm4446 = vc.u32 %v4444, %v4440
        %v4447 = vsel %vm4446, 1, 0
        %v4448 = vadd.s32 %v4444, %v4440
        %v4449 = vadd.s32 %v4445, %v4447
        %v4450 = vadd.s32 %v4449, %v4439
        %v4451 = vadd.s32 %v4450, %v4441
        %v4452 = vshrl.u32 %v4451, 4
        %v4453 = vmul.u32 %v4452, 24
        %v4454 = vsub.s32 %v4430, %v4453
        %v4455 = vsub.s32 0, %v4454
        %v4456 = vsel %vm4428, %v4455, %v4454
        %vm4457 = vcmp.lt.s32.totalorder %v3793, 0
        %v4458 = vsub.s32 0, %v3793
        %v4459 = vsel %vm4457, %v4458, %v3793
        %v4460 = vand.u32 %v4459, 65535
        %v4461 = vshrl.u32 %v4459, 16
        %v4463 = vmul.u32 %v4460, 43691
        %v4464 = vmul.u32 %v4460, 43690
        %v4465 = vmul.u32 %v4461, 43691
        %v4466 = vmul.u32 %v4461, 43690
        %v4467 = vshll.u32 %v4464, 16
        %v4468 = vshrl.u32 %v4464, 16
        %v4469 = vshll.u32 %v4465, 16
        %v4470 = vshrl.u32 %v4465, 16
        %vm4471 = vc.u32 %v4463, %v4467
        %v4472 = vsel %vm4471, 1, 0
        %v4473 = vadd.s32 %v4463, %v4467
        %v4474 = vadd.s32 %v4466, %v4472
        %vm4475 = vc.u32 %v4473, %v4469
        %v4476 = vsel %vm4475, 1, 0
        %v4477 = vadd.s32 %v4473, %v4469
        %v4478 = vadd.s32 %v4474, %v4476
        %v4479 = vadd.s32 %v4478, %v4468
        %v4480 = vadd.s32 %v4479, %v4470
        %v4481 = vshrl.u32 %v4480, 4
        %v4482 = vmul.u32 %v4481, 24
        %v4483 = vsub.s32 %v4459, %v4482
        %v4484 = vsub.s32 0, %v4483
        %v4485 = vsel %vm4457, %v4484, %v4483
        %vm4486 = vcmp.lt.s32.totalorder %v3794, 0
        %v4487 = vsub.s32 0, %v3794
        %v4488 = vsel %vm4486, %v4487, %v3794
        %v4489 = vand.u32 %v4488, 65535
        %v4490 = vshrl.u32 %v4488, 16
        %v4492 = vmul.u32 %v4489, 43691
        %v4493 = vmul.u32 %v4489, 43690
        %v4494 = vmul.u32 %v4490, 43691
        %v4495 = vmul.u32 %v4490, 43690
        %v4496 = vshll.u32 %v4493, 16
        %v4497 = vshrl.u32 %v4493, 16
        %v4498 = vshll.u32 %v4494, 16
        %v4499 = vshrl.u32 %v4494, 16
        %vm4500 = vc.u32 %v4492, %v4496
        %v4501 = vsel %vm4500, 1, 0
        %v4502 = vadd.s32 %v4492, %v4496
        %v4503 = vadd.s32 %v4495, %v4501
        %vm4504 = vc.u32 %v4502, %v4498
        %v4505 = vsel %vm4504, 1, 0
        %v4506 = vadd.s32 %v4502, %v4498
        %v4507 = vadd.s32 %v4503, %v4505
        %v4508 = vadd.s32 %v4507, %v4497
        %v4509 = vadd.s32 %v4508, %v4499
        %v4510 = vshrl.u32 %v4509, 4
        %v4511 = vmul.u32 %v4510, 24
        %v4512 = vsub.s32 %v4488, %v4511
        %v4513 = vsub.s32 0, %v4512
        %v4514 = vsel %vm4486, %v4513, %v4512
        %vm4515 = vcmp.lt.s32.totalorder %v3795, 0
        %v4516 = vsub.s32 0, %v3795
        %v4517 = vsel %vm4515, %v4516, %v3795
        %v4518 = vand.u32 %v4517, 65535
        %v4519 = vshrl.u32 %v4517, 16
        %v4521 = vmul.u32 %v4518, 43691
        %v4522 = vmul.u32 %v4518, 43690
        %v4523 = vmul.u32 %v4519, 43691
        %v4524 = vmul.u32 %v4519, 43690
        %v4525 = vshll.u32 %v4522, 16
        %v4526 = vshrl.u32 %v4522, 16
        %v4527 = vshll.u32 %v4523, 16
        %v4528 = vshrl.u32 %v4523, 16
        %vm4529 = vc.u32 %v4521, %v4525
        %v4530 = vsel %vm4529, 1, 0
        %v4531 = vadd.s32 %v4521, %v4525
        %v4532 = vadd.s32 %v4524, %v4530
        %vm4533 = vc.u32 %v4531, %v4527
        %v4534 = vsel %vm4533, 1, 0
        %v4535 = vadd.s32 %v4531, %v4527
        %v4536 = vadd.s32 %v4532, %v4534
        %v4537 = vadd.s32 %v4536, %v4526
        %v4538 = vadd.s32 %v4537, %v4528
        %v4539 = vshrl.u32 %v4538, 4
        %v4540 = vmul.u32 %v4539, 24
        %v4541 = vsub.s32 %v4517, %v4540
        %v4542 = vsub.s32 0, %v4541
        %v4543 = vsel %vm4515, %v4542, %v4541
        %vm4544 = vcmp.lt.s32.totalorder %v3796, 0
        %v4545 = vsub.s32 0, %v3796
        %v4546 = vsel %vm4544, %v4545, %v3796
        %v4547 = vand.u32 %v4546, 65535
        %v4548 = vshrl.u32 %v4546, 16
        %v4550 = vmul.u32 %v4547, 43691
        %v4551 = vmul.u32 %v4547, 43690
        %v4552 = vmul.u32 %v4548, 43691
        %v4553 = vmul.u32 %v4548, 43690
        %v4554 = vshll.u32 %v4551, 16
        %v4555 = vshrl.u32 %v4551, 16
        %v4556 = vshll.u32 %v4552, 16
        %v4557 = vshrl.u32 %v4552, 16
        %vm4558 = vc.u32 %v4550, %v4554
        %v4559 = vsel %vm4558, 1, 0
        %v4560 = vadd.s32 %v4550, %v4554
        %v4561 = vadd.s32 %v4553, %v4559
        %vm4562 = vc.u32 %v4560, %v4556
        %v4563 = vsel %vm4562, 1, 0
        %v4564 = vadd.s32 %v4560, %v4556
        %v4565 = vadd.s32 %v4561, %v4563
        %v4566 = vadd.s32 %v4565, %v4555
        %v4567 = vadd.s32 %v4566, %v4557
        %v4568 = vshrl.u32 %v4567, 4
        %v4569 = vmul.u32 %v4568, 24
        %v4570 = vsub.s32 %v4546, %v4569
        %v4571 = vsub.s32 0, %v4570
        %v4572 = vsel %vm4544, %v4571, %v4570
        %vm4573 = vcmp.lt.s32.totalorder %v3797, 0
        %v4574 = vsub.s32 0, %v3797
        %v4575 = vsel %vm4573, %v4574, %v3797
        %v4576 = vand.u32 %v4575, 65535
        %v4577 = vshrl.u32 %v4575, 16
        %v4579 = vmul.u32 %v4576, 43691
        %v4580 = vmul.u32 %v4576, 43690
        %v4581 = vmul.u32 %v4577, 43691
        %v4582 = vmul.u32 %v4577, 43690
        %v4583 = vshll.u32 %v4580, 16
        %v4584 = vshrl.u32 %v4580, 16
        %v4585 = vshll.u32 %v4581, 16
        %v4586 = vshrl.u32 %v4581, 16
        %vm4587 = vc.u32 %v4579, %v4583
        %v4588 = vsel %vm4587, 1, 0
        %v4589 = vadd.s32 %v4579, %v4583
        %v4590 = vadd.s32 %v4582, %v4588
        %vm4591 = vc.u32 %v4589, %v4585
        %v4592 = vsel %vm4591, 1, 0
        %v4593 = vadd.s32 %v4589, %v4585
        %v4594 = vadd.s32 %v4590, %v4592
        %v4595 = vadd.s32 %v4594, %v4584
        %v4596 = vadd.s32 %v4595, %v4586
        %v4597 = vshrl.u32 %v4596, 4
        %v4598 = vmul.u32 %v4597, 24
        %v4599 = vsub.s32 %v4575, %v4598
        %v4600 = vsub.s32 0, %v4599
        %v4601 = vsel %vm4573, %v4600, %v4599
        %vm4602 = vcmp.lt.s32.totalorder %v3798, 0
        %v4603 = vsub.s32 0, %v3798
        %v4604 = vsel %vm4602, %v4603, %v3798
        %v4605 = vand.u32 %v4604, 65535
        %v4606 = vshrl.u32 %v4604, 16
        %v4608 = vmul.u32 %v4605, 43691
        %v4609 = vmul.u32 %v4605, 43690
        %v4610 = vmul.u32 %v4606, 43691
        %v4611 = vmul.u32 %v4606, 43690
        %v4612 = vshll.u32 %v4609, 16
        %v4613 = vshrl.u32 %v4609, 16
        %v4614 = vshll.u32 %v4610, 16
        %v4615 = vshrl.u32 %v4610, 16
        %vm4616 = vc.u32 %v4608, %v4612
        %v4617 = vsel %vm4616, 1, 0
        %v4618 = vadd.s32 %v4608, %v4612
        %v4619 = vadd.s32 %v4611, %v4617
        %vm4620 = vc.u32 %v4618, %v4614
        %v4621 = vsel %vm4620, 1, 0
        %v4622 = vadd.s32 %v4618, %v4614
        %v4623 = vadd.s32 %v4619, %v4621
        %v4624 = vadd.s32 %v4623, %v4613
        %v4625 = vadd.s32 %v4624, %v4615
        %v4626 = vshrl.u32 %v4625, 4
        %v4627 = vmul.u32 %v4626, 24
        %v4628 = vsub.s32 %v4604, %v4627
        %v4629 = vsub.s32 0, %v4628
        %v4630 = vsel %vm4602, %v4629, %v4628
        %vm4631 = vcmp.lt.s32.totalorder %v3799, 0
        %v4632 = vsub.s32 0, %v3799
        %v4633 = vsel %vm4631, %v4632, %v3799
        %v4634 = vand.u32 %v4633, 65535
        %v4635 = vshrl.u32 %v4633, 16
        %v4637 = vmul.u32 %v4634, 43691
        %v4638 = vmul.u32 %v4634, 43690
        %v4639 = vmul.u32 %v4635, 43691
        %v4640 = vmul.u32 %v4635, 43690
        %v4641 = vshll.u32 %v4638, 16
        %v4642 = vshrl.u32 %v4638, 16
        %v4643 = vshll.u32 %v4639, 16
        %v4644 = vshrl.u32 %v4639, 16
        %vm4645 = vc.u32 %v4637, %v4641
        %v4646 = vsel %vm4645, 1, 0
        %v4647 = vadd.s32 %v4637, %v4641
        %v4648 = vadd.s32 %v4640, %v4646
        %vm4649 = vc.u32 %v4647, %v4643
        %v4650 = vsel %vm4649, 1, 0
        %v4651 = vadd.s32 %v4647, %v4643
        %v4652 = vadd.s32 %v4648, %v4650
        %v4653 = vadd.s32 %v4652, %v4642
        %v4654 = vadd.s32 %v4653, %v4644
        %v4655 = vshrl.u32 %v4654, 4
        %v4656 = vmul.u32 %v4655, 24
        %v4657 = vsub.s32 %v4633, %v4656
        %v4658 = vsub.s32 0, %v4657
        %v4659 = vsel %vm4631, %v4658, %v4657
        %vm4660 = vcmp.lt.s32.totalorder %v3800, 0
        %v4661 = vsub.s32 0, %v3800
        %v4662 = vsel %vm4660, %v4661, %v3800
        %v4663 = vand.u32 %v4662, 65535
        %v4664 = vshrl.u32 %v4662, 16
        %v4666 = vmul.u32 %v4663, 43691
        %v4667 = vmul.u32 %v4663, 43690
        %v4668 = vmul.u32 %v4664, 43691
        %v4669 = vmul.u32 %v4664, 43690
        %v4670 = vshll.u32 %v4667, 16
        %v4671 = vshrl.u32 %v4667, 16
        %v4672 = vshll.u32 %v4668, 16
        %v4673 = vshrl.u32 %v4668, 16
        %vm4674 = vc.u32 %v4666, %v4670
        %v4675 = vsel %vm4674, 1, 0
        %v4676 = vadd.s32 %v4666, %v4670
        %v4677 = vadd.s32 %v4669, %v4675
        %vm4678 = vc.u32 %v4676, %v4672
        %v4679 = vsel %vm4678, 1, 0
        %v4680 = vadd.s32 %v4676, %v4672
        %v4681 = vadd.s32 %v4677, %v4679
        %v4682 = vadd.s32 %v4681, %v4671
        %v4683 = vadd.s32 %v4682, %v4673
        %v4684 = vshrl.u32 %v4683, 4
        %v4685 = vmul.u32 %v4684, 24
        %v4686 = vsub.s32 %v4662, %v4685
        %v4687 = vsub.s32 0, %v4686
        %v4688 = vsel %vm4660, %v4687, %v4686
        %vm4689 = vcmp.lt.s32.totalorder %v3801, 0
        %v4690 = vsub.s32 0, %v3801
        %v4691 = vsel %vm4689, %v4690, %v3801
        %v4692 = vand.u32 %v4691, 65535
        %v4693 = vshrl.u32 %v4691, 16
        %v4695 = vmul.u32 %v4692, 43691
        %v4696 = vmul.u32 %v4692, 43690
        %v4697 = vmul.u32 %v4693, 43691
        %v4698 = vmul.u32 %v4693, 43690
        %v4699 = vshll.u32 %v4696, 16
        %v4700 = vshrl.u32 %v4696, 16
        %v4701 = vshll.u32 %v4697, 16
        %v4702 = vshrl.u32 %v4697, 16
        %vm4703 = vc.u32 %v4695, %v4699
        %v4704 = vsel %vm4703, 1, 0
        %v4705 = vadd.s32 %v4695, %v4699
        %v4706 = vadd.s32 %v4698, %v4704
        %vm4707 = vc.u32 %v4705, %v4701
        %v4708 = vsel %vm4707, 1, 0
        %v4709 = vadd.s32 %v4705, %v4701
        %v4710 = vadd.s32 %v4706, %v4708
        %v4711 = vadd.s32 %v4710, %v4700
        %v4712 = vadd.s32 %v4711, %v4702
        %v4713 = vshrl.u32 %v4712, 4
        %v4714 = vmul.u32 %v4713, 24
        %v4715 = vsub.s32 %v4691, %v4714
        %v4716 = vsub.s32 0, %v4715
        %v4717 = vsel %vm4689, %v4716, %v4715
        %vm4718 = vcmp.lt.s32.totalorder %v3802, 0
        %v4719 = vsub.s32 0, %v3802
        %v4720 = vsel %vm4718, %v4719, %v3802
        %v4721 = vand.u32 %v4720, 65535
        %v4722 = vshrl.u32 %v4720, 16
        %v4724 = vmul.u32 %v4721, 43691
        %v4725 = vmul.u32 %v4721, 43690
        %v4726 = vmul.u32 %v4722, 43691
        %v4727 = vmul.u32 %v4722, 43690
        %v4728 = vshll.u32 %v4725, 16
        %v4729 = vshrl.u32 %v4725, 16
        %v4730 = vshll.u32 %v4726, 16
        %v4731 = vshrl.u32 %v4726, 16
        %vm4732 = vc.u32 %v4724, %v4728
        %v4733 = vsel %vm4732, 1, 0
        %v4734 = vadd.s32 %v4724, %v4728
        %v4735 = vadd.s32 %v4727, %v4733
        %vm4736 = vc.u32 %v4734, %v4730
        %v4737 = vsel %vm4736, 1, 0
        %v4738 = vadd.s32 %v4734, %v4730
        %v4739 = vadd.s32 %v4735, %v4737
        %v4740 = vadd.s32 %v4739, %v4729
        %v4741 = vadd.s32 %v4740, %v4731
        %v4742 = vshrl.u32 %v4741, 4
        %v4743 = vmul.u32 %v4742, 24
        %v4744 = vsub.s32 %v4720, %v4743
        %v4745 = vsub.s32 0, %v4744
        %v4746 = vsel %vm4718, %v4745, %v4744
        %vm4747 = vcmp.lt.s32.totalorder %v3803, 0
        %v4748 = vsub.s32 0, %v3803
        %v4749 = vsel %vm4747, %v4748, %v3803
        %v4750 = vand.u32 %v4749, 65535
        %v4751 = vshrl.u32 %v4749, 16
        %v4753 = vmul.u32 %v4750, 43691
        %v4754 = vmul.u32 %v4750, 43690
        %v4755 = vmul.u32 %v4751, 43691
        %v4756 = vmul.u32 %v4751, 43690
        %v4757 = vshll.u32 %v4754, 16
        %v4758 = vshrl.u32 %v4754, 16
        %v4759 = vshll.u32 %v4755, 16
        %v4760 = vshrl.u32 %v4755, 16
        %vm4761 = vc.u32 %v4753, %v4757
        %v4762 = vsel %vm4761, 1, 0
        %v4763 = vadd.s32 %v4753, %v4757
        %v4764 = vadd.s32 %v4756, %v4762
        %vm4765 = vc.u32 %v4763, %v4759
        %v4766 = vsel %vm4765, 1, 0
        %v4767 = vadd.s32 %v4763, %v4759
        %v4768 = vadd.s32 %v4764, %v4766
        %v4769 = vadd.s32 %v4768, %v4758
        %v4770 = vadd.s32 %v4769, %v4760
        %v4771 = vshrl.u32 %v4770, 4
        %v4772 = vmul.u32 %v4771, 24
        %v4773 = vsub.s32 %v4749, %v4772
        %v4774 = vsub.s32 0, %v4773
        %v4775 = vsel %vm4747, %v4774, %v4773
        %vm4776 = vcmp.lt.s32.totalorder %v3804, 0
        %v4777 = vsub.s32 0, %v3804
        %v4778 = vsel %vm4776, %v4777, %v3804
        %v4779 = vand.u32 %v4778, 65535
        %v4780 = vshrl.u32 %v4778, 16
        %v4782 = vmul.u32 %v4779, 43691
        %v4783 = vmul.u32 %v4779, 43690
        %v4784 = vmul.u32 %v4780, 43691
        %v4785 = vmul.u32 %v4780, 43690
        %v4786 = vshll.u32 %v4783, 16
        %v4787 = vshrl.u32 %v4783, 16
        %v4788 = vshll.u32 %v4784, 16
        %v4789 = vshrl.u32 %v4784, 16
        %vm4790 = vc.u32 %v4782, %v4786
        %v4791 = vsel %vm4790, 1, 0
        %v4792 = vadd.s32 %v4782, %v4786
        %v4793 = vadd.s32 %v4785, %v4791
        %vm4794 = vc.u32 %v4792, %v4788
        %v4795 = vsel %vm4794, 1, 0
        %v4796 = vadd.s32 %v4792, %v4788
        %v4797 = vadd.s32 %v4793, %v4795
        %v4798 = vadd.s32 %v4797, %v4787
        %v4799 = vadd.s32 %v4798, %v4789
        %v4800 = vshrl.u32 %v4799, 4
        %v4801 = vmul.u32 %v4800, 24
        %v4802 = vsub.s32 %v4778, %v4801
        %v4803 = vsub.s32 0, %v4802
        %v4804 = vsel %vm4776, %v4803, %v4802
        %vm4805 = vcmp.lt.s32.totalorder %v3805, 0
        %v4806 = vsub.s32 0, %v3805
        %v4807 = vsel %vm4805, %v4806, %v3805
        %v4808 = vand.u32 %v4807, 65535
        %v4809 = vshrl.u32 %v4807, 16
        %v4811 = vmul.u32 %v4808, 43691
        %v4812 = vmul.u32 %v4808, 43690
        %v4813 = vmul.u32 %v4809, 43691
        %v4814 = vmul.u32 %v4809, 43690
        %v4815 = vshll.u32 %v4812, 16
        %v4816 = vshrl.u32 %v4812, 16
        %v4817 = vshll.u32 %v4813, 16
        %v4818 = vshrl.u32 %v4813, 16
        %vm4819 = vc.u32 %v4811, %v4815
        %v4820 = vsel %vm4819, 1, 0
        %v4821 = vadd.s32 %v4811, %v4815
        %v4822 = vadd.s32 %v4814, %v4820
        %vm4823 = vc.u32 %v4821, %v4817
        %v4824 = vsel %vm4823, 1, 0
        %v4825 = vadd.s32 %v4821, %v4817
        %v4826 = vadd.s32 %v4822, %v4824
        %v4827 = vadd.s32 %v4826, %v4816
        %v4828 = vadd.s32 %v4827, %v4818
        %v4829 = vshrl.u32 %v4828, 4
        %v4830 = vmul.u32 %v4829, 24
        %v4831 = vsub.s32 %v4807, %v4830
        %v4832 = vsub.s32 0, %v4831
        %v4833 = vsel %vm4805, %v4832, %v4831
        %vm4834 = vcmp.lt.s32.totalorder %v3806, 0
        %v4835 = vsub.s32 0, %v3806
        %v4836 = vsel %vm4834, %v4835, %v3806
        %v4837 = vand.u32 %v4836, 65535
        %v4838 = vshrl.u32 %v4836, 16
        %v4840 = vmul.u32 %v4837, 43691
        %v4841 = vmul.u32 %v4837, 43690
        %v4842 = vmul.u32 %v4838, 43691
        %v4843 = vmul.u32 %v4838, 43690
        %v4844 = vshll.u32 %v4841, 16
        %v4845 = vshrl.u32 %v4841, 16
        %v4846 = vshll.u32 %v4842, 16
        %v4847 = vshrl.u32 %v4842, 16
        %vm4848 = vc.u32 %v4840, %v4844
        %v4849 = vsel %vm4848, 1, 0
        %v4850 = vadd.s32 %v4840, %v4844
        %v4851 = vadd.s32 %v4843, %v4849
        %vm4852 = vc.u32 %v4850, %v4846
        %v4853 = vsel %vm4852, 1, 0
        %v4854 = vadd.s32 %v4850, %v4846
        %v4855 = vadd.s32 %v4851, %v4853
        %v4856 = vadd.s32 %v4855, %v4845
        %v4857 = vadd.s32 %v4856, %v4847
        %v4858 = vshrl.u32 %v4857, 4
        %v4859 = vmul.u32 %v4858, 24
        %v4860 = vsub.s32 %v4836, %v4859
        %v4861 = vsub.s32 0, %v4860
        %v4862 = vsel %vm4834, %v4861, %v4860
        %vm4863 = vcmp.lt.s32.totalorder %v3807, 0
        %v4864 = vsub.s32 0, %v3807
        %v4865 = vsel %vm4863, %v4864, %v3807
        %v4866 = vand.u32 %v4865, 65535
        %v4867 = vshrl.u32 %v4865, 16
        %v4869 = vmul.u32 %v4866, 43691
        %v4870 = vmul.u32 %v4866, 43690
        %v4871 = vmul.u32 %v4867, 43691
        %v4872 = vmul.u32 %v4867, 43690
        %v4873 = vshll.u32 %v4870, 16
        %v4874 = vshrl.u32 %v4870, 16
        %v4875 = vshll.u32 %v4871, 16
        %v4876 = vshrl.u32 %v4871, 16
        %vm4877 = vc.u32 %v4869, %v4873
        %v4878 = vsel %vm4877, 1, 0
        %v4879 = vadd.s32 %v4869, %v4873
        %v4880 = vadd.s32 %v4872, %v4878
        %vm4881 = vc.u32 %v4879, %v4875
        %v4882 = vsel %vm4881, 1, 0
        %v4883 = vadd.s32 %v4879, %v4875
        %v4884 = vadd.s32 %v4880, %v4882
        %v4885 = vadd.s32 %v4884, %v4874
        %v4886 = vadd.s32 %v4885, %v4876
        %v4887 = vshrl.u32 %v4886, 4
        %v4888 = vmul.u32 %v4887, 24
        %v4889 = vsub.s32 %v4865, %v4888
        %v4890 = vsub.s32 0, %v4889
        %v4891 = vsel %vm4863, %v4890, %v4889
        %vm4892 = vcmp.lt.s32.totalorder %v3808, 0
        %v4893 = vsub.s32 0, %v3808
        %v4894 = vsel %vm4892, %v4893, %v3808
        %v4895 = vand.u32 %v4894, 65535
        %v4896 = vshrl.u32 %v4894, 16
        %v4898 = vmul.u32 %v4895, 43691
        %v4899 = vmul.u32 %v4895, 43690
        %v4900 = vmul.u32 %v4896, 43691
        %v4901 = vmul.u32 %v4896, 43690
        %v4902 = vshll.u32 %v4899, 16
        %v4903 = vshrl.u32 %v4899, 16
        %v4904 = vshll.u32 %v4900, 16
        %v4905 = vshrl.u32 %v4900, 16
        %vm4906 = vc.u32 %v4898, %v4902
        %v4907 = vsel %vm4906, 1, 0
        %v4908 = vadd.s32 %v4898, %v4902
        %v4909 = vadd.s32 %v4901, %v4907
        %vm4910 = vc.u32 %v4908, %v4904
        %v4911 = vsel %vm4910, 1, 0
        %v4912 = vadd.s32 %v4908, %v4904
        %v4913 = vadd.s32 %v4909, %v4911
        %v4914 = vadd.s32 %v4913, %v4903
        %v4915 = vadd.s32 %v4914, %v4905
        %v4916 = vshrl.u32 %v4915, 4
        %v4917 = vmul.u32 %v4916, 24
        %v4918 = vsub.s32 %v4894, %v4917
        %v4919 = vsub.s32 0, %v4918
        %v4920 = vsel %vm4892, %v4919, %v4918
        %vm4921 = vcmp.lt.s32.totalorder %v3809, 0
        %v4922 = vsub.s32 0, %v3809
        %v4923 = vsel %vm4921, %v4922, %v3809
        %v4924 = vand.u32 %v4923, 65535
        %v4925 = vshrl.u32 %v4923, 16
        %v4927 = vmul.u32 %v4924, 43691
        %v4928 = vmul.u32 %v4924, 43690
        %v4929 = vmul.u32 %v4925, 43691
        %v4930 = vmul.u32 %v4925, 43690
        %v4931 = vshll.u32 %v4928, 16
        %v4932 = vshrl.u32 %v4928, 16
        %v4933 = vshll.u32 %v4929, 16
        %v4934 = vshrl.u32 %v4929, 16
        %vm4935 = vc.u32 %v4927, %v4931
        %v4936 = vsel %vm4935, 1, 0
        %v4937 = vadd.s32 %v4927, %v4931
        %v4938 = vadd.s32 %v4930, %v4936
        %vm4939 = vc.u32 %v4937, %v4933
        %v4940 = vsel %vm4939, 1, 0
        %v4941 = vadd.s32 %v4937, %v4933
        %v4942 = vadd.s32 %v4938, %v4940
        %v4943 = vadd.s32 %v4942, %v4932
        %v4944 = vadd.s32 %v4943, %v4934
        %v4945 = vshrl.u32 %v4944, 4
        %v4946 = vmul.u32 %v4945, 24
        %v4947 = vsub.s32 %v4923, %v4946
        %v4948 = vsub.s32 0, %v4947
        %v4949 = vsel %vm4921, %v4948, %v4947
        %vm4950 = vcmp.lt.s32.totalorder %v3810, 0
        %v4951 = vsub.s32 0, %v3810
        %v4952 = vsel %vm4950, %v4951, %v3810
        %v4953 = vand.u32 %v4952, 65535
        %v4954 = vshrl.u32 %v4952, 16
        %v4956 = vmul.u32 %v4953, 43691
        %v4957 = vmul.u32 %v4953, 43690
        %v4958 = vmul.u32 %v4954, 43691
        %v4959 = vmul.u32 %v4954, 43690
        %v4960 = vshll.u32 %v4957, 16
        %v4961 = vshrl.u32 %v4957, 16
        %v4962 = vshll.u32 %v4958, 16
        %v4963 = vshrl.u32 %v4958, 16
        %vm4964 = vc.u32 %v4956, %v4960
        %v4965 = vsel %vm4964, 1, 0
        %v4966 = vadd.s32 %v4956, %v4960
        %v4967 = vadd.s32 %v4959, %v4965
        %vm4968 = vc.u32 %v4966, %v4962
        %v4969 = vsel %vm4968, 1, 0
        %v4970 = vadd.s32 %v4966, %v4962
        %v4971 = vadd.s32 %v4967, %v4969
        %v4972 = vadd.s32 %v4971, %v4961
        %v4973 = vadd.s32 %v4972, %v4963
        %v4974 = vshrl.u32 %v4973, 4
        %v4975 = vmul.u32 %v4974, 24
        %v4976 = vsub.s32 %v4952, %v4975
        %v4977 = vsub.s32 0, %v4976
        %v4978 = vsel %vm4950, %v4977, %v4976
        %vm4979 = vcmp.lt.s32.totalorder %v3811, 0
        %v4980 = vsub.s32 0, %v3811
        %v4981 = vsel %vm4979, %v4980, %v3811
        %v4982 = vand.u32 %v4981, 65535
        %v4983 = vshrl.u32 %v4981, 16
        %v4985 = vmul.u32 %v4982, 43691
        %v4986 = vmul.u32 %v4982, 43690
        %v4987 = vmul.u32 %v4983, 43691
        %v4988 = vmul.u32 %v4983, 43690
        %v4989 = vshll.u32 %v4986, 16
        %v4990 = vshrl.u32 %v4986, 16
        %v4991 = vshll.u32 %v4987, 16
        %v4992 = vshrl.u32 %v4987, 16
        %vm4993 = vc.u32 %v4985, %v4989
        %v4994 = vsel %vm4993, 1, 0
        %v4995 = vadd.s32 %v4985, %v4989
        %v4996 = vadd.s32 %v4988, %v4994
        %vm4997 = vc.u32 %v4995, %v4991
        %v4998 = vsel %vm4997, 1, 0
        %v4999 = vadd.s32 %v4995, %v4991
        %v5000 = vadd.s32 %v4996, %v4998
        %v5001 = vadd.s32 %v5000, %v4990
        %v5002 = vadd.s32 %v5001, %v4992
        %v5003 = vshrl.u32 %v5002, 4
        %v5004 = vmul.u32 %v5003, 24
        %v5005 = vsub.s32 %v4981, %v5004
        %v5006 = vsub.s32 0, %v5005
        %v5007 = vsel %vm4979, %v5006, %v5005
        %vm5008 = vcmp.lt.s32.totalorder %v3812, 0
        %v5009 = vsub.s32 0, %v3812
        %v5010 = vsel %vm5008, %v5009, %v3812
        %v5011 = vand.u32 %v5010, 65535
        %v5012 = vshrl.u32 %v5010, 16
        %v5014 = vmul.u32 %v5011, 43691
        %v5015 = vmul.u32 %v5011, 43690
        %v5016 = vmul.u32 %v5012, 43691
        %v5017 = vmul.u32 %v5012, 43690
        %v5018 = vshll.u32 %v5015, 16
        %v5019 = vshrl.u32 %v5015, 16
        %v5020 = vshll.u32 %v5016, 16
        %v5021 = vshrl.u32 %v5016, 16
        %vm5022 = vc.u32 %v5014, %v5018
        %v5023 = vsel %vm5022, 1, 0
        %v5024 = vadd.s32 %v5014, %v5018
        %v5025 = vadd.s32 %v5017, %v5023
        %vm5026 = vc.u32 %v5024, %v5020
        %v5027 = vsel %vm5026, 1, 0
        %v5028 = vadd.s32 %v5024, %v5020
        %v5029 = vadd.s32 %v5025, %v5027
        %v5030 = vadd.s32 %v5029, %v5019
        %v5031 = vadd.s32 %v5030, %v5021
        %v5032 = vshrl.u32 %v5031, 4
        %v5033 = vmul.u32 %v5032, 24
        %v5034 = vsub.s32 %v5010, %v5033
        %v5035 = vsub.s32 0, %v5034
        %v5036 = vsel %vm5008, %v5035, %v5034
        %vm5037 = vcmp.lt.s32.totalorder %v3813, 0
        %v5038 = vsub.s32 0, %v3813
        %v5039 = vsel %vm5037, %v5038, %v3813
        %v5040 = vand.u32 %v5039, 65535
        %v5041 = vshrl.u32 %v5039, 16
        %v5043 = vmul.u32 %v5040, 43691
        %v5044 = vmul.u32 %v5040, 43690
        %v5045 = vmul.u32 %v5041, 43691
        %v5046 = vmul.u32 %v5041, 43690
        %v5047 = vshll.u32 %v5044, 16
        %v5048 = vshrl.u32 %v5044, 16
        %v5049 = vshll.u32 %v5045, 16
        %v5050 = vshrl.u32 %v5045, 16
        %vm5051 = vc.u32 %v5043, %v5047
        %v5052 = vsel %vm5051, 1, 0
        %v5053 = vadd.s32 %v5043, %v5047
        %v5054 = vadd.s32 %v5046, %v5052
        %vm5055 = vc.u32 %v5053, %v5049
        %v5056 = vsel %vm5055, 1, 0
        %v5057 = vadd.s32 %v5053, %v5049
        %v5058 = vadd.s32 %v5054, %v5056
        %v5059 = vadd.s32 %v5058, %v5048
        %v5060 = vadd.s32 %v5059, %v5050
        %v5061 = vshrl.u32 %v5060, 4
        %v5062 = vmul.u32 %v5061, 24
        %v5063 = vsub.s32 %v5039, %v5062
        %v5064 = vsub.s32 0, %v5063
        %v5065 = vsel %vm5037, %v5064, %v5063
        %vm5066 = vcmp.lt.s32.totalorder %v3814, 0
        %v5067 = vsub.s32 0, %v3814
        %v5068 = vsel %vm5066, %v5067, %v3814
        %v5069 = vand.u32 %v5068, 65535
        %v5070 = vshrl.u32 %v5068, 16
        %v5072 = vmul.u32 %v5069, 43691
        %v5073 = vmul.u32 %v5069, 43690
        %v5074 = vmul.u32 %v5070, 43691
        %v5075 = vmul.u32 %v5070, 43690
        %v5076 = vshll.u32 %v5073, 16
        %v5077 = vshrl.u32 %v5073, 16
        %v5078 = vshll.u32 %v5074, 16
        %v5079 = vshrl.u32 %v5074, 16
        %vm5080 = vc.u32 %v5072, %v5076
        %v5081 = vsel %vm5080, 1, 0
        %v5082 = vadd.s32 %v5072, %v5076
        %v5083 = vadd.s32 %v5075, %v5081
        %vm5084 = vc.u32 %v5082, %v5078
        %v5085 = vsel %vm5084, 1, 0
        %v5086 = vadd.s32 %v5082, %v5078
        %v5087 = vadd.s32 %v5083, %v5085
        %v5088 = vadd.s32 %v5087, %v5077
        %v5089 = vadd.s32 %v5088, %v5079
        %v5090 = vshrl.u32 %v5089, 4
        %v5091 = vmul.u32 %v5090, 24
        %v5092 = vsub.s32 %v5068, %v5091
        %v5093 = vsub.s32 0, %v5092
        %v5094 = vsel %vm5066, %v5093, %v5092
        %vm5095 = vcmp.lt.s32.totalorder %v3815, 0
        %v5096 = vsub.s32 0, %v3815
        %v5097 = vsel %vm5095, %v5096, %v3815
        %v5098 = vand.u32 %v5097, 65535
        %v5099 = vshrl.u32 %v5097, 16
        %v5101 = vmul.u32 %v5098, 43691
        %v5102 = vmul.u32 %v5098, 43690
        %v5103 = vmul.u32 %v5099, 43691
        %v5104 = vmul.u32 %v5099, 43690
        %v5105 = vshll.u32 %v5102, 16
        %v5106 = vshrl.u32 %v5102, 16
        %v5107 = vshll.u32 %v5103, 16
        %v5108 = vshrl.u32 %v5103, 16
        %vm5109 = vc.u32 %v5101, %v5105
        %v5110 = vsel %vm5109, 1, 0
        %v5111 = vadd.s32 %v5101, %v5105
        %v5112 = vadd.s32 %v5104, %v5110
        %vm5113 = vc.u32 %v5111, %v5107
        %v5114 = vsel %vm5113, 1, 0
        %v5115 = vadd.s32 %v5111, %v5107
        %v5116 = vadd.s32 %v5112, %v5114
        %v5117 = vadd.s32 %v5116, %v5106
        %v5118 = vadd.s32 %v5117, %v5108
        %v5119 = vshrl.u32 %v5118, 4
        %v5120 = vmul.u32 %v5119, 24
        %v5121 = vsub.s32 %v5097, %v5120
        %v5122 = vsub.s32 0, %v5121
        %v5123 = vsel %vm5095, %v5122, %v5121
        %vm5124 = vcmp.lt.s32.totalorder %v3816, 0
        %v5125 = vsub.s32 0, %v3816
        %v5126 = vsel %vm5124, %v5125, %v3816
        %v5127 = vand.u32 %v5126, 65535
        %v5128 = vshrl.u32 %v5126, 16
        %v5130 = vmul.u32 %v5127, 43691
        %v5131 = vmul.u32 %v5127, 43690
        %v5132 = vmul.u32 %v5128, 43691
        %v5133 = vmul.u32 %v5128, 43690
        %v5134 = vshll.u32 %v5131, 16
        %v5135 = vshrl.u32 %v5131, 16
        %v5136 = vshll.u32 %v5132, 16
        %v5137 = vshrl.u32 %v5132, 16
        %vm5138 = vc.u32 %v5130, %v5134
        %v5139 = vsel %vm5138, 1, 0
        %v5140 = vadd.s32 %v5130, %v5134
        %v5141 = vadd.s32 %v5133, %v5139
        %vm5142 = vc.u32 %v5140, %v5136
        %v5143 = vsel %vm5142, 1, 0
        %v5144 = vadd.s32 %v5140, %v5136
        %v5145 = vadd.s32 %v5141, %v5143
        %v5146 = vadd.s32 %v5145, %v5135
        %v5147 = vadd.s32 %v5146, %v5137
        %v5148 = vshrl.u32 %v5147, 4
        %v5149 = vmul.u32 %v5148, 24
        %v5150 = vsub.s32 %v5126, %v5149
        %v5151 = vsub.s32 0, %v5150
        %v5152 = vsel %vm5124, %v5151, %v5150
        %vm5153 = vcmp.lt.s32.totalorder %v3817, 0
        %v5154 = vsub.s32 0, %v3817
        %v5155 = vsel %vm5153, %v5154, %v3817
        %v5156 = vand.u32 %v5155, 65535
        %v5157 = vshrl.u32 %v5155, 16
        %v5159 = vmul.u32 %v5156, 43691
        %v5160 = vmul.u32 %v5156, 43690
        %v5161 = vmul.u32 %v5157, 43691
        %v5162 = vmul.u32 %v5157, 43690
        %v5163 = vshll.u32 %v5160, 16
        %v5164 = vshrl.u32 %v5160, 16
        %v5165 = vshll.u32 %v5161, 16
        %v5166 = vshrl.u32 %v5161, 16
        %vm5167 = vc.u32 %v5159, %v5163
        %v5168 = vsel %vm5167, 1, 0
        %v5169 = vadd.s32 %v5159, %v5163
        %v5170 = vadd.s32 %v5162, %v5168
        %vm5171 = vc.u32 %v5169, %v5165
        %v5172 = vsel %vm5171, 1, 0
        %v5173 = vadd.s32 %v5169, %v5165
        %v5174 = vadd.s32 %v5170, %v5172
        %v5175 = vadd.s32 %v5174, %v5164
        %v5176 = vadd.s32 %v5175, %v5166
        %v5177 = vshrl.u32 %v5176, 4
        %v5178 = vmul.u32 %v5177, 24
        %v5179 = vsub.s32 %v5155, %v5178
        %v5180 = vsub.s32 0, %v5179
        %v5181 = vsel %vm5153, %v5180, %v5179
        %vm5182 = vcmp.lt.s32.totalorder %v3818, 0
        %v5183 = vsub.s32 0, %v3818
        %v5184 = vsel %vm5182, %v5183, %v3818
        %v5185 = vand.u32 %v5184, 65535
        %v5186 = vshrl.u32 %v5184, 16
        %v5188 = vmul.u32 %v5185, 43691
        %v5189 = vmul.u32 %v5185, 43690
        %v5190 = vmul.u32 %v5186, 43691
        %v5191 = vmul.u32 %v5186, 43690
        %v5192 = vshll.u32 %v5189, 16
        %v5193 = vshrl.u32 %v5189, 16
        %v5194 = vshll.u32 %v5190, 16
        %v5195 = vshrl.u32 %v5190, 16
        %vm5196 = vc.u32 %v5188, %v5192
        %v5197 = vsel %vm5196, 1, 0
        %v5198 = vadd.s32 %v5188, %v5192
        %v5199 = vadd.s32 %v5191, %v5197
        %vm5200 = vc.u32 %v5198, %v5194
        %v5201 = vsel %vm5200, 1, 0
        %v5202 = vadd.s32 %v5198, %v5194
        %v5203 = vadd.s32 %v5199, %v5201
        %v5204 = vadd.s32 %v5203, %v5193
        %v5205 = vadd.s32 %v5204, %v5195
        %v5206 = vshrl.u32 %v5205, 4
        %v5207 = vmul.u32 %v5206, 24
        %v5208 = vsub.s32 %v5184, %v5207
        %v5209 = vsub.s32 0, %v5208
        %v5210 = vsel %vm5182, %v5209, %v5208
        %vm5211 = vcmp.lt.s32.totalorder %v3847, 16
        %vm5212 = vcmp.lt.s32.totalorder %v3876, 16
        %vm5213 = vcmp.lt.s32.totalorder %v3905, 16
        %vm5214 = vcmp.lt.s32.totalorder %v3934, 16
        %vm5215 = vcmp.lt.s32.totalorder %v3963, 16
        %vm5216 = vcmp.lt.s32.totalorder %v3992, 16
        %vm5217 = vcmp.lt.s32.totalorder %v4021, 16
        %vm5218 = vcmp.lt.s32.totalorder %v4050, 16
        %vm5219 = vcmp.lt.s32.totalorder %v4079, 16
        %vm5220 = vcmp.lt.s32.totalorder %v4108, 16
        %vm5221 = vcmp.lt.s32.totalorder %v4137, 16
        %vm5222 = vcmp.lt.s32.totalorder %v4166, 16
        %vm5223 = vcmp.lt.s32.totalorder %v4195, 16
        %vm5224 = vcmp.lt.s32.totalorder %v4224, 16
        %vm5225 = vcmp.lt.s32.totalorder %v4253, 16
        %vm5226 = vcmp.lt.s32.totalorder %v4282, 16
        %vm5227 = vcmp.lt.s32.totalorder %v4311, 16
        %vm5228 = vcmp.lt.s32.totalorder %v4340, 16
        %vm5229 = vcmp.lt.s32.totalorder %v4369, 16
        %vm5230 = vcmp.lt.s32.totalorder %v4398, 16
        %vm5231 = vcmp.lt.s32.totalorder %v4427, 16
        %vm5232 = vcmp.lt.s32.totalorder %v4456, 16
        %vm5233 = vcmp.lt.s32.totalorder %v4485, 16
        %vm5234 = vcmp.lt.s32.totalorder %v4514, 16
        %vm5235 = vcmp.lt.s32.totalorder %v4543, 16
        %vm5236 = vcmp.lt.s32.totalorder %v4572, 16
        %vm5237 = vcmp.lt.s32.totalorder %v4601, 16
        %vm5238 = vcmp.lt.s32.totalorder %v4630, 16
        %vm5239 = vcmp.lt.s32.totalorder %v4659, 16
        %vm5240 = vcmp.lt.s32.totalorder %v4688, 16
        %vm5241 = vcmp.lt.s32.totalorder %v4717, 16
        %vm5242 = vcmp.lt.s32.totalorder %v4746, 16
        %vm5243 = vcmp.lt.s32.totalorder %v4775, 16
        %vm5244 = vcmp.lt.s32.totalorder %v4804, 16
        %vm5245 = vcmp.lt.s32.totalorder %v4833, 16
        %vm5246 = vcmp.lt.s32.totalorder %v4862, 16
        %vm5247 = vcmp.lt.s32.totalorder %v4891, 16
        %vm5248 = vcmp.lt.s32.totalorder %v4920, 16
        %vm5249 = vcmp.lt.s32.totalorder %v4949, 16
        %vm5250 = vcmp.lt.s32.totalorder %v4978, 16
        %vm5251 = vcmp.lt.s32.totalorder %v5007, 16
        %vm5252 = vcmp.lt.s32.totalorder %v5036, 16
        %vm5253 = vcmp.lt.s32.totalorder %v5065, 16
        %vm5254 = vcmp.lt.s32.totalorder %v5094, 16
        %vm5255 = vcmp.lt.s32.totalorder %v5123, 16
        %vm5256 = vcmp.lt.s32.totalorder %v5152, 16
        %vm5257 = vcmp.lt.s32.totalorder %v5181, 16
        %vm5258 = vcmp.lt.s32.totalorder %v5210, 16
        %vm5259 = vcmp.lt.s32.totalorder %v3771, 384
        %vm5260 = vcmp.lt.s32.totalorder %v3772, 384
        %vm5261 = vcmp.lt.s32.totalorder %v3773, 384
        %vm5262 = vcmp.lt.s32.totalorder %v3774, 384
        %vm5263 = vcmp.lt.s32.totalorder %v3775, 384
        %vm5264 = vcmp.lt.s32.totalorder %v3776, 384
        %vm5265 = vcmp.lt.s32.totalorder %v3777, 384
        %vm5266 = vcmp.lt.s32.totalorder %v3778, 384
        %vm5267 = vcmp.lt.s32.totalorder %v3779, 384
        %vm5268 = vcmp.lt.s32.totalorder %v3780, 384
        %vm5269 = vcmp.lt.s32.totalorder %v3781, 384
        %vm5270 = vcmp.lt.s32.totalorder %v3782, 384
        %vm5271 = vcmp.lt.s32.totalorder %v3783, 384
        %vm5272 = vcmp.lt.s32.totalorder %v3784, 384
        %vm5273 = vcmp.lt.s32.totalorder %v3785, 384
        %vm5274 = vcmp.lt.s32.totalorder %v3786, 384
        %vm5275 = vcmp.lt.s32.totalorder %v3787, 384
        %vm5276 = vcmp.lt.s32.totalorder %v3788, 384
        %vm5277 = vcmp.lt.s32.totalorder %v3789, 384
        %vm5278 = vcmp.lt.s32.totalorder %v3790, 384
        %vm5279 = vcmp.lt.s32.totalorder %v3791, 384
        %vm5280 = vcmp.lt.s32.totalorder %v3792, 384
        %vm5281 = vcmp.lt.s32.totalorder %v3793, 384
        %vm5282 = vcmp.lt.s32.totalorder %v3794, 384
        %vm5283 = vcmp.lt.s32.totalorder %v3795, 384
        %vm5284 = vcmp.lt.s32.totalorder %v3796, 384
        %vm5285 = vcmp.lt.s32.totalorder %v3797, 384
        %vm5286 = vcmp.lt.s32.totalorder %v3798, 384
        %vm5287 = vcmp.lt.s32.totalorder %v3799, 384
        %vm5288 = vcmp.lt.s32.totalorder %v3800, 384
        %vm5289 = vcmp.lt.s32.totalorder %v3801, 384
        %vm5290 = vcmp.lt.s32.totalorder %v3802, 384
        %vm5291 = vcmp.lt.s32.totalorder %v3803, 384
        %vm5292 = vcmp.lt.s32.totalorder %v3804, 384
        %vm5293 = vcmp.lt.s32.totalorder %v3805, 384
        %vm5294 = vcmp.lt.s32.totalorder %v3806, 384
        %vm5295 = vcmp.lt.s32.totalorder %v3807, 384
        %vm5296 = vcmp.lt.s32.totalorder %v3808, 384
        %vm5297 = vcmp.lt.s32.totalorder %v3809, 384
        %vm5298 = vcmp.lt.s32.totalorder %v3810, 384
        %vm5299 = vcmp.lt.s32.totalorder %v3811, 384
        %vm5300 = vcmp.lt.s32.totalorder %v3812, 384
        %vm5301 = vcmp.lt.s32.totalorder %v3813, 384
        %vm5302 = vcmp.lt.s32.totalorder %v3814, 384
        %vm5303 = vcmp.lt.s32.totalorder %v3815, 384
        %vm5304 = vcmp.lt.s32.totalorder %v3816, 384
        %vm5305 = vcmp.lt.s32.totalorder %v3817, 384
        %vm5306 = vcmp.lt.s32.totalorder %v3818, 384
        %vm5307 = vmand %vm5211, %vm5259
        %vm5308 = vmand %vm5212, %vm5260
        %vm5309 = vmand %vm5213, %vm5261
        %vm5310 = vmand %vm5214, %vm5262
        %vm5311 = vmand %vm5215, %vm5263
        %vm5312 = vmand %vm5216, %vm5264
        %vm5313 = vmand %vm5217, %vm5265
        %vm5314 = vmand %vm5218, %vm5266
        %vm5315 = vmand %vm5219, %vm5267
        %vm5316 = vmand %vm5220, %vm5268
        %vm5317 = vmand %vm5221, %vm5269
        %vm5318 = vmand %vm5222, %vm5270
        %vm5319 = vmand %vm5223, %vm5271
        %vm5320 = vmand %vm5224, %vm5272
        %vm5321 = vmand %vm5225, %vm5273
        %vm5322 = vmand %vm5226, %vm5274
        %vm5323 = vmand %vm5227, %vm5275
        %vm5324 = vmand %vm5228, %vm5276
        %vm5325 = vmand %vm5229, %vm5277
        %vm5326 = vmand %vm5230, %vm5278
        %vm5327 = vmand %vm5231, %vm5279
        %vm5328 = vmand %vm5232, %vm5280
        %vm5329 = vmand %vm5233, %vm5281
        %vm5330 = vmand %vm5234, %vm5282
        %vm5331 = vmand %vm5235, %vm5283
        %vm5332 = vmand %vm5236, %vm5284
        %vm5333 = vmand %vm5237, %vm5285
        %vm5334 = vmand %vm5238, %vm5286
        %vm5335 = vmand %vm5239, %vm5287
        %vm5336 = vmand %vm5240, %vm5288
        %vm5337 = vmand %vm5241, %vm5289
        %vm5338 = vmand %vm5242, %vm5290
        %vm5339 = vmand %vm5243, %vm5291
        %vm5340 = vmand %vm5244, %vm5292
        %vm5341 = vmand %vm5245, %vm5293
        %vm5342 = vmand %vm5246, %vm5294
        %vm5343 = vmand %vm5247, %vm5295
        %vm5344 = vmand %vm5248, %vm5296
        %vm5345 = vmand %vm5249, %vm5297
        %vm5346 = vmand %vm5250, %vm5298
        %vm5347 = vmand %vm5251, %vm5299
        %vm5348 = vmand %vm5252, %vm5300
        %vm5349 = vmand %vm5253, %vm5301
        %vm5350 = vmand %vm5254, %vm5302
        %vm5351 = vmand %vm5255, %vm5303
        %vm5352 = vmand %vm5256, %vm5304
        %vm5353 = vmand %vm5257, %vm5305
        %vm5354 = vmand %vm5258, %vm5306
        %v5355 = vsel %vm5307, 1, 0
        %v5356 = vsel %vm5308, 1, 0
        %v5357 = vsel %vm5309, 1, 0
        %v5358 = vsel %vm5310, 1, 0
        %v5359 = vsel %vm5311, 1, 0
        %v5360 = vsel %vm5312, 1, 0
        %v5361 = vsel %vm5313, 1, 0
        %v5362 = vsel %vm5314, 1, 0
        %v5363 = vsel %vm5315, 1, 0
        %v5364 = vsel %vm5316, 1, 0
        %v5365 = vsel %vm5317, 1, 0
        %v5366 = vsel %vm5318, 1, 0
        %v5367 = vsel %vm5319, 1, 0
        %v5368 = vsel %vm5320, 1, 0
        %v5369 = vsel %vm5321, 1, 0
        %v5370 = vsel %vm5322, 1, 0
        %v5371 = vsel %vm5323, 1, 0
        %v5372 = vsel %vm5324, 1, 0
        %v5373 = vsel %vm5325, 1, 0
        %v5374 = vsel %vm5326, 1, 0
        %v5375 = vsel %vm5327, 1, 0
        %v5376 = vsel %vm5328, 1, 0
        %v5377 = vsel %vm5329, 1, 0
        %v5378 = vsel %vm5330, 1, 0
        %v5379 = vsel %vm5331, 1, 0
        %v5380 = vsel %vm5332, 1, 0
        %v5381 = vsel %vm5333, 1, 0
        %v5382 = vsel %vm5334, 1, 0
        %v5383 = vsel %vm5335, 1, 0
        %v5384 = vsel %vm5336, 1, 0
        %v5385 = vsel %vm5337, 1, 0
        %v5386 = vsel %vm5338, 1, 0
        %v5387 = vsel %vm5339, 1, 0
        %v5388 = vsel %vm5340, 1, 0
        %v5389 = vsel %vm5341, 1, 0
        %v5390 = vsel %vm5342, 1, 0
        %v5391 = vsel %vm5343, 1, 0
        %v5392 = vsel %vm5344, 1, 0
        %v5393 = vsel %vm5345, 1, 0
        %v5394 = vsel %vm5346, 1, 0
        %v5395 = vsel %vm5347, 1, 0
        %v5396 = vsel %vm5348, 1, 0
        %v5397 = vsel %vm5349, 1, 0
        %v5398 = vsel %vm5350, 1, 0
        %v5399 = vsel %vm5351, 1, 0
        %v5400 = vsel %vm5352, 1, 0
        %v5401 = vsel %vm5353, 1, 0
        %v5402 = vsel %vm5354, 1, 0
        %vm5403 = vcmp.eq.s32.totalorder %v5355, 1
        %vm5404 = vcmp.eq.s32.totalorder %v5356, 1
        %vm5405 = vcmp.eq.s32.totalorder %v5357, 1
        %vm5406 = vcmp.eq.s32.totalorder %v5358, 1
        %vm5407 = vcmp.eq.s32.totalorder %v5359, 1
        %vm5408 = vcmp.eq.s32.totalorder %v5360, 1
        %vm5409 = vcmp.eq.s32.totalorder %v5361, 1
        %vm5410 = vcmp.eq.s32.totalorder %v5362, 1
        %vm5411 = vcmp.eq.s32.totalorder %v5363, 1
        %vm5412 = vcmp.eq.s32.totalorder %v5364, 1
        %vm5413 = vcmp.eq.s32.totalorder %v5365, 1
        %vm5414 = vcmp.eq.s32.totalorder %v5366, 1
        %vm5415 = vcmp.eq.s32.totalorder %v5367, 1
        %vm5416 = vcmp.eq.s32.totalorder %v5368, 1
        %vm5417 = vcmp.eq.s32.totalorder %v5369, 1
        %vm5418 = vcmp.eq.s32.totalorder %v5370, 1
        %vm5419 = vcmp.eq.s32.totalorder %v5371, 1
        %vm5420 = vcmp.eq.s32.totalorder %v5372, 1
        %vm5421 = vcmp.eq.s32.totalorder %v5373, 1
        %vm5422 = vcmp.eq.s32.totalorder %v5374, 1
        %vm5423 = vcmp.eq.s32.totalorder %v5375, 1
        %vm5424 = vcmp.eq.s32.totalorder %v5376, 1
        %vm5425 = vcmp.eq.s32.totalorder %v5377, 1
        %vm5426 = vcmp.eq.s32.totalorder %v5378, 1
        %vm5427 = vcmp.eq.s32.totalorder %v5379, 1
        %vm5428 = vcmp.eq.s32.totalorder %v5380, 1
        %vm5429 = vcmp.eq.s32.totalorder %v5381, 1
        %vm5430 = vcmp.eq.s32.totalorder %v5382, 1
        %vm5431 = vcmp.eq.s32.totalorder %v5383, 1
        %vm5432 = vcmp.eq.s32.totalorder %v5384, 1
        %vm5433 = vcmp.eq.s32.totalorder %v5385, 1
        %vm5434 = vcmp.eq.s32.totalorder %v5386, 1
        %vm5435 = vcmp.eq.s32.totalorder %v5387, 1
        %vm5436 = vcmp.eq.s32.totalorder %v5388, 1
        %vm5437 = vcmp.eq.s32.totalorder %v5389, 1
        %vm5438 = vcmp.eq.s32.totalorder %v5390, 1
        %vm5439 = vcmp.eq.s32.totalorder %v5391, 1
        %vm5440 = vcmp.eq.s32.totalorder %v5392, 1
        %vm5441 = vcmp.eq.s32.totalorder %v5393, 1
        %vm5442 = vcmp.eq.s32.totalorder %v5394, 1
        %vm5443 = vcmp.eq.s32.totalorder %v5395, 1
        %vm5444 = vcmp.eq.s32.totalorder %v5396, 1
        %vm5445 = vcmp.eq.s32.totalorder %v5397, 1
        %vm5446 = vcmp.eq.s32.totalorder %v5398, 1
        %vm5447 = vcmp.eq.s32.totalorder %v5399, 1
        %vm5448 = vcmp.eq.s32.totalorder %v5400, 1
        %vm5449 = vcmp.eq.s32.totalorder %v5401, 1
        %vm5450 = vcmp.eq.s32.totalorder %v5402, 1
        %v5451 = vsel %vm5403, %v3674, 0.0
        %v5452 = vsel %vm5404, %v3675, 0.0
        %v5453 = vsel %vm5405, %v3676, 0.0
        %v5454 = vsel %vm5406, %v3677, 0.0
        %v5455 = vsel %vm5407, %v3678, 0.0
        %v5456 = vsel %vm5408, %v3679, 0.0
        %v5457 = vsel %vm5409, %v3680, 0.0
        %v5458 = vsel %vm5410, %v3681, 0.0
        %v5459 = vsel %vm5411, %v3682, 0.0
        %v5460 = vsel %vm5412, %v3683, 0.0
        %v5461 = vsel %vm5413, %v3684, 0.0
        %v5462 = vsel %vm5414, %v3685, 0.0
        %v5463 = vsel %vm5415, %v3686, 0.0
        %v5464 = vsel %vm5416, %v3687, 0.0
        %v5465 = vsel %vm5417, %v3688, 0.0
        %v5466 = vsel %vm5418, %v3689, 0.0
        %v5467 = vsel %vm5419, %v3690, 0.0
        %v5468 = vsel %vm5420, %v3691, 0.0
        %v5469 = vsel %vm5421, %v3692, 0.0
        %v5470 = vsel %vm5422, %v3693, 0.0
        %v5471 = vsel %vm5423, %v3694, 0.0
        %v5472 = vsel %vm5424, %v3695, 0.0
        %v5473 = vsel %vm5425, %v3696, 0.0
        %v5474 = vsel %vm5426, %v3697, 0.0
        %v5475 = vsel %vm5427, %v3698, 0.0
        %v5476 = vsel %vm5428, %v3699, 0.0
        %v5477 = vsel %vm5429, %v3700, 0.0
        %v5478 = vsel %vm5430, %v3701, 0.0
        %v5479 = vsel %vm5431, %v3702, 0.0
        %v5480 = vsel %vm5432, %v3703, 0.0
        %v5481 = vsel %vm5433, %v3704, 0.0
        %v5482 = vsel %vm5434, %v3705, 0.0
        %v5483 = vsel %vm5435, %v3706, 0.0
        %v5484 = vsel %vm5436, %v3707, 0.0
        %v5485 = vsel %vm5437, %v3708, 0.0
        %v5486 = vsel %vm5438, %v3709, 0.0
        %v5487 = vsel %vm5439, %v3710, 0.0
        %v5488 = vsel %vm5440, %v3711, 0.0
        %v5489 = vsel %vm5441, %v3712, 0.0
        %v5490 = vsel %vm5442, %v3713, 0.0
        %v5491 = vsel %vm5443, %v3714, 0.0
        %v5492 = vsel %vm5444, %v3715, 0.0
        %v5493 = vsel %vm5445, %v3716, 0.0
        %v5494 = vsel %vm5446, %v3717, 0.0
        %v5495 = vsel %vm5447, %v3718, 0.0
        %v5496 = vsel %vm5448, %v3719, 0.0
        %v5497 = vsel %vm5449, %v3720, 0.0
        %v5498 = vsel %vm5450, %v3721, 0.0
        %v5499 = vadd.f32 %v5451, %v5452
        %v5500 = vadd.f32 %v5499, %v5453
        %v5501 = vadd.f32 %v5500, %v5454
        %v5502 = vadd.f32 %v5501, %v5455
        %v5503 = vadd.f32 %v5502, %v5456
        %v5504 = vadd.f32 %v5503, %v5457
        %v5505 = vadd.f32 %v5504, %v5458
        %v5506 = vadd.f32 %v5505, %v5459
        %v5507 = vadd.f32 %v5506, %v5460
        %v5508 = vadd.f32 %v5507, %v5461
        %v5509 = vadd.f32 %v5508, %v5462
        %v5510 = vadd.f32 %v5509, %v5463
        %v5511 = vadd.f32 %v5510, %v5464
        %v5512 = vadd.f32 %v5511, %v5465
        %v5513 = vadd.f32 %v5512, %v5466
        %v5514 = vadd.f32 %v5513, %v5467
        %v5515 = vadd.f32 %v5514, %v5468
        %v5516 = vadd.f32 %v5515, %v5469
        %v5517 = vadd.f32 %v5516, %v5470
        %v5518 = vadd.f32 %v5517, %v5471
        %v5519 = vadd.f32 %v5518, %v5472
        %v5520 = vadd.f32 %v5519, %v5473
        %v5521 = vadd.f32 %v5520, %v5474
        %v5522 = vadd.f32 %v5521, %v5475
        %v5523 = vadd.f32 %v5522, %v5476
        %v5524 = vadd.f32 %v5523, %v5477
        %v5525 = vadd.f32 %v5524, %v5478
        %v5526 = vadd.f32 %v5525, %v5479
        %v5527 = vadd.f32 %v5526, %v5480
        %v5528 = vadd.f32 %v5527, %v5481
        %v5529 = vadd.f32 %v5528, %v5482
        %v5530 = vadd.f32 %v5529, %v5483
        %v5531 = vadd.f32 %v5530, %v5484
        %v5532 = vadd.f32 %v5531, %v5485
        %v5533 = vadd.f32 %v5532, %v5486
        %v5534 = vadd.f32 %v5533, %v5487
        %v5535 = vadd.f32 %v5534, %v5488
        %v5536 = vadd.f32 %v5535, %v5489
        %v5537 = vadd.f32 %v5536, %v5490
        %v5538 = vadd.f32 %v5537, %v5491
        %v5539 = vadd.f32 %v5538, %v5492
        %v5540 = vadd.f32 %v5539, %v5493
        %v5541 = vadd.f32 %v5540, %v5494
        %v5542 = vadd.f32 %v5541, %v5495
        %v5543 = vadd.f32 %v5542, %v5496
        %v5544 = vadd.f32 %v5543, %v5497
        %v5545 = vadd.f32 %v5544, %v5498
        %v5546 = vrot.slane %v5545, 4
        %v5547 = vadd.f32 %v5545, %v5546
        %v5548 = vrot.slane %v5547, 2
        %v5549 = vadd.f32 %v5547, %v5548
        %v5550 = vrot.slane %v5549, 1
        %v5551 = vadd.f32 %v5549, %v5550
        %v5552 = vadd.f32 %v5551, 0.0
        %v5553 = vmul.f32 %v5451, %v5451
        %v5554 = vmul.f32 %v5452, %v5452
        %v5555 = vmul.f32 %v5453, %v5453
        %v5556 = vmul.f32 %v5454, %v5454
        %v5557 = vmul.f32 %v5455, %v5455
        %v5558 = vmul.f32 %v5456, %v5456
        %v5559 = vmul.f32 %v5457, %v5457
        %v5560 = vmul.f32 %v5458, %v5458
        %v5561 = vmul.f32 %v5459, %v5459
        %v5562 = vmul.f32 %v5460, %v5460
        %v5563 = vmul.f32 %v5461, %v5461
        %v5564 = vmul.f32 %v5462, %v5462
        %v5565 = vmul.f32 %v5463, %v5463
        %v5566 = vmul.f32 %v5464, %v5464
        %v5567 = vmul.f32 %v5465, %v5465
        %v5568 = vmul.f32 %v5466, %v5466
        %v5569 = vmul.f32 %v5467, %v5467
        %v5570 = vmul.f32 %v5468, %v5468
        %v5571 = vmul.f32 %v5469, %v5469
        %v5572 = vmul.f32 %v5470, %v5470
        %v5573 = vmul.f32 %v5471, %v5471
        %v5574 = vmul.f32 %v5472, %v5472
        %v5575 = vmul.f32 %v5473, %v5473
        %v5576 = vmul.f32 %v5474, %v5474
        %v5577 = vmul.f32 %v5475, %v5475
        %v5578 = vmul.f32 %v5476, %v5476
        %v5579 = vmul.f32 %v5477, %v5477
        %v5580 = vmul.f32 %v5478, %v5478
        %v5581 = vmul.f32 %v5479, %v5479
        %v5582 = vmul.f32 %v5480, %v5480
        %v5583 = vmul.f32 %v5481, %v5481
        %v5584 = vmul.f32 %v5482, %v5482
        %v5585 = vmul.f32 %v5483, %v5483
        %v5586 = vmul.f32 %v5484, %v5484
        %v5587 = vmul.f32 %v5485, %v5485
        %v5588 = vmul.f32 %v5486, %v5486
        %v5589 = vmul.f32 %v5487, %v5487
        %v5590 = vmul.f32 %v5488, %v5488
        %v5591 = vmul.f32 %v5489, %v5489
        %v5592 = vmul.f32 %v5490, %v5490
        %v5593 = vmul.f32 %v5491, %v5491
        %v5594 = vmul.f32 %v5492, %v5492
        %v5595 = vmul.f32 %v5493, %v5493
        %v5596 = vmul.f32 %v5494, %v5494
        %v5597 = vmul.f32 %v5495, %v5495
        %v5598 = vmul.f32 %v5496, %v5496
        %v5599 = vmul.f32 %v5497, %v5497
        %v5600 = vmul.f32 %v5498, %v5498
        %v5601 = vadd.f32 %v5553, %v5554
        %v5602 = vadd.f32 %v5601, %v5555
        %v5603 = vadd.f32 %v5602, %v5556
        %v5604 = vadd.f32 %v5603, %v5557
        %v5605 = vadd.f32 %v5604, %v5558
        %v5606 = vadd.f32 %v5605, %v5559
        %v5607 = vadd.f32 %v5606, %v5560
        %v5608 = vadd.f32 %v5607, %v5561
        %v5609 = vadd.f32 %v5608, %v5562
        %v5610 = vadd.f32 %v5609, %v5563
        %v5611 = vadd.f32 %v5610, %v5564
        %v5612 = vadd.f32 %v5611, %v5565
        %v5613 = vadd.f32 %v5612, %v5566
        %v5614 = vadd.f32 %v5613, %v5567
        %v5615 = vadd.f32 %v5614, %v5568
        %v5616 = vadd.f32 %v5615, %v5569
        %v5617 = vadd.f32 %v5616, %v5570
        %v5618 = vadd.f32 %v5617, %v5571
        %v5619 = vadd.f32 %v5618, %v5572
        %v5620 = vadd.f32 %v5619, %v5573
        %v5621 = vadd.f32 %v5620, %v5574
        %v5622 = vadd.f32 %v5621, %v5575
        %v5623 = vadd.f32 %v5622, %v5576
        %v5624 = vadd.f32 %v5623, %v5577
        %v5625 = vadd.f32 %v5624, %v5578
        %v5626 = vadd.f32 %v5625, %v5579
        %v5627 = vadd.f32 %v5626, %v5580
        %v5628 = vadd.f32 %v5627, %v5581
        %v5629 = vadd.f32 %v5628, %v5582
        %v5630 = vadd.f32 %v5629, %v5583
        %v5631 = vadd.f32 %v5630, %v5584
        %v5632 = vadd.f32 %v5631, %v5585
        %v5633 = vadd.f32 %v5632, %v5586
        %v5634 = vadd.f32 %v5633, %v5587
        %v5635 = vadd.f32 %v5634, %v5588
        %v5636 = vadd.f32 %v5635, %v5589
        %v5637 = vadd.f32 %v5636, %v5590
        %v5638 = vadd.f32 %v5637, %v5591
        %v5639 = vadd.f32 %v5638, %v5592
        %v5640 = vadd.f32 %v5639, %v5593
        %v5641 = vadd.f32 %v5640, %v5594
        %v5642 = vadd.f32 %v5641, %v5595
        %v5643 = vadd.f32 %v5642, %v5596
        %v5644 = vadd.f32 %v5643, %v5597
        %v5645 = vadd.f32 %v5644, %v5598
        %v5646 = vadd.f32 %v5645, %v5599
        %v5647 = vadd.f32 %v5646, %v5600
        %v5648 = vrot.slane %v5647, 4
        %v5649 = vadd.f32 %v5647, %v5648
        %v5650 = vrot.slane %v5649, 2
        %v5651 = vadd.f32 %v5649, %v5650
        %v5652 = vrot.slane %v5651, 1
        %v5653 = vadd.f32 %v5651, %v5652
        %v5654 = vadd.f32 %v5653, 0.0
        %v5655 = vmul.f32 %v5552, 0.00390625
        %v5656 = vmul.f32 %v5654, 0.00390625
        %v5657 = vmul.f32 %v5655, %v5655
        %v5658 = vsub.f32 %v5656, %v5657
        %v5659 = vmax.f32 %v5658, 0.0
        %v5660 = vadd.f32 %v5659, 1e-05
        %v5661 = vrsqrt.pop %v5660
        %v5662 = vmul.f32 %v5661, %v5660
        %v5663 = vmul.f32 %v5662, %v5661
        %v5664 = vmul.f32 0.5, %v5663
        %v5665 = vsub.f32 1.5, %v5664
        %v5666 = vmul.f32 %v5661, %v5665
        %vm5667 = vweird.f32 %v5660
        %vm5668 = vweird.f32 %v5661
        %vm5669 = vmor %vm5667, %vm5668
        %v5670 = vsel %vm5669, %v5661, %v5666
        %v5671 = vld [vmem:[#allocation2] sm:$0xff]
        %v5672 = vld [vmem:[#allocation2 + $0x8] sm:$0xff]
        %v5673 = vld [vmem:[#allocation2 + $0x10] sm:$0xff]
        %v5674 = vld [vmem:[#allocation2 + $0x18] sm:$0xff]
        %v5675 = vld [vmem:[#allocation2 + $0x20] sm:$0xff]
        %v5676 = vld [vmem:[#allocation2 + $0x28] sm:$0xff]
        %v5677 = vld [vmem:[#allocation2 + $0x30] sm:$0xff]
        %v5678 = vld [vmem:[#allocation2 + $0x38] sm:$0xff]
        %v5679 = vld [vmem:[#allocation2 + $0x40] sm:$0xff]
        %v5680 = vld [vmem:[#allocation2 + $0x48] sm:$0xff]
        %v5681 = vld [vmem:[#allocation2 + $0x50] sm:$0xff]
        %v5682 = vld [vmem:[#allocation2 + $0x58] sm:$0xff]
        %v5683 = vld [vmem:[#allocation2 + $0x60] sm:$0xff]
        %v5684 = vld [vmem:[#allocation2 + $0x68] sm:$0xff]
        %v5685 = vld [vmem:[#allocation2 + $0x70] sm:$0xff]
        %v5686 = vld [vmem:[#allocation2 + $0x78] sm:$0xff]
        %v5687 = vld [vmem:[#allocation2 + $0x80] sm:$0xff]
        %v5688 = vld [vmem:[#allocation2 + $0x88] sm:$0xff]
        %v5689 = vld [vmem:[#allocation2 + $0x90] sm:$0xff]
        %v5690 = vld [vmem:[#allocation2 + $0x98] sm:$0xff]
        %v5691 = vld [vmem:[#allocation2 + $0xa0] sm:$0xff]
        %v5692 = vld [vmem:[#allocation2 + $0xa8] sm:$0xff]
        %v5693 = vld [vmem:[#allocation2 + $0xb0] sm:$0xff]
        %v5694 = vld [vmem:[#allocation2 + $0xb8] sm:$0xff]
        %v5695 = vld [vmem:[#allocation2 + $0xc0] sm:$0xff]
        %v5696 = vld [vmem:[#allocation2 + $0xc8] sm:$0xff]
        %v5697 = vld [vmem:[#allocation2 + $0xd0] sm:$0xff]
        %v5698 = vld [vmem:[#allocation2 + $0xd8] sm:$0xff]
        %v5699 = vld [vmem:[#allocation2 + $0xe0] sm:$0xff]
        %v5700 = vld [vmem:[#allocation2 + $0xe8] sm:$0xff]
        %v5701 = vld [vmem:[#allocation2 + $0xf0] sm:$0xff]
        %v5702 = vld [vmem:[#allocation2 + $0xf8] sm:$0xff]
        %v5703 = vld [vmem:[#allocation2 + $0x100] sm:$0xff]
        %v5704 = vld [vmem:[#allocation2 + $0x108] sm:$0xff]
        %v5705 = vld [vmem:[#allocation2 + $0x110] sm:$0xff]
        %v5706 = vld [vmem:[#allocation2 + $0x118] sm:$0xff]
        %v5707 = vld [vmem:[#allocation2 + $0x120] sm:$0xff]
        %v5708 = vld [vmem:[#allocation2 + $0x128] sm:$0xff]
        %v5709 = vld [vmem:[#allocation2 + $0x130] sm:$0xff]
        %v5710 = vld [vmem:[#allocation2 + $0x138] sm:$0xff]
        %v5711 = vld [vmem:[#allocation2 + $0x140] sm:$0xff]
        %v5712 = vld [vmem:[#allocation2 + $0x148] sm:$0xff]
        %v5713 = vld [vmem:[#allocation2 + $0x150] sm:$0xff]
        %v5714 = vld [vmem:[#allocation2 + $0x158] sm:$0xff]
        %v5715 = vld [vmem:[#allocation2 + $0x160] sm:$0xff]
        %v5716 = vld [vmem:[#allocation2 + $0x168] sm:$0xff]
        %v5717 = vld [vmem:[#allocation2 + $0x170] sm:$0xff]
        %v5718 = vld [vmem:[#allocation2 + $0x178] sm:$0xff]
        %v5719 = vsub.f32 %v5671, %v5655
        %v5720 = vsub.f32 %v5672, %v5655
        %v5721 = vsub.f32 %v5673, %v5655
        %v5722 = vsub.f32 %v5674, %v5655
        %v5723 = vsub.f32 %v5675, %v5655
        %v5724 = vsub.f32 %v5676, %v5655
        %v5725 = vsub.f32 %v5677, %v5655
        %v5726 = vsub.f32 %v5678, %v5655
        %v5727 = vsub.f32 %v5679, %v5655
        %v5728 = vsub.f32 %v5680, %v5655
        %v5729 = vsub.f32 %v5681, %v5655
        %v5730 = vsub.f32 %v5682, %v5655
        %v5731 = vsub.f32 %v5683, %v5655
        %v5732 = vsub.f32 %v5684, %v5655
        %v5733 = vsub.f32 %v5685, %v5655
        %v5734 = vsub.f32 %v5686, %v5655
        %v5735 = vsub.f32 %v5687, %v5655
        %v5736 = vsub.f32 %v5688, %v5655
        %v5737 = vsub.f32 %v5689, %v5655
        %v5738 = vsub.f32 %v5690, %v5655
        %v5739 = vsub.f32 %v5691, %v5655
        %v5740 = vsub.f32 %v5692, %v5655
        %v5741 = vsub.f32 %v5693, %v5655
        %v5742 = vsub.f32 %v5694, %v5655
        %v5743 = vsub.f32 %v5695, %v5655
        %v5744 = vsub.f32 %v5696, %v5655
        %v5745 = vsub.f32 %v5697, %v5655
        %v5746 = vsub.f32 %v5698, %v5655
        %v5747 = vsub.f32 %v5699, %v5655
        %v5748 = vsub.f32 %v5700, %v5655
        %v5749 = vsub.f32 %v5701, %v5655
        %v5750 = vsub.f32 %v5702, %v5655
        %v5751 = vsub.f32 %v5703, %v5655
        %v5752 = vsub.f32 %v5704, %v5655
        %v5753 = vsub.f32 %v5705, %v5655
        %v5754 = vsub.f32 %v5706, %v5655
        %v5755 = vsub.f32 %v5707, %v5655
        %v5756 = vsub.f32 %v5708, %v5655
        %v5757 = vsub.f32 %v5709, %v5655
        %v5758 = vsub.f32 %v5710, %v5655
        %v5759 = vsub.f32 %v5711, %v5655
        %v5760 = vsub.f32 %v5712, %v5655
        %v5761 = vsub.f32 %v5713, %v5655
        %v5762 = vsub.f32 %v5714, %v5655
        %v5763 = vsub.f32 %v5715, %v5655
        %v5764 = vsub.f32 %v5716, %v5655
        %v5765 = vsub.f32 %v5717, %v5655
        %v5766 = vsub.f32 %v5718, %v5655
        %v5767 = vmul.f32 %v5719, %v5670
        %v5768 = vmul.f32 %v5720, %v5670
        %v5769 = vmul.f32 %v5721, %v5670
        %v5770 = vmul.f32 %v5722, %v5670
        %v5771 = vmul.f32 %v5723, %v5670
        %v5772 = vmul.f32 %v5724, %v5670
        %v5773 = vmul.f32 %v5725, %v5670
        %v5774 = vmul.f32 %v5726, %v5670
        %v5775 = vmul.f32 %v5727, %v5670
        %v5776 = vmul.f32 %v5728, %v5670
        %v5777 = vmul.f32 %v5729, %v5670
        %v5778 = vmul.f32 %v5730, %v5670
        %v5779 = vmul.f32 %v5731, %v5670
        %v5780 = vmul.f32 %v5732, %v5670
        %v5781 = vmul.f32 %v5733, %v5670
        %v5782 = vmul.f32 %v5734, %v5670
        %v5783 = vmul.f32 %v5735, %v5670
        %v5784 = vmul.f32 %v5736, %v5670
        %v5785 = vmul.f32 %v5737, %v5670
        %v5786 = vmul.f32 %v5738, %v5670
        %v5787 = vmul.f32 %v5739, %v5670
        %v5788 = vmul.f32 %v5740, %v5670
        %v5789 = vmul.f32 %v5741, %v5670
        %v5790 = vmul.f32 %v5742, %v5670
        %v5791 = vmul.f32 %v5743, %v5670
        %v5792 = vmul.f32 %v5744, %v5670
        %v5793 = vmul.f32 %v5745, %v5670
        %v5794 = vmul.f32 %v5746, %v5670
        %v5795 = vmul.f32 %v5747, %v5670
        %v5796 = vmul.f32 %v5748, %v5670
        %v5797 = vmul.f32 %v5749, %v5670
        %v5798 = vmul.f32 %v5750, %v5670
        %v5799 = vmul.f32 %v5751, %v5670
        %v5800 = vmul.f32 %v5752, %v5670
        %v5801 = vmul.f32 %v5753, %v5670
        %v5802 = vmul.f32 %v5754, %v5670
        %v5803 = vmul.f32 %v5755, %v5670
        %v5804 = vmul.f32 %v5756, %v5670
        %v5805 = vmul.f32 %v5757, %v5670
        %v5806 = vmul.f32 %v5758, %v5670
        %v5807 = vmul.f32 %v5759, %v5670
        %v5808 = vmul.f32 %v5760, %v5670
        %v5809 = vmul.f32 %v5761, %v5670
        %v5810 = vmul.f32 %v5762, %v5670
        %v5811 = vmul.f32 %v5763, %v5670
        %v5812 = vmul.f32 %v5764, %v5670
        %v5813 = vmul.f32 %v5765, %v5670
        %v5814 = vmul.f32 %v5766, %v5670
        %v5815 = vmax.f32 %v5767, 0.0
        %v5816 = vmax.f32 %v5768, 0.0
        %v5817 = vmax.f32 %v5769, 0.0
        %v5818 = vmax.f32 %v5770, 0.0
        %v5819 = vmax.f32 %v5771, 0.0
        %v5820 = vmax.f32 %v5772, 0.0
        %v5821 = vmax.f32 %v5773, 0.0
        %v5822 = vmax.f32 %v5774, 0.0
        %v5823 = vmax.f32 %v5775, 0.0
        %v5824 = vmax.f32 %v5776, 0.0
        %v5825 = vmax.f32 %v5777, 0.0
        %v5826 = vmax.f32 %v5778, 0.0
        %v5827 = vmax.f32 %v5779, 0.0
        %v5828 = vmax.f32 %v5780, 0.0
        %v5829 = vmax.f32 %v5781, 0.0
        %v5830 = vmax.f32 %v5782, 0.0
        %v5831 = vmax.f32 %v5783, 0.0
        %v5832 = vmax.f32 %v5784, 0.0
        %v5833 = vmax.f32 %v5785, 0.0
        %v5834 = vmax.f32 %v5786, 0.0
        %v5835 = vmax.f32 %v5787, 0.0
        %v5836 = vmax.f32 %v5788, 0.0
        %v5837 = vmax.f32 %v5789, 0.0
        %v5838 = vmax.f32 %v5790, 0.0
        %v5839 = vmax.f32 %v5791, 0.0
        %v5840 = vmax.f32 %v5792, 0.0
        %v5841 = vmax.f32 %v5793, 0.0
        %v5842 = vmax.f32 %v5794, 0.0
        %v5843 = vmax.f32 %v5795, 0.0
        %v5844 = vmax.f32 %v5796, 0.0
        %v5845 = vmax.f32 %v5797, 0.0
        %v5846 = vmax.f32 %v5798, 0.0
        %v5847 = vmax.f32 %v5799, 0.0
        %v5848 = vmax.f32 %v5800, 0.0
        %v5849 = vmax.f32 %v5801, 0.0
        %v5850 = vmax.f32 %v5802, 0.0
        %v5851 = vmax.f32 %v5803, 0.0
        %v5852 = vmax.f32 %v5804, 0.0
        %v5853 = vmax.f32 %v5805, 0.0
        %v5854 = vmax.f32 %v5806, 0.0
        %v5855 = vmax.f32 %v5807, 0.0
        %v5856 = vmax.f32 %v5808, 0.0
        %v5857 = vmax.f32 %v5809, 0.0
        %v5858 = vmax.f32 %v5810, 0.0
        %v5859 = vmax.f32 %v5811, 0.0
        %v5860 = vmax.f32 %v5812, 0.0
        %v5861 = vmax.f32 %v5813, 0.0
        %v5862 = vmax.f32 %v5814, 0.0
        %vm5911 = vcmask 1040384
        %v5912 = vrot.slane %v5815, 7
        %v5913 = vrot.slane %v5816, 7
        %v5914 = vsel %vm5911, %v5912, %v5913
        %v5915 = vrot.slane %v5817, 7
        %v5916 = vsel %vm5911, %v5913, %v5915
        %v5917 = vrot.slane %v5818, 7
        %v5918 = vsel %vm5911, %v5915, %v5917
        %v5919 = vrot.slane %v5819, 7
        %v5920 = vsel %vm5911, %v5917, %v5919
        %v5921 = vrot.slane %v5820, 7
        %v5922 = vsel %vm5911, %v5919, %v5921
        %v5923 = vrot.slane %v5821, 7
        %v5924 = vsel %vm5911, %v5921, %v5923
        %v5925 = vrot.slane %v5822, 7
        %v5926 = vsel %vm5911, %v5923, %v5925
        %v5927 = vrot.slane %v5823, 7
        %v5928 = vsel %vm5911, %v5925, %v5927
        %v5929 = vrot.slane %v5824, 7
        %v5930 = vsel %vm5911, %v5927, %v5929
        %v5931 = vrot.slane %v5825, 7
        %v5932 = vsel %vm5911, %v5929, %v5931
        %v5933 = vrot.slane %v5826, 7
        %v5934 = vsel %vm5911, %v5931, %v5933
        %v5935 = vrot.slane %v5827, 7
        %v5936 = vsel %vm5911, %v5933, %v5935
        %v5937 = vrot.slane %v5828, 7
        %v5938 = vsel %vm5911, %v5935, %v5937
        %v5939 = vrot.slane %v5829, 7
        %v5940 = vsel %vm5911, %v5937, %v5939
        %v5941 = vrot.slane %v5830, 7
        %v5942 = vsel %vm5911, %v5939, %v5941
        %v5943 = vrot.slane %v5831, 7
        %v5944 = vsel %vm5911, %v5941, %v5943
        %v5945 = vrot.slane %v5832, 7
        %v5946 = vsel %vm5911, %v5943, %v5945
        %v5947 = vrot.slane %v5833, 7
        %v5948 = vsel %vm5911, %v5945, %v5947
        %v5949 = vrot.slane %v5834, 7
        %v5950 = vsel %vm5911, %v5947, %v5949
        %v5951 = vrot.slane %v5835, 7
        %v5952 = vsel %vm5911, %v5949, %v5951
        %v5953 = vrot.slane %v5836, 7
        %v5954 = vsel %vm5911, %v5951, %v5953
        %v5955 = vrot.slane %v5837, 7
        %v5956 = vsel %vm5911, %v5953, %v5955
        %v5957 = vrot.slane %v5838, 7
        %v5958 = vsel %vm5911, %v5955, %v5957
        %v5959 = vrot.slane %v5839, 7
        %v5960 = vsel %vm5911, %v5957, %v5959
        %v5961 = vrot.slane %v5840, 7
        %v5962 = vsel %vm5911, %v5959, %v5961
        %v5963 = vrot.slane %v5841, 7
        %v5964 = vsel %vm5911, %v5961, %v5963
        %v5965 = vrot.slane %v5842, 7
        %v5966 = vsel %vm5911, %v5963, %v5965
        %v5967 = vrot.slane %v5843, 7
        %v5968 = vsel %vm5911, %v5965, %v5967
        %v5969 = vrot.slane %v5844, 7
        %v5970 = vsel %vm5911, %v5967, %v5969
        %v5971 = vrot.slane %v5845, 7
        %v5972 = vsel %vm5911, %v5969, %v5971
        %v5973 = vrot.slane %v5846, 7
        %v5974 = vsel %vm5911, %v5971, %v5973
        %v5975 = vrot.slane %v5847, 7
        %v5976 = vsel %vm5911, %v5973, %v5975
        %v5977 = vrot.slane %v5848, 7
        %v5978 = vsel %vm5911, %v5975, %v5977
        %v5979 = vrot.slane %v5849, 7
        %v5980 = vsel %vm5911, %v5977, %v5979
        %v5981 = vrot.slane %v5850, 7
        %v5982 = vsel %vm5911, %v5979, %v5981
        %v5983 = vrot.slane %v5851, 7
        %v5984 = vsel %vm5911, %v5981, %v5983
        %v5985 = vrot.slane %v5852, 7
        %v5986 = vsel %vm5911, %v5983, %v5985
        %v5987 = vrot.slane %v5853, 7
        %v5988 = vsel %vm5911, %v5985, %v5987
        %v5989 = vrot.slane %v5854, 7
        %v5990 = vsel %vm5911, %v5987, %v5989
        %v5991 = vrot.slane %v5855, 7
        %v5992 = vsel %vm5911, %v5989, %v5991
        %v5993 = vrot.slane %v5856, 7
        %v5994 = vsel %vm5911, %v5991, %v5993
        %v5995 = vrot.slane %v5857, 7
        %v5996 = vsel %vm5911, %v5993, %v5995
        %v5997 = vrot.slane %v5858, 7
        %v5998 = vsel %vm5911, %v5995, %v5997
        %v5999 = vrot.slane %v5859, 7
        %v6000 = vsel %vm5911, %v5997, %v5999
        %v6001 = vrot.slane %v5860, 7
        %v6002 = vsel %vm5911, %v5999, %v6001
        %v6003 = vrot.slane %v5861, 7
        %v6004 = vsel %vm5911, %v6001, %v6003
        %v6005 = vrot.slane %v5862, 7
        %v6006 = vsel %vm5911, %v6003, %v6005
        %v6055 = vsel %vm5911, %v5815, %v5912
        %v6056 = vrot.slane %v5815, 1
        %v6057 = vrot.slane %v5816, 1
        %v6058 = vsel %vm953, %v6056, %v6057
        %v6059 = vrot.slane %v5817, 1
        %v6060 = vsel %vm953, %v6057, %v6059
        %v6061 = vrot.slane %v5818, 1
        %v6062 = vsel %vm953, %v6059, %v6061
        %v6063 = vrot.slane %v5819, 1
        %v6064 = vsel %vm953, %v6061, %v6063
        %v6065 = vrot.slane %v5820, 1
        %v6066 = vsel %vm953, %v6063, %v6065
        %v6067 = vrot.slane %v5821, 1
        %v6068 = vsel %vm953, %v6065, %v6067
        %v6069 = vrot.slane %v5822, 1
        %v6070 = vsel %vm953, %v6067, %v6069
        %v6071 = vrot.slane %v5823, 1
        %v6072 = vsel %vm953, %v6069, %v6071
        %v6073 = vrot.slane %v5824, 1
        %v6074 = vsel %vm953, %v6071, %v6073
        %v6075 = vrot.slane %v5825, 1
        %v6076 = vsel %vm953, %v6073, %v6075
        %v6077 = vrot.slane %v5826, 1
        %v6078 = vsel %vm953, %v6075, %v6077
        %v6079 = vrot.slane %v5827, 1
        %v6080 = vsel %vm953, %v6077, %v6079
        %v6081 = vrot.slane %v5828, 1
        %v6082 = vsel %vm953, %v6079, %v6081
        %v6083 = vrot.slane %v5829, 1
        %v6084 = vsel %vm953, %v6081, %v6083
        %v6085 = vrot.slane %v5830, 1
        %v6086 = vsel %vm953, %v6083, %v6085
        %v6087 = vrot.slane %v5831, 1
        %v6088 = vsel %vm953, %v6085, %v6087
        %v6089 = vrot.slane %v5832, 1
        %v6090 = vsel %vm953, %v6087, %v6089
        %v6091 = vrot.slane %v5833, 1
        %v6092 = vsel %vm953, %v6089, %v6091
        %v6093 = vrot.slane %v5834, 1
        %v6094 = vsel %vm953, %v6091, %v6093
        %v6095 = vrot.slane %v5835, 1
        %v6096 = vsel %vm953, %v6093, %v6095
        %v6097 = vrot.slane %v5836, 1
        %v6098 = vsel %vm953, %v6095, %v6097
        %v6099 = vrot.slane %v5837, 1
        %v6100 = vsel %vm953, %v6097, %v6099
        %v6101 = vrot.slane %v5838, 1
        %v6102 = vsel %vm953, %v6099, %v6101
        %v6103 = vrot.slane %v5839, 1
        %v6104 = vsel %vm953, %v6101, %v6103
        %v6105 = vrot.slane %v5840, 1
        %v6106 = vsel %vm953, %v6103, %v6105
        %v6107 = vrot.slane %v5841, 1
        %v6108 = vsel %vm953, %v6105, %v6107
        %v6109 = vrot.slane %v5842, 1
        %v6110 = vsel %vm953, %v6107, %v6109
        %v6111 = vrot.slane %v5843, 1
        %v6112 = vsel %vm953, %v6109, %v6111
        %v6113 = vrot.slane %v5844, 1
        %v6114 = vsel %vm953, %v6111, %v6113
        %v6115 = vrot.slane %v5845, 1
        %v6116 = vsel %vm953, %v6113, %v6115
        %v6117 = vrot.slane %v5846, 1
        %v6118 = vsel %vm953, %v6115, %v6117
        %v6119 = vrot.slane %v5847, 1
        %v6120 = vsel %vm953, %v6117, %v6119
        %v6121 = vrot.slane %v5848, 1
        %v6122 = vsel %vm953, %v6119, %v6121
        %v6123 = vrot.slane %v5849, 1
        %v6124 = vsel %vm953, %v6121, %v6123
        %v6125 = vrot.slane %v5850, 1
        %v6126 = vsel %vm953, %v6123, %v6125
        %v6127 = vrot.slane %v5851, 1
        %v6128 = vsel %vm953, %v6125, %v6127
        %v6129 = vrot.slane %v5852, 1
        %v6130 = vsel %vm953, %v6127, %v6129
        %v6131 = vrot.slane %v5853, 1
        %v6132 = vsel %vm953, %v6129, %v6131
        %v6133 = vrot.slane %v5854, 1
        %v6134 = vsel %vm953, %v6131, %v6133
        %v6135 = vrot.slane %v5855, 1
        %v6136 = vsel %vm953, %v6133, %v6135
        %v6137 = vrot.slane %v5856, 1
        %v6138 = vsel %vm953, %v6135, %v6137
        %v6139 = vrot.slane %v5857, 1
        %v6140 = vsel %vm953, %v6137, %v6139
        %v6141 = vrot.slane %v5858, 1
        %v6142 = vsel %vm953, %v6139, %v6141
        %v6143 = vrot.slane %v5859, 1
        %v6144 = vsel %vm953, %v6141, %v6143
        %v6145 = vrot.slane %v5860, 1
        %v6146 = vsel %vm953, %v6143, %v6145
        %v6147 = vrot.slane %v5861, 1
        %v6148 = vsel %vm953, %v6145, %v6147
        %v6149 = vrot.slane %v5862, 1
        %v6150 = vsel %vm953, %v6147, %v6149
        %v6199 = vsel %vm953, %v6149, %v5862
        %vm6200 = vcmask 1042432
        %v6201 = vrot.slane %v5815, 5
        %v6202 = vrot.slane %v5816, 5
        %v6203 = vsel %vm6200, %v6201, %v6202
        %v6204 = vrot.slane %v5817, 5
        %v6205 = vsel %vm6200, %v6202, %v6204
        %v6206 = vrot.slane %v5818, 5
        %v6207 = vsel %vm6200, %v6204, %v6206
        %v6208 = vrot.slane %v5819, 5
        %v6209 = vsel %vm6200, %v6206, %v6208
        %v6210 = vrot.slane %v5820, 5
        %v6211 = vsel %vm6200, %v6208, %v6210
        %v6212 = vrot.slane %v5821, 5
        %v6213 = vsel %vm6200, %v6210, %v6212
        %v6214 = vrot.slane %v5822, 5
        %v6215 = vsel %vm6200, %v6212, %v6214
        %v6216 = vrot.slane %v5823, 5
        %v6217 = vsel %vm6200, %v6214, %v6216
        %v6218 = vrot.slane %v5824, 5
        %v6219 = vsel %vm6200, %v6216, %v6218
        %v6220 = vrot.slane %v5825, 5
        %v6221 = vsel %vm6200, %v6218, %v6220
        %v6222 = vrot.slane %v5826, 5
        %v6223 = vsel %vm6200, %v6220, %v6222
        %v6224 = vrot.slane %v5827, 5
        %v6225 = vsel %vm6200, %v6222, %v6224
        %v6226 = vrot.slane %v5828, 5
        %v6227 = vsel %vm6200, %v6224, %v6226
        %v6228 = vrot.slane %v5829, 5
        %v6229 = vsel %vm6200, %v6226, %v6228
        %v6230 = vrot.slane %v5830, 5
        %v6231 = vsel %vm6200, %v6228, %v6230
        %v6232 = vrot.slane %v5831, 5
        %v6233 = vsel %vm6200, %v6230, %v6232
        %v6234 = vrot.slane %v5832, 5
        %v6235 = vsel %vm6200, %v6232, %v6234
        %v6236 = vrot.slane %v5833, 5
        %v6237 = vsel %vm6200, %v6234, %v6236
        %v6238 = vrot.slane %v5834, 5
        %v6239 = vsel %vm6200, %v6236, %v6238
        %v6240 = vrot.slane %v5835, 5
        %v6241 = vsel %vm6200, %v6238, %v6240
        %v6242 = vrot.slane %v5836, 5
        %v6243 = vsel %vm6200, %v6240, %v6242
        %v6244 = vrot.slane %v5837, 5
        %v6245 = vsel %vm6200, %v6242, %v6244
        %v6246 = vrot.slane %v5838, 5
        %v6247 = vsel %vm6200, %v6244, %v6246
        %v6248 = vrot.slane %v5839, 5
        %v6249 = vsel %vm6200, %v6246, %v6248
        %v6250 = vrot.slane %v5840, 5
        %v6251 = vsel %vm6200, %v6248, %v6250
        %v6252 = vrot.slane %v5841, 5
        %v6253 = vsel %vm6200, %v6250, %v6252
        %v6254 = vrot.slane %v5842, 5
        %v6255 = vsel %vm6200, %v6252, %v6254
        %v6256 = vrot.slane %v5843, 5
        %v6257 = vsel %vm6200, %v6254, %v6256
        %v6258 = vrot.slane %v5844, 5
        %v6259 = vsel %vm6200, %v6256, %v6258
        %v6260 = vrot.slane %v5845, 5
        %v6261 = vsel %vm6200, %v6258, %v6260
        %v6262 = vrot.slane %v5846, 5
        %v6263 = vsel %vm6200, %v6260, %v6262
        %v6264 = vrot.slane %v5847, 5
        %v6265 = vsel %vm6200, %v6262, %v6264
        %v6266 = vrot.slane %v5848, 5
        %v6267 = vsel %vm6200, %v6264, %v6266
        %v6268 = vrot.slane %v5849, 5
        %v6269 = vsel %vm6200, %v6266, %v6268
        %v6270 = vrot.slane %v5850, 5
        %v6271 = vsel %vm6200, %v6268, %v6270
        %v6272 = vrot.slane %v5851, 5
        %v6273 = vsel %vm6200, %v6270, %v6272
        %v6274 = vrot.slane %v5852, 5
        %v6275 = vsel %vm6200, %v6272, %v6274
        %v6276 = vrot.slane %v5853, 5
        %v6277 = vsel %vm6200, %v6274, %v6276
        %v6278 = vrot.slane %v5854, 5
        %v6279 = vsel %vm6200, %v6276, %v6278
        %v6280 = vrot.slane %v5855, 5
        %v6281 = vsel %vm6200, %v6278, %v6280
        %v6282 = vrot.slane %v5856, 5
        %v6283 = vsel %vm6200, %v6280, %v6282
        %v6284 = vrot.slane %v5857, 5
        %v6285 = vsel %vm6200, %v6282, %v6284
        %v6286 = vrot.slane %v5858, 5
        %v6287 = vsel %vm6200, %v6284, %v6286
        %v6288 = vrot.slane %v5859, 5
        %v6289 = vsel %vm6200, %v6286, %v6288
        %v6290 = vrot.slane %v5860, 5
        %v6291 = vsel %vm6200, %v6288, %v6290
        %v6292 = vrot.slane %v5861, 5
        %v6293 = vsel %vm6200, %v6290, %v6292
        %v6294 = vrot.slane %v5862, 5
        %v6295 = vsel %vm6200, %v6292, %v6294
        %v6344 = vsel %vm6200, %v5815, %v6201
        %vm6345 = vcmp.eq.s32.totalorder %v3847, 0
        %vm6346 = vcmp.eq.s32.totalorder %v3876, 0
        %vm6347 = vcmp.eq.s32.totalorder %v3905, 0
        %vm6348 = vcmp.eq.s32.totalorder %v3934, 0
        %vm6349 = vcmp.eq.s32.totalorder %v3963, 0
        %vm6350 = vcmp.eq.s32.totalorder %v3992, 0
        %vm6351 = vcmp.eq.s32.totalorder %v4021, 0
        %vm6352 = vcmp.eq.s32.totalorder %v4050, 0
        %vm6353 = vcmp.eq.s32.totalorder %v4079, 0
        %vm6354 = vcmp.eq.s32.totalorder %v4108, 0
        %vm6355 = vcmp.eq.s32.totalorder %v4137, 0
        %vm6356 = vcmp.eq.s32.totalorder %v4166, 0
        %vm6357 = vcmp.eq.s32.totalorder %v4195, 0
        %vm6358 = vcmp.eq.s32.totalorder %v4224, 0
        %vm6359 = vcmp.eq.s32.totalorder %v4253, 0
        %vm6360 = vcmp.eq.s32.totalorder %v4282, 0
        %vm6361 = vcmp.eq.s32.totalorder %v4311, 0
        %vm6362 = vcmp.eq.s32.totalorder %v4340, 0
        %vm6363 = vcmp.eq.s32.totalorder %v4369, 0
        %vm6364 = vcmp.eq.s32.totalorder %v4398, 0
        %vm6365 = vcmp.eq.s32.totalorder %v4427, 0
        %vm6366 = vcmp.eq.s32.totalorder %v4456, 0
        %vm6367 = vcmp.eq.s32.totalorder %v4485, 0
        %vm6368 = vcmp.eq.s32.totalorder %v4514, 0
        %vm6369 = vcmp.eq.s32.totalorder %v4543, 0
        %vm6370 = vcmp.eq.s32.totalorder %v4572, 0
        %vm6371 = vcmp.eq.s32.totalorder %v4601, 0
        %vm6372 = vcmp.eq.s32.totalorder %v4630, 0
        %vm6373 = vcmp.eq.s32.totalorder %v4659, 0
        %vm6374 = vcmp.eq.s32.totalorder %v4688, 0
        %vm6375 = vcmp.eq.s32.totalorder %v4717, 0
        %vm6376 = vcmp.eq.s32.totalorder %v4746, 0
        %vm6377 = vcmp.eq.s32.totalorder %v4775, 0
        %vm6378 = vcmp.eq.s32.totalorder %v4804, 0
        %vm6379 = vcmp.eq.s32.totalorder %v4833, 0
        %vm6380 = vcmp.eq.s32.totalorder %v4862, 0
        %vm6381 = vcmp.eq.s32.totalorder %v4891, 0
        %vm6382 = vcmp.eq.s32.totalorder %v4920, 0
        %vm6383 = vcmp.eq.s32.totalorder %v4949, 0
        %vm6384 = vcmp.eq.s32.totalorder %v4978, 0
        %vm6385 = vcmp.eq.s32.totalorder %v5007, 0
        %vm6386 = vcmp.eq.s32.totalorder %v5036, 0
        %vm6387 = vcmp.eq.s32.totalorder %v5065, 0
        %vm6388 = vcmp.eq.s32.totalorder %v5094, 0
        %vm6389 = vcmp.eq.s32.totalorder %v5123, 0
        %vm6390 = vcmp.eq.s32.totalorder %v5152, 0
        %vm6391 = vcmp.eq.s32.totalorder %v5181, 0
        %vm6392 = vcmp.eq.s32.totalorder %v5210, 0
        %vm6393 = vcmp.eq.s32.totalorder %v3847, 17
        %vm6394 = vcmp.eq.s32.totalorder %v3876, 17
        %vm6395 = vcmp.eq.s32.totalorder %v3905, 17
        %vm6396 = vcmp.eq.s32.totalorder %v3934, 17
        %vm6397 = vcmp.eq.s32.totalorder %v3963, 17
        %vm6398 = vcmp.eq.s32.totalorder %v3992, 17
        %vm6399 = vcmp.eq.s32.totalorder %v4021, 17
        %vm6400 = vcmp.eq.s32.totalorder %v4050, 17
        %vm6401 = vcmp.eq.s32.totalorder %v4079, 17
        %vm6402 = vcmp.eq.s32.totalorder %v4108, 17
        %vm6403 = vcmp.eq.s32.totalorder %v4137, 17
        %vm6404 = vcmp.eq.s32.totalorder %v4166, 17
        %vm6405 = vcmp.eq.s32.totalorder %v4195, 17
        %vm6406 = vcmp.eq.s32.totalorder %v4224, 17
        %vm6407 = vcmp.eq.s32.totalorder %v4253, 17
        %vm6408 = vcmp.eq.s32.totalorder %v4282, 17
        %vm6409 = vcmp.eq.s32.totalorder %v4311, 17
        %vm6410 = vcmp.eq.s32.totalorder %v4340, 17
        %vm6411 = vcmp.eq.s32.totalorder %v4369, 17
        %vm6412 = vcmp.eq.s32.totalorder %v4398, 17
        %vm6413 = vcmp.eq.s32.totalorder %v4427, 17
        %vm6414 = vcmp.eq.s32.totalorder %v4456, 17
        %vm6415 = vcmp.eq.s32.totalorder %v4485, 17
        %vm6416 = vcmp.eq.s32.totalorder %v4514, 17
        %vm6417 = vcmp.eq.s32.totalorder %v4543, 17
        %vm6418 = vcmp.eq.s32.totalorder %v4572, 17
        %vm6419 = vcmp.eq.s32.totalorder %v4601, 17
        %vm6420 = vcmp.eq.s32.totalorder %v4630, 17
        %vm6421 = vcmp.eq.s32.totalorder %v4659, 17
        %vm6422 = vcmp.eq.s32.totalorder %v4688, 17
        %vm6423 = vcmp.eq.s32.totalorder %v4717, 17
        %vm6424 = vcmp.eq.s32.totalorder %v4746, 17
        %vm6425 = vcmp.eq.s32.totalorder %v4775, 17
        %vm6426 = vcmp.eq.s32.totalorder %v4804, 17
        %vm6427 = vcmp.eq.s32.totalorder %v4833, 17
        %vm6428 = vcmp.eq.s32.totalorder %v4862, 17
        %vm6429 = vcmp.eq.s32.totalorder %v4891, 17
        %vm6430 = vcmp.eq.s32.totalorder %v4920, 17
        %vm6431 = vcmp.eq.s32.totalorder %v4949, 17
        %vm6432 = vcmp.eq.s32.totalorder %v4978, 17
        %vm6433 = vcmp.eq.s32.totalorder %v5007, 17
        %vm6434 = vcmp.eq.s32.totalorder %v5036, 17
        %vm6435 = vcmp.eq.s32.totalorder %v5065, 17
        %vm6436 = vcmp.eq.s32.totalorder %v5094, 17
        %vm6437 = vcmp.eq.s32.totalorder %v5123, 17
        %vm6438 = vcmp.eq.s32.totalorder %v5152, 17
        %vm6439 = vcmp.eq.s32.totalorder %v5181, 17
        %vm6440 = vcmp.eq.s32.totalorder %v5210, 17
        %v6441 = vsel %vm6393, 1, 0
        %v6442 = vsel %vm6394, 1, 0
        %v6443 = vsel %vm6395, 1, 0
        %v6444 = vsel %vm6396, 1, 0
        %v6445 = vsel %vm6397, 1, 0
        %v6446 = vsel %vm6398, 1, 0
        %v6447 = vsel %vm6399, 1, 0
        %v6448 = vsel %vm6400, 1, 0
        %v6449 = vsel %vm6401, 1, 0
        %v6450 = vsel %vm6402, 1, 0
        %v6451 = vsel %vm6403, 1, 0
        %v6452 = vsel %vm6404, 1, 0
        %v6453 = vsel %vm6405, 1, 0
        %v6454 = vsel %vm6406, 1, 0
        %v6455 = vsel %vm6407, 1, 0
        %v6456 = vsel %vm6408, 1, 0
        %v6457 = vsel %vm6409, 1, 0
        %v6458 = vsel %vm6410, 1, 0
        %v6459 = vsel %vm6411, 1, 0
        %v6460 = vsel %vm6412, 1, 0
        %v6461 = vsel %vm6413, 1, 0
        %v6462 = vsel %vm6414, 1, 0
        %v6463 = vsel %vm6415, 1, 0
        %v6464 = vsel %vm6416, 1, 0
        %v6465 = vsel %vm6417, 1, 0
        %v6466 = vsel %vm6418, 1, 0
        %v6467 = vsel %vm6419, 1, 0
        %v6468 = vsel %vm6420, 1, 0
        %v6469 = vsel %vm6421, 1, 0
        %v6470 = vsel %vm6422, 1, 0
        %v6471 = vsel %vm6423, 1, 0
        %v6472 = vsel %vm6424, 1, 0
        %v6473 = vsel %vm6425, 1, 0
        %v6474 = vsel %vm6426, 1, 0
        %v6475 = vsel %vm6427, 1, 0
        %v6476 = vsel %vm6428, 1, 0
        %v6477 = vsel %vm6429, 1, 0
        %v6478 = vsel %vm6430, 1, 0
        %v6479 = vsel %vm6431, 1, 0
        %v6480 = vsel %vm6432, 1, 0
        %v6481 = vsel %vm6433, 1, 0
        %v6482 = vsel %vm6434, 1, 0
        %v6483 = vsel %vm6435, 1, 0
        %v6484 = vsel %vm6436, 1, 0
        %v6485 = vsel %vm6437, 1, 0
        %v6486 = vsel %vm6438, 1, 0
        %v6487 = vsel %vm6439, 1, 0
        %v6488 = vsel %vm6440, 1, 0
        %vm6489 = vcmp.eq.s32.totalorder %v6441, 1
        %vm6490 = vcmp.eq.s32.totalorder %v6442, 1
        %vm6491 = vcmp.eq.s32.totalorder %v6443, 1
        %vm6492 = vcmp.eq.s32.totalorder %v6444, 1
        %vm6493 = vcmp.eq.s32.totalorder %v6445, 1
        %vm6494 = vcmp.eq.s32.totalorder %v6446, 1
        %vm6495 = vcmp.eq.s32.totalorder %v6447, 1
        %vm6496 = vcmp.eq.s32.totalorder %v6448, 1
        %vm6497 = vcmp.eq.s32.totalorder %v6449, 1
        %vm6498 = vcmp.eq.s32.totalorder %v6450, 1
        %vm6499 = vcmp.eq.s32.totalorder %v6451, 1
        %vm6500 = vcmp.eq.s32.totalorder %v6452, 1
        %vm6501 = vcmp.eq.s32.totalorder %v6453, 1
        %vm6502 = vcmp.eq.s32.totalorder %v6454, 1
        %vm6503 = vcmp.eq.s32.totalorder %v6455, 1
        %vm6504 = vcmp.eq.s32.totalorder %v6456, 1
        %vm6505 = vcmp.eq.s32.totalorder %v6457, 1
        %vm6506 = vcmp.eq.s32.totalorder %v6458, 1
        %vm6507 = vcmp.eq.s32.totalorder %v6459, 1
        %vm6508 = vcmp.eq.s32.totalorder %v6460, 1
        %vm6509 = vcmp.eq.s32.totalorder %v6461, 1
        %vm6510 = vcmp.eq.s32.totalorder %v6462, 1
        %vm6511 = vcmp.eq.s32.totalorder %v6463, 1
        %vm6512 = vcmp.eq.s32.totalorder %v6464, 1
        %vm6513 = vcmp.eq.s32.totalorder %v6465, 1
        %vm6514 = vcmp.eq.s32.totalorder %v6466, 1
        %vm6515 = vcmp.eq.s32.totalorder %v6467, 1
        %vm6516 = vcmp.eq.s32.totalorder %v6468, 1
        %vm6517 = vcmp.eq.s32.totalorder %v6469, 1
        %vm6518 = vcmp.eq.s32.totalorder %v6470, 1
        %vm6519 = vcmp.eq.s32.totalorder %v6471, 1
        %vm6520 = vcmp.eq.s32.totalorder %v6472, 1
        %vm6521 = vcmp.eq.s32.totalorder %v6473, 1
        %vm6522 = vcmp.eq.s32.totalorder %v6474, 1
        %vm6523 = vcmp.eq.s32.totalorder %v6475, 1
        %vm6524 = vcmp.eq.s32.totalorder %v6476, 1
        %vm6525 = vcmp.eq.s32.totalorder %v6477, 1
        %vm6526 = vcmp.eq.s32.totalorder %v6478, 1
        %vm6527 = vcmp.eq.s32.totalorder %v6479, 1
        %vm6528 = vcmp.eq.s32.totalorder %v6480, 1
        %vm6529 = vcmp.eq.s32.totalorder %v6481, 1
        %vm6530 = vcmp.eq.s32.totalorder %v6482, 1
        %vm6531 = vcmp.eq.s32.totalorder %v6483, 1
        %vm6532 = vcmp.eq.s32.totalorder %v6484, 1
        %vm6533 = vcmp.eq.s32.totalorder %v6485, 1
        %vm6534 = vcmp.eq.s32.totalorder %v6486, 1
        %vm6535 = vcmp.eq.s32.totalorder %v6487, 1
        %vm6536 = vcmp.eq.s32.totalorder %v6488, 1
        %v6537 = vsel %vm6489, %v6344, %v6055
        %v6538 = vsel %vm6490, %v6203, %v5914
        %v6539 = vsel %vm6491, %v6205, %v5916
        %v6540 = vsel %vm6492, %v6207, %v5918
        %v6541 = vsel %vm6493, %v6209, %v5920
        %v6542 = vsel %vm6494, %v6211, %v5922
        %v6543 = vsel %vm6495, %v6213, %v5924
        %v6544 = vsel %vm6496, %v6215, %v5926
        %v6545 = vsel %vm6497, %v6217, %v5928
        %v6546 = vsel %vm6498, %v6219, %v5930
        %v6547 = vsel %vm6499, %v6221, %v5932
        %v6548 = vsel %vm6500, %v6223, %v5934
        %v6549 = vsel %vm6501, %v6225, %v5936
        %v6550 = vsel %vm6502, %v6227, %v5938
        %v6551 = vsel %vm6503, %v6229, %v5940
        %v6552 = vsel %vm6504, %v6231, %v5942
        %v6553 = vsel %vm6505, %v6233, %v5944
        %v6554 = vsel %vm6506, %v6235, %v5946
        %v6555 = vsel %vm6507, %v6237, %v5948
        %v6556 = vsel %vm6508, %v6239, %v5950
        %v6557 = vsel %vm6509, %v6241, %v5952
        %v6558 = vsel %vm6510, %v6243, %v5954
        %v6559 = vsel %vm6511, %v6245, %v5956
        %v6560 = vsel %vm6512, %v6247, %v5958
        %v6561 = vsel %vm6513, %v6249, %v5960
        %v6562 = vsel %vm6514, %v6251, %v5962
        %v6563 = vsel %vm6515, %v6253, %v5964
        %v6564 = vsel %vm6516, %v6255, %v5966
        %v6565 = vsel %vm6517, %v6257, %v5968
        %v6566 = vsel %vm6518, %v6259, %v5970
        %v6567 = vsel %vm6519, %v6261, %v5972
        %v6568 = vsel %vm6520, %v6263, %v5974
        %v6569 = vsel %vm6521, %v6265, %v5976
        %v6570 = vsel %vm6522, %v6267, %v5978
        %v6571 = vsel %vm6523, %v6269, %v5980
        %v6572 = vsel %vm6524, %v6271, %v5982
        %v6573 = vsel %vm6525, %v6273, %v5984
        %v6574 = vsel %vm6526, %v6275, %v5986
        %v6575 = vsel %vm6527, %v6277, %v5988
        %v6576 = vsel %vm6528, %v6279, %v5990
        %v6577 = vsel %vm6529, %v6281, %v5992
        %v6578 = vsel %vm6530, %v6283, %v5994
        %v6579 = vsel %vm6531, %v6285, %v5996
        %v6580 = vsel %vm6532, %v6287, %v5998
        %v6581 = vsel %vm6533, %v6289, %v6000
        %v6582 = vsel %vm6534, %v6291, %v6002
        %v6583 = vsel %vm6535, %v6293, %v6004
        %v6584 = vsel %vm6536, %v6295, %v6006
        %v6585 = vsel %vm6345, 1, 0
        %v6586 = vsel %vm6346, 1, 0
        %v6587 = vsel %vm6347, 1, 0
        %v6588 = vsel %vm6348, 1, 0
        %v6589 = vsel %vm6349, 1, 0
        %v6590 = vsel %vm6350, 1, 0
        %v6591 = vsel %vm6351, 1, 0
        %v6592 = vsel %vm6352, 1, 0
        %v6593 = vsel %vm6353, 1, 0
        %v6594 = vsel %vm6354, 1, 0
        %v6595 = vsel %vm6355, 1, 0
        %v6596 = vsel %vm6356, 1, 0
        %v6597 = vsel %vm6357, 1, 0
        %v6598 = vsel %vm6358, 1, 0
        %v6599 = vsel %vm6359, 1, 0
        %v6600 = vsel %vm6360, 1, 0
        %v6601 = vsel %vm6361, 1, 0
        %v6602 = vsel %vm6362, 1, 0
        %v6603 = vsel %vm6363, 1, 0
        %v6604 = vsel %vm6364, 1, 0
        %v6605 = vsel %vm6365, 1, 0
        %v6606 = vsel %vm6366, 1, 0
        %v6607 = vsel %vm6367, 1, 0
        %v6608 = vsel %vm6368, 1, 0
        %v6609 = vsel %vm6369, 1, 0
        %v6610 = vsel %vm6370, 1, 0
        %v6611 = vsel %vm6371, 1, 0
        %v6612 = vsel %vm6372, 1, 0
        %v6613 = vsel %vm6373, 1, 0
        %v6614 = vsel %vm6374, 1, 0
        %v6615 = vsel %vm6375, 1, 0
        %v6616 = vsel %vm6376, 1, 0
        %v6617 = vsel %vm6377, 1, 0
        %v6618 = vsel %vm6378, 1, 0
        %v6619 = vsel %vm6379, 1, 0
        %v6620 = vsel %vm6380, 1, 0
        %v6621 = vsel %vm6381, 1, 0
        %v6622 = vsel %vm6382, 1, 0
        %v6623 = vsel %vm6383, 1, 0
        %v6624 = vsel %vm6384, 1, 0
        %v6625 = vsel %vm6385, 1, 0
        %v6626 = vsel %vm6386, 1, 0
        %v6627 = vsel %vm6387, 1, 0
        %v6628 = vsel %vm6388, 1, 0
        %v6629 = vsel %vm6389, 1, 0
        %v6630 = vsel %vm6390, 1, 0
        %v6631 = vsel %vm6391, 1, 0
        %v6632 = vsel %vm6392, 1, 0
        %vm6633 = vcmp.eq.s32.totalorder %v6585, 1
        %vm6634 = vcmp.eq.s32.totalorder %v6586, 1
        %vm6635 = vcmp.eq.s32.totalorder %v6587, 1
        %vm6636 = vcmp.eq.s32.totalorder %v6588, 1
        %vm6637 = vcmp.eq.s32.totalorder %v6589, 1
        %vm6638 = vcmp.eq.s32.totalorder %v6590, 1
        %vm6639 = vcmp.eq.s32.totalorder %v6591, 1
        %vm6640 = vcmp.eq.s32.totalorder %v6592, 1
        %vm6641 = vcmp.eq.s32.totalorder %v6593, 1
        %vm6642 = vcmp.eq.s32.totalorder %v6594, 1
        %vm6643 = vcmp.eq.s32.totalorder %v6595, 1
        %vm6644 = vcmp.eq.s32.totalorder %v6596, 1
        %vm6645 = vcmp.eq.s32.totalorder %v6597, 1
        %vm6646 = vcmp.eq.s32.totalorder %v6598, 1
        %vm6647 = vcmp.eq.s32.totalorder %v6599, 1
        %vm6648 = vcmp.eq.s32.totalorder %v6600, 1
        %vm6649 = vcmp.eq.s32.totalorder %v6601, 1
        %vm6650 = vcmp.eq.s32.totalorder %v6602, 1
        %vm6651 = vcmp.eq.s32.totalorder %v6603, 1
        %vm6652 = vcmp.eq.s32.totalorder %v6604, 1
        %vm6653 = vcmp.eq.s32.totalorder %v6605, 1
        %vm6654 = vcmp.eq.s32.totalorder %v6606, 1
        %vm6655 = vcmp.eq.s32.totalorder %v6607, 1
        %vm6656 = vcmp.eq.s32.totalorder %v6608, 1
        %vm6657 = vcmp.eq.s32.totalorder %v6609, 1
        %vm6658 = vcmp.eq.s32.totalorder %v6610, 1
        %vm6659 = vcmp.eq.s32.totalorder %v6611, 1
        %vm6660 = vcmp.eq.s32.totalorder %v6612, 1
        %vm6661 = vcmp.eq.s32.totalorder %v6613, 1
        %vm6662 = vcmp.eq.s32.totalorder %v6614, 1
        %vm6663 = vcmp.eq.s32.totalorder %v6615, 1
        %vm6664 = vcmp.eq.s32.totalorder %v6616, 1
        %vm6665 = vcmp.eq.s32.totalorder %v6617, 1
        %vm6666 = vcmp.eq.s32.totalorder %v6618, 1
        %vm6667 = vcmp.eq.s32.totalorder %v6619, 1
        %vm6668 = vcmp.eq.s32.totalorder %v6620, 1
        %vm6669 = vcmp.eq.s32.totalorder %v6621, 1
        %vm6670 = vcmp.eq.s32.totalorder %v6622, 1
        %vm6671 = vcmp.eq.s32.totalorder %v6623, 1
        %vm6672 = vcmp.eq.s32.totalorder %v6624, 1
        %vm6673 = vcmp.eq.s32.totalorder %v6625, 1
        %vm6674 = vcmp.eq.s32.totalorder %v6626, 1
        %vm6675 = vcmp.eq.s32.totalorder %v6627, 1
        %vm6676 = vcmp.eq.s32.totalorder %v6628, 1
        %vm6677 = vcmp.eq.s32.totalorder %v6629, 1
        %vm6678 = vcmp.eq.s32.totalorder %v6630, 1
        %vm6679 = vcmp.eq.s32.totalorder %v6631, 1
        %vm6680 = vcmp.eq.s32.totalorder %v6632, 1
        %v6681 = vsel %vm6633, %v6058, %v6537
        %v6682 = vsel %vm6634, %v6060, %v6538
        %v6683 = vsel %vm6635, %v6062, %v6539
        %v6684 = vsel %vm6636, %v6064, %v6540
        %v6685 = vsel %vm6637, %v6066, %v6541
        %v6686 = vsel %vm6638, %v6068, %v6542
        %v6687 = vsel %vm6639, %v6070, %v6543
        %v6688 = vsel %vm6640, %v6072, %v6544
        %v6689 = vsel %vm6641, %v6074, %v6545
        %v6690 = vsel %vm6642, %v6076, %v6546
        %v6691 = vsel %vm6643, %v6078, %v6547
        %v6692 = vsel %vm6644, %v6080, %v6548
        %v6693 = vsel %vm6645, %v6082, %v6549
        %v6694 = vsel %vm6646, %v6084, %v6550
        %v6695 = vsel %vm6647, %v6086, %v6551
        %v6696 = vsel %vm6648, %v6088, %v6552
        %v6697 = vsel %vm6649, %v6090, %v6553
        %v6698 = vsel %vm6650, %v6092, %v6554
        %v6699 = vsel %vm6651, %v6094, %v6555
        %v6700 = vsel %vm6652, %v6096, %v6556
        %v6701 = vsel %vm6653, %v6098, %v6557
        %v6702 = vsel %vm6654, %v6100, %v6558
        %v6703 = vsel %vm6655, %v6102, %v6559
        %v6704 = vsel %vm6656, %v6104, %v6560
        %v6705 = vsel %vm6657, %v6106, %v6561
        %v6706 = vsel %vm6658, %v6108, %v6562
        %v6707 = vsel %vm6659, %v6110, %v6563
        %v6708 = vsel %vm6660, %v6112, %v6564
        %v6709 = vsel %vm6661, %v6114, %v6565
        %v6710 = vsel %vm6662, %v6116, %v6566
        %v6711 = vsel %vm6663, %v6118, %v6567
        %v6712 = vsel %vm6664, %v6120, %v6568
        %v6713 = vsel %vm6665, %v6122, %v6569
        %v6714 = vsel %vm6666, %v6124, %v6570
        %v6715 = vsel %vm6667, %v6126, %v6571
        %v6716 = vsel %vm6668, %v6128, %v6572
        %v6717 = vsel %vm6669, %v6130, %v6573
        %v6718 = vsel %vm6670, %v6132, %v6574
        %v6719 = vsel %vm6671, %v6134, %v6575
        %v6720 = vsel %vm6672, %v6136, %v6576
        %v6721 = vsel %vm6673, %v6138, %v6577
        %v6722 = vsel %vm6674, %v6140, %v6578
        %v6723 = vsel %vm6675, %v6142, %v6579
        %v6724 = vsel %vm6676, %v6144, %v6580
        %v6725 = vsel %vm6677, %v6146, %v6581
        %v6726 = vsel %vm6678, %v6148, %v6582
        %v6727 = vsel %vm6679, %v6150, %v6583
        %v6728 = vsel %vm6680, %v6199, %v6584
        %s6729 = scalar_lea.vmem [#allocation3], 24
        %6730 = vst [vmem:[%s6729] sm:$0xff] %v6681
        %6731 = vst [vmem:[%s6729 + $0x8] sm:$0xff] %v6682
        %6732 = vst [vmem:[%s6729 + $0x10] sm:$0xff] %v6683
        %6733 = vst [vmem:[%s6729 + $0x18] sm:$0xff] %v6684
        %6734 = vst [vmem:[%s6729 + $0x20] sm:$0xff] %v6685
        %6735 = vst [vmem:[%s6729 + $0x28] sm:$0xff] %v6686
        %6736 = vst [vmem:[%s6729 + $0x30] sm:$0xff] %v6687
        %6737 = vst [vmem:[%s6729 + $0x38] sm:$0xff] %v6688
        %6738 = vst [vmem:[%s6729 + $0x40] sm:$0xff] %v6689
        %6739 = vst [vmem:[%s6729 + $0x48] sm:$0xff] %v6690
        %6740 = vst [vmem:[%s6729 + $0x50] sm:$0xff] %v6691
        %6741 = vst [vmem:[%s6729 + $0x58] sm:$0xff] %v6692
        %6742 = vst [vmem:[%s6729 + $0x60] sm:$0xff] %v6693
        %6743 = vst [vmem:[%s6729 + $0x68] sm:$0xff] %v6694
        %6744 = vst [vmem:[%s6729 + $0x70] sm:$0xff] %v6695
        %6745 = vst [vmem:[%s6729 + $0x78] sm:$0xff] %v6696
        %6746 = vst [vmem:[%s6729 + $0x80] sm:$0xff] %v6697
        %6747 = vst [vmem:[%s6729 + $0x88] sm:$0xff] %v6698
        %6748 = vst [vmem:[%s6729 + $0x90] sm:$0xff] %v6699
        %6749 = vst [vmem:[%s6729 + $0x98] sm:$0xff] %v6700
        %6750 = vst [vmem:[%s6729 + $0xa0] sm:$0xff] %v6701
        %6751 = vst [vmem:[%s6729 + $0xa8] sm:$0xff] %v6702
        %6752 = vst [vmem:[%s6729 + $0xb0] sm:$0xff] %v6703
        %6753 = vst [vmem:[%s6729 + $0xb8] sm:$0xff] %v6704
        %6754 = vst [vmem:[%s6729 + $0xc0] sm:$0xff] %v6705
        %6755 = vst [vmem:[%s6729 + $0xc8] sm:$0xff] %v6706
        %6756 = vst [vmem:[%s6729 + $0xd0] sm:$0xff] %v6707
        %6757 = vst [vmem:[%s6729 + $0xd8] sm:$0xff] %v6708
        %6758 = vst [vmem:[%s6729 + $0xe0] sm:$0xff] %v6709
        %6759 = vst [vmem:[%s6729 + $0xe8] sm:$0xff] %v6710
        %6760 = vst [vmem:[%s6729 + $0xf0] sm:$0xff] %v6711
        %6761 = vst [vmem:[%s6729 + $0xf8] sm:$0xff] %v6712
        %6762 = vst [vmem:[%s6729 + $0x100] sm:$0xff] %v6713
        %6763 = vst [vmem:[%s6729 + $0x108] sm:$0xff] %v6714
        %6764 = vst [vmem:[%s6729 + $0x110] sm:$0xff] %v6715
        %6765 = vst [vmem:[%s6729 + $0x118] sm:$0xff] %v6716
        %6766 = vst [vmem:[%s6729 + $0x120] sm:$0xff] %v6717
        %6767 = vst [vmem:[%s6729 + $0x128] sm:$0xff] %v6718
        %6768 = vst [vmem:[%s6729 + $0x130] sm:$0xff] %v6719
        %6769 = vst [vmem:[%s6729 + $0x138] sm:$0xff] %v6720
        %6770 = vst [vmem:[%s6729 + $0x140] sm:$0xff] %v6721
        %6771 = vst [vmem:[%s6729 + $0x148] sm:$0xff] %v6722
        %6772 = vst [vmem:[%s6729 + $0x150] sm:$0xff] %v6723
        %6773 = vst [vmem:[%s6729 + $0x158] sm:$0xff] %v6724
        %6774 = vst [vmem:[%s6729 + $0x160] sm:$0xff] %v6725
        %6775 = vst [vmem:[%s6729 + $0x168] sm:$0xff] %v6726
        %6776 = vst [vmem:[%s6729 + $0x170] sm:$0xff] %v6727
        %6777 = vst [vmem:[%s6729 + $0x178] sm:$0xff] %v6728
        %v6778 = vld [vmem:[#allocation3 + $0x30] sm:$0xff]
        %v6779 = vld [vmem:[#allocation3 + $0x38] sm:$0xff]
        %v6780 = vld [vmem:[#allocation3 + $0x40] sm:$0xff]
        %6781 = vst [vmem:[#allocation3] sm:$0xff] %v6778
        %6782 = vst [vmem:[#allocation3 + $0x8] sm:$0xff] %v6779
        %6783 = vst [vmem:[#allocation3 + $0x10] sm:$0xff] %v6780
        %v6784 = vld [vmem:[#allocation3 + $0x168] sm:$0xff]
        %v6785 = vld [vmem:[#allocation3 + $0x170] sm:$0xff]
        %v6786 = vld [vmem:[#allocation3 + $0x178] sm:$0xff]
        %6787 = vst [vmem:[#allocation3 + $0x198] sm:$0xff] %v6784
        %6788 = vst [vmem:[#allocation3 + $0x1a0] sm:$0xff] %v6785
        %6789 = vst [vmem:[#allocation3 + $0x1a8] sm:$0xff] %v6786
        %v6790 = vld [vmem:[#allocation3] sm:$0xff]
        %v6791 = vld [vmem:[#allocation3 + $0x8] sm:$0xff]
        %v6792 = vld [vmem:[#allocation3 + $0x10] sm:$0xff]
        %v6793 = vld [vmem:[#allocation3 + $0x18] sm:$0xff]
        %v6794 = vld [vmem:[#allocation3 + $0x20] sm:$0xff]
        %v6795 = vld [vmem:[#allocation3 + $0x28] sm:$0xff]
        %v6796 = vld [vmem:[#allocation3 + $0x30] sm:$0xff]
        %v6797 = vld [vmem:[#allocation3 + $0x38] sm:$0xff]
        %v6798 = vld [vmem:[#allocation3 + $0x40] sm:$0xff]
        %v6799 = vld [vmem:[#allocation3 + $0x48] sm:$0xff]
        %v6800 = vld [vmem:[#allocation3 + $0x50] sm:$0xff]
        %v6801 = vld [vmem:[#allocation3 + $0x58] sm:$0xff]
        %v6802 = vld [vmem:[#allocation3 + $0x60] sm:$0xff]
        %v6803 = vld [vmem:[#allocation3 + $0x68] sm:$0xff]
        %v6804 = vld [vmem:[#allocation3 + $0x70] sm:$0xff]
        %v6805 = vld [vmem:[#allocation3 + $0x78] sm:$0xff]
        %v6806 = vld [vmem:[#allocation3 + $0x80] sm:$0xff]
        %v6807 = vld [vmem:[#allocation3 + $0x88] sm:$0xff]
        %v6808 = vld [vmem:[#allocation3 + $0x90] sm:$0xff]
        %v6809 = vld [vmem:[#allocation3 + $0x98] sm:$0xff]
        %v6810 = vld [vmem:[#allocation3 + $0xa0] sm:$0xff]
        %v6811 = vld [vmem:[#allocation3 + $0xa8] sm:$0xff]
        %v6812 = vld [vmem:[#allocation3 + $0xb0] sm:$0xff]
        %v6813 = vld [vmem:[#allocation3 + $0xb8] sm:$0xff]
        %v6814 = vld [vmem:[#allocation3 + $0xc0] sm:$0xff]
        %v6815 = vld [vmem:[#allocation3 + $0xc8] sm:$0xff]
        %v6816 = vld [vmem:[#allocation3 + $0xd0] sm:$0xff]
        %v6817 = vld [vmem:[#allocation3 + $0xd8] sm:$0xff]
        %v6818 = vld [vmem:[#allocation3 + $0xe0] sm:$0xff]
        %v6819 = vld [vmem:[#allocation3 + $0xe8] sm:$0xff]
        %v6820 = vld [vmem:[#allocation3 + $0xf0] sm:$0xff]
        %v6821 = vld [vmem:[#allocation3 + $0xf8] sm:$0xff]
        %v6822 = vld [vmem:[#allocation3 + $0x100] sm:$0xff]
        %v6823 = vld [vmem:[#allocation3 + $0x108] sm:$0xff]
        %v6824 = vld [vmem:[#allocation3 + $0x110] sm:$0xff]
        %v6825 = vld [vmem:[#allocation3 + $0x118] sm:$0xff]
        %v6826 = vld [vmem:[#allocation3 + $0x120] sm:$0xff]
        %v6827 = vld [vmem:[#allocation3 + $0x128] sm:$0xff]
        %v6828 = vld [vmem:[#allocation3 + $0x130] sm:$0xff]
        %v6829 = vld [vmem:[#allocation3 + $0x138] sm:$0xff]
        %v6830 = vld [vmem:[#allocation3 + $0x140] sm:$0xff]
        %v6831 = vld [vmem:[#allocation3 + $0x148] sm:$0xff]
        %v6832 = vld [vmem:[#allocation3 + $0x150] sm:$0xff]
        %v6833 = vld [vmem:[#allocation3 + $0x158] sm:$0xff]
        %v6834 = vld [vmem:[#allocation3 + $0x160] sm:$0xff]
        %v6835 = vld [vmem:[#allocation3 + $0x168] sm:$0xff]
        %v6836 = vld [vmem:[#allocation3 + $0x170] sm:$0xff]
        %v6837 = vld [vmem:[#allocation3 + $0x178] sm:$0xff]
        %v6838 = vld [vmem:[#allocation3 + $0x180] sm:$0xff]
        %v6839 = vpack.c.bf16 %v6791, %v6790
        %v6840 = vpack.c.bf16 %v6793, %v6792
        %v6841 = vpack.c.bf16 %v6795, %v6794
        %v6842 = vpack.c.bf16 %v6797, %v6796
        %v6843 = vpack.c.bf16 %v6799, %v6798
        %v6844 = vpack.c.bf16 %v6801, %v6800
        %v6845 = vpack.c.bf16 %v6803, %v6802
        %v6846 = vpack.c.bf16 %v6805, %v6804
        %v6847 = vpack.c.bf16 %v6807, %v6806
        %v6848 = vpack.c.bf16 %v6809, %v6808
        %v6849 = vpack.c.bf16 %v6811, %v6810
        %v6850 = vpack.c.bf16 %v6813, %v6812
        %v6851 = vpack.c.bf16 %v6815, %v6814
        %v6852 = vpack.c.bf16 %v6817, %v6816
        %v6853 = vpack.c.bf16 %v6819, %v6818
        %v6854 = vpack.c.bf16 %v6821, %v6820
        %v6855 = vpack.c.bf16 %v6823, %v6822
        %v6856 = vpack.c.bf16 %v6825, %v6824
        %v6857 = vpack.c.bf16 %v6827, %v6826
        %v6858 = vpack.c.bf16 %v6829, %v6828
        %v6859 = vpack.c.bf16 %v6831, %v6830
        %v6860 = vpack.c.bf16 %v6833, %v6832
        %v6861 = vpack.c.bf16 %v6835, %v6834
        %v6862 = vpack.c.bf16 %v6837, %v6836
        %v6863 = vpack.c.bf16 %v6838, %v6838
        %v6864 = vld [vmem:[#allocation9] sm:$0xff]
        %v6865 = vld [vmem:[#allocation9 + $0x8] sm:$0xf]
        %v6866 = vld [vmem:[#allocation9 + $0xc] sm:$0xff]
        %v6867 = vld [vmem:[#allocation9 + $0x14] sm:$0xf]
        %v6868 = vld [vmem:[#allocation9 + $0x18] sm:$0xff]
        %v6869 = vld [vmem:[#allocation9 + $0x20] sm:$0xf]
        %v6870 = vld [vmem:[#allocation9 + $0x24] sm:$0xff]
        %v6871 = vld [vmem:[#allocation9 + $0x2c] sm:$0xf]
        %v6872 = vld [vmem:[#allocation9 + $0x30] sm:$0xff]
        %v6873 = vld [vmem:[#allocation9 + $0x38] sm:$0xf]
        %v6874 = vld [vmem:[#allocation9 + $0x3c] sm:$0xff]
        %v6875 = vld [vmem:[#allocation9 + $0x44] sm:$0xf]
        %v6876 = vld [vmem:[#allocation9 + $0x48] sm:$0xff]
        %v6877 = vld [vmem:[#allocation9 + $0x50] sm:$0xf]
        %v6878 = vld [vmem:[#allocation9 + $0x54] sm:$0xff]
        %v6879 = vld [vmem:[#allocation9 + $0x5c] sm:$0xf]
        %v6880 = vld [vmem:[#allocation9 + $0x60] sm:$0xff]
        %v6881 = vld [vmem:[#allocation9 + $0x68] sm:$0xf]
        %v6882 = vld [vmem:[#allocation9 + $0x6c] sm:$0xff]
        %v6883 = vld [vmem:[#allocation9 + $0x74] sm:$0xf]
        %v6884 = vld [vmem:[#allocation9 + $0x78] sm:$0xff]
        %v6885 = vld [vmem:[#allocation9 + $0x80] sm:$0xf]
        %v6886 = vld [vmem:[#allocation9 + $0x84] sm:$0xff]
        %v6887 = vld [vmem:[#allocation9 + $0x8c] sm:$0xf]
        %v6888 = vld [vmem:[#allocation9 + $0x90] sm:$0xff]
        %v6889 = vld [vmem:[#allocation9 + $0x98] sm:$0xf]
        %v6890 = vld [vmem:[#allocation9 + $0x9c] sm:$0xff]
        %v6891 = vld [vmem:[#allocation9 + $0xa4] sm:$0xf]
        %v6892 = vld [vmem:[#allocation9 + $0xa8] sm:$0xff]
        %v6893 = vld [vmem:[#allocation9 + $0xb0] sm:$0xf]
        %v6894 = vld [vmem:[#allocation9 + $0xb4] sm:$0xff]
        %v6895 = vld [vmem:[#allocation9 + $0xbc] sm:$0xf]
        %v6928 = vunpack.c.l.b16 %v6864
        %v6929 = vunpack.c.h.b16 %v6864
        %v6930 = vunpack.c.l.b16 %v6865
        %v6931 = vunpack.c.l.b16 %v6866
        %v6932 = vunpack.c.h.b16 %v6866
        %v6933 = vunpack.c.l.b16 %v6867
        %v6934 = vunpack.c.l.b16 %v6868
        %v6935 = vunpack.c.h.b16 %v6868
        %v6936 = vunpack.c.l.b16 %v6869
        %v6937 = vunpack.c.l.b16 %v6870
        %v6938 = vunpack.c.h.b16 %v6870
        %v6939 = vunpack.c.l.b16 %v6871
        %v6940 = vunpack.c.l.b16 %v6872
        %v6941 = vunpack.c.h.b16 %v6872
        %v6942 = vunpack.c.l.b16 %v6873
        %v6943 = vunpack.c.l.b16 %v6874
        %v6944 = vunpack.c.h.b16 %v6874
        %v6945 = vunpack.c.l.b16 %v6875
        %v6946 = vunpack.c.l.b16 %v6876
        %v6947 = vunpack.c.h.b16 %v6876
        %v6948 = vunpack.c.l.b16 %v6877
        %v6949 = vunpack.c.l.b16 %v6878
        %v6950 = vunpack.c.h.b16 %v6878
        %v6951 = vunpack.c.l.b16 %v6879
        %v6952 = vunpack.c.l.b16 %v6880
        %v6953 = vunpack.c.h.b16 %v6880
        %v6954 = vunpack.c.l.b16 %v6881
        %v6955 = vunpack.c.l.b16 %v6882
        %v6956 = vunpack.c.h.b16 %v6882
        %v6957 = vunpack.c.l.b16 %v6883
        %v6958 = vunpack.c.l.b16 %v6884
        %v6959 = vunpack.c.h.b16 %v6884
        %v6960 = vunpack.c.l.b16 %v6885
        %v6961 = vunpack.c.l.b16 %v6886
        %v6962 = vunpack.c.h.b16 %v6886
        %v6963 = vunpack.c.l.b16 %v6887
        %v6964 = vunpack.c.l.b16 %v6888
        %v6965 = vunpack.c.h.b16 %v6888
        %v6966 = vunpack.c.l.b16 %v6889
        %v6967 = vunpack.c.l.b16 %v6890
        %v6968 = vunpack.c.h.b16 %v6890
        %v6969 = vunpack.c.l.b16 %v6891
        %v6970 = vunpack.c.l.b16 %v6892
        %v6971 = vunpack.c.h.b16 %v6892
        %v6972 = vunpack.c.l.b16 %v6893
        %v6973 = vunpack.c.l.b16 %v6894
        %v6974 = vunpack.c.h.b16 %v6894
        %v6975 = vunpack.c.l.b16 %v6895
        %v6976 = vpack.c.b16 %v6931, %v6928
        %v6977 = vpack.c.b16 %v6932, %v6929
        %v6978 = vpack.c.b16 %v6933, %v6930
        %v6979 = vpack.c.b16 %v6937, %v6934
        %v6980 = vpack.c.b16 %v6938, %v6935
        %v6981 = vpack.c.b16 %v6939, %v6936
        %v6982 = vpack.c.b16 %v6943, %v6940
        %v6983 = vpack.c.b16 %v6944, %v6941
        %v6984 = vpack.c.b16 %v6945, %v6942
        %v6985 = vpack.c.b16 %v6949, %v6946
        %v6986 = vpack.c.b16 %v6950, %v6947
        %v6987 = vpack.c.b16 %v6951, %v6948
        %v6988 = vpack.c.b16 %v6955, %v6952
        %v6989 = vpack.c.b16 %v6956, %v6953
        %v6990 = vpack.c.b16 %v6957, %v6954
        %v6991 = vpack.c.b16 %v6961, %v6958
        %v6992 = vpack.c.b16 %v6962, %v6959
        %v6993 = vpack.c.b16 %v6963, %v6960
        %v6994 = vpack.c.b16 %v6967, %v6964
        %v6995 = vpack.c.b16 %v6968, %v6965
        %v6996 = vpack.c.b16 %v6969, %v6966
        %v6997 = vpack.c.b16 %v6973, %v6970
        %v6998 = vpack.c.b16 %v6974, %v6971
        %v6999 = vpack.c.b16 %v6975, %v6972
        %7024 = vmatpush.bf16.msra.mxu0 %v6997
        %7025 = vmatpush.bf16.msra.mxu0 %v6994
        %7026 = vmatpush.bf16.msra.mxu0 %v6991
        %7027 = vmatpush.bf16.msra.mxu0 %v6988
        %7028 = vmatpush.bf16.msra.mxu0 %v6985
        %7029 = vmatpush.bf16.msra.mxu0 %v6982
        %7030 = vmatpush.bf16.msra.mxu0 %v6979
        %7031 = vmatpush.bf16.msra.mxu0 %v6976
        %7032 = vmatmul.bf16.gmra.mxu0 %v6839
        %v7033 = vpop.f32.mrf.mxu0
        %v7034 = vadd.f32 0.0, %v7033
        %v7035 = vpop.f32.mrf.mxu0
        %v7036 = vadd.f32 0.0, %v7035
        %7037 = vmatmul.bf16.gmra.mxu0 %v6840
        %v7038 = vpop.f32.mrf.mxu0
        %v7039 = vadd.f32 0.0, %v7038
        %v7040 = vpop.f32.mrf.mxu0
        %v7041 = vadd.f32 0.0, %v7040
        %7042 = vmatmul.bf16.gmra.mxu0 %v6841
        %v7043 = vpop.f32.mrf.mxu0
        %v7044 = vadd.f32 0.0, %v7043
        %v7045 = vpop.f32.mrf.mxu0
        %v7046 = vadd.f32 0.0, %v7045
        %7047 = vmatmul.bf16.gmra.mxu0 %v6842
        %v7048 = vpop.f32.mrf.mxu0
        %v7049 = vadd.f32 0.0, %v7048
        %v7050 = vpop.f32.mrf.mxu0
        %v7051 = vadd.f32 0.0, %v7050
        %7052 = vmatmul.bf16.gmra.mxu0 %v6843
        %v7053 = vpop.f32.mrf.mxu0
        %v7054 = vadd.f32 0.0, %v7053
        %v7055 = vpop.f32.mrf.mxu0
        %v7056 = vadd.f32 0.0, %v7055
        %7057 = vmatmul.bf16.gmra.mxu0 %v6844
        %v7058 = vpop.f32.mrf.mxu0
        %v7059 = vadd.f32 0.0, %v7058
        %v7060 = vpop.f32.mrf.mxu0
        %v7061 = vadd.f32 0.0, %v7060
        %7062 = vmatmul.bf16.gmra.mxu0 %v6845
        %v7063 = vpop.f32.mrf.mxu0
        %v7064 = vadd.f32 0.0, %v7063
        %v7065 = vpop.f32.mrf.mxu0
        %v7066 = vadd.f32 0.0, %v7065
        %7067 = vmatmul.bf16.gmra.mxu0 %v6846
        %v7068 = vpop.f32.mrf.mxu0
        %v7069 = vadd.f32 0.0, %v7068
        %v7070 = vpop.f32.mrf.mxu0
        %v7071 = vadd.f32 0.0, %v7070
        %7072 = vmatmul.bf16.gmra.mxu0 %v6847
        %v7073 = vpop.f32.mrf.mxu0
        %v7074 = vadd.f32 0.0, %v7073
        %v7075 = vpop.f32.mrf.mxu0
        %v7076 = vadd.f32 0.0, %v7075
        %7077 = vmatmul.bf16.gmra.mxu0 %v6848
        %v7078 = vpop.f32.mrf.mxu0
        %v7079 = vadd.f32 0.0, %v7078
        %v7080 = vpop.f32.mrf.mxu0
        %v7081 = vadd.f32 0.0, %v7080
        %7082 = vmatmul.bf16.gmra.mxu0 %v6849
        %v7083 = vpop.f32.mrf.mxu0
        %v7084 = vadd.f32 0.0, %v7083
        %v7085 = vpop.f32.mrf.mxu0
        %v7086 = vadd.f32 0.0, %v7085
        %7087 = vmatmul.bf16.gmra.mxu0 %v6850
        %v7088 = vpop.f32.mrf.mxu0
        %v7089 = vadd.f32 0.0, %v7088
        %v7090 = vpop.f32.mrf.mxu0
        %v7091 = vadd.f32 0.0, %v7090
        %7092 = vmatmul.bf16.gmra.mxu0 %v6851
        %v7093 = vpop.f32.mrf.mxu0
        %v7094 = vadd.f32 0.0, %v7093
        %v7095 = vpop.f32.mrf.mxu0
        %v7096 = vadd.f32 0.0, %v7095
        %7097 = vmatmul.bf16.gmra.mxu0 %v6852
        %v7098 = vpop.f32.mrf.mxu0
        %v7099 = vadd.f32 0.0, %v7098
        %v7100 = vpop.f32.mrf.mxu0
        %v7101 = vadd.f32 0.0, %v7100
        %7102 = vmatmul.bf16.gmra.mxu0 %v6853
        %v7103 = vpop.f32.mrf.mxu0
        %v7104 = vadd.f32 0.0, %v7103
        %v7105 = vpop.f32.mrf.mxu0
        %v7106 = vadd.f32 0.0, %v7105
        %7107 = vmatmul.bf16.gmra.mxu0 %v6854
        %v7108 = vpop.f32.mrf.mxu0
        %v7109 = vadd.f32 0.0, %v7108
        %v7110 = vpop.f32.mrf.mxu0
        %v7111 = vadd.f32 0.0, %v7110
        %7112 = vmatmul.bf16.gmra.mxu0 %v6855
        %v7113 = vpop.f32.mrf.mxu0
        %v7114 = vadd.f32 0.0, %v7113
        %v7115 = vpop.f32.mrf.mxu0
        %v7116 = vadd.f32 0.0, %v7115
        %7117 = vmatmul.bf16.gmra.mxu0 %v6856
        %v7118 = vpop.f32.mrf.mxu0
        %v7119 = vadd.f32 0.0, %v7118
        %v7120 = vpop.f32.mrf.mxu0
        %v7121 = vadd.f32 0.0, %v7120
        %7122 = vmatmul.bf16.gmra.mxu0 %v6857
        %v7123 = vpop.f32.mrf.mxu0
        %v7124 = vadd.f32 0.0, %v7123
        %v7125 = vpop.f32.mrf.mxu0
        %v7126 = vadd.f32 0.0, %v7125
        %7127 = vmatmul.bf16.gmra.mxu0 %v6858
        %v7128 = vpop.f32.mrf.mxu0
        %v7129 = vadd.f32 0.0, %v7128
        %v7130 = vpop.f32.mrf.mxu0
        %v7131 = vadd.f32 0.0, %v7130
        %7132 = vmatmul.bf16.gmra.mxu0 %v6859
        %v7133 = vpop.f32.mrf.mxu0
        %v7134 = vadd.f32 0.0, %v7133
        %v7135 = vpop.f32.mrf.mxu0
        %v7136 = vadd.f32 0.0, %v7135
        %7137 = vmatmul.bf16.gmra.mxu0 %v6860
        %v7138 = vpop.f32.mrf.mxu0
        %v7139 = vadd.f32 0.0, %v7138
        %v7140 = vpop.f32.mrf.mxu0
        %v7141 = vadd.f32 0.0, %v7140
        %7142 = vmatmul.bf16.gmra.mxu0 %v6861
        %v7143 = vpop.f32.mrf.mxu0
        %v7144 = vadd.f32 0.0, %v7143
        %v7145 = vpop.f32.mrf.mxu0
        %v7146 = vadd.f32 0.0, %v7145
        %7147 = vmatmul.bf16.gmra.mxu0 %v6862
        %v7148 = vpop.f32.mrf.mxu0
        %v7149 = vadd.f32 0.0, %v7148
        %v7150 = vpop.f32.mrf.mxu0
        %v7151 = vadd.f32 0.0, %v7150
        %7152 = vmatmul.bf16.gmra.mxu0 %v6863
        %v7153 = vpop.f32.mrf.mxu0
        %v7154 = vpop.f32.mrf.mxu0
        %7155 = vdwg.mxu0
        %7156 = vmatpush.bf16.msra.mxu0 %v6998
        %7157 = vmatpush.bf16.msra.mxu0 %v6995
        %7158 = vmatpush.bf16.msra.mxu0 %v6992
        %7159 = vmatpush.bf16.msra.mxu0 %v6989
        %7160 = vmatpush.bf16.msra.mxu0 %v6986
        %7161 = vmatpush.bf16.msra.mxu0 %v6983
        %7162 = vmatpush.bf16.msra.mxu0 %v6980
        %7163 = vmatpush.bf16.msra.mxu0 %v6977
        %7164 = vmatmul.bf16.gmra.mxu0 %v6839
        %v7165 = vpop.f32.mrf.mxu0
        %v7166 = vadd.f32 0.0, %v7165
        %v7167 = vpop.f32.mrf.mxu0
        %v7168 = vadd.f32 0.0, %v7167
        %7169 = vmatmul.bf16.gmra.mxu0 %v6840
        %v7170 = vpop.f32.mrf.mxu0
        %v7171 = vadd.f32 0.0, %v7170
        %v7172 = vpop.f32.mrf.mxu0
        %v7173 = vadd.f32 0.0, %v7172
        %7174 = vmatmul.bf16.gmra.mxu0 %v6841
        %v7175 = vpop.f32.mrf.mxu0
        %v7176 = vadd.f32 0.0, %v7175
        %v7177 = vpop.f32.mrf.mxu0
        %v7178 = vadd.f32 0.0, %v7177
        %7179 = vmatmul.bf16.gmra.mxu0 %v6842
        %v7180 = vpop.f32.mrf.mxu0
        %v7181 = vadd.f32 0.0, %v7180
        %v7182 = vpop.f32.mrf.mxu0
        %v7183 = vadd.f32 0.0, %v7182
        %7184 = vmatmul.bf16.gmra.mxu0 %v6843
        %v7185 = vpop.f32.mrf.mxu0
        %v7186 = vadd.f32 0.0, %v7185
        %v7187 = vpop.f32.mrf.mxu0
        %v7188 = vadd.f32 0.0, %v7187
        %7189 = vmatmul.bf16.gmra.mxu0 %v6844
        %v7190 = vpop.f32.mrf.mxu0
        %v7191 = vadd.f32 0.0, %v7190
        %v7192 = vpop.f32.mrf.mxu0
        %v7193 = vadd.f32 0.0, %v7192
        %7194 = vmatmul.bf16.gmra.mxu0 %v6845
        %v7195 = vpop.f32.mrf.mxu0
        %v7196 = vadd.f32 0.0, %v7195
        %v7197 = vpop.f32.mrf.mxu0
        %v7198 = vadd.f32 0.0, %v7197
        %7199 = vmatmul.bf16.gmra.mxu0 %v6846
        %v7200 = vpop.f32.mrf.mxu0
        %v7201 = vadd.f32 0.0, %v7200
        %v7202 = vpop.f32.mrf.mxu0
        %v7203 = vadd.f32 0.0, %v7202
        %7204 = vmatmul.bf16.gmra.mxu0 %v6847
        %v7205 = vpop.f32.mrf.mxu0
        %v7206 = vadd.f32 0.0, %v7205
        %v7207 = vpop.f32.mrf.mxu0
        %v7208 = vadd.f32 0.0, %v7207
        %7209 = vmatmul.bf16.gmra.mxu0 %v6848
        %v7210 = vpop.f32.mrf.mxu0
        %v7211 = vadd.f32 0.0, %v7210
        %v7212 = vpop.f32.mrf.mxu0
        %v7213 = vadd.f32 0.0, %v7212
        %7214 = vmatmul.bf16.gmra.mxu0 %v6849
        %v7215 = vpop.f32.mrf.mxu0
        %v7216 = vadd.f32 0.0, %v7215
        %v7217 = vpop.f32.mrf.mxu0
        %v7218 = vadd.f32 0.0, %v7217
        %7219 = vmatmul.bf16.gmra.mxu0 %v6850
        %v7220 = vpop.f32.mrf.mxu0
        %v7221 = vadd.f32 0.0, %v7220
        %v7222 = vpop.f32.mrf.mxu0
        %v7223 = vadd.f32 0.0, %v7222
        %7224 = vmatmul.bf16.gmra.mxu0 %v6851
        %v7225 = vpop.f32.mrf.mxu0
        %v7226 = vadd.f32 0.0, %v7225
        %v7227 = vpop.f32.mrf.mxu0
        %v7228 = vadd.f32 0.0, %v7227
        %7229 = vmatmul.bf16.gmra.mxu0 %v6852
        %v7230 = vpop.f32.mrf.mxu0
        %v7231 = vadd.f32 0.0, %v7230
        %v7232 = vpop.f32.mrf.mxu0
        %v7233 = vadd.f32 0.0, %v7232
        %7234 = vmatmul.bf16.gmra.mxu0 %v6853
        %v7235 = vpop.f32.mrf.mxu0
        %v7236 = vadd.f32 0.0, %v7235
        %v7237 = vpop.f32.mrf.mxu0
        %v7238 = vadd.f32 0.0, %v7237
        %7239 = vmatmul.bf16.gmra.mxu0 %v6854
        %v7240 = vpop.f32.mrf.mxu0
        %v7241 = vadd.f32 0.0, %v7240
        %v7242 = vpop.f32.mrf.mxu0
        %v7243 = vadd.f32 0.0, %v7242
        %7244 = vmatmul.bf16.gmra.mxu0 %v6855
        %v7245 = vpop.f32.mrf.mxu0
        %v7246 = vadd.f32 0.0, %v7245
        %v7247 = vpop.f32.mrf.mxu0
        %v7248 = vadd.f32 0.0, %v7247
        %7249 = vmatmul.bf16.gmra.mxu0 %v6856
        %v7250 = vpop.f32.mrf.mxu0
        %v7251 = vadd.f32 0.0, %v7250
        %v7252 = vpop.f32.mrf.mxu0
        %v7253 = vadd.f32 0.0, %v7252
        %7254 = vmatmul.bf16.gmra.mxu0 %v6857
        %v7255 = vpop.f32.mrf.mxu0
        %v7256 = vadd.f32 0.0, %v7255
        %v7257 = vpop.f32.mrf.mxu0
        %v7258 = vadd.f32 0.0, %v7257
        %7259 = vmatmul.bf16.gmra.mxu0 %v6858
        %v7260 = vpop.f32.mrf.mxu0
        %v7261 = vadd.f32 0.0, %v7260
        %v7262 = vpop.f32.mrf.mxu0
        %v7263 = vadd.f32 0.0, %v7262
        %7264 = vmatmul.bf16.gmra.mxu0 %v6859
        %v7265 = vpop.f32.mrf.mxu0
        %v7266 = vadd.f32 0.0, %v7265
        %v7267 = vpop.f32.mrf.mxu0
        %v7268 = vadd.f32 0.0, %v7267
        %7269 = vmatmul.bf16.gmra.mxu0 %v6860
        %v7270 = vpop.f32.mrf.mxu0
        %v7271 = vadd.f32 0.0, %v7270
        %v7272 = vpop.f32.mrf.mxu0
        %v7273 = vadd.f32 0.0, %v7272
        %7274 = vmatmul.bf16.gmra.mxu0 %v6861
        %v7275 = vpop.f32.mrf.mxu0
        %v7276 = vadd.f32 0.0, %v7275
        %v7277 = vpop.f32.mrf.mxu0
        %v7278 = vadd.f32 0.0, %v7277
        %7279 = vmatmul.bf16.gmra.mxu0 %v6862
        %v7280 = vpop.f32.mrf.mxu0
        %v7281 = vadd.f32 0.0, %v7280
        %v7282 = vpop.f32.mrf.mxu0
        %v7283 = vadd.f32 0.0, %v7282
        %7284 = vmatmul.bf16.gmra.mxu0 %v6863
        %v7285 = vpop.f32.mrf.mxu0
        %v7286 = vadd.f32 0.0, %v7285
        %v7287 = vpop.f32.mrf.mxu0
        %7288 = vdwg.mxu0
        %7289 = vmatpush.bf16.msra.mxu0 %v6999
        %7290 = vmatpush.bf16.msra.mxu0 %v6996
        %7291 = vmatpush.bf16.msra.mxu0 %v6993
        %7292 = vmatpush.bf16.msra.mxu0 %v6990
        %7293 = vmatpush.bf16.msra.mxu0 %v6987
        %7294 = vmatpush.bf16.msra.mxu0 %v6984
        %7295 = vmatpush.bf16.msra.mxu0 %v6981
        %7296 = vmatpush.bf16.msra.mxu0 %v6978
        %7297 = vmatmul.bf16.gmra.mxu0 %v6839
        %v7298 = vpop.f32.mrf.mxu0
        %v7299 = vadd.f32 0.0, %v7298
        %v7300 = vpop.f32.mrf.mxu0
        %v7301 = vadd.f32 0.0, %v7300
        %7302 = vmatmul.bf16.gmra.mxu0 %v6840
        %v7303 = vpop.f32.mrf.mxu0
        %v7304 = vadd.f32 0.0, %v7303
        %v7305 = vpop.f32.mrf.mxu0
        %v7306 = vadd.f32 0.0, %v7305
        %7307 = vmatmul.bf16.gmra.mxu0 %v6841
        %v7308 = vpop.f32.mrf.mxu0
        %v7309 = vadd.f32 0.0, %v7308
        %v7310 = vpop.f32.mrf.mxu0
        %v7311 = vadd.f32 0.0, %v7310
        %7312 = vmatmul.bf16.gmra.mxu0 %v6842
        %v7313 = vpop.f32.mrf.mxu0
        %v7314 = vadd.f32 0.0, %v7313
        %v7315 = vpop.f32.mrf.mxu0
        %v7316 = vadd.f32 0.0, %v7315
        %7317 = vmatmul.bf16.gmra.mxu0 %v6843
        %v7318 = vpop.f32.mrf.mxu0
        %v7319 = vadd.f32 0.0, %v7318
        %v7320 = vpop.f32.mrf.mxu0
        %v7321 = vadd.f32 0.0, %v7320
        %7322 = vmatmul.bf16.gmra.mxu0 %v6844
        %v7323 = vpop.f32.mrf.mxu0
        %v7324 = vadd.f32 0.0, %v7323
        %v7325 = vpop.f32.mrf.mxu0
        %v7326 = vadd.f32 0.0, %v7325
        %7327 = vmatmul.bf16.gmra.mxu0 %v6845
        %v7328 = vpop.f32.mrf.mxu0
        %v7329 = vadd.f32 0.0, %v7328
        %v7330 = vpop.f32.mrf.mxu0
        %v7331 = vadd.f32 0.0, %v7330
        %7332 = vmatmul.bf16.gmra.mxu0 %v6846
        %v7333 = vpop.f32.mrf.mxu0
        %v7334 = vadd.f32 0.0, %v7333
        %v7335 = vpop.f32.mrf.mxu0
        %v7336 = vadd.f32 0.0, %v7335
        %7337 = vmatmul.bf16.gmra.mxu0 %v6847
        %v7338 = vpop.f32.mrf.mxu0
        %v7339 = vadd.f32 0.0, %v7338
        %v7340 = vpop.f32.mrf.mxu0
        %v7341 = vadd.f32 0.0, %v7340
        %7342 = vmatmul.bf16.gmra.mxu0 %v6848
        %v7343 = vpop.f32.mrf.mxu0
        %v7344 = vadd.f32 0.0, %v7343
        %v7345 = vpop.f32.mrf.mxu0
        %v7346 = vadd.f32 0.0, %v7345
        %7347 = vmatmul.bf16.gmra.mxu0 %v6849
        %v7348 = vpop.f32.mrf.mxu0
        %v7349 = vadd.f32 0.0, %v7348
        %v7350 = vpop.f32.mrf.mxu0
        %v7351 = vadd.f32 0.0, %v7350
        %7352 = vmatmul.bf16.gmra.mxu0 %v6850
        %v7353 = vpop.f32.mrf.mxu0
        %v7354 = vadd.f32 0.0, %v7353
        %v7355 = vpop.f32.mrf.mxu0
        %v7356 = vadd.f32 0.0, %v7355
        %7357 = vmatmul.bf16.gmra.mxu0 %v6851
        %v7358 = vpop.f32.mrf.mxu0
        %v7359 = vadd.f32 0.0, %v7358
        %v7360 = vpop.f32.mrf.mxu0
        %v7361 = vadd.f32 0.0, %v7360
        %7362 = vmatmul.bf16.gmra.mxu0 %v6852
        %v7363 = vpop.f32.mrf.mxu0
        %v7364 = vadd.f32 0.0, %v7363
        %v7365 = vpop.f32.mrf.mxu0
        %v7366 = vadd.f32 0.0, %v7365
        %7367 = vmatmul.bf16.gmra.mxu0 %v6853
        %v7368 = vpop.f32.mrf.mxu0
        %v7369 = vadd.f32 0.0, %v7368
        %v7370 = vpop.f32.mrf.mxu0
        %v7371 = vadd.f32 0.0, %v7370
        %7372 = vmatmul.bf16.gmra.mxu0 %v6854
        %v7373 = vpop.f32.mrf.mxu0
        %v7374 = vadd.f32 0.0, %v7373
        %v7375 = vpop.f32.mrf.mxu0
        %v7376 = vadd.f32 0.0, %v7375
        %7377 = vmatmul.bf16.gmra.mxu0 %v6855
        %v7378 = vpop.f32.mrf.mxu0
        %v7379 = vadd.f32 0.0, %v7378
        %v7380 = vpop.f32.mrf.mxu0
        %v7381 = vadd.f32 0.0, %v7380
        %7382 = vmatmul.bf16.gmra.mxu0 %v6856
        %v7383 = vpop.f32.mrf.mxu0
        %v7384 = vadd.f32 0.0, %v7383
        %v7385 = vpop.f32.mrf.mxu0
        %v7386 = vadd.f32 0.0, %v7385
        %7387 = vmatmul.bf16.gmra.mxu0 %v6857
        %v7388 = vpop.f32.mrf.mxu0
        %v7389 = vadd.f32 0.0, %v7388
        %v7390 = vpop.f32.mrf.mxu0
        %v7391 = vadd.f32 0.0, %v7390
        %7392 = vmatmul.bf16.gmra.mxu0 %v6858
        %v7393 = vpop.f32.mrf.mxu0
        %v7394 = vadd.f32 0.0, %v7393
        %v7395 = vpop.f32.mrf.mxu0
        %v7396 = vadd.f32 0.0, %v7395
        %7397 = vmatmul.bf16.gmra.mxu0 %v6859
        %v7398 = vpop.f32.mrf.mxu0
        %v7399 = vadd.f32 0.0, %v7398
        %v7400 = vpop.f32.mrf.mxu0
        %v7401 = vadd.f32 0.0, %v7400
        %7402 = vmatmul.bf16.gmra.mxu0 %v6860
        %v7403 = vpop.f32.mrf.mxu0
        %v7404 = vadd.f32 0.0, %v7403
        %v7405 = vpop.f32.mrf.mxu0
        %v7406 = vadd.f32 0.0, %v7405
        %7407 = vmatmul.bf16.gmra.mxu0 %v6861
        %v7408 = vpop.f32.mrf.mxu0
        %v7409 = vadd.f32 0.0, %v7408
        %v7410 = vpop.f32.mrf.mxu0
        %v7411 = vadd.f32 0.0, %v7410
        %7412 = vmatmul.bf16.gmra.mxu0 %v6862
        %v7413 = vpop.f32.mrf.mxu0
        %v7414 = vadd.f32 0.0, %v7413
        %v7415 = vpop.f32.mrf.mxu0
        %v7416 = vadd.f32 0.0, %v7415
        %7417 = vmatmul.bf16.gmra.mxu0 %v6863
        %v7418 = vpop.f32.mrf.mxu0
        %v7419 = vadd.f32 0.0, %v7418
        %v7420 = vpop.f32.mrf.mxu0
        %7421 = vdwg.mxu0
        %v7422 = vadd.f32 %v7034, 0.0
        %v7423 = vadd.f32 %v7036, 0.0
        %v7424 = vadd.f32 %v7039, 0.0
        %v7425 = vadd.f32 %v7041, 0.0
        %v7426 = vadd.f32 %v7044, 0.0
        %v7427 = vadd.f32 %v7046, 0.0
        %v7428 = vadd.f32 %v7049, 0.0
        %v7429 = vadd.f32 %v7051, 0.0
        %v7430 = vadd.f32 %v7054, 0.0
        %v7431 = vadd.f32 %v7056, 0.0
        %v7432 = vadd.f32 %v7059, 0.0
        %v7433 = vadd.f32 %v7061, 0.0
        %v7434 = vadd.f32 %v7064, 0.0
        %v7435 = vadd.f32 %v7066, 0.0
        %v7436 = vadd.f32 %v7069, 0.0
        %v7437 = vadd.f32 %v7071, 0.0
        %v7438 = vadd.f32 %v7074, 0.0
        %v7439 = vadd.f32 %v7076, 0.0
        %v7440 = vadd.f32 %v7079, 0.0
        %v7441 = vadd.f32 %v7081, 0.0
        %v7442 = vadd.f32 %v7084, 0.0
        %v7443 = vadd.f32 %v7086, 0.0
        %v7444 = vadd.f32 %v7089, 0.0
        %v7445 = vadd.f32 %v7091, 0.0
        %v7446 = vadd.f32 %v7094, 0.0
        %v7447 = vadd.f32 %v7096, 0.0
        %v7448 = vadd.f32 %v7099, 0.0
        %v7449 = vadd.f32 %v7101, 0.0
        %v7450 = vadd.f32 %v7104, 0.0
        %v7451 = vadd.f32 %v7106, 0.0
        %v7452 = vadd.f32 %v7109, 0.0
        %v7453 = vadd.f32 %v7111, 0.0
        %v7454 = vadd.f32 %v7114, 0.0
        %v7455 = vadd.f32 %v7116, 0.0
        %v7456 = vadd.f32 %v7119, 0.0
        %v7457 = vadd.f32 %v7121, 0.0
        %v7458 = vadd.f32 %v7124, 0.0
        %v7459 = vadd.f32 %v7126, 0.0
        %v7460 = vadd.f32 %v7129, 0.0
        %v7461 = vadd.f32 %v7131, 0.0
        %v7462 = vadd.f32 %v7134, 0.0
        %v7463 = vadd.f32 %v7136, 0.0
        %v7464 = vadd.f32 %v7139, 0.0
        %v7465 = vadd.f32 %v7141, 0.0
        %v7466 = vadd.f32 %v7144, 0.0
        %v7467 = vadd.f32 %v7146, 0.0
        %v7468 = vadd.f32 %v7149, 0.0
        %v7469 = vadd.f32 %v7151, 0.0
        %v7519 = vrot.slane %v7166, 1
        %v7520 = vrot.slane %v7168, 1
        %v7521 = vsel %vm953, %v7519, %v7520
        %v7522 = vrot.slane %v7171, 1
        %v7523 = vsel %vm953, %v7520, %v7522
        %v7524 = vrot.slane %v7173, 1
        %v7525 = vsel %vm953, %v7522, %v7524
        %v7526 = vrot.slane %v7176, 1
        %v7527 = vsel %vm953, %v7524, %v7526
        %v7528 = vrot.slane %v7178, 1
        %v7529 = vsel %vm953, %v7526, %v7528
        %v7530 = vrot.slane %v7181, 1
        %v7531 = vsel %vm953, %v7528, %v7530
        %v7532 = vrot.slane %v7183, 1
        %v7533 = vsel %vm953, %v7530, %v7532
        %v7534 = vrot.slane %v7186, 1
        %v7535 = vsel %vm953, %v7532, %v7534
        %v7536 = vrot.slane %v7188, 1
        %v7537 = vsel %vm953, %v7534, %v7536
        %v7538 = vrot.slane %v7191, 1
        %v7539 = vsel %vm953, %v7536, %v7538
        %v7540 = vrot.slane %v7193, 1
        %v7541 = vsel %vm953, %v7538, %v7540
        %v7542 = vrot.slane %v7196, 1
        %v7543 = vsel %vm953, %v7540, %v7542
        %v7544 = vrot.slane %v7198, 1
        %v7545 = vsel %vm953, %v7542, %v7544
        %v7546 = vrot.slane %v7201, 1
        %v7547 = vsel %vm953, %v7544, %v7546
        %v7548 = vrot.slane %v7203, 1
        %v7549 = vsel %vm953, %v7546, %v7548
        %v7550 = vrot.slane %v7206, 1
        %v7551 = vsel %vm953, %v7548, %v7550
        %v7552 = vrot.slane %v7208, 1
        %v7553 = vsel %vm953, %v7550, %v7552
        %v7554 = vrot.slane %v7211, 1
        %v7555 = vsel %vm953, %v7552, %v7554
        %v7556 = vrot.slane %v7213, 1
        %v7557 = vsel %vm953, %v7554, %v7556
        %v7558 = vrot.slane %v7216, 1
        %v7559 = vsel %vm953, %v7556, %v7558
        %v7560 = vrot.slane %v7218, 1
        %v7561 = vsel %vm953, %v7558, %v7560
        %v7562 = vrot.slane %v7221, 1
        %v7563 = vsel %vm953, %v7560, %v7562
        %v7564 = vrot.slane %v7223, 1
        %v7565 = vsel %vm953, %v7562, %v7564
        %v7566 = vrot.slane %v7226, 1
        %v7567 = vsel %vm953, %v7564, %v7566
        %v7568 = vrot.slane %v7228, 1
        %v7569 = vsel %vm953, %v7566, %v7568
        %v7570 = vrot.slane %v7231, 1
        %v7571 = vsel %vm953, %v7568, %v7570
        %v7572 = vrot.slane %v7233, 1
        %v7573 = vsel %vm953, %v7570, %v7572
        %v7574 = vrot.slane %v7236, 1
        %v7575 = vsel %vm953, %v7572, %v7574
        %v7576 = vrot.slane %v7238, 1
        %v7577 = vsel %vm953, %v7574, %v7576
        %v7578 = vrot.slane %v7241, 1
        %v7579 = vsel %vm953, %v7576, %v7578
        %v7580 = vrot.slane %v7243, 1
        %v7581 = vsel %vm953, %v7578, %v7580
        %v7582 = vrot.slane %v7246, 1
        %v7583 = vsel %vm953, %v7580, %v7582
        %v7584 = vrot.slane %v7248, 1
        %v7585 = vsel %vm953, %v7582, %v7584
        %v7586 = vrot.slane %v7251, 1
        %v7587 = vsel %vm953, %v7584, %v7586
        %v7588 = vrot.slane %v7253, 1
        %v7589 = vsel %vm953, %v7586, %v7588
        %v7590 = vrot.slane %v7256, 1
        %v7591 = vsel %vm953, %v7588, %v7590
        %v7592 = vrot.slane %v7258, 1
        %v7593 = vsel %vm953, %v7590, %v7592
        %v7594 = vrot.slane %v7261, 1
        %v7595 = vsel %vm953, %v7592, %v7594
        %v7596 = vrot.slane %v7263, 1
        %v7597 = vsel %vm953, %v7594, %v7596
        %v7598 = vrot.slane %v7266, 1
        %v7599 = vsel %vm953, %v7596, %v7598
        %v7600 = vrot.slane %v7268, 1
        %v7601 = vsel %vm953, %v7598, %v7600
        %v7602 = vrot.slane %v7271, 1
        %v7603 = vsel %vm953, %v7600, %v7602
        %v7604 = vrot.slane %v7273, 1
        %v7605 = vsel %vm953, %v7602, %v7604
        %v7606 = vrot.slane %v7276, 1
        %v7607 = vsel %vm953, %v7604, %v7606
        %v7608 = vrot.slane %v7278, 1
        %v7609 = vsel %vm953, %v7606, %v7608
        %v7610 = vrot.slane %v7281, 1
        %v7611 = vsel %vm953, %v7608, %v7610
        %v7612 = vrot.slane %v7283, 1
        %v7613 = vsel %vm953, %v7610, %v7612
        %v7614 = vrot.slane %v7286, 1
        %v7615 = vsel %vm953, %v7612, %v7614
        %v7664 = vadd.f32 %v7422, %v7521
        %v7665 = vadd.f32 %v7423, %v7523
        %v7666 = vadd.f32 %v7424, %v7525
        %v7667 = vadd.f32 %v7425, %v7527
        %v7668 = vadd.f32 %v7426, %v7529
        %v7669 = vadd.f32 %v7427, %v7531
        %v7670 = vadd.f32 %v7428, %v7533
        %v7671 = vadd.f32 %v7429, %v7535
        %v7672 = vadd.f32 %v7430, %v7537
        %v7673 = vadd.f32 %v7431, %v7539
        %v7674 = vadd.f32 %v7432, %v7541
        %v7675 = vadd.f32 %v7433, %v7543
        %v7676 = vadd.f32 %v7434, %v7545
        %v7677 = vadd.f32 %v7435, %v7547
        %v7678 = vadd.f32 %v7436, %v7549
        %v7679 = vadd.f32 %v7437, %v7551
        %v7680 = vadd.f32 %v7438, %v7553
        %v7681 = vadd.f32 %v7439, %v7555
        %v7682 = vadd.f32 %v7440, %v7557
        %v7683 = vadd.f32 %v7441, %v7559
        %v7684 = vadd.f32 %v7442, %v7561
        %v7685 = vadd.f32 %v7443, %v7563
        %v7686 = vadd.f32 %v7444, %v7565
        %v7687 = vadd.f32 %v7445, %v7567
        %v7688 = vadd.f32 %v7446, %v7569
        %v7689 = vadd.f32 %v7447, %v7571
        %v7690 = vadd.f32 %v7448, %v7573
        %v7691 = vadd.f32 %v7449, %v7575
        %v7692 = vadd.f32 %v7450, %v7577
        %v7693 = vadd.f32 %v7451, %v7579
        %v7694 = vadd.f32 %v7452, %v7581
        %v7695 = vadd.f32 %v7453, %v7583
        %v7696 = vadd.f32 %v7454, %v7585
        %v7697 = vadd.f32 %v7455, %v7587
        %v7698 = vadd.f32 %v7456, %v7589
        %v7699 = vadd.f32 %v7457, %v7591
        %v7700 = vadd.f32 %v7458, %v7593
        %v7701 = vadd.f32 %v7459, %v7595
        %v7702 = vadd.f32 %v7460, %v7597
        %v7703 = vadd.f32 %v7461, %v7599
        %v7704 = vadd.f32 %v7462, %v7601
        %v7705 = vadd.f32 %v7463, %v7603
        %v7706 = vadd.f32 %v7464, %v7605
        %v7707 = vadd.f32 %v7465, %v7607
        %v7708 = vadd.f32 %v7466, %v7609
        %v7709 = vadd.f32 %v7467, %v7611
        %v7710 = vadd.f32 %v7468, %v7613
        %v7711 = vadd.f32 %v7469, %v7615
        %v7761 = vrot.slane %v7299, 2
        %v7762 = vrot.slane %v7301, 2
        %v7763 = vsel %vm1196, %v7761, %v7762
        %v7764 = vrot.slane %v7304, 2
        %v7765 = vsel %vm1196, %v7762, %v7764
        %v7766 = vrot.slane %v7306, 2
        %v7767 = vsel %vm1196, %v7764, %v7766
        %v7768 = vrot.slane %v7309, 2
        %v7769 = vsel %vm1196, %v7766, %v7768
        %v7770 = vrot.slane %v7311, 2
        %v7771 = vsel %vm1196, %v7768, %v7770
        %v7772 = vrot.slane %v7314, 2
        %v7773 = vsel %vm1196, %v7770, %v7772
        %v7774 = vrot.slane %v7316, 2
        %v7775 = vsel %vm1196, %v7772, %v7774
        %v7776 = vrot.slane %v7319, 2
        %v7777 = vsel %vm1196, %v7774, %v7776
        %v7778 = vrot.slane %v7321, 2
        %v7779 = vsel %vm1196, %v7776, %v7778
        %v7780 = vrot.slane %v7324, 2
        %v7781 = vsel %vm1196, %v7778, %v7780
        %v7782 = vrot.slane %v7326, 2
        %v7783 = vsel %vm1196, %v7780, %v7782
        %v7784 = vrot.slane %v7329, 2
        %v7785 = vsel %vm1196, %v7782, %v7784
        %v7786 = vrot.slane %v7331, 2
        %v7787 = vsel %vm1196, %v7784, %v7786
        %v7788 = vrot.slane %v7334, 2
        %v7789 = vsel %vm1196, %v7786, %v7788
        %v7790 = vrot.slane %v7336, 2
        %v7791 = vsel %vm1196, %v7788, %v7790
        %v7792 = vrot.slane %v7339, 2
        %v7793 = vsel %vm1196, %v7790, %v7792
        %v7794 = vrot.slane %v7341, 2
        %v7795 = vsel %vm1196, %v7792, %v7794
        %v7796 = vrot.slane %v7344, 2
        %v7797 = vsel %vm1196, %v7794, %v7796
        %v7798 = vrot.slane %v7346, 2
        %v7799 = vsel %vm1196, %v7796, %v7798
        %v7800 = vrot.slane %v7349, 2
        %v7801 = vsel %vm1196, %v7798, %v7800
        %v7802 = vrot.slane %v7351, 2
        %v7803 = vsel %vm1196, %v7800, %v7802
        %v7804 = vrot.slane %v7354, 2
        %v7805 = vsel %vm1196, %v7802, %v7804
        %v7806 = vrot.slane %v7356, 2
        %v7807 = vsel %vm1196, %v7804, %v7806
        %v7808 = vrot.slane %v7359, 2
        %v7809 = vsel %vm1196, %v7806, %v7808
        %v7810 = vrot.slane %v7361, 2
        %v7811 = vsel %vm1196, %v7808, %v7810
        %v7812 = vrot.slane %v7364, 2
        %v7813 = vsel %vm1196, %v7810, %v7812
        %v7814 = vrot.slane %v7366, 2
        %v7815 = vsel %vm1196, %v7812, %v7814
        %v7816 = vrot.slane %v7369, 2
        %v7817 = vsel %vm1196, %v7814, %v7816
        %v7818 = vrot.slane %v7371, 2
        %v7819 = vsel %vm1196, %v7816, %v7818
        %v7820 = vrot.slane %v7374, 2
        %v7821 = vsel %vm1196, %v7818, %v7820
        %v7822 = vrot.slane %v7376, 2
        %v7823 = vsel %vm1196, %v7820, %v7822
        %v7824 = vrot.slane %v7379, 2
        %v7825 = vsel %vm1196, %v7822, %v7824
        %v7826 = vrot.slane %v7381, 2
        %v7827 = vsel %vm1196, %v7824, %v7826
        %v7828 = vrot.slane %v7384, 2
        %v7829 = vsel %vm1196, %v7826, %v7828
        %v7830 = vrot.slane %v7386, 2
        %v7831 = vsel %vm1196, %v7828, %v7830
        %v7832 = vrot.slane %v7389, 2
        %v7833 = vsel %vm1196, %v7830, %v7832
        %v7834 = vrot.slane %v7391, 2
        %v7835 = vsel %vm1196, %v7832, %v7834
        %v7836 = vrot.slane %v7394, 2
        %v7837 = vsel %vm1196, %v7834, %v7836
        %v7838 = vrot.slane %v7396, 2
        %v7839 = vsel %vm1196, %v7836, %v7838
        %v7840 = vrot.slane %v7399, 2
        %v7841 = vsel %vm1196, %v7838, %v7840
        %v7842 = vrot.slane %v7401, 2
        %v7843 = vsel %vm1196, %v7840, %v7842
        %v7844 = vrot.slane %v7404, 2
        %v7845 = vsel %vm1196, %v7842, %v7844
        %v7846 = vrot.slane %v7406, 2
        %v7847 = vsel %vm1196, %v7844, %v7846
        %v7848 = vrot.slane %v7409, 2
        %v7849 = vsel %vm1196, %v7846, %v7848
        %v7850 = vrot.slane %v7411, 2
        %v7851 = vsel %vm1196, %v7848, %v7850
        %v7852 = vrot.slane %v7414, 2
        %v7853 = vsel %vm1196, %v7850, %v7852
        %v7854 = vrot.slane %v7416, 2
        %v7855 = vsel %vm1196, %v7852, %v7854
        %v7856 = vrot.slane %v7419, 2
        %v7857 = vsel %vm1196, %v7854, %v7856
        %v7906 = vadd.f32 %v7664, %v7763
        %v7907 = vadd.f32 %v7665, %v7765
        %v7908 = vadd.f32 %v7666, %v7767
        %v7909 = vadd.f32 %v7667, %v7769
        %v7910 = vadd.f32 %v7668, %v7771
        %v7911 = vadd.f32 %v7669, %v7773
        %v7912 = vadd.f32 %v7670, %v7775
        %v7913 = vadd.f32 %v7671, %v7777
        %v7914 = vadd.f32 %v7672, %v7779
        %v7915 = vadd.f32 %v7673, %v7781
        %v7916 = vadd.f32 %v7674, %v7783
        %v7917 = vadd.f32 %v7675, %v7785
        %v7918 = vadd.f32 %v7676, %v7787
        %v7919 = vadd.f32 %v7677, %v7789
        %v7920 = vadd.f32 %v7678, %v7791
        %v7921 = vadd.f32 %v7679, %v7793
        %v7922 = vadd.f32 %v7680, %v7795
        %v7923 = vadd.f32 %v7681, %v7797
        %v7924 = vadd.f32 %v7682, %v7799
        %v7925 = vadd.f32 %v7683, %v7801
        %v7926 = vadd.f32 %v7684, %v7803
        %v7927 = vadd.f32 %v7685, %v7805
        %v7928 = vadd.f32 %v7686, %v7807
        %v7929 = vadd.f32 %v7687, %v7809
        %v7930 = vadd.f32 %v7688, %v7811
        %v7931 = vadd.f32 %v7689, %v7813
        %v7932 = vadd.f32 %v7690, %v7815
        %v7933 = vadd.f32 %v7691, %v7817
        %v7934 = vadd.f32 %v7692, %v7819
        %v7935 = vadd.f32 %v7693, %v7821
        %v7936 = vadd.f32 %v7694, %v7823
        %v7937 = vadd.f32 %v7695, %v7825
        %v7938 = vadd.f32 %v7696, %v7827
        %v7939 = vadd.f32 %v7697, %v7829
        %v7940 = vadd.f32 %v7698, %v7831
        %v7941 = vadd.f32 %v7699, %v7833
        %v7942 = vadd.f32 %v7700, %v7835
        %v7943 = vadd.f32 %v7701, %v7837
        %v7944 = vadd.f32 %v7702, %v7839
        %v7945 = vadd.f32 %v7703, %v7841
        %v7946 = vadd.f32 %v7704, %v7843
        %v7947 = vadd.f32 %v7705, %v7845
        %v7948 = vadd.f32 %v7706, %v7847
        %v7949 = vadd.f32 %v7707, %v7849
        %v7950 = vadd.f32 %v7708, %v7851
        %v7951 = vadd.f32 %v7709, %v7853
        %v7952 = vadd.f32 %v7710, %v7855
        %v7953 = vadd.f32 %v7711, %v7857
        %v7954 = vld [vmem:[%s6729] sm:$0xff]
        %v7955 = vld [vmem:[%s6729 + $0x8] sm:$0xff]
        %v7956 = vld [vmem:[%s6729 + $0x10] sm:$0xff]
        %v7957 = vld [vmem:[%s6729 + $0x18] sm:$0xff]
        %v7958 = vld [vmem:[%s6729 + $0x20] sm:$0xff]
        %v7959 = vld [vmem:[%s6729 + $0x28] sm:$0xff]
        %v7960 = vld [vmem:[%s6729 + $0x30] sm:$0xff]
        %v7961 = vld [vmem:[%s6729 + $0x38] sm:$0xff]
        %v7962 = vld [vmem:[%s6729 + $0x40] sm:$0xff]
        %v7963 = vld [vmem:[%s6729 + $0x48] sm:$0xff]
        %v7964 = vld [vmem:[%s6729 + $0x50] sm:$0xff]
        %v7965 = vld [vmem:[%s6729 + $0x58] sm:$0xff]
        %v7966 = vld [vmem:[%s6729 + $0x60] sm:$0xff]
        %v7967 = vld [vmem:[%s6729 + $0x68] sm:$0xff]
        %v7968 = vld [vmem:[%s6729 + $0x70] sm:$0xff]
        %v7969 = vld [vmem:[%s6729 + $0x78] sm:$0xff]
        %v7970 = vld [vmem:[%s6729 + $0x80] sm:$0xff]
        %v7971 = vld [vmem:[%s6729 + $0x88] sm:$0xff]
        %v7972 = vld [vmem:[%s6729 + $0x90] sm:$0xff]
        %v7973 = vld [vmem:[%s6729 + $0x98] sm:$0xff]
        %v7974 = vld [vmem:[%s6729 + $0xa0] sm:$0xff]
        %v7975 = vld [vmem:[%s6729 + $0xa8] sm:$0xff]
        %v7976 = vld [vmem:[%s6729 + $0xb0] sm:$0xff]
        %v7977 = vld [vmem:[%s6729 + $0xb8] sm:$0xff]
        %v7978 = vld [vmem:[%s6729 + $0xc0] sm:$0xff]
        %v7979 = vld [vmem:[%s6729 + $0xc8] sm:$0xff]
        %v7980 = vld [vmem:[%s6729 + $0xd0] sm:$0xff]
        %v7981 = vld [vmem:[%s6729 + $0xd8] sm:$0xff]
        %v7982 = vld [vmem:[%s6729 + $0xe0] sm:$0xff]
        %v7983 = vld [vmem:[%s6729 + $0xe8] sm:$0xff]
        %v7984 = vld [vmem:[%s6729 + $0xf0] sm:$0xff]
        %v7985 = vld [vmem:[%s6729 + $0xf8] sm:$0xff]
        %v7986 = vld [vmem:[%s6729 + $0x100] sm:$0xff]
        %v7987 = vld [vmem:[%s6729 + $0x108] sm:$0xff]
        %v7988 = vld [vmem:[%s6729 + $0x110] sm:$0xff]
        %v7989 = vld [vmem:[%s6729 + $0x118] sm:$0xff]
        %v7990 = vld [vmem:[%s6729 + $0x120] sm:$0xff]
        %v7991 = vld [vmem:[%s6729 + $0x128] sm:$0xff]
        %v7992 = vld [vmem:[%s6729 + $0x130] sm:$0xff]
        %v7993 = vld [vmem:[%s6729 + $0x138] sm:$0xff]
        %v7994 = vld [vmem:[%s6729 + $0x140] sm:$0xff]
        %v7995 = vld [vmem:[%s6729 + $0x148] sm:$0xff]
        %v7996 = vld [vmem:[%s6729 + $0x150] sm:$0xff]
        %v7997 = vld [vmem:[%s6729 + $0x158] sm:$0xff]
        %v7998 = vld [vmem:[%s6729 + $0x160] sm:$0xff]
        %v7999 = vld [vmem:[%s6729 + $0x168] sm:$0xff]
        %v8000 = vld [vmem:[%s6729 + $0x170] sm:$0xff]
        %v8001 = vld [vmem:[%s6729 + $0x178] sm:$0xff]
        %v8002 = vld [vmem:[%s6729 + $0x180] sm:$0xff]
        %v8003 = vpack.c.bf16 %v7955, %v7954
        %v8004 = vpack.c.bf16 %v7957, %v7956
        %v8005 = vpack.c.bf16 %v7959, %v7958
        %v8006 = vpack.c.bf16 %v7961, %v7960
        %v8007 = vpack.c.bf16 %v7963, %v7962
        %v8008 = vpack.c.bf16 %v7965, %v7964
        %v8009 = vpack.c.bf16 %v7967, %v7966
        %v8010 = vpack.c.bf16 %v7969, %v7968
        %v8011 = vpack.c.bf16 %v7971, %v7970
        %v8012 = vpack.c.bf16 %v7973, %v7972
        %v8013 = vpack.c.bf16 %v7975, %v7974
        %v8014 = vpack.c.bf16 %v7977, %v7976
        %v8015 = vpack.c.bf16 %v7979, %v7978
        %v8016 = vpack.c.bf16 %v7981, %v7980
        %v8017 = vpack.c.bf16 %v7983, %v7982
        %v8018 = vpack.c.bf16 %v7985, %v7984
        %v8019 = vpack.c.bf16 %v7987, %v7986
        %v8020 = vpack.c.bf16 %v7989, %v7988
        %v8021 = vpack.c.bf16 %v7991, %v7990
        %v8022 = vpack.c.bf16 %v7993, %v7992
        %v8023 = vpack.c.bf16 %v7995, %v7994
        %v8024 = vpack.c.bf16 %v7997, %v7996
        %v8025 = vpack.c.bf16 %v7999, %v7998
        %v8026 = vpack.c.bf16 %v8001, %v8000
        %v8027 = vpack.c.bf16 %v8002, %v8002
        %s8028 = scalar_lea.vmem [#allocation9], 192
        %v8029 = vld [vmem:[%s8028] sm:$0xff]
        %v8030 = vld [vmem:[%s8028 + $0x8] sm:$0xf]
        %v8031 = vld [vmem:[%s8028 + $0xc] sm:$0xff]
        %v8032 = vld [vmem:[%s8028 + $0x14] sm:$0xf]
        %v8033 = vld [vmem:[%s8028 + $0x18] sm:$0xff]
        %v8034 = vld [vmem:[%s8028 + $0x20] sm:$0xf]
        %v8035 = vld [vmem:[%s8028 + $0x24] sm:$0xff]
        %v8036 = vld [vmem:[%s8028 + $0x2c] sm:$0xf]
        %v8037 = vld [vmem:[%s8028 + $0x30] sm:$0xff]
        %v8038 = vld [vmem:[%s8028 + $0x38] sm:$0xf]
        %v8039 = vld [vmem:[%s8028 + $0x3c] sm:$0xff]
        %v8040 = vld [vmem:[%s8028 + $0x44] sm:$0xf]
        %v8041 = vld [vmem:[%s8028 + $0x48] sm:$0xff]
        %v8042 = vld [vmem:[%s8028 + $0x50] sm:$0xf]
        %v8043 = vld [vmem:[%s8028 + $0x54] sm:$0xff]
        %v8044 = vld [vmem:[%s8028 + $0x5c] sm:$0xf]
        %v8045 = vld [vmem:[%s8028 + $0x60] sm:$0xff]
        %v8046 = vld [vmem:[%s8028 + $0x68] sm:$0xf]
        %v8047 = vld [vmem:[%s8028 + $0x6c] sm:$0xff]
        %v8048 = vld [vmem:[%s8028 + $0x74] sm:$0xf]
        %v8049 = vld [vmem:[%s8028 + $0x78] sm:$0xff]
        %v8050 = vld [vmem:[%s8028 + $0x80] sm:$0xf]
        %v8051 = vld [vmem:[%s8028 + $0x84] sm:$0xff]
        %v8052 = vld [vmem:[%s8028 + $0x8c] sm:$0xf]
        %v8053 = vld [vmem:[%s8028 + $0x90] sm:$0xff]
        %v8054 = vld [vmem:[%s8028 + $0x98] sm:$0xf]
        %v8055 = vld [vmem:[%s8028 + $0x9c] sm:$0xff]
        %v8056 = vld [vmem:[%s8028 + $0xa4] sm:$0xf]
        %v8057 = vld [vmem:[%s8028 + $0xa8] sm:$0xff]
        %v8058 = vld [vmem:[%s8028 + $0xb0] sm:$0xf]
        %v8059 = vld [vmem:[%s8028 + $0xb4] sm:$0xff]
        %v8060 = vld [vmem:[%s8028 + $0xbc] sm:$0xf]
        %v8093 = vunpack.c.l.b16 %v8029
        %v8094 = vunpack.c.h.b16 %v8029
        %v8095 = vunpack.c.l.b16 %v8030
        %v8096 = vunpack.c.l.b16 %v8031
        %v8097 = vunpack.c.h.b16 %v8031
        %v8098 = vunpack.c.l.b16 %v8032
        %v8099 = vunpack.c.l.b16 %v8033
        %v8100 = vunpack.c.h.b16 %v8033
        %v8101 = vunpack.c.l.b16 %v8034
        %v8102 = vunpack.c.l.b16 %v8035
        %v8103 = vunpack.c.h.b16 %v8035
        %v8104 = vunpack.c.l.b16 %v8036
        %v8105 = vunpack.c.l.b16 %v8037
        %v8106 = vunpack.c.h.b16 %v8037
        %v8107 = vunpack.c.l.b16 %v8038
        %v8108 = vunpack.c.l.b16 %v8039
        %v8109 = vunpack.c.h.b16 %v8039
        %v8110 = vunpack.c.l.b16 %v8040
        %v8111 = vunpack.c.l.b16 %v8041
        %v8112 = vunpack.c.h.b16 %v8041
        %v8113 = vunpack.c.l.b16 %v8042
        %v8114 = vunpack.c.l.b16 %v8043
        %v8115 = vunpack.c.h.b16 %v8043
        %v8116 = vunpack.c.l.b16 %v8044
        %v8117 = vunpack.c.l.b16 %v8045
        %v8118 = vunpack.c.h.b16 %v8045
        %v8119 = vunpack.c.l.b16 %v8046
        %v8120 = vunpack.c.l.b16 %v8047
        %v8121 = vunpack.c.h.b16 %v8047
        %v8122 = vunpack.c.l.b16 %v8048
        %v8123 = vunpack.c.l.b16 %v8049
        %v8124 = vunpack.c.h.b16 %v8049
        %v8125 = vunpack.c.l.b16 %v8050
        %v8126 = vunpack.c.l.b16 %v8051
        %v8127 = vunpack.c.h.b16 %v8051
        %v8128 = vunpack.c.l.b16 %v8052
        %v8129 = vunpack.c.l.b16 %v8053
        %v8130 = vunpack.c.h.b16 %v8053
        %v8131 = vunpack.c.l.b16 %v8054
        %v8132 = vunpack.c.l.b16 %v8055
        %v8133 = vunpack.c.h.b16 %v8055
        %v8134 = vunpack.c.l.b16 %v8056
        %v8135 = vunpack.c.l.b16 %v8057
        %v8136 = vunpack.c.h.b16 %v8057
        %v8137 = vunpack.c.l.b16 %v8058
        %v8138 = vunpack.c.l.b16 %v8059
        %v8139 = vunpack.c.h.b16 %v8059
        %v8140 = vunpack.c.l.b16 %v8060
        %v8141 = vpack.c.b16 %v8096, %v8093
        %v8142 = vpack.c.b16 %v8097, %v8094
        %v8143 = vpack.c.b16 %v8098, %v8095
        %v8144 = vpack.c.b16 %v8102, %v8099
        %v8145 = vpack.c.b16 %v8103, %v8100
        %v8146 = vpack.c.b16 %v8104, %v8101
        %v8147 = vpack.c.b16 %v8108, %v8105
        %v8148 = vpack.c.b16 %v8109, %v8106
        %v8149 = vpack.c.b16 %v8110, %v8107
        %v8150 = vpack.c.b16 %v8114, %v8111
        %v8151 = vpack.c.b16 %v8115, %v8112
        %v8152 = vpack.c.b16 %v8116, %v8113
        %v8153 = vpack.c.b16 %v8120, %v8117
        %v8154 = vpack.c.b16 %v8121, %v8118
        %v8155 = vpack.c.b16 %v8122, %v8119
        %v8156 = vpack.c.b16 %v8126, %v8123
        %v8157 = vpack.c.b16 %v8127, %v8124
        %v8158 = vpack.c.b16 %v8128, %v8125
        %v8159 = vpack.c.b16 %v8132, %v8129
        %v8160 = vpack.c.b16 %v8133, %v8130
        %v8161 = vpack.c.b16 %v8134, %v8131
        %v8162 = vpack.c.b16 %v8138, %v8135
        %v8163 = vpack.c.b16 %v8139, %v8136
        %v8164 = vpack.c.b16 %v8140, %v8137
        %8189 = vmatpush.bf16.msra.mxu0 %v8162
        %8190 = vmatpush.bf16.msra.mxu0 %v8159
        %8191 = vmatpush.bf16.msra.mxu0 %v8156
        %8192 = vmatpush.bf16.msra.mxu0 %v8153
        %8193 = vmatpush.bf16.msra.mxu0 %v8150
        %8194 = vmatpush.bf16.msra.mxu0 %v8147
        %8195 = vmatpush.bf16.msra.mxu0 %v8144
        %8196 = vmatpush.bf16.msra.mxu0 %v8141
        %8197 = vmatmul.bf16.gmra.mxu0 %v8003
        %v8198 = vpop.f32.mrf.mxu0
        %v8199 = vadd.f32 0.0, %v8198
        %v8200 = vpop.f32.mrf.mxu0
        %v8201 = vadd.f32 0.0, %v8200
        %8202 = vmatmul.bf16.gmra.mxu0 %v8004
        %v8203 = vpop.f32.mrf.mxu0
        %v8204 = vadd.f32 0.0, %v8203
        %v8205 = vpop.f32.mrf.mxu0
        %v8206 = vadd.f32 0.0, %v8205
        %8207 = vmatmul.bf16.gmra.mxu0 %v8005
        %v8208 = vpop.f32.mrf.mxu0
        %v8209 = vadd.f32 0.0, %v8208
        %v8210 = vpop.f32.mrf.mxu0
        %v8211 = vadd.f32 0.0, %v8210
        %8212 = vmatmul.bf16.gmra.mxu0 %v8006
        %v8213 = vpop.f32.mrf.mxu0
        %v8214 = vadd.f32 0.0, %v8213
        %v8215 = vpop.f32.mrf.mxu0
        %v8216 = vadd.f32 0.0, %v8215
        %8217 = vmatmul.bf16.gmra.mxu0 %v8007
        %v8218 = vpop.f32.mrf.mxu0
        %v8219 = vadd.f32 0.0, %v8218
        %v8220 = vpop.f32.mrf.mxu0
        %v8221 = vadd.f32 0.0, %v8220
        %8222 = vmatmul.bf16.gmra.mxu0 %v8008
        %v8223 = vpop.f32.mrf.mxu0
        %v8224 = vadd.f32 0.0, %v8223
        %v8225 = vpop.f32.mrf.mxu0
        %v8226 = vadd.f32 0.0, %v8225
        %8227 = vmatmul.bf16.gmra.mxu0 %v8009
        %v8228 = vpop.f32.mrf.mxu0
        %v8229 = vadd.f32 0.0, %v8228
        %v8230 = vpop.f32.mrf.mxu0
        %v8231 = vadd.f32 0.0, %v8230
        %8232 = vmatmul.bf16.gmra.mxu0 %v8010
        %v8233 = vpop.f32.mrf.mxu0
        %v8234 = vadd.f32 0.0, %v8233
        %v8235 = vpop.f32.mrf.mxu0
        %v8236 = vadd.f32 0.0, %v8235
        %8237 = vmatmul.bf16.gmra.mxu0 %v8011
        %v8238 = vpop.f32.mrf.mxu0
        %v8239 = vadd.f32 0.0, %v8238
        %v8240 = vpop.f32.mrf.mxu0
        %v8241 = vadd.f32 0.0, %v8240
        %8242 = vmatmul.bf16.gmra.mxu0 %v8012
        %v8243 = vpop.f32.mrf.mxu0
        %v8244 = vadd.f32 0.0, %v8243
        %v8245 = vpop.f32.mrf.mxu0
        %v8246 = vadd.f32 0.0, %v8245
        %8247 = vmatmul.bf16.gmra.mxu0 %v8013
        %v8248 = vpop.f32.mrf.mxu0
        %v8249 = vadd.f32 0.0, %v8248
        %v8250 = vpop.f32.mrf.mxu0
        %v8251 = vadd.f32 0.0, %v8250
        %8252 = vmatmul.bf16.gmra.mxu0 %v8014
        %v8253 = vpop.f32.mrf.mxu0
        %v8254 = vadd.f32 0.0, %v8253
        %v8255 = vpop.f32.mrf.mxu0
        %v8256 = vadd.f32 0.0, %v8255
        %8257 = vmatmul.bf16.gmra.mxu0 %v8015
        %v8258 = vpop.f32.mrf.mxu0
        %v8259 = vadd.f32 0.0, %v8258
        %v8260 = vpop.f32.mrf.mxu0
        %v8261 = vadd.f32 0.0, %v8260
        %8262 = vmatmul.bf16.gmra.mxu0 %v8016
        %v8263 = vpop.f32.mrf.mxu0
        %v8264 = vadd.f32 0.0, %v8263
        %v8265 = vpop.f32.mrf.mxu0
        %v8266 = vadd.f32 0.0, %v8265
        %8267 = vmatmul.bf16.gmra.mxu0 %v8017
        %v8268 = vpop.f32.mrf.mxu0
        %v8269 = vadd.f32 0.0, %v8268
        %v8270 = vpop.f32.mrf.mxu0
        %v8271 = vadd.f32 0.0, %v8270
        %8272 = vmatmul.bf16.gmra.mxu0 %v8018
        %v8273 = vpop.f32.mrf.mxu0
        %v8274 = vadd.f32 0.0, %v8273
        %v8275 = vpop.f32.mrf.mxu0
        %v8276 = vadd.f32 0.0, %v8275
        %8277 = vmatmul.bf16.gmra.mxu0 %v8019
        %v8278 = vpop.f32.mrf.mxu0
        %v8279 = vadd.f32 0.0, %v8278
        %v8280 = vpop.f32.mrf.mxu0
        %v8281 = vadd.f32 0.0, %v8280
        %8282 = vmatmul.bf16.gmra.mxu0 %v8020
        %v8283 = vpop.f32.mrf.mxu0
        %v8284 = vadd.f32 0.0, %v8283
        %v8285 = vpop.f32.mrf.mxu0
        %v8286 = vadd.f32 0.0, %v8285
        %8287 = vmatmul.bf16.gmra.mxu0 %v8021
        %v8288 = vpop.f32.mrf.mxu0
        %v8289 = vadd.f32 0.0, %v8288
        %v8290 = vpop.f32.mrf.mxu0
        %v8291 = vadd.f32 0.0, %v8290
        %8292 = vmatmul.bf16.gmra.mxu0 %v8022
        %v8293 = vpop.f32.mrf.mxu0
        %v8294 = vadd.f32 0.0, %v8293
        %v8295 = vpop.f32.mrf.mxu0
        %v8296 = vadd.f32 0.0, %v8295
        %8297 = vmatmul.bf16.gmra.mxu0 %v8023
        %v8298 = vpop.f32.mrf.mxu0
        %v8299 = vadd.f32 0.0, %v8298
        %v8300 = vpop.f32.mrf.mxu0
        %v8301 = vadd.f32 0.0, %v8300
        %8302 = vmatmul.bf16.gmra.mxu0 %v8024
        %v8303 = vpop.f32.mrf.mxu0
        %v8304 = vadd.f32 0.0, %v8303
        %v8305 = vpop.f32.mrf.mxu0
        %v8306 = vadd.f32 0.0, %v8305
        %8307 = vmatmul.bf16.gmra.mxu0 %v8025
        %v8308 = vpop.f32.mrf.mxu0
        %v8309 = vadd.f32 0.0, %v8308
        %v8310 = vpop.f32.mrf.mxu0
        %v8311 = vadd.f32 0.0, %v8310
        %8312 = vmatmul.bf16.gmra.mxu0 %v8026
        %v8313 = vpop.f32.mrf.mxu0
        %v8314 = vadd.f32 0.0, %v8313
        %v8315 = vpop.f32.mrf.mxu0
        %v8316 = vadd.f32 0.0, %v8315
        %8317 = vmatmul.bf16.gmra.mxu0 %v8027
        %v8318 = vpop.f32.mrf.mxu0
        %v8319 = vpop.f32.mrf.mxu0
        %8320 = vdwg.mxu0
        %8321 = vmatpush.bf16.msra.mxu0 %v8163
        %8322 = vmatpush.bf16.msra.mxu0 %v8160
        %8323 = vmatpush.bf16.msra.mxu0 %v8157
        %8324 = vmatpush.bf16.msra.mxu0 %v8154
        %8325 = vmatpush.bf16.msra.mxu0 %v8151
        %8326 = vmatpush.bf16.msra.mxu0 %v8148
        %8327 = vmatpush.bf16.msra.mxu0 %v8145
        %8328 = vmatpush.bf16.msra.mxu0 %v8142
        %8329 = vmatmul.bf16.gmra.mxu0 %v8003
        %v8330 = vpop.f32.mrf.mxu0
        %v8331 = vadd.f32 0.0, %v8330
        %v8332 = vpop.f32.mrf.mxu0
        %v8333 = vadd.f32 0.0, %v8332
        %8334 = vmatmul.bf16.gmra.mxu0 %v8004
        %v8335 = vpop.f32.mrf.mxu0
        %v8336 = vadd.f32 0.0, %v8335
        %v8337 = vpop.f32.mrf.mxu0
        %v8338 = vadd.f32 0.0, %v8337
        %8339 = vmatmul.bf16.gmra.mxu0 %v8005
        %v8340 = vpop.f32.mrf.mxu0
        %v8341 = vadd.f32 0.0, %v8340
        %v8342 = vpop.f32.mrf.mxu0
        %v8343 = vadd.f32 0.0, %v8342
        %8344 = vmatmul.bf16.gmra.mxu0 %v8006
        %v8345 = vpop.f32.mrf.mxu0
        %v8346 = vadd.f32 0.0, %v8345
        %v8347 = vpop.f32.mrf.mxu0
        %v8348 = vadd.f32 0.0, %v8347
        %8349 = vmatmul.bf16.gmra.mxu0 %v8007
        %v8350 = vpop.f32.mrf.mxu0
        %v8351 = vadd.f32 0.0, %v8350
        %v8352 = vpop.f32.mrf.mxu0
        %v8353 = vadd.f32 0.0, %v8352
        %8354 = vmatmul.bf16.gmra.mxu0 %v8008
        %v8355 = vpop.f32.mrf.mxu0
        %v8356 = vadd.f32 0.0, %v8355
        %v8357 = vpop.f32.mrf.mxu0
        %v8358 = vadd.f32 0.0, %v8357
        %8359 = vmatmul.bf16.gmra.mxu0 %v8009
        %v8360 = vpop.f32.mrf.mxu0
        %v8361 = vadd.f32 0.0, %v8360
        %v8362 = vpop.f32.mrf.mxu0
        %v8363 = vadd.f32 0.0, %v8362
        %8364 = vmatmul.bf16.gmra.mxu0 %v8010
        %v8365 = vpop.f32.mrf.mxu0
        %v8366 = vadd.f32 0.0, %v8365
        %v8367 = vpop.f32.mrf.mxu0
        %v8368 = vadd.f32 0.0, %v8367
        %8369 = vmatmul.bf16.gmra.mxu0 %v8011
        %v8370 = vpop.f32.mrf.mxu0
        %v8371 = vadd.f32 0.0, %v8370
        %v8372 = vpop.f32.mrf.mxu0
        %v8373 = vadd.f32 0.0, %v8372
        %8374 = vmatmul.bf16.gmra.mxu0 %v8012
        %v8375 = vpop.f32.mrf.mxu0
        %v8376 = vadd.f32 0.0, %v8375
        %v8377 = vpop.f32.mrf.mxu0
        %v8378 = vadd.f32 0.0, %v8377
        %8379 = vmatmul.bf16.gmra.mxu0 %v8013
        %v8380 = vpop.f32.mrf.mxu0
        %v8381 = vadd.f32 0.0, %v8380
        %v8382 = vpop.f32.mrf.mxu0
        %v8383 = vadd.f32 0.0, %v8382
        %8384 = vmatmul.bf16.gmra.mxu0 %v8014
        %v8385 = vpop.f32.mrf.mxu0
        %v8386 = vadd.f32 0.0, %v8385
        %v8387 = vpop.f32.mrf.mxu0
        %v8388 = vadd.f32 0.0, %v8387
        %8389 = vmatmul.bf16.gmra.mxu0 %v8015
        %v8390 = vpop.f32.mrf.mxu0
        %v8391 = vadd.f32 0.0, %v8390
        %v8392 = vpop.f32.mrf.mxu0
        %v8393 = vadd.f32 0.0, %v8392
        %8394 = vmatmul.bf16.gmra.mxu0 %v8016
        %v8395 = vpop.f32.mrf.mxu0
        %v8396 = vadd.f32 0.0, %v8395
        %v8397 = vpop.f32.mrf.mxu0
        %v8398 = vadd.f32 0.0, %v8397
        %8399 = vmatmul.bf16.gmra.mxu0 %v8017
        %v8400 = vpop.f32.mrf.mxu0
        %v8401 = vadd.f32 0.0, %v8400
        %v8402 = vpop.f32.mrf.mxu0
        %v8403 = vadd.f32 0.0, %v8402
        %8404 = vmatmul.bf16.gmra.mxu0 %v8018
        %v8405 = vpop.f32.mrf.mxu0
        %v8406 = vadd.f32 0.0, %v8405
        %v8407 = vpop.f32.mrf.mxu0
        %v8408 = vadd.f32 0.0, %v8407
        %8409 = vmatmul.bf16.gmra.mxu0 %v8019
        %v8410 = vpop.f32.mrf.mxu0
        %v8411 = vadd.f32 0.0, %v8410
        %v8412 = vpop.f32.mrf.mxu0
        %v8413 = vadd.f32 0.0, %v8412
        %8414 = vmatmul.bf16.gmra.mxu0 %v8020
        %v8415 = vpop.f32.mrf.mxu0
        %v8416 = vadd.f32 0.0, %v8415
        %v8417 = vpop.f32.mrf.mxu0
        %v8418 = vadd.f32 0.0, %v8417
        %8419 = vmatmul.bf16.gmra.mxu0 %v8021
        %v8420 = vpop.f32.mrf.mxu0
        %v8421 = vadd.f32 0.0, %v8420
        %v8422 = vpop.f32.mrf.mxu0
        %v8423 = vadd.f32 0.0, %v8422
        %8424 = vmatmul.bf16.gmra.mxu0 %v8022
        %v8425 = vpop.f32.mrf.mxu0
        %v8426 = vadd.f32 0.0, %v8425
        %v8427 = vpop.f32.mrf.mxu0
        %v8428 = vadd.f32 0.0, %v8427
        %8429 = vmatmul.bf16.gmra.mxu0 %v8023
        %v8430 = vpop.f32.mrf.mxu0
        %v8431 = vadd.f32 0.0, %v8430
        %v8432 = vpop.f32.mrf.mxu0
        %v8433 = vadd.f32 0.0, %v8432
        %8434 = vmatmul.bf16.gmra.mxu0 %v8024
        %v8435 = vpop.f32.mrf.mxu0
        %v8436 = vadd.f32 0.0, %v8435
        %v8437 = vpop.f32.mrf.mxu0
        %v8438 = vadd.f32 0.0, %v8437
        %8439 = vmatmul.bf16.gmra.mxu0 %v8025
        %v8440 = vpop.f32.mrf.mxu0
        %v8441 = vadd.f32 0.0, %v8440
        %v8442 = vpop.f32.mrf.mxu0
        %v8443 = vadd.f32 0.0, %v8442
        %8444 = vmatmul.bf16.gmra.mxu0 %v8026
        %v8445 = vpop.f32.mrf.mxu0
        %v8446 = vadd.f32 0.0, %v8445
        %v8447 = vpop.f32.mrf.mxu0
        %v8448 = vadd.f32 0.0, %v8447
        %8449 = vmatmul.bf16.gmra.mxu0 %v8027
        %v8450 = vpop.f32.mrf.mxu0
        %v8451 = vadd.f32 0.0, %v8450
        %v8452 = vpop.f32.mrf.mxu0
        %8453 = vdwg.mxu0
        %8454 = vmatpush.bf16.msra.mxu0 %v8164
        %8455 = vmatpush.bf16.msra.mxu0 %v8161
        %8456 = vmatpush.bf16.msra.mxu0 %v8158
        %8457 = vmatpush.bf16.msra.mxu0 %v8155
        %8458 = vmatpush.bf16.msra.mxu0 %v8152
        %8459 = vmatpush.bf16.msra.mxu0 %v8149
        %8460 = vmatpush.bf16.msra.mxu0 %v8146
        %8461 = vmatpush.bf16.msra.mxu0 %v8143
        %8462 = vmatmul.bf16.gmra.mxu0 %v8003
        %v8463 = vpop.f32.mrf.mxu0
        %v8464 = vadd.f32 0.0, %v8463
        %v8465 = vpop.f32.mrf.mxu0
        %v8466 = vadd.f32 0.0, %v8465
        %8467 = vmatmul.bf16.gmra.mxu0 %v8004
        %v8468 = vpop.f32.mrf.mxu0
        %v8469 = vadd.f32 0.0, %v8468
        %v8470 = vpop.f32.mrf.mxu0
        %v8471 = vadd.f32 0.0, %v8470
        %8472 = vmatmul.bf16.gmra.mxu0 %v8005
        %v8473 = vpop.f32.mrf.mxu0
        %v8474 = vadd.f32 0.0, %v8473
        %v8475 = vpop.f32.mrf.mxu0
        %v8476 = vadd.f32 0.0, %v8475
        %8477 = vmatmul.bf16.gmra.mxu0 %v8006
        %v8478 = vpop.f32.mrf.mxu0
        %v8479 = vadd.f32 0.0, %v8478
        %v8480 = vpop.f32.mrf.mxu0
        %v8481 = vadd.f32 0.0, %v8480
        %8482 = vmatmul.bf16.gmra.mxu0 %v8007
        %v8483 = vpop.f32.mrf.mxu0
        %v8484 = vadd.f32 0.0, %v8483
        %v8485 = vpop.f32.mrf.mxu0
        %v8486 = vadd.f32 0.0, %v8485
        %8487 = vmatmul.bf16.gmra.mxu0 %v8008
        %v8488 = vpop.f32.mrf.mxu0
        %v8489 = vadd.f32 0.0, %v8488
        %v8490 = vpop.f32.mrf.mxu0
        %v8491 = vadd.f32 0.0, %v8490
        %8492 = vmatmul.bf16.gmra.mxu0 %v8009
        %v8493 = vpop.f32.mrf.mxu0
        %v8494 = vadd.f32 0.0, %v8493
        %v8495 = vpop.f32.mrf.mxu0
        %v8496 = vadd.f32 0.0, %v8495
        %8497 = vmatmul.bf16.gmra.mxu0 %v8010
        %v8498 = vpop.f32.mrf.mxu0
        %v8499 = vadd.f32 0.0, %v8498
        %v8500 = vpop.f32.mrf.mxu0
        %v8501 = vadd.f32 0.0, %v8500
        %8502 = vmatmul.bf16.gmra.mxu0 %v8011
        %v8503 = vpop.f32.mrf.mxu0
        %v8504 = vadd.f32 0.0, %v8503
        %v8505 = vpop.f32.mrf.mxu0
        %v8506 = vadd.f32 0.0, %v8505
        %8507 = vmatmul.bf16.gmra.mxu0 %v8012
        %v8508 = vpop.f32.mrf.mxu0
        %v8509 = vadd.f32 0.0, %v8508
        %v8510 = vpop.f32.mrf.mxu0
        %v8511 = vadd.f32 0.0, %v8510
        %8512 = vmatmul.bf16.gmra.mxu0 %v8013
        %v8513 = vpop.f32.mrf.mxu0
        %v8514 = vadd.f32 0.0, %v8513
        %v8515 = vpop.f32.mrf.mxu0
        %v8516 = vadd.f32 0.0, %v8515
        %8517 = vmatmul.bf16.gmra.mxu0 %v8014
        %v8518 = vpop.f32.mrf.mxu0
        %v8519 = vadd.f32 0.0, %v8518
        %v8520 = vpop.f32.mrf.mxu0
        %v8521 = vadd.f32 0.0, %v8520
        %8522 = vmatmul.bf16.gmra.mxu0 %v8015
        %v8523 = vpop.f32.mrf.mxu0
        %v8524 = vadd.f32 0.0, %v8523
        %v8525 = vpop.f32.mrf.mxu0
        %v8526 = vadd.f32 0.0, %v8525
        %8527 = vmatmul.bf16.gmra.mxu0 %v8016
        %v8528 = vpop.f32.mrf.mxu0
        %v8529 = vadd.f32 0.0, %v8528
        %v8530 = vpop.f32.mrf.mxu0
        %v8531 = vadd.f32 0.0, %v8530
        %8532 = vmatmul.bf16.gmra.mxu0 %v8017
        %v8533 = vpop.f32.mrf.mxu0
        %v8534 = vadd.f32 0.0, %v8533
        %v8535 = vpop.f32.mrf.mxu0
        %v8536 = vadd.f32 0.0, %v8535
        %8537 = vmatmul.bf16.gmra.mxu0 %v8018
        %v8538 = vpop.f32.mrf.mxu0
        %v8539 = vadd.f32 0.0, %v8538
        %v8540 = vpop.f32.mrf.mxu0
        %v8541 = vadd.f32 0.0, %v8540
        %8542 = vmatmul.bf16.gmra.mxu0 %v8019
        %v8543 = vpop.f32.mrf.mxu0
        %v8544 = vadd.f32 0.0, %v8543
        %v8545 = vpop.f32.mrf.mxu0
        %v8546 = vadd.f32 0.0, %v8545
        %8547 = vmatmul.bf16.gmra.mxu0 %v8020
        %v8548 = vpop.f32.mrf.mxu0
        %v8549 = vadd.f32 0.0, %v8548
        %v8550 = vpop.f32.mrf.mxu0
        %v8551 = vadd.f32 0.0, %v8550
        %8552 = vmatmul.bf16.gmra.mxu0 %v8021
        %v8553 = vpop.f32.mrf.mxu0
        %v8554 = vadd.f32 0.0, %v8553
        %v8555 = vpop.f32.mrf.mxu0
        %v8556 = vadd.f32 0.0, %v8555
        %8557 = vmatmul.bf16.gmra.mxu0 %v8022
        %v8558 = vpop.f32.mrf.mxu0
        %v8559 = vadd.f32 0.0, %v8558
        %v8560 = vpop.f32.mrf.mxu0
        %v8561 = vadd.f32 0.0, %v8560
        %8562 = vmatmul.bf16.gmra.mxu0 %v8023
        %v8563 = vpop.f32.mrf.mxu0
        %v8564 = vadd.f32 0.0, %v8563
        %v8565 = vpop.f32.mrf.mxu0
        %v8566 = vadd.f32 0.0, %v8565
        %8567 = vmatmul.bf16.gmra.mxu0 %v8024
        %v8568 = vpop.f32.mrf.mxu0
        %v8569 = vadd.f32 0.0, %v8568
        %v8570 = vpop.f32.mrf.mxu0
        %v8571 = vadd.f32 0.0, %v8570
        %8572 = vmatmul.bf16.gmra.mxu0 %v8025
        %v8573 = vpop.f32.mrf.mxu0
        %v8574 = vadd.f32 0.0, %v8573
        %v8575 = vpop.f32.mrf.mxu0
        %v8576 = vadd.f32 0.0, %v8575
        %8577 = vmatmul.bf16.gmra.mxu0 %v8026
        %v8578 = vpop.f32.mrf.mxu0
        %v8579 = vadd.f32 0.0, %v8578
        %v8580 = vpop.f32.mrf.mxu0
        %v8581 = vadd.f32 0.0, %v8580
        %8582 = vmatmul.bf16.gmra.mxu0 %v8027
        %v8583 = vpop.f32.mrf.mxu0
        %v8584 = vadd.f32 0.0, %v8583
        %v8585 = vpop.f32.mrf.mxu0
        %8586 = vdwg.mxu0
        %v8587 = vadd.f32 %v7906, %v8199
        %v8588 = vadd.f32 %v7907, %v8201
        %v8589 = vadd.f32 %v7908, %v8204
        %v8590 = vadd.f32 %v7909, %v8206
        %v8591 = vadd.f32 %v7910, %v8209
        %v8592 = vadd.f32 %v7911, %v8211
        %v8593 = vadd.f32 %v7912, %v8214
        %v8594 = vadd.f32 %v7913, %v8216
        %v8595 = vadd.f32 %v7914, %v8219
        %v8596 = vadd.f32 %v7915, %v8221
        %v8597 = vadd.f32 %v7916, %v8224
        %v8598 = vadd.f32 %v7917, %v8226
        %v8599 = vadd.f32 %v7918, %v8229
        %v8600 = vadd.f32 %v7919, %v8231
        %v8601 = vadd.f32 %v7920, %v8234
        %v8602 = vadd.f32 %v7921, %v8236
        %v8603 = vadd.f32 %v7922, %v8239
        %v8604 = vadd.f32 %v7923, %v8241
        %v8605 = vadd.f32 %v7924, %v8244
        %v8606 = vadd.f32 %v7925, %v8246
        %v8607 = vadd.f32 %v7926, %v8249
        %v8608 = vadd.f32 %v7927, %v8251
        %v8609 = vadd.f32 %v7928, %v8254
        %v8610 = vadd.f32 %v7929, %v8256
        %v8611 = vadd.f32 %v7930, %v8259
        %v8612 = vadd.f32 %v7931, %v8261
        %v8613 = vadd.f32 %v7932, %v8264
        %v8614 = vadd.f32 %v7933, %v8266
        %v8615 = vadd.f32 %v7934, %v8269
        %v8616 = vadd.f32 %v7935, %v8271
        %v8617 = vadd.f32 %v7936, %v8274
        %v8618 = vadd.f32 %v7937, %v8276
        %v8619 = vadd.f32 %v7938, %v8279
        %v8620 = vadd.f32 %v7939, %v8281
        %v8621 = vadd.f32 %v7940, %v8284
        %v8622 = vadd.f32 %v7941, %v8286
        %v8623 = vadd.f32 %v7942, %v8289
        %v8624 = vadd.f32 %v7943, %v8291
        %v8625 = vadd.f32 %v7944, %v8294
        %v8626 = vadd.f32 %v7945, %v8296
        %v8627 = vadd.f32 %v7946, %v8299
        %v8628 = vadd.f32 %v7947, %v8301
        %v8629 = vadd.f32 %v7948, %v8304
        %v8630 = vadd.f32 %v7949, %v8306
        %v8631 = vadd.f32 %v7950, %v8309
        %v8632 = vadd.f32 %v7951, %v8311
        %v8633 = vadd.f32 %v7952, %v8314
        %v8634 = vadd.f32 %v7953, %v8316
        %v8684 = vrot.slane %v8331, 1
        %v8685 = vrot.slane %v8333, 1
        %v8686 = vsel %vm953, %v8684, %v8685
        %v8687 = vrot.slane %v8336, 1
        %v8688 = vsel %vm953, %v8685, %v8687
        %v8689 = vrot.slane %v8338, 1
        %v8690 = vsel %vm953, %v8687, %v8689
        %v8691 = vrot.slane %v8341, 1
        %v8692 = vsel %vm953, %v8689, %v8691
        %v8693 = vrot.slane %v8343, 1
        %v8694 = vsel %vm953, %v8691, %v8693
        %v8695 = vrot.slane %v8346, 1
        %v8696 = vsel %vm953, %v8693, %v8695
        %v8697 = vrot.slane %v8348, 1
        %v8698 = vsel %vm953, %v8695, %v8697
        %v8699 = vrot.slane %v8351, 1
        %v8700 = vsel %vm953, %v8697, %v8699
        %v8701 = vrot.slane %v8353, 1
        %v8702 = vsel %vm953, %v8699, %v8701
        %v8703 = vrot.slane %v8356, 1
        %v8704 = vsel %vm953, %v8701, %v8703
        %v8705 = vrot.slane %v8358, 1
        %v8706 = vsel %vm953, %v8703, %v8705
        %v8707 = vrot.slane %v8361, 1
        %v8708 = vsel %vm953, %v8705, %v8707
        %v8709 = vrot.slane %v8363, 1
        %v8710 = vsel %vm953, %v8707, %v8709
        %v8711 = vrot.slane %v8366, 1
        %v8712 = vsel %vm953, %v8709, %v8711
        %v8713 = vrot.slane %v8368, 1
        %v8714 = vsel %vm953, %v8711, %v8713
        %v8715 = vrot.slane %v8371, 1
        %v8716 = vsel %vm953, %v8713, %v8715
        %v8717 = vrot.slane %v8373, 1
        %v8718 = vsel %vm953, %v8715, %v8717
        %v8719 = vrot.slane %v8376, 1
        %v8720 = vsel %vm953, %v8717, %v8719
        %v8721 = vrot.slane %v8378, 1
        %v8722 = vsel %vm953, %v8719, %v8721
        %v8723 = vrot.slane %v8381, 1
        %v8724 = vsel %vm953, %v8721, %v8723
        %v8725 = vrot.slane %v8383, 1
        %v8726 = vsel %vm953, %v8723, %v8725
        %v8727 = vrot.slane %v8386, 1
        %v8728 = vsel %vm953, %v8725, %v8727
        %v8729 = vrot.slane %v8388, 1
        %v8730 = vsel %vm953, %v8727, %v8729
        %v8731 = vrot.slane %v8391, 1
        %v8732 = vsel %vm953, %v8729, %v8731
        %v8733 = vrot.slane %v8393, 1
        %v8734 = vsel %vm953, %v8731, %v8733
        %v8735 = vrot.slane %v8396, 1
        %v8736 = vsel %vm953, %v8733, %v8735
        %v8737 = vrot.slane %v8398, 1
        %v8738 = vsel %vm953, %v8735, %v8737
        %v8739 = vrot.slane %v8401, 1
        %v8740 = vsel %vm953, %v8737, %v8739
        %v8741 = vrot.slane %v8403, 1
        %v8742 = vsel %vm953, %v8739, %v8741
        %v8743 = vrot.slane %v8406, 1
        %v8744 = vsel %vm953, %v8741, %v8743
        %v8745 = vrot.slane %v8408, 1
        %v8746 = vsel %vm953, %v8743, %v8745
        %v8747 = vrot.slane %v8411, 1
        %v8748 = vsel %vm953, %v8745, %v8747
        %v8749 = vrot.slane %v8413, 1
        %v8750 = vsel %vm953, %v8747, %v8749
        %v8751 = vrot.slane %v8416, 1
        %v8752 = vsel %vm953, %v8749, %v8751
        %v8753 = vrot.slane %v8418, 1
        %v8754 = vsel %vm953, %v8751, %v8753
        %v8755 = vrot.slane %v8421, 1
        %v8756 = vsel %vm953, %v8753, %v8755
        %v8757 = vrot.slane %v8423, 1
        %v8758 = vsel %vm953, %v8755, %v8757
        %v8759 = vrot.slane %v8426, 1
        %v8760 = vsel %vm953, %v8757, %v8759
        %v8761 = vrot.slane %v8428, 1
        %v8762 = vsel %vm953, %v8759, %v8761
        %v8763 = vrot.slane %v8431, 1
        %v8764 = vsel %vm953, %v8761, %v8763
        %v8765 = vrot.slane %v8433, 1
        %v8766 = vsel %vm953, %v8763, %v8765
        %v8767 = vrot.slane %v8436, 1
        %v8768 = vsel %vm953, %v8765, %v8767
        %v8769 = vrot.slane %v8438, 1
        %v8770 = vsel %vm953, %v8767, %v8769
        %v8771 = vrot.slane %v8441, 1
        %v8772 = vsel %vm953, %v8769, %v8771
        %v8773 = vrot.slane %v8443, 1
        %v8774 = vsel %vm953, %v8771, %v8773
        %v8775 = vrot.slane %v8446, 1
        %v8776 = vsel %vm953, %v8773, %v8775
        %v8777 = vrot.slane %v8448, 1
        %v8778 = vsel %vm953, %v8775, %v8777
        %v8779 = vrot.slane %v8451, 1
        %v8780 = vsel %vm953, %v8777, %v8779
        %v8829 = vadd.f32 %v8587, %v8686
        %v8830 = vadd.f32 %v8588, %v8688
        %v8831 = vadd.f32 %v8589, %v8690
        %v8832 = vadd.f32 %v8590, %v8692
        %v8833 = vadd.f32 %v8591, %v8694
        %v8834 = vadd.f32 %v8592, %v8696
        %v8835 = vadd.f32 %v8593, %v8698
        %v8836 = vadd.f32 %v8594, %v8700
        %v8837 = vadd.f32 %v8595, %v8702
        %v8838 = vadd.f32 %v8596, %v8704
        %v8839 = vadd.f32 %v8597, %v8706
        %v8840 = vadd.f32 %v8598, %v8708
        %v8841 = vadd.f32 %v8599, %v8710
        %v8842 = vadd.f32 %v8600, %v8712
        %v8843 = vadd.f32 %v8601, %v8714
        %v8844 = vadd.f32 %v8602, %v8716
        %v8845 = vadd.f32 %v8603, %v8718
        %v8846 = vadd.f32 %v8604, %v8720
        %v8847 = vadd.f32 %v8605, %v8722
        %v8848 = vadd.f32 %v8606, %v8724
        %v8849 = vadd.f32 %v8607, %v8726
        %v8850 = vadd.f32 %v8608, %v8728
        %v8851 = vadd.f32 %v8609, %v8730
        %v8852 = vadd.f32 %v8610, %v8732
        %v8853 = vadd.f32 %v8611, %v8734
        %v8854 = vadd.f32 %v8612, %v8736
        %v8855 = vadd.f32 %v8613, %v8738
        %v8856 = vadd.f32 %v8614, %v8740
        %v8857 = vadd.f32 %v8615, %v8742
        %v8858 = vadd.f32 %v8616, %v8744
        %v8859 = vadd.f32 %v8617, %v8746
        %v8860 = vadd.f32 %v8618, %v8748
        %v8861 = vadd.f32 %v8619, %v8750
        %v8862 = vadd.f32 %v8620, %v8752
        %v8863 = vadd.f32 %v8621, %v8754
        %v8864 = vadd.f32 %v8622, %v8756
        %v8865 = vadd.f32 %v8623, %v8758
        %v8866 = vadd.f32 %v8624, %v8760
        %v8867 = vadd.f32 %v8625, %v8762
        %v8868 = vadd.f32 %v8626, %v8764
        %v8869 = vadd.f32 %v8627, %v8766
        %v8870 = vadd.f32 %v8628, %v8768
        %v8871 = vadd.f32 %v8629, %v8770
        %v8872 = vadd.f32 %v8630, %v8772
        %v8873 = vadd.f32 %v8631, %v8774
        %v8874 = vadd.f32 %v8632, %v8776
        %v8875 = vadd.f32 %v8633, %v8778
        %v8876 = vadd.f32 %v8634, %v8780
        %v8926 = vrot.slane %v8464, 2
        %v8927 = vrot.slane %v8466, 2
        %v8928 = vsel %vm1196, %v8926, %v8927
        %v8929 = vrot.slane %v8469, 2
        %v8930 = vsel %vm1196, %v8927, %v8929
        %v8931 = vrot.slane %v8471, 2
        %v8932 = vsel %vm1196, %v8929, %v8931
        %v8933 = vrot.slane %v8474, 2
        %v8934 = vsel %vm1196, %v8931, %v8933
        %v8935 = vrot.slane %v8476, 2
        %v8936 = vsel %vm1196, %v8933, %v8935
        %v8937 = vrot.slane %v8479, 2
        %v8938 = vsel %vm1196, %v8935, %v8937
        %v8939 = vrot.slane %v8481, 2
        %v8940 = vsel %vm1196, %v8937, %v8939
        %v8941 = vrot.slane %v8484, 2
        %v8942 = vsel %vm1196, %v8939, %v8941
        %v8943 = vrot.slane %v8486, 2
        %v8944 = vsel %vm1196, %v8941, %v8943
        %v8945 = vrot.slane %v8489, 2
        %v8946 = vsel %vm1196, %v8943, %v8945
        %v8947 = vrot.slane %v8491, 2
        %v8948 = vsel %vm1196, %v8945, %v8947
        %v8949 = vrot.slane %v8494, 2
        %v8950 = vsel %vm1196, %v8947, %v8949
        %v8951 = vrot.slane %v8496, 2
        %v8952 = vsel %vm1196, %v8949, %v8951
        %v8953 = vrot.slane %v8499, 2
        %v8954 = vsel %vm1196, %v8951, %v8953
        %v8955 = vrot.slane %v8501, 2
        %v8956 = vsel %vm1196, %v8953, %v8955
        %v8957 = vrot.slane %v8504, 2
        %v8958 = vsel %vm1196, %v8955, %v8957
        %v8959 = vrot.slane %v8506, 2
        %v8960 = vsel %vm1196, %v8957, %v8959
        %v8961 = vrot.slane %v8509, 2
        %v8962 = vsel %vm1196, %v8959, %v8961
        %v8963 = vrot.slane %v8511, 2
        %v8964 = vsel %vm1196, %v8961, %v8963
        %v8965 = vrot.slane %v8514, 2
        %v8966 = vsel %vm1196, %v8963, %v8965
        %v8967 = vrot.slane %v8516, 2
        %v8968 = vsel %vm1196, %v8965, %v8967
        %v8969 = vrot.slane %v8519, 2
        %v8970 = vsel %vm1196, %v8967, %v8969
        %v8971 = vrot.slane %v8521, 2
        %v8972 = vsel %vm1196, %v8969, %v8971
        %v8973 = vrot.slane %v8524, 2
        %v8974 = vsel %vm1196, %v8971, %v8973
        %v8975 = vrot.slane %v8526, 2
        %v8976 = vsel %vm1196, %v8973, %v8975
        %v8977 = vrot.slane %v8529, 2
        %v8978 = vsel %vm1196, %v8975, %v8977
        %v8979 = vrot.slane %v8531, 2
        %v8980 = vsel %vm1196, %v8977, %v8979
        %v8981 = vrot.slane %v8534, 2
        %v8982 = vsel %vm1196, %v8979, %v8981
        %v8983 = vrot.slane %v8536, 2
        %v8984 = vsel %vm1196, %v8981, %v8983
        %v8985 = vrot.slane %v8539, 2
        %v8986 = vsel %vm1196, %v8983, %v8985
        %v8987 = vrot.slane %v8541, 2
        %v8988 = vsel %vm1196, %v8985, %v8987
        %v8989 = vrot.slane %v8544, 2
        %v8990 = vsel %vm1196, %v8987, %v8989
        %v8991 = vrot.slane %v8546, 2
        %v8992 = vsel %vm1196, %v8989, %v8991
        %v8993 = vrot.slane %v8549, 2
        %v8994 = vsel %vm1196, %v8991, %v8993
        %v8995 = vrot.slane %v8551, 2
        %v8996 = vsel %vm1196, %v8993, %v8995
        %v8997 = vrot.slane %v8554, 2
        %v8998 = vsel %vm1196, %v8995, %v8997
        %v8999 = vrot.slane %v8556, 2
        %v9000 = vsel %vm1196, %v8997, %v8999
        %v9001 = vrot.slane %v8559, 2
        %v9002 = vsel %vm1196, %v8999, %v9001
        %v9003 = vrot.slane %v8561, 2
        %v9004 = vsel %vm1196, %v9001, %v9003
        %v9005 = vrot.slane %v8564, 2
        %v9006 = vsel %vm1196, %v9003, %v9005
        %v9007 = vrot.slane %v8566, 2
        %v9008 = vsel %vm1196, %v9005, %v9007
        %v9009 = vrot.slane %v8569, 2
        %v9010 = vsel %vm1196, %v9007, %v9009
        %v9011 = vrot.slane %v8571, 2
        %v9012 = vsel %vm1196, %v9009, %v9011
        %v9013 = vrot.slane %v8574, 2
        %v9014 = vsel %vm1196, %v9011, %v9013
        %v9015 = vrot.slane %v8576, 2
        %v9016 = vsel %vm1196, %v9013, %v9015
        %v9017 = vrot.slane %v8579, 2
        %v9018 = vsel %vm1196, %v9015, %v9017
        %v9019 = vrot.slane %v8581, 2
        %v9020 = vsel %vm1196, %v9017, %v9019
        %v9021 = vrot.slane %v8584, 2
        %v9022 = vsel %vm1196, %v9019, %v9021
        %v9071 = vadd.f32 %v8829, %v8928
        %v9072 = vadd.f32 %v8830, %v8930
        %v9073 = vadd.f32 %v8831, %v8932
        %v9074 = vadd.f32 %v8832, %v8934
        %v9075 = vadd.f32 %v8833, %v8936
        %v9076 = vadd.f32 %v8834, %v8938
        %v9077 = vadd.f32 %v8835, %v8940
        %v9078 = vadd.f32 %v8836, %v8942
        %v9079 = vadd.f32 %v8837, %v8944
        %v9080 = vadd.f32 %v8838, %v8946
        %v9081 = vadd.f32 %v8839, %v8948
        %v9082 = vadd.f32 %v8840, %v8950
        %v9083 = vadd.f32 %v8841, %v8952
        %v9084 = vadd.f32 %v8842, %v8954
        %v9085 = vadd.f32 %v8843, %v8956
        %v9086 = vadd.f32 %v8844, %v8958
        %v9087 = vadd.f32 %v8845, %v8960
        %v9088 = vadd.f32 %v8846, %v8962
        %v9089 = vadd.f32 %v8847, %v8964
        %v9090 = vadd.f32 %v8848, %v8966
        %v9091 = vadd.f32 %v8849, %v8968
        %v9092 = vadd.f32 %v8850, %v8970
        %v9093 = vadd.f32 %v8851, %v8972
        %v9094 = vadd.f32 %v8852, %v8974
        %v9095 = vadd.f32 %v8853, %v8976
        %v9096 = vadd.f32 %v8854, %v8978
        %v9097 = vadd.f32 %v8855, %v8980
        %v9098 = vadd.f32 %v8856, %v8982
        %v9099 = vadd.f32 %v8857, %v8984
        %v9100 = vadd.f32 %v8858, %v8986
        %v9101 = vadd.f32 %v8859, %v8988
        %v9102 = vadd.f32 %v8860, %v8990
        %v9103 = vadd.f32 %v8861, %v8992
        %v9104 = vadd.f32 %v8862, %v8994
        %v9105 = vadd.f32 %v8863, %v8996
        %v9106 = vadd.f32 %v8864, %v8998
        %v9107 = vadd.f32 %v8865, %v9000
        %v9108 = vadd.f32 %v8866, %v9002
        %v9109 = vadd.f32 %v8867, %v9004
        %v9110 = vadd.f32 %v8868, %v9006
        %v9111 = vadd.f32 %v8869, %v9008
        %v9112 = vadd.f32 %v8870, %v9010
        %v9113 = vadd.f32 %v8871, %v9012
        %v9114 = vadd.f32 %v8872, %v9014
        %v9115 = vadd.f32 %v8873, %v9016
        %v9116 = vadd.f32 %v8874, %v9018
        %v9117 = vadd.f32 %v8875, %v9020
        %v9118 = vadd.f32 %v8876, %v9022
        %s9119 = scalar_lea.vmem [#allocation3], 48
        %v9120 = vld [vmem:[%s9119] sm:$0xff]
        %v9121 = vld [vmem:[%s9119 + $0x8] sm:$0xff]
        %v9122 = vld [vmem:[%s9119 + $0x10] sm:$0xff]
        %v9123 = vld [vmem:[%s9119 + $0x18] sm:$0xff]
        %v9124 = vld [vmem:[%s9119 + $0x20] sm:$0xff]
        %v9125 = vld [vmem:[%s9119 + $0x28] sm:$0xff]
        %v9126 = vld [vmem:[%s9119 + $0x30] sm:$0xff]
        %v9127 = vld [vmem:[%s9119 + $0x38] sm:$0xff]
        %v9128 = vld [vmem:[%s9119 + $0x40] sm:$0xff]
        %v9129 = vld [vmem:[%s9119 + $0x48] sm:$0xff]
        %v9130 = vld [vmem:[%s9119 + $0x50] sm:$0xff]
        %v9131 = vld [vmem:[%s9119 + $0x58] sm:$0xff]
        %v9132 = vld [vmem:[%s9119 + $0x60] sm:$0xff]
        %v9133 = vld [vmem:[%s9119 + $0x68] sm:$0xff]
        %v9134 = vld [vmem:[%s9119 + $0x70] sm:$0xff]
        %v9135 = vld [vmem:[%s9119 + $0x78] sm:$0xff]
        %v9136 = vld [vmem:[%s9119 + $0x80] sm:$0xff]
        %v9137 = vld [vmem:[%s9119 + $0x88] sm:$0xff]
        %v9138 = vld [vmem:[%s9119 + $0x90] sm:$0xff]
        %v9139 = vld [vmem:[%s9119 + $0x98] sm:$0xff]
        %v9140 = vld [vmem:[%s9119 + $0xa0] sm:$0xff]
        %v9141 = vld [vmem:[%s9119 + $0xa8] sm:$0xff]
        %v9142 = vld [vmem:[%s9119 + $0xb0] sm:$0xff]
        %v9143 = vld [vmem:[%s9119 + $0xb8] sm:$0xff]
        %v9144 = vld [vmem:[%s9119 + $0xc0] sm:$0xff]
        %v9145 = vld [vmem:[%s9119 + $0xc8] sm:$0xff]
        %v9146 = vld [vmem:[%s9119 + $0xd0] sm:$0xff]
        %v9147 = vld [vmem:[%s9119 + $0xd8] sm:$0xff]
        %v9148 = vld [vmem:[%s9119 + $0xe0] sm:$0xff]
        %v9149 = vld [vmem:[%s9119 + $0xe8] sm:$0xff]
        %v9150 = vld [vmem:[%s9119 + $0xf0] sm:$0xff]
        %v9151 = vld [vmem:[%s9119 + $0xf8] sm:$0xff]
        %v9152 = vld [vmem:[%s9119 + $0x100] sm:$0xff]
        %v9153 = vld [vmem:[%s9119 + $0x108] sm:$0xff]
        %v9154 = vld [vmem:[%s9119 + $0x110] sm:$0xff]
        %v9155 = vld [vmem:[%s9119 + $0x118] sm:$0xff]
        %v9156 = vld [vmem:[%s9119 + $0x120] sm:$0xff]
        %v9157 = vld [vmem:[%s9119 + $0x128] sm:$0xff]
        %v9158 = vld [vmem:[%s9119 + $0x130] sm:$0xff]
        %v9159 = vld [vmem:[%s9119 + $0x138] sm:$0xff]
        %v9160 = vld [vmem:[%s9119 + $0x140] sm:$0xff]
        %v9161 = vld [vmem:[%s9119 + $0x148] sm:$0xff]
        %v9162 = vld [vmem:[%s9119 + $0x150] sm:$0xff]
        %v9163 = vld [vmem:[%s9119 + $0x158] sm:$0xff]
        %v9164 = vld [vmem:[%s9119 + $0x160] sm:$0xff]
        %v9165 = vld [vmem:[%s9119 + $0x168] sm:$0xff]
        %v9166 = vld [vmem:[%s9119 + $0x170] sm:$0xff]
        %v9167 = vld [vmem:[%s9119 + $0x178] sm:$0xff]
        %v9168 = vld [vmem:[%s9119 + $0x180] sm:$0xff]
        %v9169 = vpack.c.bf16 %v9121, %v9120
        %v9170 = vpack.c.bf16 %v9123, %v9122
        %v9171 = vpack.c.bf16 %v9125, %v9124
        %v9172 = vpack.c.bf16 %v9127, %v9126
        %v9173 = vpack.c.bf16 %v9129, %v9128
        %v9174 = vpack.c.bf16 %v9131, %v9130
        %v9175 = vpack.c.bf16 %v9133, %v9132
        %v9176 = vpack.c.bf16 %v9135, %v9134
        %v9177 = vpack.c.bf16 %v9137, %v9136
        %v9178 = vpack.c.bf16 %v9139, %v9138
        %v9179 = vpack.c.bf16 %v9141, %v9140
        %v9180 = vpack.c.bf16 %v9143, %v9142
        %v9181 = vpack.c.bf16 %v9145, %v9144
        %v9182 = vpack.c.bf16 %v9147, %v9146
        %v9183 = vpack.c.bf16 %v9149, %v9148
        %v9184 = vpack.c.bf16 %v9151, %v9150
        %v9185 = vpack.c.bf16 %v9153, %v9152
        %v9186 = vpack.c.bf16 %v9155, %v9154
        %v9187 = vpack.c.bf16 %v9157, %v9156
        %v9188 = vpack.c.bf16 %v9159, %v9158
        %v9189 = vpack.c.bf16 %v9161, %v9160
        %v9190 = vpack.c.bf16 %v9163, %v9162
        %v9191 = vpack.c.bf16 %v9165, %v9164
        %v9192 = vpack.c.bf16 %v9167, %v9166
        %v9193 = vpack.c.bf16 %v9168, %v9168
        %s9194 = scalar_lea.vmem [#allocation9], 384
        %v9195 = vld [vmem:[%s9194] sm:$0xff]
        %v9196 = vld [vmem:[%s9194 + $0x8] sm:$0xf]
        %v9197 = vld [vmem:[%s9194 + $0xc] sm:$0xff]
        %v9198 = vld [vmem:[%s9194 + $0x14] sm:$0xf]
        %v9199 = vld [vmem:[%s9194 + $0x18] sm:$0xff]
        %v9200 = vld [vmem:[%s9194 + $0x20] sm:$0xf]
        %v9201 = vld [vmem:[%s9194 + $0x24] sm:$0xff]
        %v9202 = vld [vmem:[%s9194 + $0x2c] sm:$0xf]
        %v9203 = vld [vmem:[%s9194 + $0x30] sm:$0xff]
        %v9204 = vld [vmem:[%s9194 + $0x38] sm:$0xf]
        %v9205 = vld [vmem:[%s9194 + $0x3c] sm:$0xff]
        %v9206 = vld [vmem:[%s9194 + $0x44] sm:$0xf]
        %v9207 = vld [vmem:[%s9194 + $0x48] sm:$0xff]
        %v9208 = vld [vmem:[%s9194 + $0x50] sm:$0xf]
        %v9209 = vld [vmem:[%s9194 + $0x54] sm:$0xff]
        %v9210 = vld [vmem:[%s9194 + $0x5c] sm:$0xf]
        %v9211 = vld [vmem:[%s9194 + $0x60] sm:$0xff]
        %v9212 = vld [vmem:[%s9194 + $0x68] sm:$0xf]
        %v9213 = vld [vmem:[%s9194 + $0x6c] sm:$0xff]
        %v9214 = vld [vmem:[%s9194 + $0x74] sm:$0xf]
        %v9215 = vld [vmem:[%s9194 + $0x78] sm:$0xff]
        %v9216 = vld [vmem:[%s9194 + $0x80] sm:$0xf]
        %v9217 = vld [vmem:[%s9194 + $0x84] sm:$0xff]
        %v9218 = vld [vmem:[%s9194 + $0x8c] sm:$0xf]
        %v9219 = vld [vmem:[%s9194 + $0x90] sm:$0xff]
        %v9220 = vld [vmem:[%s9194 + $0x98] sm:$0xf]
        %v9221 = vld [vmem:[%s9194 + $0x9c] sm:$0xff]
        %v9222 = vld [vmem:[%s9194 + $0xa4] sm:$0xf]
        %v9223 = vld [vmem:[%s9194 + $0xa8] sm:$0xff]
        %v9224 = vld [vmem:[%s9194 + $0xb0] sm:$0xf]
        %v9225 = vld [vmem:[%s9194 + $0xb4] sm:$0xff]
        %v9226 = vld [vmem:[%s9194 + $0xbc] sm:$0xf]
        %v9259 = vunpack.c.l.b16 %v9195
        %v9260 = vunpack.c.h.b16 %v9195
        %v9261 = vunpack.c.l.b16 %v9196
        %v9262 = vunpack.c.l.b16 %v9197
        %v9263 = vunpack.c.h.b16 %v9197
        %v9264 = vunpack.c.l.b16 %v9198
        %v9265 = vunpack.c.l.b16 %v9199
        %v9266 = vunpack.c.h.b16 %v9199
        %v9267 = vunpack.c.l.b16 %v9200
        %v9268 = vunpack.c.l.b16 %v9201
        %v9269 = vunpack.c.h.b16 %v9201
        %v9270 = vunpack.c.l.b16 %v9202
        %v9271 = vunpack.c.l.b16 %v9203
        %v9272 = vunpack.c.h.b16 %v9203
        %v9273 = vunpack.c.l.b16 %v9204
        %v9274 = vunpack.c.l.b16 %v9205
        %v9275 = vunpack.c.h.b16 %v9205
        %v9276 = vunpack.c.l.b16 %v9206
        %v9277 = vunpack.c.l.b16 %v9207
        %v9278 = vunpack.c.h.b16 %v9207
        %v9279 = vunpack.c.l.b16 %v9208
        %v9280 = vunpack.c.l.b16 %v9209
        %v9281 = vunpack.c.h.b16 %v9209
        %v9282 = vunpack.c.l.b16 %v9210
        %v9283 = vunpack.c.l.b16 %v9211
        %v9284 = vunpack.c.h.b16 %v9211
        %v9285 = vunpack.c.l.b16 %v9212
        %v9286 = vunpack.c.l.b16 %v9213
        %v9287 = vunpack.c.h.b16 %v9213
        %v9288 = vunpack.c.l.b16 %v9214
        %v9289 = vunpack.c.l.b16 %v9215
        %v9290 = vunpack.c.h.b16 %v9215
        %v9291 = vunpack.c.l.b16 %v9216
        %v9292 = vunpack.c.l.b16 %v9217
        %v9293 = vunpack.c.h.b16 %v9217
        %v9294 = vunpack.c.l.b16 %v9218
        %v9295 = vunpack.c.l.b16 %v9219
        %v9296 = vunpack.c.h.b16 %v9219
        %v9297 = vunpack.c.l.b16 %v9220
        %v9298 = vunpack.c.l.b16 %v9221
        %v9299 = vunpack.c.h.b16 %v9221
        %v9300 = vunpack.c.l.b16 %v9222
        %v9301 = vunpack.c.l.b16 %v9223
        %v9302 = vunpack.c.h.b16 %v9223
        %v9303 = vunpack.c.l.b16 %v9224
        %v9304 = vunpack.c.l.b16 %v9225
        %v9305 = vunpack.c.h.b16 %v9225
        %v9306 = vunpack.c.l.b16 %v9226
        %v9307 = vpack.c.b16 %v9262, %v9259
        %v9308 = vpack.c.b16 %v9263, %v9260
        %v9309 = vpack.c.b16 %v9264, %v9261
        %v9310 = vpack.c.b16 %v9268, %v9265
        %v9311 = vpack.c.b16 %v9269, %v9266
        %v9312 = vpack.c.b16 %v9270, %v9267
        %v9313 = vpack.c.b16 %v9274, %v9271
        %v9314 = vpack.c.b16 %v9275, %v9272
        %v9315 = vpack.c.b16 %v9276, %v9273
        %v9316 = vpack.c.b16 %v9280, %v9277
        %v9317 = vpack.c.b16 %v9281, %v9278
        %v9318 = vpack.c.b16 %v9282, %v9279
        %v9319 = vpack.c.b16 %v9286, %v9283
        %v9320 = vpack.c.b16 %v9287, %v9284
        %v9321 = vpack.c.b16 %v9288, %v9285
        %v9322 = vpack.c.b16 %v9292, %v9289
        %v9323 = vpack.c.b16 %v9293, %v9290
        %v9324 = vpack.c.b16 %v9294, %v9291
        %v9325 = vpack.c.b16 %v9298, %v9295
        %v9326 = vpack.c.b16 %v9299, %v9296
        %v9327 = vpack.c.b16 %v9300, %v9297
        %v9328 = vpack.c.b16 %v9304, %v9301
        %v9329 = vpack.c.b16 %v9305, %v9302
        %v9330 = vpack.c.b16 %v9306, %v9303
        %9355 = vmatpush.bf16.msra.mxu0 %v9328
        %9356 = vmatpush.bf16.msra.mxu0 %v9325
        %9357 = vmatpush.bf16.msra.mxu0 %v9322
        %9358 = vmatpush.bf16.msra.mxu0 %v9319
        %9359 = vmatpush.bf16.msra.mxu0 %v9316
        %9360 = vmatpush.bf16.msra.mxu0 %v9313
        %9361 = vmatpush.bf16.msra.mxu0 %v9310
        %9362 = vmatpush.bf16.msra.mxu0 %v9307
        %9363 = vmatmul.bf16.gmra.mxu0 %v9169
        %v9364 = vpop.f32.mrf.mxu0
        %v9365 = vadd.f32 0.0, %v9364
        %v9366 = vpop.f32.mrf.mxu0
        %v9367 = vadd.f32 0.0, %v9366
        %9368 = vmatmul.bf16.gmra.mxu0 %v9170
        %v9369 = vpop.f32.mrf.mxu0
        %v9370 = vadd.f32 0.0, %v9369
        %v9371 = vpop.f32.mrf.mxu0
        %v9372 = vadd.f32 0.0, %v9371
        %9373 = vmatmul.bf16.gmra.mxu0 %v9171
        %v9374 = vpop.f32.mrf.mxu0
        %v9375 = vadd.f32 0.0, %v9374
        %v9376 = vpop.f32.mrf.mxu0
        %v9377 = vadd.f32 0.0, %v9376
        %9378 = vmatmul.bf16.gmra.mxu0 %v9172
        %v9379 = vpop.f32.mrf.mxu0
        %v9380 = vadd.f32 0.0, %v9379
        %v9381 = vpop.f32.mrf.mxu0
        %v9382 = vadd.f32 0.0, %v9381
        %9383 = vmatmul.bf16.gmra.mxu0 %v9173
        %v9384 = vpop.f32.mrf.mxu0
        %v9385 = vadd.f32 0.0, %v9384
        %v9386 = vpop.f32.mrf.mxu0
        %v9387 = vadd.f32 0.0, %v9386
        %9388 = vmatmul.bf16.gmra.mxu0 %v9174
        %v9389 = vpop.f32.mrf.mxu0
        %v9390 = vadd.f32 0.0, %v9389
        %v9391 = vpop.f32.mrf.mxu0
        %v9392 = vadd.f32 0.0, %v9391
        %9393 = vmatmul.bf16.gmra.mxu0 %v9175
        %v9394 = vpop.f32.mrf.mxu0
        %v9395 = vadd.f32 0.0, %v9394
        %v9396 = vpop.f32.mrf.mxu0
        %v9397 = vadd.f32 0.0, %v9396
        %9398 = vmatmul.bf16.gmra.mxu0 %v9176
        %v9399 = vpop.f32.mrf.mxu0
        %v9400 = vadd.f32 0.0, %v9399
        %v9401 = vpop.f32.mrf.mxu0
        %v9402 = vadd.f32 0.0, %v9401
        %9403 = vmatmul.bf16.gmra.mxu0 %v9177
        %v9404 = vpop.f32.mrf.mxu0
        %v9405 = vadd.f32 0.0, %v9404
        %v9406 = vpop.f32.mrf.mxu0
        %v9407 = vadd.f32 0.0, %v9406
        %9408 = vmatmul.bf16.gmra.mxu0 %v9178
        %v9409 = vpop.f32.mrf.mxu0
        %v9410 = vadd.f32 0.0, %v9409
        %v9411 = vpop.f32.mrf.mxu0
        %v9412 = vadd.f32 0.0, %v9411
        %9413 = vmatmul.bf16.gmra.mxu0 %v9179
        %v9414 = vpop.f32.mrf.mxu0
        %v9415 = vadd.f32 0.0, %v9414
        %v9416 = vpop.f32.mrf.mxu0
        %v9417 = vadd.f32 0.0, %v9416
        %9418 = vmatmul.bf16.gmra.mxu0 %v9180
        %v9419 = vpop.f32.mrf.mxu0
        %v9420 = vadd.f32 0.0, %v9419
        %v9421 = vpop.f32.mrf.mxu0
        %v9422 = vadd.f32 0.0, %v9421
        %9423 = vmatmul.bf16.gmra.mxu0 %v9181
        %v9424 = vpop.f32.mrf.mxu0
        %v9425 = vadd.f32 0.0, %v9424
        %v9426 = vpop.f32.mrf.mxu0
        %v9427 = vadd.f32 0.0, %v9426
        %9428 = vmatmul.bf16.gmra.mxu0 %v9182
        %v9429 = vpop.f32.mrf.mxu0
        %v9430 = vadd.f32 0.0, %v9429
        %v9431 = vpop.f32.mrf.mxu0
        %v9432 = vadd.f32 0.0, %v9431
        %9433 = vmatmul.bf16.gmra.mxu0 %v9183
        %v9434 = vpop.f32.mrf.mxu0
        %v9435 = vadd.f32 0.0, %v9434
        %v9436 = vpop.f32.mrf.mxu0
        %v9437 = vadd.f32 0.0, %v9436
        %9438 = vmatmul.bf16.gmra.mxu0 %v9184
        %v9439 = vpop.f32.mrf.mxu0
        %v9440 = vadd.f32 0.0, %v9439
        %v9441 = vpop.f32.mrf.mxu0
        %v9442 = vadd.f32 0.0, %v9441
        %9443 = vmatmul.bf16.gmra.mxu0 %v9185
        %v9444 = vpop.f32.mrf.mxu0
        %v9445 = vadd.f32 0.0, %v9444
        %v9446 = vpop.f32.mrf.mxu0
        %v9447 = vadd.f32 0.0, %v9446
        %9448 = vmatmul.bf16.gmra.mxu0 %v9186
        %v9449 = vpop.f32.mrf.mxu0
        %v9450 = vadd.f32 0.0, %v9449
        %v9451 = vpop.f32.mrf.mxu0
        %v9452 = vadd.f32 0.0, %v9451
        %9453 = vmatmul.bf16.gmra.mxu0 %v9187
        %v9454 = vpop.f32.mrf.mxu0
        %v9455 = vadd.f32 0.0, %v9454
        %v9456 = vpop.f32.mrf.mxu0
        %v9457 = vadd.f32 0.0, %v9456
        %9458 = vmatmul.bf16.gmra.mxu0 %v9188
        %v9459 = vpop.f32.mrf.mxu0
        %v9460 = vadd.f32 0.0, %v9459
        %v9461 = vpop.f32.mrf.mxu0
        %v9462 = vadd.f32 0.0, %v9461
        %9463 = vmatmul.bf16.gmra.mxu0 %v9189
        %v9464 = vpop.f32.mrf.mxu0
        %v9465 = vadd.f32 0.0, %v9464
        %v9466 = vpop.f32.mrf.mxu0
        %v9467 = vadd.f32 0.0, %v9466
        %9468 = vmatmul.bf16.gmra.mxu0 %v9190
        %v9469 = vpop.f32.mrf.mxu0
        %v9470 = vadd.f32 0.0, %v9469
        %v9471 = vpop.f32.mrf.mxu0
        %v9472 = vadd.f32 0.0, %v9471
        %9473 = vmatmul.bf16.gmra.mxu0 %v9191
        %v9474 = vpop.f32.mrf.mxu0
        %v9475 = vadd.f32 0.0, %v9474
        %v9476 = vpop.f32.mrf.mxu0
        %v9477 = vadd.f32 0.0, %v9476
        %9478 = vmatmul.bf16.gmra.mxu0 %v9192
        %v9479 = vpop.f32.mrf.mxu0
        %v9480 = vadd.f32 0.0, %v9479
        %v9481 = vpop.f32.mrf.mxu0
        %v9482 = vadd.f32 0.0, %v9481
        %9483 = vmatmul.bf16.gmra.mxu0 %v9193
        %v9484 = vpop.f32.mrf.mxu0
        %v9485 = vpop.f32.mrf.mxu0
        %9486 = vdwg.mxu0
        %9487 = vmatpush.bf16.msra.mxu0 %v9329
        %9488 = vmatpush.bf16.msra.mxu0 %v9326
        %9489 = vmatpush.bf16.msra.mxu0 %v9323
        %9490 = vmatpush.bf16.msra.mxu0 %v9320
        %9491 = vmatpush.bf16.msra.mxu0 %v9317
        %9492 = vmatpush.bf16.msra.mxu0 %v9314
        %9493 = vmatpush.bf16.msra.mxu0 %v9311
        %9494 = vmatpush.bf16.msra.mxu0 %v9308
        %9495 = vmatmul.bf16.gmra.mxu0 %v9169
        %v9496 = vpop.f32.mrf.mxu0
        %v9497 = vadd.f32 0.0, %v9496
        %v9498 = vpop.f32.mrf.mxu0
        %v9499 = vadd.f32 0.0, %v9498
        %9500 = vmatmul.bf16.gmra.mxu0 %v9170
        %v9501 = vpop.f32.mrf.mxu0
        %v9502 = vadd.f32 0.0, %v9501
        %v9503 = vpop.f32.mrf.mxu0
        %v9504 = vadd.f32 0.0, %v9503
        %9505 = vmatmul.bf16.gmra.mxu0 %v9171
        %v9506 = vpop.f32.mrf.mxu0
        %v9507 = vadd.f32 0.0, %v9506
        %v9508 = vpop.f32.mrf.mxu0
        %v9509 = vadd.f32 0.0, %v9508
        %9510 = vmatmul.bf16.gmra.mxu0 %v9172
        %v9511 = vpop.f32.mrf.mxu0
        %v9512 = vadd.f32 0.0, %v9511
        %v9513 = vpop.f32.mrf.mxu0
        %v9514 = vadd.f32 0.0, %v9513
        %9515 = vmatmul.bf16.gmra.mxu0 %v9173
        %v9516 = vpop.f32.mrf.mxu0
        %v9517 = vadd.f32 0.0, %v9516
        %v9518 = vpop.f32.mrf.mxu0
        %v9519 = vadd.f32 0.0, %v9518
        %9520 = vmatmul.bf16.gmra.mxu0 %v9174
        %v9521 = vpop.f32.mrf.mxu0
        %v9522 = vadd.f32 0.0, %v9521
        %v9523 = vpop.f32.mrf.mxu0
        %v9524 = vadd.f32 0.0, %v9523
        %9525 = vmatmul.bf16.gmra.mxu0 %v9175
        %v9526 = vpop.f32.mrf.mxu0
        %v9527 = vadd.f32 0.0, %v9526
        %v9528 = vpop.f32.mrf.mxu0
        %v9529 = vadd.f32 0.0, %v9528
        %9530 = vmatmul.bf16.gmra.mxu0 %v9176
        %v9531 = vpop.f32.mrf.mxu0
        %v9532 = vadd.f32 0.0, %v9531
        %v9533 = vpop.f32.mrf.mxu0
        %v9534 = vadd.f32 0.0, %v9533
        %9535 = vmatmul.bf16.gmra.mxu0 %v9177
        %v9536 = vpop.f32.mrf.mxu0
        %v9537 = vadd.f32 0.0, %v9536
        %v9538 = vpop.f32.mrf.mxu0
        %v9539 = vadd.f32 0.0, %v9538
        %9540 = vmatmul.bf16.gmra.mxu0 %v9178
        %v9541 = vpop.f32.mrf.mxu0
        %v9542 = vadd.f32 0.0, %v9541
        %v9543 = vpop.f32.mrf.mxu0
        %v9544 = vadd.f32 0.0, %v9543
        %9545 = vmatmul.bf16.gmra.mxu0 %v9179
        %v9546 = vpop.f32.mrf.mxu0
        %v9547 = vadd.f32 0.0, %v9546
        %v9548 = vpop.f32.mrf.mxu0
        %v9549 = vadd.f32 0.0, %v9548
        %9550 = vmatmul.bf16.gmra.mxu0 %v9180
        %v9551 = vpop.f32.mrf.mxu0
        %v9552 = vadd.f32 0.0, %v9551
        %v9553 = vpop.f32.mrf.mxu0
        %v9554 = vadd.f32 0.0, %v9553
        %9555 = vmatmul.bf16.gmra.mxu0 %v9181
        %v9556 = vpop.f32.mrf.mxu0
        %v9557 = vadd.f32 0.0, %v9556
        %v9558 = vpop.f32.mrf.mxu0
        %v9559 = vadd.f32 0.0, %v9558
        %9560 = vmatmul.bf16.gmra.mxu0 %v9182
        %v9561 = vpop.f32.mrf.mxu0
        %v9562 = vadd.f32 0.0, %v9561
        %v9563 = vpop.f32.mrf.mxu0
        %v9564 = vadd.f32 0.0, %v9563
        %9565 = vmatmul.bf16.gmra.mxu0 %v9183
        %v9566 = vpop.f32.mrf.mxu0
        %v9567 = vadd.f32 0.0, %v9566
        %v9568 = vpop.f32.mrf.mxu0
        %v9569 = vadd.f32 0.0, %v9568
        %9570 = vmatmul.bf16.gmra.mxu0 %v9184
        %v9571 = vpop.f32.mrf.mxu0
        %v9572 = vadd.f32 0.0, %v9571
        %v9573 = vpop.f32.mrf.mxu0
        %v9574 = vadd.f32 0.0, %v9573
        %9575 = vmatmul.bf16.gmra.mxu0 %v9185
        %v9576 = vpop.f32.mrf.mxu0
        %v9577 = vadd.f32 0.0, %v9576
        %v9578 = vpop.f32.mrf.mxu0
        %v9579 = vadd.f32 0.0, %v9578
        %9580 = vmatmul.bf16.gmra.mxu0 %v9186
        %v9581 = vpop.f32.mrf.mxu0
        %v9582 = vadd.f32 0.0, %v9581
        %v9583 = vpop.f32.mrf.mxu0
        %v9584 = vadd.f32 0.0, %v9583
        %9585 = vmatmul.bf16.gmra.mxu0 %v9187
        %v9586 = vpop.f32.mrf.mxu0
        %v9587 = vadd.f32 0.0, %v9586
        %v9588 = vpop.f32.mrf.mxu0
        %v9589 = vadd.f32 0.0, %v9588
        %9590 = vmatmul.bf16.gmra.mxu0 %v9188
        %v9591 = vpop.f32.mrf.mxu0
        %v9592 = vadd.f32 0.0, %v9591
        %v9593 = vpop.f32.mrf.mxu0
        %v9594 = vadd.f32 0.0, %v9593
        %9595 = vmatmul.bf16.gmra.mxu0 %v9189
        %v9596 = vpop.f32.mrf.mxu0
        %v9597 = vadd.f32 0.0, %v9596
        %v9598 = vpop.f32.mrf.mxu0
        %v9599 = vadd.f32 0.0, %v9598
        %9600 = vmatmul.bf16.gmra.mxu0 %v9190
        %v9601 = vpop.f32.mrf.mxu0
        %v9602 = vadd.f32 0.0, %v9601
        %v9603 = vpop.f32.mrf.mxu0
        %v9604 = vadd.f32 0.0, %v9603
        %9605 = vmatmul.bf16.gmra.mxu0 %v9191
        %v9606 = vpop.f32.mrf.mxu0
        %v9607 = vadd.f32 0.0, %v9606
        %v9608 = vpop.f32.mrf.mxu0
        %v9609 = vadd.f32 0.0, %v9608
        %9610 = vmatmul.bf16.gmra.mxu0 %v9192
        %v9611 = vpop.f32.mrf.mxu0
        %v9612 = vadd.f32 0.0, %v9611
        %v9613 = vpop.f32.mrf.mxu0
        %v9614 = vadd.f32 0.0, %v9613
        %9615 = vmatmul.bf16.gmra.mxu0 %v9193
        %v9616 = vpop.f32.mrf.mxu0
        %v9617 = vadd.f32 0.0, %v9616
        %v9618 = vpop.f32.mrf.mxu0
        %9619 = vdwg.mxu0
        %9620 = vmatpush.bf16.msra.mxu0 %v9330
        %9621 = vmatpush.bf16.msra.mxu0 %v9327
        %9622 = vmatpush.bf16.msra.mxu0 %v9324
        %9623 = vmatpush.bf16.msra.mxu0 %v9321
        %9624 = vmatpush.bf16.msra.mxu0 %v9318
        %9625 = vmatpush.bf16.msra.mxu0 %v9315
        %9626 = vmatpush.bf16.msra.mxu0 %v9312
        %9627 = vmatpush.bf16.msra.mxu0 %v9309
        %9628 = vmatmul.bf16.gmra.mxu0 %v9169
        %v9629 = vpop.f32.mrf.mxu0
        %v9630 = vadd.f32 0.0, %v9629
        %v9631 = vpop.f32.mrf.mxu0
        %v9632 = vadd.f32 0.0, %v9631
        %9633 = vmatmul.bf16.gmra.mxu0 %v9170
        %v9634 = vpop.f32.mrf.mxu0
        %v9635 = vadd.f32 0.0, %v9634
        %v9636 = vpop.f32.mrf.mxu0
        %v9637 = vadd.f32 0.0, %v9636
        %9638 = vmatmul.bf16.gmra.mxu0 %v9171
        %v9639 = vpop.f32.mrf.mxu0
        %v9640 = vadd.f32 0.0, %v9639
        %v9641 = vpop.f32.mrf.mxu0
        %v9642 = vadd.f32 0.0, %v9641
        %9643 = vmatmul.bf16.gmra.mxu0 %v9172
        %v9644 = vpop.f32.mrf.mxu0
        %v9645 = vadd.f32 0.0, %v9644
        %v9646 = vpop.f32.mrf.mxu0
        %v9647 = vadd.f32 0.0, %v9646
        %9648 = vmatmul.bf16.gmra.mxu0 %v9173
        %v9649 = vpop.f32.mrf.mxu0
        %v9650 = vadd.f32 0.0, %v9649
        %v9651 = vpop.f32.mrf.mxu0
        %v9652 = vadd.f32 0.0, %v9651
        %9653 = vmatmul.bf16.gmra.mxu0 %v9174
        %v9654 = vpop.f32.mrf.mxu0
        %v9655 = vadd.f32 0.0, %v9654
        %v9656 = vpop.f32.mrf.mxu0
        %v9657 = vadd.f32 0.0, %v9656
        %9658 = vmatmul.bf16.gmra.mxu0 %v9175
        %v9659 = vpop.f32.mrf.mxu0
        %v9660 = vadd.f32 0.0, %v9659
        %v9661 = vpop.f32.mrf.mxu0
        %v9662 = vadd.f32 0.0, %v9661
        %9663 = vmatmul.bf16.gmra.mxu0 %v9176
        %v9664 = vpop.f32.mrf.mxu0
        %v9665 = vadd.f32 0.0, %v9664
        %v9666 = vpop.f32.mrf.mxu0
        %v9667 = vadd.f32 0.0, %v9666
        %9668 = vmatmul.bf16.gmra.mxu0 %v9177
        %v9669 = vpop.f32.mrf.mxu0
        %v9670 = vadd.f32 0.0, %v9669
        %v9671 = vpop.f32.mrf.mxu0
        %v9672 = vadd.f32 0.0, %v9671
        %9673 = vmatmul.bf16.gmra.mxu0 %v9178
        %v9674 = vpop.f32.mrf.mxu0
        %v9675 = vadd.f32 0.0, %v9674
        %v9676 = vpop.f32.mrf.mxu0
        %v9677 = vadd.f32 0.0, %v9676
        %9678 = vmatmul.bf16.gmra.mxu0 %v9179
        %v9679 = vpop.f32.mrf.mxu0
        %v9680 = vadd.f32 0.0, %v9679
        %v9681 = vpop.f32.mrf.mxu0
        %v9682 = vadd.f32 0.0, %v9681
        %9683 = vmatmul.bf16.gmra.mxu0 %v9180
        %v9684 = vpop.f32.mrf.mxu0
        %v9685 = vadd.f32 0.0, %v9684
        %v9686 = vpop.f32.mrf.mxu0
        %v9687 = vadd.f32 0.0, %v9686
        %9688 = vmatmul.bf16.gmra.mxu0 %v9181
        %v9689 = vpop.f32.mrf.mxu0
        %v9690 = vadd.f32 0.0, %v9689
        %v9691 = vpop.f32.mrf.mxu0
        %v9692 = vadd.f32 0.0, %v9691
        %9693 = vmatmul.bf16.gmra.mxu0 %v9182
        %v9694 = vpop.f32.mrf.mxu0
        %v9695 = vadd.f32 0.0, %v9694
        %v9696 = vpop.f32.mrf.mxu0
        %v9697 = vadd.f32 0.0, %v9696
        %9698 = vmatmul.bf16.gmra.mxu0 %v9183
        %v9699 = vpop.f32.mrf.mxu0
        %v9700 = vadd.f32 0.0, %v9699
        %v9701 = vpop.f32.mrf.mxu0
        %v9702 = vadd.f32 0.0, %v9701
        %9703 = vmatmul.bf16.gmra.mxu0 %v9184
        %v9704 = vpop.f32.mrf.mxu0
        %v9705 = vadd.f32 0.0, %v9704
        %v9706 = vpop.f32.mrf.mxu0
        %v9707 = vadd.f32 0.0, %v9706
        %9708 = vmatmul.bf16.gmra.mxu0 %v9185
        %v9709 = vpop.f32.mrf.mxu0
        %v9710 = vadd.f32 0.0, %v9709
        %v9711 = vpop.f32.mrf.mxu0
        %v9712 = vadd.f32 0.0, %v9711
        %9713 = vmatmul.bf16.gmra.mxu0 %v9186
        %v9714 = vpop.f32.mrf.mxu0
        %v9715 = vadd.f32 0.0, %v9714
        %v9716 = vpop.f32.mrf.mxu0
        %v9717 = vadd.f32 0.0, %v9716
        %9718 = vmatmul.bf16.gmra.mxu0 %v9187
        %v9719 = vpop.f32.mrf.mxu0
        %v9720 = vadd.f32 0.0, %v9719
        %v9721 = vpop.f32.mrf.mxu0
        %v9722 = vadd.f32 0.0, %v9721
        %9723 = vmatmul.bf16.gmra.mxu0 %v9188
        %v9724 = vpop.f32.mrf.mxu0
        %v9725 = vadd.f32 0.0, %v9724
        %v9726 = vpop.f32.mrf.mxu0
        %v9727 = vadd.f32 0.0, %v9726
        %9728 = vmatmul.bf16.gmra.mxu0 %v9189
        %v9729 = vpop.f32.mrf.mxu0
        %v9730 = vadd.f32 0.0, %v9729
        %v9731 = vpop.f32.mrf.mxu0
        %v9732 = vadd.f32 0.0, %v9731
        %9733 = vmatmul.bf16.gmra.mxu0 %v9190
        %v9734 = vpop.f32.mrf.mxu0
        %v9735 = vadd.f32 0.0, %v9734
        %v9736 = vpop.f32.mrf.mxu0
        %v9737 = vadd.f32 0.0, %v9736
        %9738 = vmatmul.bf16.gmra.mxu0 %v9191
        %v9739 = vpop.f32.mrf.mxu0
        %v9740 = vadd.f32 0.0, %v9739
        %v9741 = vpop.f32.mrf.mxu0
        %v9742 = vadd.f32 0.0, %v9741
        %9743 = vmatmul.bf16.gmra.mxu0 %v9192
        %v9744 = vpop.f32.mrf.mxu0
        %v9745 = vadd.f32 0.0, %v9744
        %v9746 = vpop.f32.mrf.mxu0
        %v9747 = vadd.f32 0.0, %v9746
        %9748 = vmatmul.bf16.gmra.mxu0 %v9193
        %v9749 = vpop.f32.mrf.mxu0
        %v9750 = vadd.f32 0.0, %v9749
        %v9751 = vpop.f32.mrf.mxu0
        %9752 = vdwg.mxu0
        %v9753 = vadd.f32 %v9071, %v9365
        %v9754 = vadd.f32 %v9072, %v9367
        %v9755 = vadd.f32 %v9073, %v9370
        %v9756 = vadd.f32 %v9074, %v9372
        %v9757 = vadd.f32 %v9075, %v9375
        %v9758 = vadd.f32 %v9076, %v9377
        %v9759 = vadd.f32 %v9077, %v9380
        %v9760 = vadd.f32 %v9078, %v9382
        %v9761 = vadd.f32 %v9079, %v9385
        %v9762 = vadd.f32 %v9080, %v9387
        %v9763 = vadd.f32 %v9081, %v9390
        %v9764 = vadd.f32 %v9082, %v9392
        %v9765 = vadd.f32 %v9083, %v9395
        %v9766 = vadd.f32 %v9084, %v9397
        %v9767 = vadd.f32 %v9085, %v9400
        %v9768 = vadd.f32 %v9086, %v9402
        %v9769 = vadd.f32 %v9087, %v9405
        %v9770 = vadd.f32 %v9088, %v9407
        %v9771 = vadd.f32 %v9089, %v9410
        %v9772 = vadd.f32 %v9090, %v9412
        %v9773 = vadd.f32 %v9091, %v9415
        %v9774 = vadd.f32 %v9092, %v9417
        %v9775 = vadd.f32 %v9093, %v9420
        %v9776 = vadd.f32 %v9094, %v9422
        %v9777 = vadd.f32 %v9095, %v9425
        %v9778 = vadd.f32 %v9096, %v9427
        %v9779 = vadd.f32 %v9097, %v9430
        %v9780 = vadd.f32 %v9098, %v9432
        %v9781 = vadd.f32 %v9099, %v9435
        %v9782 = vadd.f32 %v9100, %v9437
        %v9783 = vadd.f32 %v9101, %v9440
        %v9784 = vadd.f32 %v9102, %v9442
        %v9785 = vadd.f32 %v9103, %v9445
        %v9786 = vadd.f32 %v9104, %v9447
        %v9787 = vadd.f32 %v9105, %v9450
        %v9788 = vadd.f32 %v9106, %v9452
        %v9789 = vadd.f32 %v9107, %v9455
        %v9790 = vadd.f32 %v9108, %v9457
        %v9791 = vadd.f32 %v9109, %v9460
        %v9792 = vadd.f32 %v9110, %v9462
        %v9793 = vadd.f32 %v9111, %v9465
        %v9794 = vadd.f32 %v9112, %v9467
        %v9795 = vadd.f32 %v9113, %v9470
        %v9796 = vadd.f32 %v9114, %v9472
        %v9797 = vadd.f32 %v9115, %v9475
        %v9798 = vadd.f32 %v9116, %v9477
        %v9799 = vadd.f32 %v9117, %v9480
        %v9800 = vadd.f32 %v9118, %v9482
        %v9850 = vrot.slane %v9497, 1
        %v9851 = vrot.slane %v9499, 1
        %v9852 = vsel %vm953, %v9850, %v9851
        %v9853 = vrot.slane %v9502, 1
        %v9854 = vsel %vm953, %v9851, %v9853
        %v9855 = vrot.slane %v9504, 1
        %v9856 = vsel %vm953, %v9853, %v9855
        %v9857 = vrot.slane %v9507, 1
        %v9858 = vsel %vm953, %v9855, %v9857
        %v9859 = vrot.slane %v9509, 1
        %v9860 = vsel %vm953, %v9857, %v9859
        %v9861 = vrot.slane %v9512, 1
        %v9862 = vsel %vm953, %v9859, %v9861
        %v9863 = vrot.slane %v9514, 1
        %v9864 = vsel %vm953, %v9861, %v9863
        %v9865 = vrot.slane %v9517, 1
        %v9866 = vsel %vm953, %v9863, %v9865
        %v9867 = vrot.slane %v9519, 1
        %v9868 = vsel %vm953, %v9865, %v9867
        %v9869 = vrot.slane %v9522, 1
        %v9870 = vsel %vm953, %v9867, %v9869
        %v9871 = vrot.slane %v9524, 1
        %v9872 = vsel %vm953, %v9869, %v9871
        %v9873 = vrot.slane %v9527, 1
        %v9874 = vsel %vm953, %v9871, %v9873
        %v9875 = vrot.slane %v9529, 1
        %v9876 = vsel %vm953, %v9873, %v9875
        %v9877 = vrot.slane %v9532, 1
        %v9878 = vsel %vm953, %v9875, %v9877
        %v9879 = vrot.slane %v9534, 1
        %v9880 = vsel %vm953, %v9877, %v9879
        %v9881 = vrot.slane %v9537, 1
        %v9882 = vsel %vm953, %v9879, %v9881
        %v9883 = vrot.slane %v9539, 1
        %v9884 = vsel %vm953, %v9881, %v9883
        %v9885 = vrot.slane %v9542, 1
        %v9886 = vsel %vm953, %v9883, %v9885
        %v9887 = vrot.slane %v9544, 1
        %v9888 = vsel %vm953, %v9885, %v9887
        %v9889 = vrot.slane %v9547, 1
        %v9890 = vsel %vm953, %v9887, %v9889
        %v9891 = vrot.slane %v9549, 1
        %v9892 = vsel %vm953, %v9889, %v9891
        %v9893 = vrot.slane %v9552, 1
        %v9894 = vsel %vm953, %v9891, %v9893
        %v9895 = vrot.slane %v9554, 1
        %v9896 = vsel %vm953, %v9893, %v9895
        %v9897 = vrot.slane %v9557, 1
        %v9898 = vsel %vm953, %v9895, %v9897
        %v9899 = vrot.slane %v9559, 1
        %v9900 = vsel %vm953, %v9897, %v9899
        %v9901 = vrot.slane %v9562, 1
        %v9902 = vsel %vm953, %v9899, %v9901
        %v9903 = vrot.slane %v9564, 1
        %v9904 = vsel %vm953, %v9901, %v9903
        %v9905 = vrot.slane %v9567, 1
        %v9906 = vsel %vm953, %v9903, %v9905
        %v9907 = vrot.slane %v9569, 1
        %v9908 = vsel %vm953, %v9905, %v9907
        %v9909 = vrot.slane %v9572, 1
        %v9910 = vsel %vm953, %v9907, %v9909
        %v9911 = vrot.slane %v9574, 1
        %v9912 = vsel %vm953, %v9909, %v9911
        %v9913 = vrot.slane %v9577, 1
        %v9914 = vsel %vm953, %v9911, %v9913
        %v9915 = vrot.slane %v9579, 1
        %v9916 = vsel %vm953, %v9913, %v9915
        %v9917 = vrot.slane %v9582, 1
        %v9918 = vsel %vm953, %v9915, %v9917
        %v9919 = vrot.slane %v9584, 1
        %v9920 = vsel %vm953, %v9917, %v9919
        %v9921 = vrot.slane %v9587, 1
        %v9922 = vsel %vm953, %v9919, %v9921
        %v9923 = vrot.slane %v9589, 1
        %v9924 = vsel %vm953, %v9921, %v9923
        %v9925 = vrot.slane %v9592, 1
        %v9926 = vsel %vm953, %v9923, %v9925
        %v9927 = vrot.slane %v9594, 1
        %v9928 = vsel %vm953, %v9925, %v9927
        %v9929 = vrot.slane %v9597, 1
        %v9930 = vsel %vm953, %v9927, %v9929
        %v9931 = vrot.slane %v9599, 1
        %v9932 = vsel %vm953, %v9929, %v9931
        %v9933 = vrot.slane %v9602, 1
        %v9934 = vsel %vm953, %v9931, %v9933
        %v9935 = vrot.slane %v9604, 1
        %v9936 = vsel %vm953, %v9933, %v9935
        %v9937 = vrot.slane %v9607, 1
        %v9938 = vsel %vm953, %v9935, %v9937
        %v9939 = vrot.slane %v9609, 1
        %v9940 = vsel %vm953, %v9937, %v9939
        %v9941 = vrot.slane %v9612, 1
        %v9942 = vsel %vm953, %v9939, %v9941
        %v9943 = vrot.slane %v9614, 1
        %v9944 = vsel %vm953, %v9941, %v9943
        %v9945 = vrot.slane %v9617, 1
        %v9946 = vsel %vm953, %v9943, %v9945
        %v9995 = vadd.f32 %v9753, %v9852
        %v9996 = vadd.f32 %v9754, %v9854
        %v9997 = vadd.f32 %v9755, %v9856
        %v9998 = vadd.f32 %v9756, %v9858
        %v9999 = vadd.f32 %v9757, %v9860
        %v10000 = vadd.f32 %v9758, %v9862
        %v10001 = vadd.f32 %v9759, %v9864
        %v10002 = vadd.f32 %v9760, %v9866
        %v10003 = vadd.f32 %v9761, %v9868
        %v10004 = vadd.f32 %v9762, %v9870
        %v10005 = vadd.f32 %v9763, %v9872
        %v10006 = vadd.f32 %v9764, %v9874
        %v10007 = vadd.f32 %v9765, %v9876
        %v10008 = vadd.f32 %v9766, %v9878
        %v10009 = vadd.f32 %v9767, %v9880
        %v10010 = vadd.f32 %v9768, %v9882
        %v10011 = vadd.f32 %v9769, %v9884
        %v10012 = vadd.f32 %v9770, %v9886
        %v10013 = vadd.f32 %v9771, %v9888
        %v10014 = vadd.f32 %v9772, %v9890
        %v10015 = vadd.f32 %v9773, %v9892
        %v10016 = vadd.f32 %v9774, %v9894
        %v10017 = vadd.f32 %v9775, %v9896
        %v10018 = vadd.f32 %v9776, %v9898
        %v10019 = vadd.f32 %v9777, %v9900
        %v10020 = vadd.f32 %v9778, %v9902
        %v10021 = vadd.f32 %v9779, %v9904
        %v10022 = vadd.f32 %v9780, %v9906
        %v10023 = vadd.f32 %v9781, %v9908
        %v10024 = vadd.f32 %v9782, %v9910
        %v10025 = vadd.f32 %v9783, %v9912
        %v10026 = vadd.f32 %v9784, %v9914
        %v10027 = vadd.f32 %v9785, %v9916
        %v10028 = vadd.f32 %v9786, %v9918
        %v10029 = vadd.f32 %v9787, %v9920
        %v10030 = vadd.f32 %v9788, %v9922
        %v10031 = vadd.f32 %v9789, %v9924
        %v10032 = vadd.f32 %v9790, %v9926
        %v10033 = vadd.f32 %v9791, %v9928
        %v10034 = vadd.f32 %v9792, %v9930
        %v10035 = vadd.f32 %v9793, %v9932
        %v10036 = vadd.f32 %v9794, %v9934
        %v10037 = vadd.f32 %v9795, %v9936
        %v10038 = vadd.f32 %v9796, %v9938
        %v10039 = vadd.f32 %v9797, %v9940
        %v10040 = vadd.f32 %v9798, %v9942
        %v10041 = vadd.f32 %v9799, %v9944
        %v10042 = vadd.f32 %v9800, %v9946
        %v10092 = vrot.slane %v9630, 2
        %v10093 = vrot.slane %v9632, 2
        %v10094 = vsel %vm1196, %v10092, %v10093
        %v10095 = vrot.slane %v9635, 2
        %v10096 = vsel %vm1196, %v10093, %v10095
        %v10097 = vrot.slane %v9637, 2
        %v10098 = vsel %vm1196, %v10095, %v10097
        %v10099 = vrot.slane %v9640, 2
        %v10100 = vsel %vm1196, %v10097, %v10099
        %v10101 = vrot.slane %v9642, 2
        %v10102 = vsel %vm1196, %v10099, %v10101
        %v10103 = vrot.slane %v9645, 2
        %v10104 = vsel %vm1196, %v10101, %v10103
        %v10105 = vrot.slane %v9647, 2
        %v10106 = vsel %vm1196, %v10103, %v10105
        %v10107 = vrot.slane %v9650, 2
        %v10108 = vsel %vm1196, %v10105, %v10107
        %v10109 = vrot.slane %v9652, 2
        %v10110 = vsel %vm1196, %v10107, %v10109
        %v10111 = vrot.slane %v9655, 2
        %v10112 = vsel %vm1196, %v10109, %v10111
        %v10113 = vrot.slane %v9657, 2
        %v10114 = vsel %vm1196, %v10111, %v10113
        %v10115 = vrot.slane %v9660, 2
        %v10116 = vsel %vm1196, %v10113, %v10115
        %v10117 = vrot.slane %v9662, 2
        %v10118 = vsel %vm1196, %v10115, %v10117
        %v10119 = vrot.slane %v9665, 2
        %v10120 = vsel %vm1196, %v10117, %v10119
        %v10121 = vrot.slane %v9667, 2
        %v10122 = vsel %vm1196, %v10119, %v10121
        %v10123 = vrot.slane %v9670, 2
        %v10124 = vsel %vm1196, %v10121, %v10123
        %v10125 = vrot.slane %v9672, 2
        %v10126 = vsel %vm1196, %v10123, %v10125
        %v10127 = vrot.slane %v9675, 2
        %v10128 = vsel %vm1196, %v10125, %v10127
        %v10129 = vrot.slane %v9677, 2
        %v10130 = vsel %vm1196, %v10127, %v10129
        %v10131 = vrot.slane %v9680, 2
        %v10132 = vsel %vm1196, %v10129, %v10131
        %v10133 = vrot.slane %v9682, 2
        %v10134 = vsel %vm1196, %v10131, %v10133
        %v10135 = vrot.slane %v9685, 2
        %v10136 = vsel %vm1196, %v10133, %v10135
        %v10137 = vrot.slane %v9687, 2
        %v10138 = vsel %vm1196, %v10135, %v10137
        %v10139 = vrot.slane %v9690, 2
        %v10140 = vsel %vm1196, %v10137, %v10139
        %v10141 = vrot.slane %v9692, 2
        %v10142 = vsel %vm1196, %v10139, %v10141
        %v10143 = vrot.slane %v9695, 2
        %v10144 = vsel %vm1196, %v10141, %v10143
        %v10145 = vrot.slane %v9697, 2
        %v10146 = vsel %vm1196, %v10143, %v10145
        %v10147 = vrot.slane %v9700, 2
        %v10148 = vsel %vm1196, %v10145, %v10147
        %v10149 = vrot.slane %v9702, 2
        %v10150 = vsel %vm1196, %v10147, %v10149
        %v10151 = vrot.slane %v9705, 2
        %v10152 = vsel %vm1196, %v10149, %v10151
        %v10153 = vrot.slane %v9707, 2
        %v10154 = vsel %vm1196, %v10151, %v10153
        %v10155 = vrot.slane %v9710, 2
        %v10156 = vsel %vm1196, %v10153, %v10155
        %v10157 = vrot.slane %v9712, 2
        %v10158 = vsel %vm1196, %v10155, %v10157
        %v10159 = vrot.slane %v9715, 2
        %v10160 = vsel %vm1196, %v10157, %v10159
        %v10161 = vrot.slane %v9717, 2
        %v10162 = vsel %vm1196, %v10159, %v10161
        %v10163 = vrot.slane %v9720, 2
        %v10164 = vsel %vm1196, %v10161, %v10163
        %v10165 = vrot.slane %v9722, 2
        %v10166 = vsel %vm1196, %v10163, %v10165
        %v10167 = vrot.slane %v9725, 2
        %v10168 = vsel %vm1196, %v10165, %v10167
        %v10169 = vrot.slane %v9727, 2
        %v10170 = vsel %vm1196, %v10167, %v10169
        %v10171 = vrot.slane %v9730, 2
        %v10172 = vsel %vm1196, %v10169, %v10171
        %v10173 = vrot.slane %v9732, 2
        %v10174 = vsel %vm1196, %v10171, %v10173
        %v10175 = vrot.slane %v9735, 2
        %v10176 = vsel %vm1196, %v10173, %v10175
        %v10177 = vrot.slane %v9737, 2
        %v10178 = vsel %vm1196, %v10175, %v10177
        %v10179 = vrot.slane %v9740, 2
        %v10180 = vsel %vm1196, %v10177, %v10179
        %v10181 = vrot.slane %v9742, 2
        %v10182 = vsel %vm1196, %v10179, %v10181
        %v10183 = vrot.slane %v9745, 2
        %v10184 = vsel %vm1196, %v10181, %v10183
        %v10185 = vrot.slane %v9747, 2
        %v10186 = vsel %vm1196, %v10183, %v10185
        %v10187 = vrot.slane %v9750, 2
        %v10188 = vsel %vm1196, %v10185, %v10187
        %v10237 = vadd.f32 %v9995, %v10094
        %v10238 = vadd.f32 %v9996, %v10096
        %v10239 = vadd.f32 %v9997, %v10098
        %v10240 = vadd.f32 %v9998, %v10100
        %v10241 = vadd.f32 %v9999, %v10102
        %v10242 = vadd.f32 %v10000, %v10104
        %v10243 = vadd.f32 %v10001, %v10106
        %v10244 = vadd.f32 %v10002, %v10108
        %v10245 = vadd.f32 %v10003, %v10110
        %v10246 = vadd.f32 %v10004, %v10112
        %v10247 = vadd.f32 %v10005, %v10114
        %v10248 = vadd.f32 %v10006, %v10116
        %v10249 = vadd.f32 %v10007, %v10118
        %v10250 = vadd.f32 %v10008, %v10120
        %v10251 = vadd.f32 %v10009, %v10122
        %v10252 = vadd.f32 %v10010, %v10124
        %v10253 = vadd.f32 %v10011, %v10126
        %v10254 = vadd.f32 %v10012, %v10128
        %v10255 = vadd.f32 %v10013, %v10130
        %v10256 = vadd.f32 %v10014, %v10132
        %v10257 = vadd.f32 %v10015, %v10134
        %v10258 = vadd.f32 %v10016, %v10136
        %v10259 = vadd.f32 %v10017, %v10138
        %v10260 = vadd.f32 %v10018, %v10140
        %v10261 = vadd.f32 %v10019, %v10142
        %v10262 = vadd.f32 %v10020, %v10144
        %v10263 = vadd.f32 %v10021, %v10146
        %v10264 = vadd.f32 %v10022, %v10148
        %v10265 = vadd.f32 %v10023, %v10150
        %v10266 = vadd.f32 %v10024, %v10152
        %v10267 = vadd.f32 %v10025, %v10154
        %v10268 = vadd.f32 %v10026, %v10156
        %v10269 = vadd.f32 %v10027, %v10158
        %v10270 = vadd.f32 %v10028, %v10160
        %v10271 = vadd.f32 %v10029, %v10162
        %v10272 = vadd.f32 %v10030, %v10164
        %v10273 = vadd.f32 %v10031, %v10166
        %v10274 = vadd.f32 %v10032, %v10168
        %v10275 = vadd.f32 %v10033, %v10170
        %v10276 = vadd.f32 %v10034, %v10172
        %v10277 = vadd.f32 %v10035, %v10174
        %v10278 = vadd.f32 %v10036, %v10176
        %v10279 = vadd.f32 %v10037, %v10178
        %v10280 = vadd.f32 %v10038, %v10180
        %v10281 = vadd.f32 %v10039, %v10182
        %v10282 = vadd.f32 %v10040, %v10184
        %v10283 = vadd.f32 %v10041, %v10186
        %v10284 = vadd.f32 %v10042, %v10188
        %10285 = vst [vmem:[#allocation2] sm:$0xff] %v10237
        %10286 = vst [vmem:[#allocation2 + $0x8] sm:$0xff] %v10238
        %10287 = vst [vmem:[#allocation2 + $0x10] sm:$0xff] %v10239
        %10288 = vst [vmem:[#allocation2 + $0x18] sm:$0xff] %v10240
        %10289 = vst [vmem:[#allocation2 + $0x20] sm:$0xff] %v10241
        %10290 = vst [vmem:[#allocation2 + $0x28] sm:$0xff] %v10242
        %10291 = vst [vmem:[#allocation2 + $0x30] sm:$0xff] %v10243
        %10292 = vst [vmem:[#allocation2 + $0x38] sm:$0xff] %v10244
        %10293 = vst [vmem:[#allocation2 + $0x40] sm:$0xff] %v10245
        %10294 = vst [vmem:[#allocation2 + $0x48] sm:$0xff] %v10246
        %10295 = vst [vmem:[#allocation2 + $0x50] sm:$0xff] %v10247
        %10296 = vst [vmem:[#allocation2 + $0x58] sm:$0xff] %v10248
        %10297 = vst [vmem:[#allocation2 + $0x60] sm:$0xff] %v10249
        %10298 = vst [vmem:[#allocation2 + $0x68] sm:$0xff] %v10250
        %10299 = vst [vmem:[#allocation2 + $0x70] sm:$0xff] %v10251
        %10300 = vst [vmem:[#allocation2 + $0x78] sm:$0xff] %v10252
        %10301 = vst [vmem:[#allocation2 + $0x80] sm:$0xff] %v10253
        %10302 = vst [vmem:[#allocation2 + $0x88] sm:$0xff] %v10254
        %10303 = vst [vmem:[#allocation2 + $0x90] sm:$0xff] %v10255
        %10304 = vst [vmem:[#allocation2 + $0x98] sm:$0xff] %v10256
        %10305 = vst [vmem:[#allocation2 + $0xa0] sm:$0xff] %v10257
        %10306 = vst [vmem:[#allocation2 + $0xa8] sm:$0xff] %v10258
        %10307 = vst [vmem:[#allocation2 + $0xb0] sm:$0xff] %v10259
        %10308 = vst [vmem:[#allocation2 + $0xb8] sm:$0xff] %v10260
        %10309 = vst [vmem:[#allocation2 + $0xc0] sm:$0xff] %v10261
        %10310 = vst [vmem:[#allocation2 + $0xc8] sm:$0xff] %v10262
        %10311 = vst [vmem:[#allocation2 + $0xd0] sm:$0xff] %v10263
        %10312 = vst [vmem:[#allocation2 + $0xd8] sm:$0xff] %v10264
        %10313 = vst [vmem:[#allocation2 + $0xe0] sm:$0xff] %v10265
        %10314 = vst [vmem:[#allocation2 + $0xe8] sm:$0xff] %v10266
        %10315 = vst [vmem:[#allocation2 + $0xf0] sm:$0xff] %v10267
        %10316 = vst [vmem:[#allocation2 + $0xf8] sm:$0xff] %v10268
        %10317 = vst [vmem:[#allocation2 + $0x100] sm:$0xff] %v10269
        %10318 = vst [vmem:[#allocation2 + $0x108] sm:$0xff] %v10270
        %10319 = vst [vmem:[#allocation2 + $0x110] sm:$0xff] %v10271
        %10320 = vst [vmem:[#allocation2 + $0x118] sm:$0xff] %v10272
        %10321 = vst [vmem:[#allocation2 + $0x120] sm:$0xff] %v10273
        %10322 = vst [vmem:[#allocation2 + $0x128] sm:$0xff] %v10274
        %10323 = vst [vmem:[#allocation2 + $0x130] sm:$0xff] %v10275
        %10324 = vst [vmem:[#allocation2 + $0x138] sm:$0xff] %v10276
        %10325 = vst [vmem:[#allocation2 + $0x140] sm:$0xff] %v10277
        %10326 = vst [vmem:[#allocation2 + $0x148] sm:$0xff] %v10278
        %10327 = vst [vmem:[#allocation2 + $0x150] sm:$0xff] %v10279
        %10328 = vst [vmem:[#allocation2 + $0x158] sm:$0xff] %v10280
        %10329 = vst [vmem:[#allocation2 + $0x160] sm:$0xff] %v10281
        %10330 = vst [vmem:[#allocation2 + $0x168] sm:$0xff] %v10282
        %10331 = vst [vmem:[#allocation2 + $0x170] sm:$0xff] %v10283
        %10332 = vst [vmem:[#allocation2 + $0x178] sm:$0xff] %v10284
        %v10333 = vsel %vm5403, %v10237, 0.0
        %v10334 = vsel %vm5404, %v10238, 0.0
        %v10335 = vsel %vm5405, %v10239, 0.0
        %v10336 = vsel %vm5406, %v10240, 0.0
        %v10337 = vsel %vm5407, %v10241, 0.0
        %v10338 = vsel %vm5408, %v10242, 0.0
        %v10339 = vsel %vm5409, %v10243, 0.0
        %v10340 = vsel %vm5410, %v10244, 0.0
        %v10341 = vsel %vm5411, %v10245, 0.0
        %v10342 = vsel %vm5412, %v10246, 0.0
        %v10343 = vsel %vm5413, %v10247, 0.0
        %v10344 = vsel %vm5414, %v10248, 0.0
        %v10345 = vsel %vm5415, %v10249, 0.0
        %v10346 = vsel %vm5416, %v10250, 0.0
        %v10347 = vsel %vm5417, %v10251, 0.0
        %v10348 = vsel %vm5418, %v10252, 0.0
        %v10349 = vsel %vm5419, %v10253, 0.0
        %v10350 = vsel %vm5420, %v10254, 0.0
        %v10351 = vsel %vm5421, %v10255, 0.0
        %v10352 = vsel %vm5422, %v10256, 0.0
        %v10353 = vsel %vm5423, %v10257, 0.0
        %v10354 = vsel %vm5424, %v10258, 0.0
        %v10355 = vsel %vm5425, %v10259, 0.0
        %v10356 = vsel %vm5426, %v10260, 0.0
        %v10357 = vsel %vm5427, %v10261, 0.0
        %v10358 = vsel %vm5428, %v10262, 0.0
        %v10359 = vsel %vm5429, %v10263, 0.0
        %v10360 = vsel %vm5430, %v10264, 0.0
        %v10361 = vsel %vm5431, %v10265, 0.0
        %v10362 = vsel %vm5432, %v10266, 0.0
        %v10363 = vsel %vm5433, %v10267, 0.0
        %v10364 = vsel %vm5434, %v10268, 0.0
        %v10365 = vsel %vm5435, %v10269, 0.0
        %v10366 = vsel %vm5436, %v10270, 0.0
        %v10367 = vsel %vm5437, %v10271, 0.0
        %v10368 = vsel %vm5438, %v10272, 0.0
        %v10369 = vsel %vm5439, %v10273, 0.0
        %v10370 = vsel %vm5440, %v10274, 0.0
        %v10371 = vsel %vm5441, %v10275, 0.0
        %v10372 = vsel %vm5442, %v10276, 0.0
        %v10373 = vsel %vm5443, %v10277, 0.0
        %v10374 = vsel %vm5444, %v10278, 0.0
        %v10375 = vsel %vm5445, %v10279, 0.0
        %v10376 = vsel %vm5446, %v10280, 0.0
        %v10377 = vsel %vm5447, %v10281, 0.0
        %v10378 = vsel %vm5448, %v10282, 0.0
        %v10379 = vsel %vm5449, %v10283, 0.0
        %v10380 = vsel %vm5450, %v10284, 0.0
        %v10381 = vadd.f32 %v10333, %v10334
        %v10382 = vadd.f32 %v10381, %v10335
        %v10383 = vadd.f32 %v10382, %v10336
        %v10384 = vadd.f32 %v10383, %v10337
        %v10385 = vadd.f32 %v10384, %v10338
        %v10386 = vadd.f32 %v10385, %v10339
        %v10387 = vadd.f32 %v10386, %v10340
        %v10388 = vadd.f32 %v10387, %v10341
        %v10389 = vadd.f32 %v10388, %v10342
        %v10390 = vadd.f32 %v10389, %v10343
        %v10391 = vadd.f32 %v10390, %v10344
        %v10392 = vadd.f32 %v10391, %v10345
        %v10393 = vadd.f32 %v10392, %v10346
        %v10394 = vadd.f32 %v10393, %v10347
        %v10395 = vadd.f32 %v10394, %v10348
        %v10396 = vadd.f32 %v10395, %v10349
        %v10397 = vadd.f32 %v10396, %v10350
        %v10398 = vadd.f32 %v10397, %v10351
        %v10399 = vadd.f32 %v10398, %v10352
        %v10400 = vadd.f32 %v10399, %v10353
        %v10401 = vadd.f32 %v10400, %v10354
        %v10402 = vadd.f32 %v10401, %v10355
        %v10403 = vadd.f32 %v10402, %v10356
        %v10404 = vadd.f32 %v10403, %v10357
        %v10405 = vadd.f32 %v10404, %v10358
        %v10406 = vadd.f32 %v10405, %v10359
        %v10407 = vadd.f32 %v10406, %v10360
        %v10408 = vadd.f32 %v10407, %v10361
        %v10409 = vadd.f32 %v10408, %v10362
        %v10410 = vadd.f32 %v10409, %v10363
        %v10411 = vadd.f32 %v10410, %v10364
        %v10412 = vadd.f32 %v10411, %v10365
        %v10413 = vadd.f32 %v10412, %v10366
        %v10414 = vadd.f32 %v10413, %v10367
        %v10415 = vadd.f32 %v10414, %v10368
        %v10416 = vadd.f32 %v10415, %v10369
        %v10417 = vadd.f32 %v10416, %v10370
        %v10418 = vadd.f32 %v10417, %v10371
        %v10419 = vadd.f32 %v10418, %v10372
        %v10420 = vadd.f32 %v10419, %v10373
        %v10421 = vadd.f32 %v10420, %v10374
        %v10422 = vadd.f32 %v10421, %v10375
        %v10423 = vadd.f32 %v10422, %v10376
        %v10424 = vadd.f32 %v10423, %v10377
        %v10425 = vadd.f32 %v10424, %v10378
        %v10426 = vadd.f32 %v10425, %v10379
        %v10427 = vadd.f32 %v10426, %v10380
        %v10428 = vrot.slane %v10427, 4
        %v10429 = vadd.f32 %v10427, %v10428
        %v10430 = vrot.slane %v10429, 2
        %v10431 = vadd.f32 %v10429, %v10430
        %v10432 = vrot.slane %v10431, 1
        %v10433 = vadd.f32 %v10431, %v10432
        %v10434 = vadd.f32 %v10433, 0.0
        %v10435 = vmul.f32 %v10333, %v10333
        %v10436 = vmul.f32 %v10334, %v10334
        %v10437 = vmul.f32 %v10335, %v10335
        %v10438 = vmul.f32 %v10336, %v10336
        %v10439 = vmul.f32 %v10337, %v10337
        %v10440 = vmul.f32 %v10338, %v10338
        %v10441 = vmul.f32 %v10339, %v10339
        %v10442 = vmul.f32 %v10340, %v10340
        %v10443 = vmul.f32 %v10341, %v10341
        %v10444 = vmul.f32 %v10342, %v10342
        %v10445 = vmul.f32 %v10343, %v10343
        %v10446 = vmul.f32 %v10344, %v10344
        %v10447 = vmul.f32 %v10345, %v10345
        %v10448 = vmul.f32 %v10346, %v10346
        %v10449 = vmul.f32 %v10347, %v10347
        %v10450 = vmul.f32 %v10348, %v10348
        %v10451 = vmul.f32 %v10349, %v10349
        %v10452 = vmul.f32 %v10350, %v10350
        %v10453 = vmul.f32 %v10351, %v10351
        %v10454 = vmul.f32 %v10352, %v10352
        %v10455 = vmul.f32 %v10353, %v10353
        %v10456 = vmul.f32 %v10354, %v10354
        %v10457 = vmul.f32 %v10355, %v10355
        %v10458 = vmul.f32 %v10356, %v10356
        %v10459 = vmul.f32 %v10357, %v10357
        %v10460 = vmul.f32 %v10358, %v10358
        %v10461 = vmul.f32 %v10359, %v10359
        %v10462 = vmul.f32 %v10360, %v10360
        %v10463 = vmul.f32 %v10361, %v10361
        %v10464 = vmul.f32 %v10362, %v10362
        %v10465 = vmul.f32 %v10363, %v10363
        %v10466 = vmul.f32 %v10364, %v10364
        %v10467 = vmul.f32 %v10365, %v10365
        %v10468 = vmul.f32 %v10366, %v10366
        %v10469 = vmul.f32 %v10367, %v10367
        %v10470 = vmul.f32 %v10368, %v10368
        %v10471 = vmul.f32 %v10369, %v10369
        %v10472 = vmul.f32 %v10370, %v10370
        %v10473 = vmul.f32 %v10371, %v10371
        %v10474 = vmul.f32 %v10372, %v10372
        %v10475 = vmul.f32 %v10373, %v10373
        %v10476 = vmul.f32 %v10374, %v10374
        %v10477 = vmul.f32 %v10375, %v10375
        %v10478 = vmul.f32 %v10376, %v10376
        %v10479 = vmul.f32 %v10377, %v10377
        %v10480 = vmul.f32 %v10378, %v10378
        %v10481 = vmul.f32 %v10379, %v10379
        %v10482 = vmul.f32 %v10380, %v10380
        %v10483 = vadd.f32 %v10435, %v10436
        %v10484 = vadd.f32 %v10483, %v10437
        %v10485 = vadd.f32 %v10484, %v10438
        %v10486 = vadd.f32 %v10485, %v10439
        %v10487 = vadd.f32 %v10486, %v10440
        %v10488 = vadd.f32 %v10487, %v10441
        %v10489 = vadd.f32 %v10488, %v10442
        %v10490 = vadd.f32 %v10489, %v10443
        %v10491 = vadd.f32 %v10490, %v10444
        %v10492 = vadd.f32 %v10491, %v10445
        %v10493 = vadd.f32 %v10492, %v10446
        %v10494 = vadd.f32 %v10493, %v10447
        %v10495 = vadd.f32 %v10494, %v10448
        %v10496 = vadd.f32 %v10495, %v10449
        %v10497 = vadd.f32 %v10496, %v10450
        %v10498 = vadd.f32 %v10497, %v10451
        %v10499 = vadd.f32 %v10498, %v10452
        %v10500 = vadd.f32 %v10499, %v10453
        %v10501 = vadd.f32 %v10500, %v10454
        %v10502 = vadd.f32 %v10501, %v10455
        %v10503 = vadd.f32 %v10502, %v10456
        %v10504 = vadd.f32 %v10503, %v10457
        %v10505 = vadd.f32 %v10504, %v10458
        %v10506 = vadd.f32 %v10505, %v10459
        %v10507 = vadd.f32 %v10506, %v10460
        %v10508 = vadd.f32 %v10507, %v10461
        %v10509 = vadd.f32 %v10508, %v10462
        %v10510 = vadd.f32 %v10509, %v10463
        %v10511 = vadd.f32 %v10510, %v10464
        %v10512 = vadd.f32 %v10511, %v10465
        %v10513 = vadd.f32 %v10512, %v10466
        %v10514 = vadd.f32 %v10513, %v10467
        %v10515 = vadd.f32 %v10514, %v10468
        %v10516 = vadd.f32 %v10515, %v10469
        %v10517 = vadd.f32 %v10516, %v10470
        %v10518 = vadd.f32 %v10517, %v10471
        %v10519 = vadd.f32 %v10518, %v10472
        %v10520 = vadd.f32 %v10519, %v10473
        %v10521 = vadd.f32 %v10520, %v10474
        %v10522 = vadd.f32 %v10521, %v10475
        %v10523 = vadd.f32 %v10522, %v10476
        %v10524 = vadd.f32 %v10523, %v10477
        %v10525 = vadd.f32 %v10524, %v10478
        %v10526 = vadd.f32 %v10525, %v10479
        %v10527 = vadd.f32 %v10526, %v10480
        %v10528 = vadd.f32 %v10527, %v10481
        %v10529 = vadd.f32 %v10528, %v10482
        %v10530 = vrot.slane %v10529, 4
        %v10531 = vadd.f32 %v10529, %v10530
        %v10532 = vrot.slane %v10531, 2
        %v10533 = vadd.f32 %v10531, %v10532
        %v10534 = vrot.slane %v10533, 1
        %v10535 = vadd.f32 %v10533, %v10534
        %v10536 = vadd.f32 %v10535, 0.0
        %v10537 = vmul.f32 %v10434, 0.00390625
        %v10538 = vmul.f32 %v10536, 0.00390625
        %v10539 = vmul.f32 %v10537, %v10537
        %v10540 = vsub.f32 %v10538, %v10539
        %v10541 = vmax.f32 %v10540, 0.0
        %v10542 = vadd.f32 %v10541, 1e-05
        %v10543 = vrsqrt.pop %v10542
        %v10544 = vmul.f32 %v10543, %v10542
        %v10545 = vmul.f32 %v10544, %v10543
        %v10546 = vmul.f32 0.5, %v10545
        %v10547 = vsub.f32 1.5, %v10546
        %v10548 = vmul.f32 %v10543, %v10547
        %vm10549 = vweird.f32 %v10542
        %vm10550 = vweird.f32 %v10543
        %vm10551 = vmor %vm10549, %vm10550
        %v10552 = vsel %vm10551, %v10543, %v10548
        %v10553 = vld [vmem:[#allocation2] sm:$0xff]
        %v10554 = vld [vmem:[#allocation2 + $0x8] sm:$0xff]
        %v10555 = vld [vmem:[#allocation2 + $0x10] sm:$0xff]
        %v10556 = vld [vmem:[#allocation2 + $0x18] sm:$0xff]
        %v10557 = vld [vmem:[#allocation2 + $0x20] sm:$0xff]
        %v10558 = vld [vmem:[#allocation2 + $0x28] sm:$0xff]
        %v10559 = vld [vmem:[#allocation2 + $0x30] sm:$0xff]
        %v10560 = vld [vmem:[#allocation2 + $0x38] sm:$0xff]
        %v10561 = vld [vmem:[#allocation2 + $0x40] sm:$0xff]
        %v10562 = vld [vmem:[#allocation2 + $0x48] sm:$0xff]
        %v10563 = vld [vmem:[#allocation2 + $0x50] sm:$0xff]
        %v10564 = vld [vmem:[#allocation2 + $0x58] sm:$0xff]
        %v10565 = vld [vmem:[#allocation2 + $0x60] sm:$0xff]
        %v10566 = vld [vmem:[#allocation2 + $0x68] sm:$0xff]
        %v10567 = vld [vmem:[#allocation2 + $0x70] sm:$0xff]
        %v10568 = vld [vmem:[#allocation2 + $0x78] sm:$0xff]
        %v10569 = vld [vmem:[#allocation2 + $0x80] sm:$0xff]
        %v10570 = vld [vmem:[#allocation2 + $0x88] sm:$0xff]
        %v10571 = vld [vmem:[#allocation2 + $0x90] sm:$0xff]
        %v10572 = vld [vmem:[#allocation2 + $0x98] sm:$0xff]
        %v10573 = vld [vmem:[#allocation2 + $0xa0] sm:$0xff]
        %v10574 = vld [vmem:[#allocation2 + $0xa8] sm:$0xff]
        %v10575 = vld [vmem:[#allocation2 + $0xb0] sm:$0xff]
        %v10576 = vld [vmem:[#allocation2 + $0xb8] sm:$0xff]
        %v10577 = vld [vmem:[#allocation2 + $0xc0] sm:$0xff]
        %v10578 = vld [vmem:[#allocation2 + $0xc8] sm:$0xff]
        %v10579 = vld [vmem:[#allocation2 + $0xd0] sm:$0xff]
        %v10580 = vld [vmem:[#allocation2 + $0xd8] sm:$0xff]
        %v10581 = vld [vmem:[#allocation2 + $0xe0] sm:$0xff]
        %v10582 = vld [vmem:[#allocation2 + $0xe8] sm:$0xff]
        %v10583 = vld [vmem:[#allocation2 + $0xf0] sm:$0xff]
        %v10584 = vld [vmem:[#allocation2 + $0xf8] sm:$0xff]
        %v10585 = vld [vmem:[#allocation2 + $0x100] sm:$0xff]
        %v10586 = vld [vmem:[#allocation2 + $0x108] sm:$0xff]
        %v10587 = vld [vmem:[#allocation2 + $0x110] sm:$0xff]
        %v10588 = vld [vmem:[#allocation2 + $0x118] sm:$0xff]
        %v10589 = vld [vmem:[#allocation2 + $0x120] sm:$0xff]
        %v10590 = vld [vmem:[#allocation2 + $0x128] sm:$0xff]
        %v10591 = vld [vmem:[#allocation2 + $0x130] sm:$0xff]
        %v10592 = vld [vmem:[#allocation2 + $0x138] sm:$0xff]
        %v10593 = vld [vmem:[#allocation2 + $0x140] sm:$0xff]
        %v10594 = vld [vmem:[#allocation2 + $0x148] sm:$0xff]
        %v10595 = vld [vmem:[#allocation2 + $0x150] sm:$0xff]
        %v10596 = vld [vmem:[#allocation2 + $0x158] sm:$0xff]
        %v10597 = vld [vmem:[#allocation2 + $0x160] sm:$0xff]
        %v10598 = vld [vmem:[#allocation2 + $0x168] sm:$0xff]
        %v10599 = vld [vmem:[#allocation2 + $0x170] sm:$0xff]
        %v10600 = vld [vmem:[#allocation2 + $0x178] sm:$0xff]
        %v10601 = vsub.f32 %v10553, %v10537
        %v10602 = vsub.f32 %v10554, %v10537
        %v10603 = vsub.f32 %v10555, %v10537
        %v10604 = vsub.f32 %v10556, %v10537
        %v10605 = vsub.f32 %v10557, %v10537
        %v10606 = vsub.f32 %v10558, %v10537
        %v10607 = vsub.f32 %v10559, %v10537
        %v10608 = vsub.f32 %v10560, %v10537
        %v10609 = vsub.f32 %v10561, %v10537
        %v10610 = vsub.f32 %v10562, %v10537
        %v10611 = vsub.f32 %v10563, %v10537
        %v10612 = vsub.f32 %v10564, %v10537
        %v10613 = vsub.f32 %v10565, %v10537
        %v10614 = vsub.f32 %v10566, %v10537
        %v10615 = vsub.f32 %v10567, %v10537
        %v10616 = vsub.f32 %v10568, %v10537
        %v10617 = vsub.f32 %v10569, %v10537
        %v10618 = vsub.f32 %v10570, %v10537
        %v10619 = vsub.f32 %v10571, %v10537
        %v10620 = vsub.f32 %v10572, %v10537
        %v10621 = vsub.f32 %v10573, %v10537
        %v10622 = vsub.f32 %v10574, %v10537
        %v10623 = vsub.f32 %v10575, %v10537
        %v10624 = vsub.f32 %v10576, %v10537
        %v10625 = vsub.f32 %v10577, %v10537
        %v10626 = vsub.f32 %v10578, %v10537
        %v10627 = vsub.f32 %v10579, %v10537
        %v10628 = vsub.f32 %v10580, %v10537
        %v10629 = vsub.f32 %v10581, %v10537
        %v10630 = vsub.f32 %v10582, %v10537
        %v10631 = vsub.f32 %v10583, %v10537
        %v10632 = vsub.f32 %v10584, %v10537
        %v10633 = vsub.f32 %v10585, %v10537
        %v10634 = vsub.f32 %v10586, %v10537
        %v10635 = vsub.f32 %v10587, %v10537
        %v10636 = vsub.f32 %v10588, %v10537
        %v10637 = vsub.f32 %v10589, %v10537
        %v10638 = vsub.f32 %v10590, %v10537
        %v10639 = vsub.f32 %v10591, %v10537
        %v10640 = vsub.f32 %v10592, %v10537
        %v10641 = vsub.f32 %v10593, %v10537
        %v10642 = vsub.f32 %v10594, %v10537
        %v10643 = vsub.f32 %v10595, %v10537
        %v10644 = vsub.f32 %v10596, %v10537
        %v10645 = vsub.f32 %v10597, %v10537
        %v10646 = vsub.f32 %v10598, %v10537
        %v10647 = vsub.f32 %v10599, %v10537
        %v10648 = vsub.f32 %v10600, %v10537
        %v10649 = vmul.f32 %v10601, %v10552
        %v10650 = vmul.f32 %v10602, %v10552
        %v10651 = vmul.f32 %v10603, %v10552
        %v10652 = vmul.f32 %v10604, %v10552
        %v10653 = vmul.f32 %v10605, %v10552
        %v10654 = vmul.f32 %v10606, %v10552
        %v10655 = vmul.f32 %v10607, %v10552
        %v10656 = vmul.f32 %v10608, %v10552
        %v10657 = vmul.f32 %v10609, %v10552
        %v10658 = vmul.f32 %v10610, %v10552
        %v10659 = vmul.f32 %v10611, %v10552
        %v10660 = vmul.f32 %v10612, %v10552
        %v10661 = vmul.f32 %v10613, %v10552
        %v10662 = vmul.f32 %v10614, %v10552
        %v10663 = vmul.f32 %v10615, %v10552
        %v10664 = vmul.f32 %v10616, %v10552
        %v10665 = vmul.f32 %v10617, %v10552
        %v10666 = vmul.f32 %v10618, %v10552
        %v10667 = vmul.f32 %v10619, %v10552
        %v10668 = vmul.f32 %v10620, %v10552
        %v10669 = vmul.f32 %v10621, %v10552
        %v10670 = vmul.f32 %v10622, %v10552
        %v10671 = vmul.f32 %v10623, %v10552
        %v10672 = vmul.f32 %v10624, %v10552
        %v10673 = vmul.f32 %v10625, %v10552
        %v10674 = vmul.f32 %v10626, %v10552
        %v10675 = vmul.f32 %v10627, %v10552
        %v10676 = vmul.f32 %v10628, %v10552
        %v10677 = vmul.f32 %v10629, %v10552
        %v10678 = vmul.f32 %v10630, %v10552
        %v10679 = vmul.f32 %v10631, %v10552
        %v10680 = vmul.f32 %v10632, %v10552
        %v10681 = vmul.f32 %v10633, %v10552
        %v10682 = vmul.f32 %v10634, %v10552
        %v10683 = vmul.f32 %v10635, %v10552
        %v10684 = vmul.f32 %v10636, %v10552
        %v10685 = vmul.f32 %v10637, %v10552
        %v10686 = vmul.f32 %v10638, %v10552
        %v10687 = vmul.f32 %v10639, %v10552
        %v10688 = vmul.f32 %v10640, %v10552
        %v10689 = vmul.f32 %v10641, %v10552
        %v10690 = vmul.f32 %v10642, %v10552
        %v10691 = vmul.f32 %v10643, %v10552
        %v10692 = vmul.f32 %v10644, %v10552
        %v10693 = vmul.f32 %v10645, %v10552
        %v10694 = vmul.f32 %v10646, %v10552
        %v10695 = vmul.f32 %v10647, %v10552
        %v10696 = vmul.f32 %v10648, %v10552
        %v10697 = vld [vmem:[%s190 + $0x19] sm:$0xff]
        %v10698 = vld [vmem:[%s190 + $0x21] sm:$0xff]
        %v10699 = vld [vmem:[%s190 + $0x29] sm:$0xff]
        %v10700 = vld [vmem:[%s190 + $0x31] sm:$0xff]
        %v10701 = vld [vmem:[%s190 + $0x39] sm:$0xff]
        %v10702 = vld [vmem:[%s190 + $0x41] sm:$0xff]
        %v10703 = vld [vmem:[%s190 + $0x49] sm:$0xff]
        %v10704 = vld [vmem:[%s190 + $0x51] sm:$0xff]
        %v10705 = vld [vmem:[%s190 + $0x59] sm:$0xff]
        %v10706 = vld [vmem:[%s190 + $0x61] sm:$0xff]
        %v10707 = vld [vmem:[%s190 + $0x69] sm:$0xff]
        %v10708 = vld [vmem:[%s190 + $0x71] sm:$0xff]
        %v10709 = vld [vmem:[%s190 + $0x79] sm:$0xff]
        %v10710 = vld [vmem:[%s190 + $0x81] sm:$0xff]
        %v10711 = vld [vmem:[%s190 + $0x89] sm:$0xff]
        %v10712 = vld [vmem:[%s190 + $0x91] sm:$0xff]
        %v10713 = vld [vmem:[%s190 + $0x99] sm:$0xff]
        %v10714 = vld [vmem:[%s190 + $0xa1] sm:$0xff]
        %v10715 = vld [vmem:[%s190 + $0xa9] sm:$0xff]
        %v10716 = vld [vmem:[%s190 + $0xb1] sm:$0xff]
        %v10717 = vld [vmem:[%s190 + $0xb9] sm:$0xff]
        %v10718 = vld [vmem:[%s190 + $0xc1] sm:$0xff]
        %v10719 = vld [vmem:[%s190 + $0xc9] sm:$0xff]
        %v10720 = vld [vmem:[%s190 + $0xd1] sm:$0xff]
        %v10721 = vld [vmem:[%s190 + $0xd9] sm:$0xff]
        %v10722 = vld [vmem:[%s190 + $0xe1] sm:$0xff]
        %v10723 = vld [vmem:[%s190 + $0xe9] sm:$0xff]
        %v10724 = vld [vmem:[%s190 + $0xf1] sm:$0xff]
        %v10725 = vld [vmem:[%s190 + $0xf9] sm:$0xff]
        %v10726 = vld [vmem:[%s190 + $0x101] sm:$0xff]
        %v10727 = vld [vmem:[%s190 + $0x109] sm:$0xff]
        %v10728 = vld [vmem:[%s190 + $0x111] sm:$0xff]
        %v10729 = vld [vmem:[%s190 + $0x119] sm:$0xff]
        %v10730 = vld [vmem:[%s190 + $0x121] sm:$0xff]
        %v10731 = vld [vmem:[%s190 + $0x129] sm:$0xff]
        %v10732 = vld [vmem:[%s190 + $0x131] sm:$0xff]
        %v10733 = vld [vmem:[%s190 + $0x139] sm:$0xff]
        %v10734 = vld [vmem:[%s190 + $0x141] sm:$0xff]
        %v10735 = vld [vmem:[%s190 + $0x149] sm:$0xff]
        %v10736 = vld [vmem:[%s190 + $0x151] sm:$0xff]
        %v10737 = vld [vmem:[%s190 + $0x159] sm:$0xff]
        %v10738 = vld [vmem:[%s190 + $0x161] sm:$0xff]
        %v10739 = vld [vmem:[%s190 + $0x169] sm:$0xff]
        %v10740 = vld [vmem:[%s190 + $0x171] sm:$0xff]
        %v10741 = vld [vmem:[%s190 + $0x179] sm:$0xff]
        %v10742 = vld [vmem:[%s190 + $0x181] sm:$0xff]
        %v10743 = vld [vmem:[%s190 + $0x189] sm:$0xff]
        %v10744 = vld [vmem:[%s190 + $0x191] sm:$0xff]
        %v10745 = vadd.f32 %v10697, %v10649
        %v10746 = vadd.f32 %v10698, %v10650
        %v10747 = vadd.f32 %v10699, %v10651
        %v10748 = vadd.f32 %v10700, %v10652
        %v10749 = vadd.f32 %v10701, %v10653
        %v10750 = vadd.f32 %v10702, %v10654
        %v10751 = vadd.f32 %v10703, %v10655
        %v10752 = vadd.f32 %v10704, %v10656
        %v10753 = vadd.f32 %v10705, %v10657
        %v10754 = vadd.f32 %v10706, %v10658
        %v10755 = vadd.f32 %v10707, %v10659
        %v10756 = vadd.f32 %v10708, %v10660
        %v10757 = vadd.f32 %v10709, %v10661
        %v10758 = vadd.f32 %v10710, %v10662
        %v10759 = vadd.f32 %v10711, %v10663
        %v10760 = vadd.f32 %v10712, %v10664
        %v10761 = vadd.f32 %v10713, %v10665
        %v10762 = vadd.f32 %v10714, %v10666
        %v10763 = vadd.f32 %v10715, %v10667
        %v10764 = vadd.f32 %v10716, %v10668
        %v10765 = vadd.f32 %v10717, %v10669
        %v10766 = vadd.f32 %v10718, %v10670
        %v10767 = vadd.f32 %v10719, %v10671
        %v10768 = vadd.f32 %v10720, %v10672
        %v10769 = vadd.f32 %v10721, %v10673
        %v10770 = vadd.f32 %v10722, %v10674
        %v10771 = vadd.f32 %v10723, %v10675
        %v10772 = vadd.f32 %v10724, %v10676
        %v10773 = vadd.f32 %v10725, %v10677
        %v10774 = vadd.f32 %v10726, %v10678
        %v10775 = vadd.f32 %v10727, %v10679
        %v10776 = vadd.f32 %v10728, %v10680
        %v10777 = vadd.f32 %v10729, %v10681
        %v10778 = vadd.f32 %v10730, %v10682
        %v10779 = vadd.f32 %v10731, %v10683
        %v10780 = vadd.f32 %v10732, %v10684
        %v10781 = vadd.f32 %v10733, %v10685
        %v10782 = vadd.f32 %v10734, %v10686
        %v10783 = vadd.f32 %v10735, %v10687
        %v10784 = vadd.f32 %v10736, %v10688
        %v10785 = vadd.f32 %v10737, %v10689
        %v10786 = vadd.f32 %v10738, %v10690
        %v10787 = vadd.f32 %v10739, %v10691
        %v10788 = vadd.f32 %v10740, %v10692
        %v10789 = vadd.f32 %v10741, %v10693
        %v10790 = vadd.f32 %v10742, %v10694
        %v10791 = vadd.f32 %v10743, %v10695
        %v10792 = vadd.f32 %v10744, %v10696
        %10793 = vst [vmem:[%s223] sm:$0xff] %v10745
        %10794 = vst [vmem:[%s223 + $0x8] sm:$0xff] %v10746
        %10795 = vst [vmem:[%s223 + $0x10] sm:$0xff] %v10747
        %10796 = vst [vmem:[%s223 + $0x18] sm:$0xff] %v10748
        %10797 = vst [vmem:[%s223 + $0x20] sm:$0xff] %v10749
        %10798 = vst [vmem:[%s223 + $0x28] sm:$0xff] %v10750
        %10799 = vst [vmem:[%s223 + $0x30] sm:$0xff] %v10751
        %10800 = vst [vmem:[%s223 + $0x38] sm:$0xff] %v10752
        %10801 = vst [vmem:[%s223 + $0x40] sm:$0xff] %v10753
        %10802 = vst [vmem:[%s223 + $0x48] sm:$0xff] %v10754
        %10803 = vst [vmem:[%s223 + $0x50] sm:$0xff] %v10755
        %10804 = vst [vmem:[%s223 + $0x58] sm:$0xff] %v10756
        %10805 = vst [vmem:[%s223 + $0x60] sm:$0xff] %v10757
        %10806 = vst [vmem:[%s223 + $0x68] sm:$0xff] %v10758
        %10807 = vst [vmem:[%s223 + $0x70] sm:$0xff] %v10759
        %10808 = vst [vmem:[%s223 + $0x78] sm:$0xff] %v10760
        %10809 = vst [vmem:[%s223 + $0x80] sm:$0xff] %v10761
        %10810 = vst [vmem:[%s223 + $0x88] sm:$0xff] %v10762
        %10811 = vst [vmem:[%s223 + $0x90] sm:$0xff] %v10763
        %10812 = vst [vmem:[%s223 + $0x98] sm:$0xff] %v10764
        %10813 = vst [vmem:[%s223 + $0xa0] sm:$0xff] %v10765
        %10814 = vst [vmem:[%s223 + $0xa8] sm:$0xff] %v10766
        %10815 = vst [vmem:[%s223 + $0xb0] sm:$0xff] %v10767
        %10816 = vst [vmem:[%s223 + $0xb8] sm:$0xff] %v10768
        %10817 = vst [vmem:[%s223 + $0xc0] sm:$0xff] %v10769
        %10818 = vst [vmem:[%s223 + $0xc8] sm:$0xff] %v10770
        %10819 = vst [vmem:[%s223 + $0xd0] sm:$0xff] %v10771
        %10820 = vst [vmem:[%s223 + $0xd8] sm:$0xff] %v10772
        %10821 = vst [vmem:[%s223 + $0xe0] sm:$0xff] %v10773
        %10822 = vst [vmem:[%s223 + $0xe8] sm:$0xff] %v10774
        %10823 = vst [vmem:[%s223 + $0xf0] sm:$0xff] %v10775
        %10824 = vst [vmem:[%s223 + $0xf8] sm:$0xff] %v10776
        %10825 = vst [vmem:[%s223 + $0x100] sm:$0xff] %v10777
        %10826 = vst [vmem:[%s223 + $0x108] sm:$0xff] %v10778
        %10827 = vst [vmem:[%s223 + $0x110] sm:$0xff] %v10779
        %10828 = vst [vmem:[%s223 + $0x118] sm:$0xff] %v10780
        %10829 = vst [vmem:[%s223 + $0x120] sm:$0xff] %v10781
        %10830 = vst [vmem:[%s223 + $0x128] sm:$0xff] %v10782
        %10831 = vst [vmem:[%s223 + $0x130] sm:$0xff] %v10783
        %10832 = vst [vmem:[%s223 + $0x138] sm:$0xff] %v10784
        %10833 = vst [vmem:[%s223 + $0x140] sm:$0xff] %v10785
        %10834 = vst [vmem:[%s223 + $0x148] sm:$0xff] %v10786
        %10835 = vst [vmem:[%s223 + $0x150] sm:$0xff] %v10787
        %10836 = vst [vmem:[%s223 + $0x158] sm:$0xff] %v10788
        %10837 = vst [vmem:[%s223 + $0x160] sm:$0xff] %v10789
        %10838 = vst [vmem:[%s223 + $0x168] sm:$0xff] %v10790
        %10839 = vst [vmem:[%s223 + $0x170] sm:$0xff] %v10791
        %10840 = vst [vmem:[%s223 + $0x178] sm:$0xff] %v10792
        %s10841 = sand.u32 %s97, 1
        %s10842 = scalar_lea.sflag [#allocation6], %s10841
        %s10843 = sand.u32 %s97, 1
        %s10844 = smul.addr %s10843, 384
        %s10845 = scalar_lea.vmem [#allocation10], %s10844
        // Predicated region
        $region45: #{tpu_custom_call.1} parent=31 // pred_check
          %p10846 = pneg %p107
        $region46: #{tpu_custom_call.1} parent=31 // pred_check_branch
          %10848 = sbr.rel (%p10846) target = $region48
        $region47: #{tpu_custom_call.1} parent=31 // pred_region
          %10850 = vsyncadd %s10842, 0
          %s10851 = smul.addr %s21, 48
          %s10852 = smul.addr %s10851, 8
          %s10853 = scalar_lea.hbm %s3, %s10852
          %s10854 = sshll.u32 %s10845, 4
          %s10855 = int_to_ptr.vmem [resolvable:$true] %s10854
          %s10856 = sshll.u32 %s10853, 4
          %s10857 = int_to_ptr.hbm [resolvable:$true] %s10856
          %10862 = dma.vmem_to_hbm [thread:$0]  %s10855, 6144, %s10857, %s10842, 128, 128, 8
        $region48: #{tpu_custom_call.1} parent=31 // pred_fallthru
          _
      $region32: #{tpu_custom_call.1} parent=5 // pred_fallthru
        _
      %p10863 = scmp.le.s32.totalorder 2, %s16
      // Predicated region
      $region49: #{tpu_custom_call.1} parent=5 // pred_check
        %p10864 = pneg %p10863
      $region50: #{tpu_custom_call.1} parent=5 // pred_check_branch
        %10866 = sbr.rel (%p10864) target = $region52
      $region51: #{tpu_custom_call.1} parent=5 // pred_region
        %s10867 = ssub.s32 %s16, 2
        // Predicated region
        $region53: #{tpu_custom_call.1} parent=51 // pred_check
          %p10868 = pneg %p113
        $region54: #{tpu_custom_call.1} parent=51 // pred_check_branch
          %10870 = sbr.rel (%p10868) target = $region56
        $region55: #{tpu_custom_call.1} parent=51 // pred_region
          %s10871 = sand.u32 %s98, 1
          %s10872 = scalar_lea.sflag [#allocation6], %s10871
          %s10873 = sand.u32 %s98, 1
          %s10874 = smul.addr %s10873, 384
          %s10875 = scalar_lea.vmem [#allocation10], %s10874
          %10877 = dma.done %s10872, 6144
        $region56: #{tpu_custom_call.1} parent=51 // pred_fallthru
          _
      $region52: #{tpu_custom_call.1} parent=5 // pred_fallthru
        _
    $region6: #{tpu_custom_call.1} parent=1 // loop_footer
      %s20 = sadd.s32 1, %s16
    $region7: #{tpu_custom_call.1} parent=1 // loop_footer_branch
      %15 = sbr.rel target = $region3
    $region8: #{tpu_custom_call.1} parent=1 // loop_exit
      _
    %10878 = vsyncpa [#allocation5], 1
    %s10879 = scalar_lea.sflag [#allocation5], 1
    %10880 = vsyncpa %s10879, 1
    %10881 = vsyncpa [#allocation8], 1
    %10882 = vsyncpa [#allocation6], 1
    %s10883 = scalar_lea.sflag [#allocation6], 1
    %10884 = vsyncpa %s10883, 1

</llo_original>
